<compile_context>
chip_gen: v5e
topology: v5e:2x2
jax: 0.10.0
libtpu: 0.0.40
codegen_flags: <defaults>
</compile_context>

<pallas_src>
import jax
import jax.numpy as jnp
import numpy as np
from jax.experimental import pallas as pl
from jax.experimental.pallas import tpu as pltpu


def _round_up(x, m):
    return ((x + m - 1) // m) * m


def _leaky_relu(x, slope=0.2):
    return jnp.where(x > 0, x, slope * x)


def discriminator_kernel(x_ref,
                         w1_ref, b1_ref,
                         w2_ref, b2_ref,
                         w3_ref, b3_ref,
                         w4_ref, b4_ref,
                         o_ref):
    """One batch tile of the MLP forward. Weights are VMEM-resident across grid steps."""
    x = x_ref[...]                                                             # [TB, Dp] bf16

    # Linear(Dp, 1024) + LeakyReLU(0.2)   (Dropout -> identity at inference)
    h = jnp.dot(x, w1_ref[...], preferred_element_type=jnp.float32) + b1_ref[...]
    h = _leaky_relu(h)

    # Linear(1024, 512) + LeakyReLU(0.2)
    h = jnp.dot(h.astype(jnp.bfloat16), w2_ref[...],
                preferred_element_type=jnp.float32) + b2_ref[...]
    h = _leaky_relu(h)

    # Linear(512, 256) + LeakyReLU(0.2)
    h = jnp.dot(h.astype(jnp.bfloat16), w3_ref[...],
                preferred_element_type=jnp.float32) + b3_ref[...]
    h = _leaky_relu(h)

    # Linear(256, 1): output width 1 is MXU-unfriendly -> VPU multiply + lane reduction (XLU).
    # w4_ref is [1, 256] f32; b4 scalar lives in SMEM.
    logit = jnp.sum(h * w4_ref[...], axis=-1, keepdims=True) + b4_ref[0, 0]    # [TB, 1] f32

    # Sigmoid: divide goes to the (otherwise idle) EUP slot.
    o_ref[...] = pl.reciprocal(1.0 + jnp.exp(-logit), approx=True)


def discriminator_forward(x, params, *, tb=128):
    """x: [B, image_dim] float32. params: dict from init_params (bf16 weights, f32 biases).

    tb: batch tile. 128 is safe everywhere; raise to 256-512 on v5e/v6e (128 MiB VMEM) for
    larger batches, keep <=256 on v7x's 64 MiB VMEM unless vmem_limit_bytes is raised.
    """
    B, D = x.shape
    Dp = params["w1"].shape[0]                     # feature dim padded to a multiple of 128
    if D != Dp:
        x = jnp.pad(x, ((0, 0), (0, Dp - D)))
    Bp = _round_up(B, tb)
    if Bp != B:
        x = jnp.pad(x, ((0, Bp - B), (0, 0)))
    x = x.astype(jnp.bfloat16)

    grid = (Bp // tb,)
    const = lambda i: (0, 0)                       # resident blocks: same tile every step

    in_specs = [
        pl.BlockSpec((tb, Dp), lambda i: (i, 0)),          # x: one batch tile per grid step
        pl.BlockSpec((Dp, 1024), const),                   # w1 (bf16, resident)
        pl.BlockSpec((1, 1024), const),                    # b1
        pl.BlockSpec((1024, 512), const),                  # w2
        pl.BlockSpec((1, 512), const),                     # b2
        pl.BlockSpec((512, 256), const),                   # w3
        pl.BlockSpec((1, 256), const),                     # b3
        pl.BlockSpec((1, 256), const),                     # w4 (f32, VPU path)
        pl.BlockSpec(memory_space=pltpu.MemorySpace.SMEM),  # b4 scalar
    ]
    out_specs = pl.BlockSpec((tb, 1), lambda i: (i, 0))

    flops = 2 * Bp * (Dp * 1024 + 1024 * 512 + 512 * 256 + 256)
    w_bytes = 2 * (Dp * 1024 + 1024 * 512 + 512 * 256) + 4 * (1024 + 512 + 256 + 256 + 1)
    cost = pl.CostEstimate(
        flops=flops,
        transcendentals=Bp,
        bytes_accessed=Bp * Dp * 2 + w_bytes + Bp * 4,
    )

    out = pl.pallas_call(
        discriminator_kernel,
        out_shape=jax.ShapeDtypeStruct((Bp, 1), jnp.float32),
        grid_spec=pltpu.PrefetchScalarGridSpec(
            num_scalar_prefetch=0,
            grid=grid,
            in_specs=in_specs,
            out_specs=out_specs,
        ),
        compiler_params=pltpu.CompilerParams(
            dimension_semantics=("parallel",),          # megacore: split batch tiles over TCs
        ),
        cost_estimate=cost,
    )(x,
      params["w1"], params["b1"],
      params["w2"], params["b2"],
      params["w3"], params["b3"],
      params["w4"], params["b4"])
    return out[:B]


def init_params(key, image_dim):
    """PyTorch nn.Linear-style init U(-1/sqrt(fan_in), 1/sqrt(fan_in)).

    Weights of the three big layers are stored bf16 (MXU native); the first layer's input dim is
    zero-padded to a multiple of 128. Last layer kept f32 as [1, 256] for the VPU reduction path.
    """
    Dp = _round_up(image_dim, 128)
    dims = [(image_dim, 1024), (1024, 512), (512, 256), (256, 1)]
    params = {}
    keys = jax.random.split(key, 2 * len(dims))
    for i, (fan_in, fan_out) in enumerate(dims):
        bound = 1.0 / np.sqrt(fan_in)
        w = jax.random.uniform(keys[2 * i], (fan_in, fan_out), jnp.float32, -bound, bound)
        b = jax.random.uniform(keys[2 * i + 1], (1, fan_out), jnp.float32, -bound, bound)
        if i == 0 and Dp != fan_in:
            w = jnp.pad(w, ((0, Dp - fan_in), (0, 0)))       # zero rows for padded features
        if fan_out == 1:
            params[f"w{i+1}"] = w.T                          # [1, 256] f32
            params[f"b{i+1}"] = b                            # [1, 1]  f32 (SMEM)
        else:
            params[f"w{i+1}"] = w.astype(jnp.bfloat16)       # [in, out] bf16
            params[f"b{i+1}"] = b                            # [1, out] f32
    return params


def reference_forward(x, params):
    """Pure-JAX reference with the same bf16-input / f32-accumulate numerics as the kernel."""
    Dp = params["w1"].shape[0]
    x = jnp.pad(x, ((0, 0), (0, Dp - x.shape[1]))).astype(jnp.bfloat16)
    h = _leaky_relu(jnp.dot(x, params["w1"], preferred_element_type=jnp.float32) + params["b1"])
    h = _leaky_relu(jnp.dot(h.astype(jnp.bfloat16), params["w2"],
                            preferred_element_type=jnp.float32) + params["b2"])
    h = _leaky_relu(jnp.dot(h.astype(jnp.bfloat16), params["w3"],
                            preferred_element_type=jnp.float32) + params["b3"])
    logit = jnp.sum(h * params["w4"], axis=-1, keepdims=True) + params["b4"]
    return jax.nn.sigmoid(logit)


if __name__ == "__main__":
    key = jax.random.PRNGKey(0)
    k_x, k_p = jax.random.split(key)

    batch = 200            # non-multiple of the tile -> exercises batch padding
    image_dim = 784        # flattened 28x28 image (MNIST-like) -> padded to 896 internally
    x = jax.random.normal(k_x, (batch, image_dim), dtype=jnp.float32)
    params = init_params(k_p, image_dim)

    out = discriminator_forward(x, params, tb=128)
    out = jax.block_until_ready(out)

    ref = jax.block_until_ready(reference_forward(x, params))
    assert out.shape == (batch, 1)
    np.testing.assert_allclose(np.asarray(out), np.asarray(ref), rtol=5e-3, atol=5e-3)

    print("KERNEL_OK")
</pallas_src>

<mosaic_0001>
module attributes {stable_mosaic.version = 11 : i64} {
  func.func @discriminator_kernel(%arg0: i32, %arg1: memref<128x896xbf16, #tpu.memory_space<vmem>>, %arg2: memref<896x1024xbf16, #tpu.memory_space<vmem>>, %arg3: memref<1x1024xf32, #tpu.memory_space<vmem>>, %arg4: memref<1024x512xbf16, #tpu.memory_space<vmem>>, %arg5: memref<1x512xf32, #tpu.memory_space<vmem>>, %arg6: memref<512x256xbf16, #tpu.memory_space<vmem>>, %arg7: memref<1x256xf32, #tpu.memory_space<vmem>>, %arg8: memref<1x256xf32, #tpu.memory_space<vmem>>, %arg9: memref<1x1xf32, #tpu.memory_space<smem>>, %arg10: memref<128x1xf32, #tpu.memory_space<vmem>>) attributes {dimension_semantics = [#tpu.dimension_semantics<parallel>], iteration_bounds = array<i64: 2>, scalar_prefetch = 0 : i64, scratch_operands = 0 : i64, tpu.core_type = #tpu.core_type<tc>, window_params = [{transform_indices = @transform_0, window_bounds = array<i64: 128, 896>}, {pipeline_mode = #tpu.pipeline_mode<synchronous>, transform_indices = @transform_1, window_bounds = array<i64: 896, 1024>}, {pipeline_mode = #tpu.pipeline_mode<synchronous>, transform_indices = @transform_2, window_bounds = array<i64: 1, 1024>}, {pipeline_mode = #tpu.pipeline_mode<synchronous>, transform_indices = @transform_3, window_bounds = array<i64: 1024, 512>}, {pipeline_mode = #tpu.pipeline_mode<synchronous>, transform_indices = @transform_4, window_bounds = array<i64: 1, 512>}, {pipeline_mode = #tpu.pipeline_mode<synchronous>, transform_indices = @transform_5, window_bounds = array<i64: 512, 256>}, {pipeline_mode = #tpu.pipeline_mode<synchronous>, transform_indices = @transform_6, window_bounds = array<i64: 1, 256>}, {pipeline_mode = #tpu.pipeline_mode<synchronous>, transform_indices = @transform_7, window_bounds = array<i64: 1, 256>}, {transform_indices = @transform_8, window_bounds = array<i64: 1, 1>}, {transform_indices = @transform_9, window_bounds = array<i64: 128, 1>}]} {
    %c0 = arith.constant 0 : index
    %c0_0 = arith.constant 0 : index
    %0 = vector.load %arg1[%c0, %c0_0] : memref<128x896xbf16, #tpu.memory_space<vmem>>, vector<128x896xbf16>
    %c0_1 = arith.constant 0 : index
    %c0_2 = arith.constant 0 : index
    %1 = vector.load %arg2[%c0_1, %c0_2] : memref<896x1024xbf16, #tpu.memory_space<vmem>>, vector<896x1024xbf16>
    %cst = arith.constant dense<0.000000e+00> : vector<128x1024xf32>
    %2 = tpu.matmul %0, %1, %cst {dimension_numbers = #tpu.dot_dimension_numbers<[1], [0], [0], [1], [0, 0, 1, 1], [], []>} : vector<128x896xbf16>, vector<896x1024xbf16>, vector<128x1024xf32> -> vector<128x1024xf32>
    %c0_3 = arith.constant 0 : index
    %c0_4 = arith.constant 0 : index
    %3 = vector.load %arg3[%c0_3, %c0_4] : memref<1x1024xf32, #tpu.memory_space<vmem>>, vector<1x1024xf32>
    %4 = vector.broadcast %3 : vector<1x1024xf32> to vector<128x1024xf32>
    %5 = arith.addf %2, %4 : vector<128x1024xf32>
    %cst_5 = arith.constant 0.000000e+00 : f32
    %6 = vector.broadcast %cst_5 : f32 to vector<128x1024xf32>
    %7 = arith.cmpf ogt, %5, %6 : vector<128x1024xf32>
    %cst_6 = arith.constant 2.000000e-01 : f32
    %8 = vector.broadcast %cst_6 : f32 to vector<128x1024xf32>
    %9 = arith.mulf %8, %5 : vector<128x1024xf32>
    %10 = arith.select %7, %5, %9 : vector<128x1024xi1>, vector<128x1024xf32>
    %11 = arith.truncf %10 : vector<128x1024xf32> to vector<128x1024xbf16>
    %c0_7 = arith.constant 0 : index
    %c0_8 = arith.constant 0 : index
    %12 = vector.load %arg4[%c0_7, %c0_8] : memref<1024x512xbf16, #tpu.memory_space<vmem>>, vector<1024x512xbf16>
    %cst_9 = arith.constant dense<0.000000e+00> : vector<128x512xf32>
    %13 = tpu.matmul %11, %12, %cst_9 {dimension_numbers = #tpu.dot_dimension_numbers<[1], [0], [0], [1], [0, 0, 1, 1], [], []>} : vector<128x1024xbf16>, vector<1024x512xbf16>, vector<128x512xf32> -> vector<128x512xf32>
    %c0_10 = arith.constant 0 : index
    %c0_11 = arith.constant 0 : index
    %14 = vector.load %arg5[%c0_10, %c0_11] : memref<1x512xf32, #tpu.memory_space<vmem>>, vector<1x512xf32>
    %15 = vector.broadcast %14 : vector<1x512xf32> to vector<128x512xf32>
    %16 = arith.addf %13, %15 : vector<128x512xf32>
    %cst_12 = arith.constant 0.000000e+00 : f32
    %17 = vector.broadcast %cst_12 : f32 to vector<128x512xf32>
    %18 = arith.cmpf ogt, %16, %17 : vector<128x512xf32>
    %cst_13 = arith.constant 2.000000e-01 : f32
    %19 = vector.broadcast %cst_13 : f32 to vector<128x512xf32>
    %20 = arith.mulf %19, %16 : vector<128x512xf32>
    %21 = arith.select %18, %16, %20 : vector<128x512xi1>, vector<128x512xf32>
    %22 = arith.truncf %21 : vector<128x512xf32> to vector<128x512xbf16>
    %c0_14 = arith.constant 0 : index
    %c0_15 = arith.constant 0 : index
    %23 = vector.load %arg6[%c0_14, %c0_15] : memref<512x256xbf16, #tpu.memory_space<vmem>>, vector<512x256xbf16>
    %cst_16 = arith.constant dense<0.000000e+00> : vector<128x256xf32>
    %24 = tpu.matmul %22, %23, %cst_16 {dimension_numbers = #tpu.dot_dimension_numbers<[1], [0], [0], [1], [0, 0, 1, 1], [], []>} : vector<128x512xbf16>, vector<512x256xbf16>, vector<128x256xf32> -> vector<128x256xf32>
    %c0_17 = arith.constant 0 : index
    %c0_18 = arith.constant 0 : index
    %25 = vector.load %arg7[%c0_17, %c0_18] : memref<1x256xf32, #tpu.memory_space<vmem>>, vector<1x256xf32>
    %26 = vector.broadcast %25 : vector<1x256xf32> to vector<128x256xf32>
    %27 = arith.addf %24, %26 : vector<128x256xf32>
    %cst_19 = arith.constant 0.000000e+00 : f32
    %28 = vector.broadcast %cst_19 : f32 to vector<128x256xf32>
    %29 = arith.cmpf ogt, %27, %28 : vector<128x256xf32>
    %cst_20 = arith.constant 2.000000e-01 : f32
    %30 = vector.broadcast %cst_20 : f32 to vector<128x256xf32>
    %31 = arith.mulf %30, %27 : vector<128x256xf32>
    %32 = arith.select %29, %27, %31 : vector<128x256xi1>, vector<128x256xf32>
    %c0_21 = arith.constant 0 : index
    %c0_22 = arith.constant 0 : index
    %33 = vector.load %arg8[%c0_21, %c0_22] : memref<1x256xf32, #tpu.memory_space<vmem>>, vector<1x256xf32>
    %34 = vector.broadcast %33 : vector<1x256xf32> to vector<128x256xf32>
    %35 = arith.mulf %32, %34 : vector<128x256xf32>
    %cst_23 = arith.constant dense<0.000000e+00> : vector<128xf32>
    %36 = vector.multi_reduction <add>, %35, %cst_23 [1] : vector<128x256xf32> to vector<128xf32>
    %37 = vector.shape_cast %36 : vector<128xf32> to vector<128x1xf32>
    %c0_24 = arith.constant 0 : index
    %c0_25 = arith.constant 0 : index
    %38 = memref.load %arg9[%c0_24, %c0_25] : memref<1x1xf32, #tpu.memory_space<smem>>
    %39 = vector.broadcast %38 : f32 to vector<128x1xf32>
    %40 = arith.addf %37, %39 : vector<128x1xf32>
    %cst_26 = arith.constant 0.000000e+00 : f32
    %41 = vector.broadcast %cst_26 : f32 to vector<128x1xf32>
    %42 = arith.subf %41, %40 : vector<128x1xf32>
    %43 = math.exp %42 : vector<128x1xf32>
    %cst_27 = arith.constant 1.000000e+00 : f32
    %44 = vector.broadcast %cst_27 : f32 to vector<128x1xf32>
    %45 = arith.addf %44, %43 : vector<128x1xf32>
    %46 = tpu.reciprocal %45 {approx = true} : vector<128x1xf32> -> vector<128x1xf32>
    %c0_28 = arith.constant 0 : index
    %c0_29 = arith.constant 0 : index
    %47 = vector.load %arg10[%c0_28, %c0_29] : memref<128x1xf32, #tpu.memory_space<vmem>>, vector<128x1xf32>
    tpu.vector_store %arg10[%c0_28, %c0_29], %46 {strides = array<i32>} : memref<128x1xf32, #tpu.memory_space<vmem>>, vector<128x1xf32>,
    return
  }
  func.func @transform_0(%arg0: i32) -> (i32, i32) {
    %c0_i32 = arith.constant 0 : i32
    %c0_i32_0 = arith.constant 0 : i32
    return %arg0, %c0_i32 : i32, i32
  }
  func.func @transform_1(%arg0: i32) -> (i32, i32) {
    %c0_i32 = arith.constant 0 : i32
    %c0_i32_0 = arith.constant 0 : i32
    %c0_i32_1 = arith.constant 0 : i32
    return %c0_i32, %c0_i32_0 : i32, i32
  }
  func.func @transform_2(%arg0: i32) -> (i32, i32) {
    %c0_i32 = arith.constant 0 : i32
    %c0_i32_0 = arith.constant 0 : i32
    %c0_i32_1 = arith.constant 0 : i32
    return %c0_i32, %c0_i32_0 : i32, i32
  }
  func.func @transform_3(%arg0: i32) -> (i32, i32) {
    %c0_i32 = arith.constant 0 : i32
    %c0_i32_0 = arith.constant 0 : i32
    %c0_i32_1 = arith.constant 0 : i32
    return %c0_i32, %c0_i32_0 : i32, i32
  }
  func.func @transform_4(%arg0: i32) -> (i32, i32) {
    %c0_i32 = arith.constant 0 : i32
    %c0_i32_0 = arith.constant 0 : i32
    %c0_i32_1 = arith.constant 0 : i32
    return %c0_i32, %c0_i32_0 : i32, i32
  }
  func.func @transform_5(%arg0: i32) -> (i32, i32) {
    %c0_i32 = arith.constant 0 : i32
    %c0_i32_0 = arith.constant 0 : i32
    %c0_i32_1 = arith.constant 0 : i32
    return %c0_i32, %c0_i32_0 : i32, i32
  }
  func.func @transform_6(%arg0: i32) -> (i32, i32) {
    %c0_i32 = arith.constant 0 : i32
    %c0_i32_0 = arith.constant 0 : i32
    %c0_i32_1 = arith.constant 0 : i32
    return %c0_i32, %c0_i32_0 : i32, i32
  }
  func.func @transform_7(%arg0: i32) -> (i32, i32) {
    %c0_i32 = arith.constant 0 : i32
    %c0_i32_0 = arith.constant 0 : i32
    %c0_i32_1 = arith.constant 0 : i32
    return %c0_i32, %c0_i32_0 : i32, i32
  }
  func.func @transform_8(%arg0: i32) -> (i32, i32) {
    %c0_i32 = arith.constant 0 : i32
    %c0_i32_0 = arith.constant 0 : i32
    %c0_i32_1 = arith.constant 0 : i32
    return %c0_i32, %c0_i32_0 : i32, i32
  }
  func.func @transform_9(%arg0: i32) -> (i32, i32) {
    %c0_i32 = arith.constant 0 : i32
    %c0_i32_0 = arith.constant 0 : i32
    return %arg0, %c0_i32 : i32, i32
  }
}

</mosaic_0001>

<llo_original>
// kernel: tpu_custom_call.1
$region0: #{tpu_custom_call.1}
  #allocation0 [shape = 'u32[]', space=smem, size = 0x4, offset = 0x4, fixed_abs, tag = 'smem constant byte address 0x4 - core index']
  #allocation1 [shape = 'u32[72,128]{1,0:T(1,128)}', space=vmem, size = 0x9000, scoped, tag = 'internal scratch']
  #allocation2 [shape = 'f32[1,1]{1,0:T(1,128)S(6)}', space=smem, size = 0x200, scoped, tag = 'scoped memory for tpu_custom_call.1']
  %s0 = inlined_call_operand.hbm [shape: bf16[256,896], index: 0, kind: input, shape index: {}]
  %s1 = inlined_call_operand.hbm [shape: bf16[896,1024], index: 1, kind: input, shape index: {}]
  %s2 = inlined_call_operand.hbm [shape: f32[1,1024], index: 2, kind: input, shape index: {}]
  %s3 = inlined_call_operand.hbm [shape: bf16[1024,512], index: 3, kind: input, shape index: {}]
  %s4 = inlined_call_operand.hbm [shape: f32[1,512], index: 4, kind: input, shape index: {}]
  %s5 = inlined_call_operand.hbm [shape: bf16[512,256], index: 5, kind: input, shape index: {}]
  %s6 = inlined_call_operand.hbm [shape: f32[1,256], index: 6, kind: input, shape index: {}]
  %s7 = inlined_call_operand.hbm [shape: f32[1,256], index: 7, kind: input, shape index: {}]
  %s8 = inlined_call_operand.<no memory space> [shape: f32[1,1], index: 8, kind: input, shape index: {}]
  %s9 = inlined_call_operand.vmem [shape: f32[256,1], index: 9, kind: output, shape index: {}]
  %s10 = sld [smem:[#allocation0]]
  $region101: #{tpu_custom_call.1} parent=0
    _
  %s12 = ssub.s32 1, %s10
  %s13 = scalar_select 0, %s12, %s10
  %14 = sst [smem:[#allocation2]] %s8
  $region1: #{tpu_custom_call.1} parent=0
    #allocation3 [shape = 'u8[458752]{0}', space=vmem, size = 0x70000, scoped, tag = 'input window, operand 0']
    #allocation4 [shape = 's32[2]{0}', space=sflag, size = 0x8, scoped, tag = 'scoped memory for tpu_custom_call.1']
    #allocation5 [shape = 'u8[1835008]{0}', space=vmem, size = 0x1c0000, scoped, tag = 'input window, operand 1, single buffered']
    #allocation6 [shape = 's32[1]{0}', space=sflag, size = 0x4, scoped, tag = 'scoped memory for tpu_custom_call.1']
    #allocation7 [shape = 'u8[4096]{0}', space=vmem, size = 0x1000, scoped, tag = 'input window, operand 2, single buffered']
    #allocation8 [shape = 'u8[1048576]{0}', space=vmem, size = 0x100000, scoped, tag = 'input window, operand 3, single buffered']
    #allocation9 [shape = 's32[1]{0}', space=sflag, size = 0x4, scoped, tag = 'scoped memory for tpu_custom_call.1']
    #allocation10 [shape = 'u8[2048]{0}', space=vmem, size = 0x800, scoped, tag = 'input window, operand 4, single buffered']
    #allocation11 [shape = 'u8[262144]{0}', space=vmem, size = 0x40000, scoped, tag = 'input window, operand 5, single buffered']
    #allocation12 [shape = 's32[1]{0}', space=sflag, size = 0x4, scoped, tag = 'scoped memory for tpu_custom_call.1']
    #allocation13 [shape = 'u8[1024]{0}', space=vmem, size = 0x400, scoped, tag = 'input window, operand 6, single buffered']
    #allocation14 [shape = 'u8[1024]{0}', space=vmem, size = 0x400, scoped, tag = 'input window, operand 7, single buffered']
    #allocation15 [shape = 's32[1]{0}', space=sflag, size = 0x4, scoped, tag = 'scoped memory for tpu_custom_call.1']
    %15 = vsyncpa [#allocation4], 0
    %s16 = scalar_lea.sflag [#allocation4], 1
    %17 = vsyncpa %s16, 0
    %18 = vsyncpa [#allocation6], 0
    %19 = vsyncpa [#allocation9], 0
    %20 = vsyncpa [#allocation12], 0
    %21 = vsyncpa [#allocation15], 0
    loop: start=0, step=1, limit=4
    $region2: #{tpu_custom_call.1} parent=1 // loop_pre_header
      _
    $region3: #{tpu_custom_call.1} parent=1 // loop_header
      %s23 = sphi 0, %s27
      %p24 = scmp.ge.s32.totalorder %s23, 4
      %s33 = sphi 0, %s35
      %s36 = sphi 0, %s33
      %s37 = sphi 0, %s36
      %s53 = sphi 0, %s37
      %s57 = sphi 0, %s57
      %s59 = sphi 0, %s57
      %s60 = sphi 0, %s59
      %s74 = sphi 0, %s60
      %s78 = sphi 0, %s78
      %s80 = sphi 0, %s78
      %s81 = sphi 0, %s80
      %s95 = sphi 0, %s81
      %s99 = sphi 0, %s99
      %s101 = sphi 0, %s99
      %s102 = sphi 0, %s101
      %s116 = sphi 0, %s102
      %s120 = sphi 0, %s120
      %s122 = sphi 0, %s120
      %s123 = sphi 0, %s122
      %s137 = sphi 0, %s123
      %s141 = sphi 0, %s141
      %s143 = sphi 0, %s141
      %s144 = sphi 0, %s143
      %s158 = sphi 0, %s144
      %s162 = sphi 0, %s162
      %s164 = sphi 0, %s162
      %s165 = sphi 0, %s164
      %s179 = sphi 0, %s165
      %s183 = sphi 0, %s183
      %s185 = sphi 0, %s183
      %s186 = sphi 0, %s185
      %s200 = sphi 0, %s186
      %s204 = sphi 0, %s204
      %s206 = sphi 0, %s204
      %s207 = sphi 0, %s206
      %s221 = sphi 0, %s207
      %s227 = sphi 0, %s229
      %s230 = sphi 0, %s227
      %s231 = sphi 0, %s230
      %s247 = sphi 0, %s231
    $region4: #{tpu_custom_call.1} parent=1 // loop_header_branch
      %26 = sbr.rel (%p24) target = $region8
    $region5: #{tpu_custom_call.1} parent=1 // loop_body
      %s28 = ssub.s32 %s23, 1
      %s29 = ssub.s32 %s23, 2
      %s30 = sadd.s32 %s23, 1
      %s31 = ssub.s32 %s23, %s30
      %p32 = scmp.eq.s32.totalorder %s31, 0
      %s34 = sadd.s32 %s33, 1
      %s35 = scalar_select %p32, %s33, %s34
      %p38 = pneg %p32
      %p39 = scmp.eq.s32.totalorder %s23, 1
      %p40 = por %p38, %p39
      %p41 = scmp.ne.s32.totalorder %s33, %s36
      %p42 = scmp.eq.s32.totalorder %s23, 0
      %p43 = por %p41, %p42
      %p44 = scmp.ne.s32.totalorder %s33, %s36
      %p45 = scmp.eq.s32.totalorder %s28, 1
      %p46 = por %p44, %p45
      %p47 = scmp.ne.s32.totalorder %s36, %s37
      %p48 = scmp.eq.s32.totalorder %s28, 0
      %p49 = por %p47, %p48
      %p50 = scmp.ne.s32.totalorder %s36, %s37
      %p51 = scmp.eq.s32.totalorder %s29, 1
      %p52 = por %p50, %p51
      %p54 = scmp.ne.s32.totalorder %s37, %s53
      %p55 = scmp.eq.s32.totalorder %s29, 0
      %p56 = por %p54, %p55
      %s58 = sadd.s32 %s57, 1
      %p61 = scmp.eq.s32.totalorder %s23, 1
      %p62 = scmp.ne.s32.totalorder %s57, %s59
      %p63 = scmp.eq.s32.totalorder %s23, 0
      %p64 = por %p62, %p63
      %p65 = scmp.ne.s32.totalorder %s57, %s59
      %p66 = scmp.eq.s32.totalorder %s28, 1
      %p67 = por %p65, %p66
      %p68 = scmp.ne.s32.totalorder %s59, %s60
      %p69 = scmp.eq.s32.totalorder %s28, 0
      %p70 = por %p68, %p69
      %p71 = scmp.ne.s32.totalorder %s59, %s60
      %p72 = scmp.eq.s32.totalorder %s29, 1
      %p73 = por %p71, %p72
      %p75 = scmp.ne.s32.totalorder %s60, %s74
      %p76 = scmp.eq.s32.totalorder %s29, 0
      %p77 = por %p75, %p76
      %s79 = sadd.s32 %s78, 1
      %p82 = scmp.eq.s32.totalorder %s23, 1
      %p83 = scmp.ne.s32.totalorder %s78, %s80
      %p84 = scmp.eq.s32.totalorder %s23, 0
      %p85 = por %p83, %p84
      %p86 = scmp.ne.s32.totalorder %s78, %s80
      %p87 = scmp.eq.s32.totalorder %s28, 1
      %p88 = por %p86, %p87
      %p89 = scmp.ne.s32.totalorder %s80, %s81
      %p90 = scmp.eq.s32.totalorder %s28, 0
      %p91 = por %p89, %p90
      %p92 = scmp.ne.s32.totalorder %s80, %s81
      %p93 = scmp.eq.s32.totalorder %s29, 1
      %p94 = por %p92, %p93
      %p96 = scmp.ne.s32.totalorder %s81, %s95
      %p97 = scmp.eq.s32.totalorder %s29, 0
      %p98 = por %p96, %p97
      %s100 = sadd.s32 %s99, 1
      %p103 = scmp.eq.s32.totalorder %s23, 1
      %p104 = scmp.ne.s32.totalorder %s99, %s101
      %p105 = scmp.eq.s32.totalorder %s23, 0
      %p106 = por %p104, %p105
      %p107 = scmp.ne.s32.totalorder %s99, %s101
      %p108 = scmp.eq.s32.totalorder %s28, 1
      %p109 = por %p107, %p108
      %p110 = scmp.ne.s32.totalorder %s101, %s102
      %p111 = scmp.eq.s32.totalorder %s28, 0
      %p112 = por %p110, %p111
      %p113 = scmp.ne.s32.totalorder %s101, %s102
      %p114 = scmp.eq.s32.totalorder %s29, 1
      %p115 = por %p113, %p114
      %p117 = scmp.ne.s32.totalorder %s102, %s116
      %p118 = scmp.eq.s32.totalorder %s29, 0
      %p119 = por %p117, %p118
      %s121 = sadd.s32 %s120, 1
      %p124 = scmp.eq.s32.totalorder %s23, 1
      %p125 = scmp.ne.s32.totalorder %s120, %s122
      %p126 = scmp.eq.s32.totalorder %s23, 0
      %p127 = por %p125, %p126
      %p128 = scmp.ne.s32.totalorder %s120, %s122
      %p129 = scmp.eq.s32.totalorder %s28, 1
      %p130 = por %p128, %p129
      %p131 = scmp.ne.s32.totalorder %s122, %s123
      %p132 = scmp.eq.s32.totalorder %s28, 0
      %p133 = por %p131, %p132
      %p134 = scmp.ne.s32.totalorder %s122, %s123
      %p135 = scmp.eq.s32.totalorder %s29, 1
      %p136 = por %p134, %p135
      %p138 = scmp.ne.s32.totalorder %s123, %s137
      %p139 = scmp.eq.s32.totalorder %s29, 0
      %p140 = por %p138, %p139
      %s142 = sadd.s32 %s141, 1
      %p145 = scmp.eq.s32.totalorder %s23, 1
      %p146 = scmp.ne.s32.totalorder %s141, %s143
      %p147 = scmp.eq.s32.totalorder %s23, 0
      %p148 = por %p146, %p147
      %p149 = scmp.ne.s32.totalorder %s141, %s143
      %p150 = scmp.eq.s32.totalorder %s28, 1
      %p151 = por %p149, %p150
      %p152 = scmp.ne.s32.totalorder %s143, %s144
      %p153 = scmp.eq.s32.totalorder %s28, 0
      %p154 = por %p152, %p153
      %p155 = scmp.ne.s32.totalorder %s143, %s144
      %p156 = scmp.eq.s32.totalorder %s29, 1
      %p157 = por %p155, %p156
      %p159 = scmp.ne.s32.totalorder %s144, %s158
      %p160 = scmp.eq.s32.totalorder %s29, 0
      %p161 = por %p159, %p160
      %s163 = sadd.s32 %s162, 1
      %p166 = scmp.eq.s32.totalorder %s23, 1
      %p167 = scmp.ne.s32.totalorder %s162, %s164
      %p168 = scmp.eq.s32.totalorder %s23, 0
      %p169 = por %p167, %p168
      %p170 = scmp.ne.s32.totalorder %s162, %s164
      %p171 = scmp.eq.s32.totalorder %s28, 1
      %p172 = por %p170, %p171
      %p173 = scmp.ne.s32.totalorder %s164, %s165
      %p174 = scmp.eq.s32.totalorder %s28, 0
      %p175 = por %p173, %p174
      %p176 = scmp.ne.s32.totalorder %s164, %s165
      %p177 = scmp.eq.s32.totalorder %s29, 1
      %p178 = por %p176, %p177
      %p180 = scmp.ne.s32.totalorder %s165, %s179
      %p181 = scmp.eq.s32.totalorder %s29, 0
      %p182 = por %p180, %p181
      %s184 = sadd.s32 %s183, 1
      %p187 = scmp.eq.s32.totalorder %s23, 1
      %p188 = scmp.ne.s32.totalorder %s183, %s185
      %p189 = scmp.eq.s32.totalorder %s23, 0
      %p190 = por %p188, %p189
      %p191 = scmp.ne.s32.totalorder %s183, %s185
      %p192 = scmp.eq.s32.totalorder %s28, 1
      %p193 = por %p191, %p192
      %p194 = scmp.ne.s32.totalorder %s185, %s186
      %p195 = scmp.eq.s32.totalorder %s28, 0
      %p196 = por %p194, %p195
      %p197 = scmp.ne.s32.totalorder %s185, %s186
      %p198 = scmp.eq.s32.totalorder %s29, 1
      %p199 = por %p197, %p198
      %p201 = scmp.ne.s32.totalorder %s186, %s200
      %p202 = scmp.eq.s32.totalorder %s29, 0
      %p203 = por %p201, %p202
      %s205 = sadd.s32 %s204, 1
      %p208 = scmp.eq.s32.totalorder %s23, 1
      %p209 = scmp.ne.s32.totalorder %s204, %s206
      %p210 = scmp.eq.s32.totalorder %s23, 0
      %p211 = por %p209, %p210
      %p212 = scmp.ne.s32.totalorder %s204, %s206
      %p213 = scmp.eq.s32.totalorder %s28, 1
      %p214 = por %p212, %p213
      %p215 = scmp.ne.s32.totalorder %s206, %s207
      %p216 = scmp.eq.s32.totalorder %s28, 0
      %p217 = por %p215, %p216
      %p218 = scmp.ne.s32.totalorder %s206, %s207
      %p219 = scmp.eq.s32.totalorder %s29, 1
      %p220 = por %p218, %p219
      %p222 = scmp.ne.s32.totalorder %s207, %s221
      %p223 = scmp.eq.s32.totalorder %s29, 0
      %p224 = por %p222, %p223
      %s225 = ssub.s32 %s23, %s30
      %p226 = scmp.eq.s32.totalorder %s225, 0
      %s228 = sadd.s32 %s227, 1
      %s229 = scalar_select %p226, %s227, %s228
      %p232 = pneg %p226
      %p233 = scmp.eq.s32.totalorder %s23, 1
      %p234 = por %p232, %p233
      %p235 = scmp.ne.s32.totalorder %s227, %s230
      %p236 = scmp.eq.s32.totalorder %s23, 0
      %p237 = por %p235, %p236
      %p238 = scmp.ne.s32.totalorder %s227, %s230
      %p239 = scmp.eq.s32.totalorder %s28, 1
      %p240 = por %p238, %p239
      %p241 = scmp.ne.s32.totalorder %s230, %s231
      %p242 = scmp.eq.s32.totalorder %s28, 0
      %p243 = por %p241, %p242
      %p244 = scmp.ne.s32.totalorder %s230, %s231
      %p245 = scmp.eq.s32.totalorder %s29, 1
      %p246 = por %p244, %p245
      %p248 = scmp.ne.s32.totalorder %s231, %s247
      %p249 = scmp.eq.s32.totalorder %s29, 0
      %p250 = por %p248, %p249
      %p251 = scmp.le.s32.totalorder 1, %s23
      %p252 = scmp.lt.s32.totalorder %s23, 3
      %p253 = pnand %p251, %p252
      %p254 = pneg %p253
      // Predicated region
      $region9: #{tpu_custom_call.1} parent=5 // pred_check
        _
      $region10: #{tpu_custom_call.1} parent=5 // pred_check_branch
        %256 = sbr.rel (%p253) target = $region12
      $region11: #{tpu_custom_call.1} parent=5 // pred_region
        %s257 = ssub.s32 %s23, 1
        // Predicated region
        $region13: #{tpu_custom_call.1} parent=11 // pred_check
          %p258 = pneg %p70
        $region14: #{tpu_custom_call.1} parent=11 // pred_check_branch
          %260 = sbr.rel (%p258) target = $region16
        $region15: #{tpu_custom_call.1} parent=11 // pred_region
          %262 = vsyncadd [#allocation6], 0
          %s263 = sshll.u32 %s1, 4
          %s264 = int_to_ptr.hbm [resolvable:$true] %s263
          %s265 = sshll.u32 [#allocation5], 4
          %s266 = int_to_ptr.vmem [resolvable:$true] %s265
          %271 = dma.hbm_to_vmem [thread:$0]  %s264, 57344, %s266, [#allocation6], 512, 512, 32
        $region16: #{tpu_custom_call.1} parent=11 // pred_fallthru
          _
        // Predicated region
        $region17: #{tpu_custom_call.1} parent=11 // pred_check
          %p272 = pneg %p91
        $region18: #{tpu_custom_call.1} parent=11 // pred_check_branch
          %274 = sbr.rel (%p272) target = $region20
        $region19: #{tpu_custom_call.1} parent=11 // pred_region
          %276 = vsyncadd [#allocation6], 0
          %s278 = sshll.u32 %s2, 4
          %s279 = int_to_ptr.hbm [resolvable:$true] %s278
          %s280 = sshll.u32 [#allocation7], 4
          %s281 = int_to_ptr.vmem [resolvable:$true] %s280
          %283 = dma.hbm_to_vmem [thread:$0]  %s279, 128, %s281, [#allocation6]
        $region20: #{tpu_custom_call.1} parent=11 // pred_fallthru
          _
        // Predicated region
        $region21: #{tpu_custom_call.1} parent=11 // pred_check
          %p284 = pneg %p112
        $region22: #{tpu_custom_call.1} parent=11 // pred_check_branch
          %286 = sbr.rel (%p284) target = $region24
        $region23: #{tpu_custom_call.1} parent=11 // pred_region
          %288 = vsyncadd [#allocation9], 0
          %s289 = sshll.u32 %s3, 4
          %s290 = int_to_ptr.hbm [resolvable:$true] %s289
          %s291 = sshll.u32 [#allocation8], 4
          %s292 = int_to_ptr.vmem [resolvable:$true] %s291
          %297 = dma.hbm_to_vmem [thread:$0]  %s290, 32768, %s292, [#allocation9], 256, 256, 16
        $region24: #{tpu_custom_call.1} parent=11 // pred_fallthru
          _
        // Predicated region
        $region25: #{tpu_custom_call.1} parent=11 // pred_check
          %p298 = pneg %p133
        $region26: #{tpu_custom_call.1} parent=11 // pred_check_branch
          %300 = sbr.rel (%p298) target = $region28
        $region27: #{tpu_custom_call.1} parent=11 // pred_region
          %302 = vsyncadd [#allocation9], 0
          %s304 = sshll.u32 %s4, 4
          %s305 = int_to_ptr.hbm [resolvable:$true] %s304
          %s306 = sshll.u32 [#allocation10], 4
          %s307 = int_to_ptr.vmem [resolvable:$true] %s306
          %309 = dma.hbm_to_vmem [thread:$0]  %s305, 64, %s307, [#allocation9]
        $region28: #{tpu_custom_call.1} parent=11 // pred_fallthru
          _
        // Predicated region
        $region29: #{tpu_custom_call.1} parent=11 // pred_check
          %p310 = pneg %p154
        $region30: #{tpu_custom_call.1} parent=11 // pred_check_branch
          %312 = sbr.rel (%p310) target = $region32
        $region31: #{tpu_custom_call.1} parent=11 // pred_region
          %314 = vsyncadd [#allocation12], 0
          %s315 = sshll.u32 %s5, 4
          %s316 = int_to_ptr.hbm [resolvable:$true] %s315
          %s317 = sshll.u32 [#allocation11], 4
          %s318 = int_to_ptr.vmem [resolvable:$true] %s317
          %323 = dma.hbm_to_vmem [thread:$0]  %s316, 8192, %s318, [#allocation12], 128, 128, 8
        $region32: #{tpu_custom_call.1} parent=11 // pred_fallthru
          _
        // Predicated region
        $region33: #{tpu_custom_call.1} parent=11 // pred_check
          %p324 = pneg %p175
        $region34: #{tpu_custom_call.1} parent=11 // pred_check_branch
          %326 = sbr.rel (%p324) target = $region36
        $region35: #{tpu_custom_call.1} parent=11 // pred_region
          %328 = vsyncadd [#allocation12], 0
          %s330 = sshll.u32 %s6, 4
          %s331 = int_to_ptr.hbm [resolvable:$true] %s330
          %s332 = sshll.u32 [#allocation13], 4
          %s333 = int_to_ptr.vmem [resolvable:$true] %s332
          %335 = dma.hbm_to_vmem [thread:$0]  %s331, 32, %s333, [#allocation12]
        $region36: #{tpu_custom_call.1} parent=11 // pred_fallthru
          _
        // Predicated region
        $region37: #{tpu_custom_call.1} parent=11 // pred_check
          %p336 = pneg %p196
        $region38: #{tpu_custom_call.1} parent=11 // pred_check_branch
          %338 = sbr.rel (%p336) target = $region40
        $region39: #{tpu_custom_call.1} parent=11 // pred_region
          %340 = vsyncadd [#allocation15], 0
          %s342 = sshll.u32 %s7, 4
          %s343 = int_to_ptr.hbm [resolvable:$true] %s342
          %s344 = sshll.u32 [#allocation14], 4
          %s345 = int_to_ptr.vmem [resolvable:$true] %s344
          %347 = dma.hbm_to_vmem [thread:$0]  %s343, 32, %s345, [#allocation15]
        $region40: #{tpu_custom_call.1} parent=11 // pred_fallthru
          _
        // Predicated region
        $region41: #{tpu_custom_call.1} parent=11 // pred_check
          %p348 = pneg %p217
        $region42: #{tpu_custom_call.1} parent=11 // pred_check_branch
          %350 = sbr.rel (%p348) target = $region44
        $region43: #{tpu_custom_call.1} parent=11 // pred_region
          _
        $region44: #{tpu_custom_call.1} parent=11 // pred_fallthru
          _
      $region12: #{tpu_custom_call.1} parent=5 // pred_fallthru
        _
      %p351 = scmp.lt.s32.totalorder %s23, 2
      // Predicated region
      $region45: #{tpu_custom_call.1} parent=5 // pred_check
        %p352 = pneg %p351
      $region46: #{tpu_custom_call.1} parent=5 // pred_check_branch
        %354 = sbr.rel (%p352) target = $region48
      $region47: #{tpu_custom_call.1} parent=5 // pred_region
        // Predicated region
        $region49: #{tpu_custom_call.1} parent=47 // pred_check
          %p355 = pneg %p43
        $region50: #{tpu_custom_call.1} parent=47 // pred_check_branch
          %357 = sbr.rel (%p355) target = $region52
        $region51: #{tpu_custom_call.1} parent=47 // pred_region
          %s358 = sand.u32 %s33, 1
          %s359 = scalar_lea.sflag [#allocation4], %s358
          %s360 = sand.u32 %s33, 1
          %s361 = smul.addr %s360, 448
          %s362 = scalar_lea.vmem [#allocation3], %s361
          %s363 = smul.u32 16, %s23
          %365 = vsyncadd %s359, 0
          %s366 = smul.addr %s363, 7
          %s367 = smul.addr %s366, 4
          %s368 = scalar_lea.hbm %s0, %s367
          %s369 = sshll.u32 %s368, 4
          %s370 = int_to_ptr.hbm [resolvable:$true] %s369
          %s371 = sshll.u32 %s362, 4
          %s372 = int_to_ptr.vmem [resolvable:$true] %s371
          %377 = dma.hbm_to_vmem [thread:$0]  %s370, 7168, %s372, %s359, 448, 448, 28
        $region52: #{tpu_custom_call.1} parent=47 // pred_fallthru
          _
      $region48: #{tpu_custom_call.1} parent=5 // pred_fallthru
        _
      %p378 = scmp.le.s32.totalorder 1, %s23
      %p379 = scmp.lt.s32.totalorder %s23, 3
      %p380 = pnand %p378, %p379
      %p381 = pneg %p380
      // Predicated region
      $region53: #{tpu_custom_call.1} parent=5 // pred_check
        _
      $region54: #{tpu_custom_call.1} parent=5 // pred_check_branch
        %383 = sbr.rel (%p380) target = $region56
      $region55: #{tpu_custom_call.1} parent=5 // pred_region
        %s384 = ssub.s32 %s23, 1
        %s385 = sand.u32 %s36, 1
        %s386 = scalar_lea.sflag [#allocation4], %s385
        %s387 = sand.u32 %s36, 1
        %s388 = smul.addr %s387, 448
        %s389 = scalar_lea.vmem [#allocation3], %s388
        // Predicated region
        $region57: #{tpu_custom_call.1} parent=55 // pred_check
          %p390 = pneg %p49
        $region58: #{tpu_custom_call.1} parent=55 // pred_check_branch
          %392 = sbr.rel (%p390) target = $region60
        $region59: #{tpu_custom_call.1} parent=55 // pred_region
          %394 = dma.done %s386, 7168
        $region60: #{tpu_custom_call.1} parent=55 // pred_fallthru
          _
        // Predicated region
        $region61: #{tpu_custom_call.1} parent=55 // pred_check
          %p395 = pneg %p70
        $region62: #{tpu_custom_call.1} parent=55 // pred_check_branch
          %397 = sbr.rel (%p395) target = $region64
        $region63: #{tpu_custom_call.1} parent=55 // pred_region
          %399 = dma.done [#allocation6], 57344
        $region64: #{tpu_custom_call.1} parent=55 // pred_fallthru
          _
        // Predicated region
        $region65: #{tpu_custom_call.1} parent=55 // pred_check
          %p400 = pneg %p91
        $region66: #{tpu_custom_call.1} parent=55 // pred_check_branch
          %402 = sbr.rel (%p400) target = $region68
        $region67: #{tpu_custom_call.1} parent=55 // pred_region
          %404 = dma.done [#allocation6], 128
        $region68: #{tpu_custom_call.1} parent=55 // pred_fallthru
          _
        // Predicated region
        $region69: #{tpu_custom_call.1} parent=55 // pred_check
          %p405 = pneg %p112
        $region70: #{tpu_custom_call.1} parent=55 // pred_check_branch
          %407 = sbr.rel (%p405) target = $region72
        $region71: #{tpu_custom_call.1} parent=55 // pred_region
          %409 = dma.done [#allocation9], 32768
        $region72: #{tpu_custom_call.1} parent=55 // pred_fallthru
          _
        // Predicated region
        $region73: #{tpu_custom_call.1} parent=55 // pred_check
          %p410 = pneg %p133
        $region74: #{tpu_custom_call.1} parent=55 // pred_check_branch
          %412 = sbr.rel (%p410) target = $region76
        $region75: #{tpu_custom_call.1} parent=55 // pred_region
          %414 = dma.done [#allocation9], 64
        $region76: #{tpu_custom_call.1} parent=55 // pred_fallthru
          _
        // Predicated region
        $region77: #{tpu_custom_call.1} parent=55 // pred_check
          %p415 = pneg %p154
        $region78: #{tpu_custom_call.1} parent=55 // pred_check_branch
          %417 = sbr.rel (%p415) target = $region80
        $region79: #{tpu_custom_call.1} parent=55 // pred_region
          %419 = dma.done [#allocation12], 8192
        $region80: #{tpu_custom_call.1} parent=55 // pred_fallthru
          _
        // Predicated region
        $region81: #{tpu_custom_call.1} parent=55 // pred_check
          %p420 = pneg %p175
        $region82: #{tpu_custom_call.1} parent=55 // pred_check_branch
          %422 = sbr.rel (%p420) target = $region84
        $region83: #{tpu_custom_call.1} parent=55 // pred_region
          %424 = dma.done [#allocation12], 32
        $region84: #{tpu_custom_call.1} parent=55 // pred_fallthru
          _
        // Predicated region
        $region85: #{tpu_custom_call.1} parent=55 // pred_check
          %p425 = pneg %p196
        $region86: #{tpu_custom_call.1} parent=55 // pred_check_branch
          %427 = sbr.rel (%p425) target = $region88
        $region87: #{tpu_custom_call.1} parent=55 // pred_region
          %429 = dma.done [#allocation15], 32
        $region88: #{tpu_custom_call.1} parent=55 // pred_fallthru
          _
        %s430 = sand.u32 %s36, 1
        %s431 = scalar_lea.sflag [#allocation4], %s430
        %s432 = sand.u32 %s36, 1
        %s433 = smul.addr %s432, 448
        %s434 = scalar_lea.vmem [#allocation3], %s433
        %p435 = pneg %p49
        %p436 = pneg %p46
        %p437 = pneg %p70
        %p438 = pneg %p67
        %p439 = pneg %p91
        %p440 = pneg %p88
        %p441 = pneg %p112
        %p442 = pneg %p109
        %p443 = pneg %p133
        %p444 = pneg %p130
        %p445 = pneg %p154
        %p446 = pneg %p151
        %p447 = pneg %p175
        %p448 = pneg %p172
        %p449 = pneg %p196
        %p450 = pneg %p193
        %p451 = pneg %p217
        %p452 = pneg %p214
        %p453 = pneg %p243
        %p454 = pneg %p240
        %s455 = smul.u32 16, %s28
        %p456 = scmp.lt.s32.totalorder %s455, 31
        %s457 = scalar_select %p456, %s455, 31
        %s458 = smul.addr %s457, 8
        %s459 = scalar_lea.vmem %s9, %s458
        %s460 = smul.u32 16, %s28
        %s461 = smul.u32 16, %s28
        %p462 = scmp.lt.s32.totalorder %s461, 31
        %s463 = scalar_select %p462, %s461, 31
        %s464 = smul.addr %s463, 8
        %s465 = scalar_lea.vmem %s9, %s464
        %s466 = smul.u32 16, %s28
        %v467 = vld [vmem:[%s389] sm:$0xff]
        %v468 = vld [vmem:[%s389 + $0x8] sm:$0xff]
        %v469 = vld [vmem:[%s389 + $0x10] sm:$0xff]
        %v470 = vld [vmem:[%s389 + $0x18] sm:$0xf]
        %v471 = vld [vmem:[%s389 + $0x1c] sm:$0xff]
        %v472 = vld [vmem:[%s389 + $0x24] sm:$0xff]
        %v473 = vld [vmem:[%s389 + $0x2c] sm:$0xff]
        %v474 = vld [vmem:[%s389 + $0x34] sm:$0xf]
        %v475 = vld [vmem:[%s389 + $0x38] sm:$0xff]
        %v476 = vld [vmem:[%s389 + $0x40] sm:$0xff]
        %v477 = vld [vmem:[%s389 + $0x48] sm:$0xff]
        %v478 = vld [vmem:[%s389 + $0x50] sm:$0xf]
        %v479 = vld [vmem:[%s389 + $0x54] sm:$0xff]
        %v480 = vld [vmem:[%s389 + $0x5c] sm:$0xff]
        %v481 = vld [vmem:[%s389 + $0x64] sm:$0xff]
        %v482 = vld [vmem:[%s389 + $0x6c] sm:$0xf]
        %v483 = vld [vmem:[%s389 + $0x70] sm:$0xff]
        %v484 = vld [vmem:[%s389 + $0x78] sm:$0xff]
        %v485 = vld [vmem:[%s389 + $0x80] sm:$0xff]
        %v486 = vld [vmem:[%s389 + $0x88] sm:$0xf]
        %v487 = vld [vmem:[%s389 + $0x8c] sm:$0xff]
        %v488 = vld [vmem:[%s389 + $0x94] sm:$0xff]
        %v489 = vld [vmem:[%s389 + $0x9c] sm:$0xff]
        %v490 = vld [vmem:[%s389 + $0xa4] sm:$0xf]
        %v491 = vld [vmem:[%s389 + $0xa8] sm:$0xff]
        %v492 = vld [vmem:[%s389 + $0xb0] sm:$0xff]
        %v493 = vld [vmem:[%s389 + $0xb8] sm:$0xff]
        %v494 = vld [vmem:[%s389 + $0xc0] sm:$0xf]
        %v495 = vld [vmem:[%s389 + $0xc4] sm:$0xff]
        %v496 = vld [vmem:[%s389 + $0xcc] sm:$0xff]
        %v497 = vld [vmem:[%s389 + $0xd4] sm:$0xff]
        %v498 = vld [vmem:[%s389 + $0xdc] sm:$0xf]
        %v499 = vld [vmem:[%s389 + $0xe0] sm:$0xff]
        %v500 = vld [vmem:[%s389 + $0xe8] sm:$0xff]
        %v501 = vld [vmem:[%s389 + $0xf0] sm:$0xff]
        %v502 = vld [vmem:[%s389 + $0xf8] sm:$0xf]
        %v503 = vld [vmem:[%s389 + $0xfc] sm:$0xff]
        %v504 = vld [vmem:[%s389 + $0x104] sm:$0xff]
        %v505 = vld [vmem:[%s389 + $0x10c] sm:$0xff]
        %v506 = vld [vmem:[%s389 + $0x114] sm:$0xf]
        %v507 = vld [vmem:[%s389 + $0x118] sm:$0xff]
        %v508 = vld [vmem:[%s389 + $0x120] sm:$0xff]
        %v509 = vld [vmem:[%s389 + $0x128] sm:$0xff]
        %v510 = vld [vmem:[%s389 + $0x130] sm:$0xf]
        %v511 = vld [vmem:[%s389 + $0x134] sm:$0xff]
        %v512 = vld [vmem:[%s389 + $0x13c] sm:$0xff]
        %v513 = vld [vmem:[%s389 + $0x144] sm:$0xff]
        %v514 = vld [vmem:[%s389 + $0x14c] sm:$0xf]
        %v515 = vld [vmem:[%s389 + $0x150] sm:$0xff]
        %v516 = vld [vmem:[%s389 + $0x158] sm:$0xff]
        %v517 = vld [vmem:[%s389 + $0x160] sm:$0xff]
        %v518 = vld [vmem:[%s389 + $0x168] sm:$0xf]
        %v519 = vld [vmem:[%s389 + $0x16c] sm:$0xff]
        %v520 = vld [vmem:[%s389 + $0x174] sm:$0xff]
        %v521 = vld [vmem:[%s389 + $0x17c] sm:$0xff]
        %v522 = vld [vmem:[%s389 + $0x184] sm:$0xf]
        %v523 = vld [vmem:[%s389 + $0x188] sm:$0xff]
        %v524 = vld [vmem:[%s389 + $0x190] sm:$0xff]
        %v525 = vld [vmem:[%s389 + $0x198] sm:$0xff]
        %v526 = vld [vmem:[%s389 + $0x1a0] sm:$0xf]
        %v527 = vld [vmem:[%s389 + $0x1a4] sm:$0xff]
        %v528 = vld [vmem:[%s389 + $0x1ac] sm:$0xff]
        %v529 = vld [vmem:[%s389 + $0x1b4] sm:$0xff]
        %v530 = vld [vmem:[%s389 + $0x1bc] sm:$0xf]
        %v531 = vld [vmem:[#allocation5] sm:$0xff]
        %v532 = vld [vmem:[#allocation5 + $0x8] sm:$0xff]
        %v533 = vld [vmem:[#allocation5 + $0x10] sm:$0xff]
        %v534 = vld [vmem:[#allocation5 + $0x18] sm:$0xff]
        %v535 = vld [vmem:[#allocation5 + $0x20] sm:$0xff]
        %v536 = vld [vmem:[#allocation5 + $0x28] sm:$0xff]
        %v537 = vld [vmem:[#allocation5 + $0x30] sm:$0xff]
        %v538 = vld [vmem:[#allocation5 + $0x38] sm:$0xff]
        %v539 = vld [vmem:[#allocation5 + $0x40] sm:$0xff]
        %v540 = vld [vmem:[#allocation5 + $0x48] sm:$0xff]
        %v541 = vld [vmem:[#allocation5 + $0x50] sm:$0xff]
        %v542 = vld [vmem:[#allocation5 + $0x58] sm:$0xff]
        %v543 = vld [vmem:[#allocation5 + $0x60] sm:$0xff]
        %v544 = vld [vmem:[#allocation5 + $0x68] sm:$0xff]
        %v545 = vld [vmem:[#allocation5 + $0x70] sm:$0xff]
        %v546 = vld [vmem:[#allocation5 + $0x78] sm:$0xff]
        %v547 = vld [vmem:[#allocation5 + $0x80] sm:$0xff]
        %v548 = vld [vmem:[#allocation5 + $0x88] sm:$0xff]
        %v549 = vld [vmem:[#allocation5 + $0x90] sm:$0xff]
        %v550 = vld [vmem:[#allocation5 + $0x98] sm:$0xff]
        %v551 = vld [vmem:[#allocation5 + $0xa0] sm:$0xff]
        %v552 = vld [vmem:[#allocation5 + $0xa8] sm:$0xff]
        %v553 = vld [vmem:[#allocation5 + $0xb0] sm:$0xff]
        %v554 = vld [vmem:[#allocation5 + $0xb8] sm:$0xff]
        %v555 = vld [vmem:[#allocation5 + $0xc0] sm:$0xff]
        %v556 = vld [vmem:[#allocation5 + $0xc8] sm:$0xff]
        %v557 = vld [vmem:[#allocation5 + $0xd0] sm:$0xff]
        %v558 = vld [vmem:[#allocation5 + $0xd8] sm:$0xff]
        %v559 = vld [vmem:[#allocation5 + $0xe0] sm:$0xff]
        %v560 = vld [vmem:[#allocation5 + $0xe8] sm:$0xff]
        %v561 = vld [vmem:[#allocation5 + $0xf0] sm:$0xff]
        %v562 = vld [vmem:[#allocation5 + $0xf8] sm:$0xff]
        %v563 = vld [vmem:[#allocation5 + $0x100] sm:$0xff]
        %v564 = vld [vmem:[#allocation5 + $0x108] sm:$0xff]
        %v565 = vld [vmem:[#allocation5 + $0x110] sm:$0xff]
        %v566 = vld [vmem:[#allocation5 + $0x118] sm:$0xff]
        %v567 = vld [vmem:[#allocation5 + $0x120] sm:$0xff]
        %v568 = vld [vmem:[#allocation5 + $0x128] sm:$0xff]
        %v569 = vld [vmem:[#allocation5 + $0x130] sm:$0xff]
        %v570 = vld [vmem:[#allocation5 + $0x138] sm:$0xff]
        %v571 = vld [vmem:[#allocation5 + $0x140] sm:$0xff]
        %v572 = vld [vmem:[#allocation5 + $0x148] sm:$0xff]
        %v573 = vld [vmem:[#allocation5 + $0x150] sm:$0xff]
        %v574 = vld [vmem:[#allocation5 + $0x158] sm:$0xff]
        %v575 = vld [vmem:[#allocation5 + $0x160] sm:$0xff]
        %v576 = vld [vmem:[#allocation5 + $0x168] sm:$0xff]
        %v577 = vld [vmem:[#allocation5 + $0x170] sm:$0xff]
        %v578 = vld [vmem:[#allocation5 + $0x178] sm:$0xff]
        %v579 = vld [vmem:[#allocation5 + $0x180] sm:$0xff]
        %v580 = vld [vmem:[#allocation5 + $0x188] sm:$0xff]
        %v581 = vld [vmem:[#allocation5 + $0x190] sm:$0xff]
        %v582 = vld [vmem:[#allocation5 + $0x198] sm:$0xff]
        %v583 = vld [vmem:[#allocation5 + $0x1a0] sm:$0xff]
        %v584 = vld [vmem:[#allocation5 + $0x1a8] sm:$0xff]
        %v585 = vld [vmem:[#allocation5 + $0x1b0] sm:$0xff]
        %v586 = vld [vmem:[#allocation5 + $0x1b8] sm:$0xff]
        %v587 = vld [vmem:[#allocation5 + $0x1c0] sm:$0xff]
        %v588 = vld [vmem:[#allocation5 + $0x1c8] sm:$0xff]
        %v589 = vld [vmem:[#allocation5 + $0x1d0] sm:$0xff]
        %v590 = vld [vmem:[#allocation5 + $0x1d8] sm:$0xff]
        %v591 = vld [vmem:[#allocation5 + $0x1e0] sm:$0xff]
        %v592 = vld [vmem:[#allocation5 + $0x1e8] sm:$0xff]
        %v593 = vld [vmem:[#allocation5 + $0x1f0] sm:$0xff]
        %v594 = vld [vmem:[#allocation5 + $0x1f8] sm:$0xff]
        %v595 = vld [vmem:[#allocation5 + $0x200] sm:$0xff]
        %v596 = vld [vmem:[#allocation5 + $0x208] sm:$0xff]
        %v597 = vld [vmem:[#allocation5 + $0x210] sm:$0xff]
        %v598 = vld [vmem:[#allocation5 + $0x218] sm:$0xff]
        %v599 = vld [vmem:[#allocation5 + $0x220] sm:$0xff]
        %v600 = vld [vmem:[#allocation5 + $0x228] sm:$0xff]
        %v601 = vld [vmem:[#allocation5 + $0x230] sm:$0xff]
        %v602 = vld [vmem:[#allocation5 + $0x238] sm:$0xff]
        %v603 = vld [vmem:[#allocation5 + $0x240] sm:$0xff]
        %v604 = vld [vmem:[#allocation5 + $0x248] sm:$0xff]
        %v605 = vld [vmem:[#allocation5 + $0x250] sm:$0xff]
        %v606 = vld [vmem:[#allocation5 + $0x258] sm:$0xff]
        %v607 = vld [vmem:[#allocation5 + $0x260] sm:$0xff]
        %v608 = vld [vmem:[#allocation5 + $0x268] sm:$0xff]
        %v609 = vld [vmem:[#allocation5 + $0x270] sm:$0xff]
        %v610 = vld [vmem:[#allocation5 + $0x278] sm:$0xff]
        %v611 = vld [vmem:[#allocation5 + $0x280] sm:$0xff]
        %v612 = vld [vmem:[#allocation5 + $0x288] sm:$0xff]
        %v613 = vld [vmem:[#allocation5 + $0x290] sm:$0xff]
        %v614 = vld [vmem:[#allocation5 + $0x298] sm:$0xff]
        %v615 = vld [vmem:[#allocation5 + $0x2a0] sm:$0xff]
        %v616 = vld [vmem:[#allocation5 + $0x2a8] sm:$0xff]
        %v617 = vld [vmem:[#allocation5 + $0x2b0] sm:$0xff]
        %v618 = vld [vmem:[#allocation5 + $0x2b8] sm:$0xff]
        %v619 = vld [vmem:[#allocation5 + $0x2c0] sm:$0xff]
        %v620 = vld [vmem:[#allocation5 + $0x2c8] sm:$0xff]
        %v621 = vld [vmem:[#allocation5 + $0x2d0] sm:$0xff]
        %v622 = vld [vmem:[#allocation5 + $0x2d8] sm:$0xff]
        %v623 = vld [vmem:[#allocation5 + $0x2e0] sm:$0xff]
        %v624 = vld [vmem:[#allocation5 + $0x2e8] sm:$0xff]
        %v625 = vld [vmem:[#allocation5 + $0x2f0] sm:$0xff]
        %v626 = vld [vmem:[#allocation5 + $0x2f8] sm:$0xff]
        %v627 = vld [vmem:[#allocation5 + $0x300] sm:$0xff]
        %v628 = vld [vmem:[#allocation5 + $0x308] sm:$0xff]
        %v629 = vld [vmem:[#allocation5 + $0x310] sm:$0xff]
        %v630 = vld [vmem:[#allocation5 + $0x318] sm:$0xff]
        %v631 = vld [vmem:[#allocation5 + $0x320] sm:$0xff]
        %v632 = vld [vmem:[#allocation5 + $0x328] sm:$0xff]
        %v633 = vld [vmem:[#allocation5 + $0x330] sm:$0xff]
        %v634 = vld [vmem:[#allocation5 + $0x338] sm:$0xff]
        %v635 = vld [vmem:[#allocation5 + $0x340] sm:$0xff]
        %v636 = vld [vmem:[#allocation5 + $0x348] sm:$0xff]
        %v637 = vld [vmem:[#allocation5 + $0x350] sm:$0xff]
        %v638 = vld [vmem:[#allocation5 + $0x358] sm:$0xff]
        %v639 = vld [vmem:[#allocation5 + $0x360] sm:$0xff]
        %v640 = vld [vmem:[#allocation5 + $0x368] sm:$0xff]
        %v641 = vld [vmem:[#allocation5 + $0x370] sm:$0xff]
        %v642 = vld [vmem:[#allocation5 + $0x378] sm:$0xff]
        %v643 = vld [vmem:[#allocation5 + $0x380] sm:$0xff]
        %v644 = vld [vmem:[#allocation5 + $0x388] sm:$0xff]
        %v645 = vld [vmem:[#allocation5 + $0x390] sm:$0xff]
        %v646 = vld [vmem:[#allocation5 + $0x398] sm:$0xff]
        %v647 = vld [vmem:[#allocation5 + $0x3a0] sm:$0xff]
        %v648 = vld [vmem:[#allocation5 + $0x3a8] sm:$0xff]
        %v649 = vld [vmem:[#allocation5 + $0x3b0] sm:$0xff]
        %v650 = vld [vmem:[#allocation5 + $0x3b8] sm:$0xff]
        %v651 = vld [vmem:[#allocation5 + $0x3c0] sm:$0xff]
        %v652 = vld [vmem:[#allocation5 + $0x3c8] sm:$0xff]
        %v653 = vld [vmem:[#allocation5 + $0x3d0] sm:$0xff]
        %v654 = vld [vmem:[#allocation5 + $0x3d8] sm:$0xff]
        %v655 = vld [vmem:[#allocation5 + $0x3e0] sm:$0xff]
        %v656 = vld [vmem:[#allocation5 + $0x3e8] sm:$0xff]
        %v657 = vld [vmem:[#allocation5 + $0x3f0] sm:$0xff]
        %v658 = vld [vmem:[#allocation5 + $0x3f8] sm:$0xff]
        %v659 = vld [vmem:[#allocation5 + $0x400] sm:$0xff]
        %v660 = vld [vmem:[#allocation5 + $0x408] sm:$0xff]
        %v661 = vld [vmem:[#allocation5 + $0x410] sm:$0xff]
        %v662 = vld [vmem:[#allocation5 + $0x418] sm:$0xff]
        %v663 = vld [vmem:[#allocation5 + $0x420] sm:$0xff]
        %v664 = vld [vmem:[#allocation5 + $0x428] sm:$0xff]
        %v665 = vld [vmem:[#allocation5 + $0x430] sm:$0xff]
        %v666 = vld [vmem:[#allocation5 + $0x438] sm:$0xff]
        %v667 = vld [vmem:[#allocation5 + $0x440] sm:$0xff]
        %v668 = vld [vmem:[#allocation5 + $0x448] sm:$0xff]
        %v669 = vld [vmem:[#allocation5 + $0x450] sm:$0xff]
        %v670 = vld [vmem:[#allocation5 + $0x458] sm:$0xff]
        %v671 = vld [vmem:[#allocation5 + $0x460] sm:$0xff]
        %v672 = vld [vmem:[#allocation5 + $0x468] sm:$0xff]
        %v673 = vld [vmem:[#allocation5 + $0x470] sm:$0xff]
        %v674 = vld [vmem:[#allocation5 + $0x478] sm:$0xff]
        %v675 = vld [vmem:[#allocation5 + $0x480] sm:$0xff]
        %v676 = vld [vmem:[#allocation5 + $0x488] sm:$0xff]
        %v677 = vld [vmem:[#allocation5 + $0x490] sm:$0xff]
        %v678 = vld [vmem:[#allocation5 + $0x498] sm:$0xff]
        %v679 = vld [vmem:[#allocation5 + $0x4a0] sm:$0xff]
        %v680 = vld [vmem:[#allocation5 + $0x4a8] sm:$0xff]
        %v681 = vld [vmem:[#allocation5 + $0x4b0] sm:$0xff]
        %v682 = vld [vmem:[#allocation5 + $0x4b8] sm:$0xff]
        %v683 = vld [vmem:[#allocation5 + $0x4c0] sm:$0xff]
        %v684 = vld [vmem:[#allocation5 + $0x4c8] sm:$0xff]
        %v685 = vld [vmem:[#allocation5 + $0x4d0] sm:$0xff]
        %v686 = vld [vmem:[#allocation5 + $0x4d8] sm:$0xff]
        %v687 = vld [vmem:[#allocation5 + $0x4e0] sm:$0xff]
        %v688 = vld [vmem:[#allocation5 + $0x4e8] sm:$0xff]
        %v689 = vld [vmem:[#allocation5 + $0x4f0] sm:$0xff]
        %v690 = vld [vmem:[#allocation5 + $0x4f8] sm:$0xff]
        %v691 = vld [vmem:[#allocation5 + $0x500] sm:$0xff]
        %v692 = vld [vmem:[#allocation5 + $0x508] sm:$0xff]
        %v693 = vld [vmem:[#allocation5 + $0x510] sm:$0xff]
        %v694 = vld [vmem:[#allocation5 + $0x518] sm:$0xff]
        %v695 = vld [vmem:[#allocation5 + $0x520] sm:$0xff]
        %v696 = vld [vmem:[#allocation5 + $0x528] sm:$0xff]
        %v697 = vld [vmem:[#allocation5 + $0x530] sm:$0xff]
        %v698 = vld [vmem:[#allocation5 + $0x538] sm:$0xff]
        %v699 = vld [vmem:[#allocation5 + $0x540] sm:$0xff]
        %v700 = vld [vmem:[#allocation5 + $0x548] sm:$0xff]
        %v701 = vld [vmem:[#allocation5 + $0x550] sm:$0xff]
        %v702 = vld [vmem:[#allocation5 + $0x558] sm:$0xff]
        %v703 = vld [vmem:[#allocation5 + $0x560] sm:$0xff]
        %v704 = vld [vmem:[#allocation5 + $0x568] sm:$0xff]
        %v705 = vld [vmem:[#allocation5 + $0x570] sm:$0xff]
        %v706 = vld [vmem:[#allocation5 + $0x578] sm:$0xff]
        %v707 = vld [vmem:[#allocation5 + $0x580] sm:$0xff]
        %v708 = vld [vmem:[#allocation5 + $0x588] sm:$0xff]
        %v709 = vld [vmem:[#allocation5 + $0x590] sm:$0xff]
        %v710 = vld [vmem:[#allocation5 + $0x598] sm:$0xff]
        %v711 = vld [vmem:[#allocation5 + $0x5a0] sm:$0xff]
        %v712 = vld [vmem:[#allocation5 + $0x5a8] sm:$0xff]
        %v713 = vld [vmem:[#allocation5 + $0x5b0] sm:$0xff]
        %v714 = vld [vmem:[#allocation5 + $0x5b8] sm:$0xff]
        %v715 = vld [vmem:[#allocation5 + $0x5c0] sm:$0xff]
        %v716 = vld [vmem:[#allocation5 + $0x5c8] sm:$0xff]
        %v717 = vld [vmem:[#allocation5 + $0x5d0] sm:$0xff]
        %v718 = vld [vmem:[#allocation5 + $0x5d8] sm:$0xff]
        %v719 = vld [vmem:[#allocation5 + $0x5e0] sm:$0xff]
        %v720 = vld [vmem:[#allocation5 + $0x5e8] sm:$0xff]
        %v721 = vld [vmem:[#allocation5 + $0x5f0] sm:$0xff]
        %v722 = vld [vmem:[#allocation5 + $0x5f8] sm:$0xff]
        %v723 = vld [vmem:[#allocation5 + $0x600] sm:$0xff]
        %v724 = vld [vmem:[#allocation5 + $0x608] sm:$0xff]
        %v725 = vld [vmem:[#allocation5 + $0x610] sm:$0xff]
        %v726 = vld [vmem:[#allocation5 + $0x618] sm:$0xff]
        %v727 = vld [vmem:[#allocation5 + $0x620] sm:$0xff]
        %v728 = vld [vmem:[#allocation5 + $0x628] sm:$0xff]
        %v729 = vld [vmem:[#allocation5 + $0x630] sm:$0xff]
        %v730 = vld [vmem:[#allocation5 + $0x638] sm:$0xff]
        %v731 = vld [vmem:[#allocation5 + $0x640] sm:$0xff]
        %v732 = vld [vmem:[#allocation5 + $0x648] sm:$0xff]
        %v733 = vld [vmem:[#allocation5 + $0x650] sm:$0xff]
        %v734 = vld [vmem:[#allocation5 + $0x658] sm:$0xff]
        %v735 = vld [vmem:[#allocation5 + $0x660] sm:$0xff]
        %v736 = vld [vmem:[#allocation5 + $0x668] sm:$0xff]
        %v737 = vld [vmem:[#allocation5 + $0x670] sm:$0xff]
        %v738 = vld [vmem:[#allocation5 + $0x678] sm:$0xff]
        %v739 = vld [vmem:[#allocation5 + $0x680] sm:$0xff]
        %v740 = vld [vmem:[#allocation5 + $0x688] sm:$0xff]
        %v741 = vld [vmem:[#allocation5 + $0x690] sm:$0xff]
        %v742 = vld [vmem:[#allocation5 + $0x698] sm:$0xff]
        %v743 = vld [vmem:[#allocation5 + $0x6a0] sm:$0xff]
        %v744 = vld [vmem:[#allocation5 + $0x6a8] sm:$0xff]
        %v745 = vld [vmem:[#allocation5 + $0x6b0] sm:$0xff]
        %v746 = vld [vmem:[#allocation5 + $0x6b8] sm:$0xff]
        %v747 = vld [vmem:[#allocation5 + $0x6c0] sm:$0xff]
        %v748 = vld [vmem:[#allocation5 + $0x6c8] sm:$0xff]
        %v749 = vld [vmem:[#allocation5 + $0x6d0] sm:$0xff]
        %v750 = vld [vmem:[#allocation5 + $0x6d8] sm:$0xff]
        %v751 = vld [vmem:[#allocation5 + $0x6e0] sm:$0xff]
        %v752 = vld [vmem:[#allocation5 + $0x6e8] sm:$0xff]
        %v753 = vld [vmem:[#allocation5 + $0x6f0] sm:$0xff]
        %v754 = vld [vmem:[#allocation5 + $0x6f8] sm:$0xff]
        %v755 = vld [vmem:[#allocation5 + $0x700] sm:$0xff]
        %v756 = vld [vmem:[#allocation5 + $0x708] sm:$0xff]
        %v757 = vld [vmem:[#allocation5 + $0x710] sm:$0xff]
        %v758 = vld [vmem:[#allocation5 + $0x718] sm:$0xff]
        %v759 = vld [vmem:[#allocation5 + $0x720] sm:$0xff]
        %v760 = vld [vmem:[#allocation5 + $0x728] sm:$0xff]
        %v761 = vld [vmem:[#allocation5 + $0x730] sm:$0xff]
        %v762 = vld [vmem:[#allocation5 + $0x738] sm:$0xff]
        %v763 = vld [vmem:[#allocation5 + $0x740] sm:$0xff]
        %v764 = vld [vmem:[#allocation5 + $0x748] sm:$0xff]
        %v765 = vld [vmem:[#allocation5 + $0x750] sm:$0xff]
        %v766 = vld [vmem:[#allocation5 + $0x758] sm:$0xff]
        %v767 = vld [vmem:[#allocation5 + $0x760] sm:$0xff]
        %v768 = vld [vmem:[#allocation5 + $0x768] sm:$0xff]
        %v769 = vld [vmem:[#allocation5 + $0x770] sm:$0xff]
        %v770 = vld [vmem:[#allocation5 + $0x778] sm:$0xff]
        %v771 = vld [vmem:[#allocation5 + $0x780] sm:$0xff]
        %v772 = vld [vmem:[#allocation5 + $0x788] sm:$0xff]
        %v773 = vld [vmem:[#allocation5 + $0x790] sm:$0xff]
        %v774 = vld [vmem:[#allocation5 + $0x798] sm:$0xff]
        %v775 = vld [vmem:[#allocation5 + $0x7a0] sm:$0xff]
        %v776 = vld [vmem:[#allocation5 + $0x7a8] sm:$0xff]
        %v777 = vld [vmem:[#allocation5 + $0x7b0] sm:$0xff]
        %v778 = vld [vmem:[#allocation5 + $0x7b8] sm:$0xff]
        %v779 = vld [vmem:[#allocation5 + $0x7c0] sm:$0xff]
        %v780 = vld [vmem:[#allocation5 + $0x7c8] sm:$0xff]
        %v781 = vld [vmem:[#allocation5 + $0x7d0] sm:$0xff]
        %v782 = vld [vmem:[#allocation5 + $0x7d8] sm:$0xff]
        %v783 = vld [vmem:[#allocation5 + $0x7e0] sm:$0xff]
        %v784 = vld [vmem:[#allocation5 + $0x7e8] sm:$0xff]
        %v785 = vld [vmem:[#allocation5 + $0x7f0] sm:$0xff]
        %v786 = vld [vmem:[#allocation5 + $0x7f8] sm:$0xff]
        %v787 = vld [vmem:[#allocation5 + $0x800] sm:$0xff]
        %v788 = vld [vmem:[#allocation5 + $0x808] sm:$0xff]
        %v789 = vld [vmem:[#allocation5 + $0x810] sm:$0xff]
        %v790 = vld [vmem:[#allocation5 + $0x818] sm:$0xff]
        %v791 = vld [vmem:[#allocation5 + $0x820] sm:$0xff]
        %v792 = vld [vmem:[#allocation5 + $0x828] sm:$0xff]
        %v793 = vld [vmem:[#allocation5 + $0x830] sm:$0xff]
        %v794 = vld [vmem:[#allocation5 + $0x838] sm:$0xff]
        %v795 = vld [vmem:[#allocation5 + $0x840] sm:$0xff]
        %v796 = vld [vmem:[#allocation5 + $0x848] sm:$0xff]
        %v797 = vld [vmem:[#allocation5 + $0x850] sm:$0xff]
        %v798 = vld [vmem:[#allocation5 + $0x858] sm:$0xff]
        %v799 = vld [vmem:[#allocation5 + $0x860] sm:$0xff]
        %v800 = vld [vmem:[#allocation5 + $0x868] sm:$0xff]
        %v801 = vld [vmem:[#allocation5 + $0x870] sm:$0xff]
        %v802 = vld [vmem:[#allocation5 + $0x878] sm:$0xff]
        %v803 = vld [vmem:[#allocation5 + $0x880] sm:$0xff]
        %v804 = vld [vmem:[#allocation5 + $0x888] sm:$0xff]
        %v805 = vld [vmem:[#allocation5 + $0x890] sm:$0xff]
        %v806 = vld [vmem:[#allocation5 + $0x898] sm:$0xff]
        %v807 = vld [vmem:[#allocation5 + $0x8a0] sm:$0xff]
        %v808 = vld [vmem:[#allocation5 + $0x8a8] sm:$0xff]
        %v809 = vld [vmem:[#allocation5 + $0x8b0] sm:$0xff]
        %v810 = vld [vmem:[#allocation5 + $0x8b8] sm:$0xff]
        %v811 = vld [vmem:[#allocation5 + $0x8c0] sm:$0xff]
        %v812 = vld [vmem:[#allocation5 + $0x8c8] sm:$0xff]
        %v813 = vld [vmem:[#allocation5 + $0x8d0] sm:$0xff]
        %v814 = vld [vmem:[#allocation5 + $0x8d8] sm:$0xff]
        %v815 = vld [vmem:[#allocation5 + $0x8e0] sm:$0xff]
        %v816 = vld [vmem:[#allocation5 + $0x8e8] sm:$0xff]
        %v817 = vld [vmem:[#allocation5 + $0x8f0] sm:$0xff]
        %v818 = vld [vmem:[#allocation5 + $0x8f8] sm:$0xff]
        %v819 = vld [vmem:[#allocation5 + $0x900] sm:$0xff]
        %v820 = vld [vmem:[#allocation5 + $0x908] sm:$0xff]
        %v821 = vld [vmem:[#allocation5 + $0x910] sm:$0xff]
        %v822 = vld [vmem:[#allocation5 + $0x918] sm:$0xff]
        %v823 = vld [vmem:[#allocation5 + $0x920] sm:$0xff]
        %v824 = vld [vmem:[#allocation5 + $0x928] sm:$0xff]
        %v825 = vld [vmem:[#allocation5 + $0x930] sm:$0xff]
        %v826 = vld [vmem:[#allocation5 + $0x938] sm:$0xff]
        %v827 = vld [vmem:[#allocation5 + $0x940] sm:$0xff]
        %v828 = vld [vmem:[#allocation5 + $0x948] sm:$0xff]
        %v829 = vld [vmem:[#allocation5 + $0x950] sm:$0xff]
        %v830 = vld [vmem:[#allocation5 + $0x958] sm:$0xff]
        %v831 = vld [vmem:[#allocation5 + $0x960] sm:$0xff]
        %v832 = vld [vmem:[#allocation5 + $0x968] sm:$0xff]
        %v833 = vld [vmem:[#allocation5 + $0x970] sm:$0xff]
        %v834 = vld [vmem:[#allocation5 + $0x978] sm:$0xff]
        %v835 = vld [vmem:[#allocation5 + $0x980] sm:$0xff]
        %v836 = vld [vmem:[#allocation5 + $0x988] sm:$0xff]
        %v837 = vld [vmem:[#allocation5 + $0x990] sm:$0xff]
        %v838 = vld [vmem:[#allocation5 + $0x998] sm:$0xff]
        %v839 = vld [vmem:[#allocation5 + $0x9a0] sm:$0xff]
        %v840 = vld [vmem:[#allocation5 + $0x9a8] sm:$0xff]
        %v841 = vld [vmem:[#allocation5 + $0x9b0] sm:$0xff]
        %v842 = vld [vmem:[#allocation5 + $0x9b8] sm:$0xff]
        %v843 = vld [vmem:[#allocation5 + $0x9c0] sm:$0xff]
        %v844 = vld [vmem:[#allocation5 + $0x9c8] sm:$0xff]
        %v845 = vld [vmem:[#allocation5 + $0x9d0] sm:$0xff]
        %v846 = vld [vmem:[#allocation5 + $0x9d8] sm:$0xff]
        %v847 = vld [vmem:[#allocation5 + $0x9e0] sm:$0xff]
        %v848 = vld [vmem:[#allocation5 + $0x9e8] sm:$0xff]
        %v849 = vld [vmem:[#allocation5 + $0x9f0] sm:$0xff]
        %v850 = vld [vmem:[#allocation5 + $0x9f8] sm:$0xff]
        %v851 = vld [vmem:[#allocation5 + $0xa00] sm:$0xff]
        %v852 = vld [vmem:[#allocation5 + $0xa08] sm:$0xff]
        %v853 = vld [vmem:[#allocation5 + $0xa10] sm:$0xff]
        %v854 = vld [vmem:[#allocation5 + $0xa18] sm:$0xff]
        %v855 = vld [vmem:[#allocation5 + $0xa20] sm:$0xff]
        %v856 = vld [vmem:[#allocation5 + $0xa28] sm:$0xff]
        %v857 = vld [vmem:[#allocation5 + $0xa30] sm:$0xff]
        %v858 = vld [vmem:[#allocation5 + $0xa38] sm:$0xff]
        %v859 = vld [vmem:[#allocation5 + $0xa40] sm:$0xff]
        %v860 = vld [vmem:[#allocation5 + $0xa48] sm:$0xff]
        %v861 = vld [vmem:[#allocation5 + $0xa50] sm:$0xff]
        %v862 = vld [vmem:[#allocation5 + $0xa58] sm:$0xff]
        %v863 = vld [vmem:[#allocation5 + $0xa60] sm:$0xff]
        %v864 = vld [vmem:[#allocation5 + $0xa68] sm:$0xff]
        %v865 = vld [vmem:[#allocation5 + $0xa70] sm:$0xff]
        %v866 = vld [vmem:[#allocation5 + $0xa78] sm:$0xff]
        %v867 = vld [vmem:[#allocation5 + $0xa80] sm:$0xff]
        %v868 = vld [vmem:[#allocation5 + $0xa88] sm:$0xff]
        %v869 = vld [vmem:[#allocation5 + $0xa90] sm:$0xff]
        %v870 = vld [vmem:[#allocation5 + $0xa98] sm:$0xff]
        %v871 = vld [vmem:[#allocation5 + $0xaa0] sm:$0xff]
        %v872 = vld [vmem:[#allocation5 + $0xaa8] sm:$0xff]
        %v873 = vld [vmem:[#allocation5 + $0xab0] sm:$0xff]
        %v874 = vld [vmem:[#allocation5 + $0xab8] sm:$0xff]
        %v875 = vld [vmem:[#allocation5 + $0xac0] sm:$0xff]
        %v876 = vld [vmem:[#allocation5 + $0xac8] sm:$0xff]
        %v877 = vld [vmem:[#allocation5 + $0xad0] sm:$0xff]
        %v878 = vld [vmem:[#allocation5 + $0xad8] sm:$0xff]
        %v879 = vld [vmem:[#allocation5 + $0xae0] sm:$0xff]
        %v880 = vld [vmem:[#allocation5 + $0xae8] sm:$0xff]
        %v881 = vld [vmem:[#allocation5 + $0xaf0] sm:$0xff]
        %v882 = vld [vmem:[#allocation5 + $0xaf8] sm:$0xff]
        %v883 = vld [vmem:[#allocation5 + $0xb00] sm:$0xff]
        %v884 = vld [vmem:[#allocation5 + $0xb08] sm:$0xff]
        %v885 = vld [vmem:[#allocation5 + $0xb10] sm:$0xff]
        %v886 = vld [vmem:[#allocation5 + $0xb18] sm:$0xff]
        %v887 = vld [vmem:[#allocation5 + $0xb20] sm:$0xff]
        %v888 = vld [vmem:[#allocation5 + $0xb28] sm:$0xff]
        %v889 = vld [vmem:[#allocation5 + $0xb30] sm:$0xff]
        %v890 = vld [vmem:[#allocation5 + $0xb38] sm:$0xff]
        %v891 = vld [vmem:[#allocation5 + $0xb40] sm:$0xff]
        %v892 = vld [vmem:[#allocation5 + $0xb48] sm:$0xff]
        %v893 = vld [vmem:[#allocation5 + $0xb50] sm:$0xff]
        %v894 = vld [vmem:[#allocation5 + $0xb58] sm:$0xff]
        %v895 = vld [vmem:[#allocation5 + $0xb60] sm:$0xff]
        %v896 = vld [vmem:[#allocation5 + $0xb68] sm:$0xff]
        %v897 = vld [vmem:[#allocation5 + $0xb70] sm:$0xff]
        %v898 = vld [vmem:[#allocation5 + $0xb78] sm:$0xff]
        %v899 = vld [vmem:[#allocation5 + $0xb80] sm:$0xff]
        %v900 = vld [vmem:[#allocation5 + $0xb88] sm:$0xff]
        %v901 = vld [vmem:[#allocation5 + $0xb90] sm:$0xff]
        %v902 = vld [vmem:[#allocation5 + $0xb98] sm:$0xff]
        %v903 = vld [vmem:[#allocation5 + $0xba0] sm:$0xff]
        %v904 = vld [vmem:[#allocation5 + $0xba8] sm:$0xff]
        %v905 = vld [vmem:[#allocation5 + $0xbb0] sm:$0xff]
        %v906 = vld [vmem:[#allocation5 + $0xbb8] sm:$0xff]
        %v907 = vld [vmem:[#allocation5 + $0xbc0] sm:$0xff]
        %v908 = vld [vmem:[#allocation5 + $0xbc8] sm:$0xff]
        %v909 = vld [vmem:[#allocation5 + $0xbd0] sm:$0xff]
        %v910 = vld [vmem:[#allocation5 + $0xbd8] sm:$0xff]
        %v911 = vld [vmem:[#allocation5 + $0xbe0] sm:$0xff]
        %v912 = vld [vmem:[#allocation5 + $0xbe8] sm:$0xff]
        %v913 = vld [vmem:[#allocation5 + $0xbf0] sm:$0xff]
        %v914 = vld [vmem:[#allocation5 + $0xbf8] sm:$0xff]
        %v915 = vld [vmem:[#allocation5 + $0xc00] sm:$0xff]
        %v916 = vld [vmem:[#allocation5 + $0xc08] sm:$0xff]
        %v917 = vld [vmem:[#allocation5 + $0xc10] sm:$0xff]
        %v918 = vld [vmem:[#allocation5 + $0xc18] sm:$0xff]
        %v919 = vld [vmem:[#allocation5 + $0xc20] sm:$0xff]
        %v920 = vld [vmem:[#allocation5 + $0xc28] sm:$0xff]
        %v921 = vld [vmem:[#allocation5 + $0xc30] sm:$0xff]
        %v922 = vld [vmem:[#allocation5 + $0xc38] sm:$0xff]
        %v923 = vld [vmem:[#allocation5 + $0xc40] sm:$0xff]
        %v924 = vld [vmem:[#allocation5 + $0xc48] sm:$0xff]
        %v925 = vld [vmem:[#allocation5 + $0xc50] sm:$0xff]
        %v926 = vld [vmem:[#allocation5 + $0xc58] sm:$0xff]
        %v927 = vld [vmem:[#allocation5 + $0xc60] sm:$0xff]
        %v928 = vld [vmem:[#allocation5 + $0xc68] sm:$0xff]
        %v929 = vld [vmem:[#allocation5 + $0xc70] sm:$0xff]
        %v930 = vld [vmem:[#allocation5 + $0xc78] sm:$0xff]
        %v931 = vld [vmem:[#allocation5 + $0xc80] sm:$0xff]
        %v932 = vld [vmem:[#allocation5 + $0xc88] sm:$0xff]
        %v933 = vld [vmem:[#allocation5 + $0xc90] sm:$0xff]
        %v934 = vld [vmem:[#allocation5 + $0xc98] sm:$0xff]
        %v935 = vld [vmem:[#allocation5 + $0xca0] sm:$0xff]
        %v936 = vld [vmem:[#allocation5 + $0xca8] sm:$0xff]
        %v937 = vld [vmem:[#allocation5 + $0xcb0] sm:$0xff]
        %v938 = vld [vmem:[#allocation5 + $0xcb8] sm:$0xff]
        %v939 = vld [vmem:[#allocation5 + $0xcc0] sm:$0xff]
        %v940 = vld [vmem:[#allocation5 + $0xcc8] sm:$0xff]
        %v941 = vld [vmem:[#allocation5 + $0xcd0] sm:$0xff]
        %v942 = vld [vmem:[#allocation5 + $0xcd8] sm:$0xff]
        %v943 = vld [vmem:[#allocation5 + $0xce0] sm:$0xff]
        %v944 = vld [vmem:[#allocation5 + $0xce8] sm:$0xff]
        %v945 = vld [vmem:[#allocation5 + $0xcf0] sm:$0xff]
        %v946 = vld [vmem:[#allocation5 + $0xcf8] sm:$0xff]
        %v947 = vld [vmem:[#allocation5 + $0xd00] sm:$0xff]
        %v948 = vld [vmem:[#allocation5 + $0xd08] sm:$0xff]
        %v949 = vld [vmem:[#allocation5 + $0xd10] sm:$0xff]
        %v950 = vld [vmem:[#allocation5 + $0xd18] sm:$0xff]
        %v951 = vld [vmem:[#allocation5 + $0xd20] sm:$0xff]
        %v952 = vld [vmem:[#allocation5 + $0xd28] sm:$0xff]
        %v953 = vld [vmem:[#allocation5 + $0xd30] sm:$0xff]
        %v954 = vld [vmem:[#allocation5 + $0xd38] sm:$0xff]
        %v955 = vld [vmem:[#allocation5 + $0xd40] sm:$0xff]
        %v956 = vld [vmem:[#allocation5 + $0xd48] sm:$0xff]
        %v957 = vld [vmem:[#allocation5 + $0xd50] sm:$0xff]
        %v958 = vld [vmem:[#allocation5 + $0xd58] sm:$0xff]
        %v959 = vld [vmem:[#allocation5 + $0xd60] sm:$0xff]
        %v960 = vld [vmem:[#allocation5 + $0xd68] sm:$0xff]
        %v961 = vld [vmem:[#allocation5 + $0xd70] sm:$0xff]
        %v962 = vld [vmem:[#allocation5 + $0xd78] sm:$0xff]
        %v963 = vld [vmem:[#allocation5 + $0xd80] sm:$0xff]
        %v964 = vld [vmem:[#allocation5 + $0xd88] sm:$0xff]
        %v965 = vld [vmem:[#allocation5 + $0xd90] sm:$0xff]
        %v966 = vld [vmem:[#allocation5 + $0xd98] sm:$0xff]
        %v967 = vld [vmem:[#allocation5 + $0xda0] sm:$0xff]
        %v968 = vld [vmem:[#allocation5 + $0xda8] sm:$0xff]
        %v969 = vld [vmem:[#allocation5 + $0xdb0] sm:$0xff]
        %v970 = vld [vmem:[#allocation5 + $0xdb8] sm:$0xff]
        %v971 = vld [vmem:[#allocation5 + $0xdc0] sm:$0xff]
        %v972 = vld [vmem:[#allocation5 + $0xdc8] sm:$0xff]
        %v973 = vld [vmem:[#allocation5 + $0xdd0] sm:$0xff]
        %v974 = vld [vmem:[#allocation5 + $0xdd8] sm:$0xff]
        %v975 = vld [vmem:[#allocation5 + $0xde0] sm:$0xff]
        %v976 = vld [vmem:[#allocation5 + $0xde8] sm:$0xff]
        %v977 = vld [vmem:[#allocation5 + $0xdf0] sm:$0xff]
        %v978 = vld [vmem:[#allocation5 + $0xdf8] sm:$0xff]
        %v979 = vld [vmem:[#allocation7] sm:$0xff]
        %v981 = vperm.slane %v979, 0
        %v982 = vperm.slane %v979, 1
        %v983 = vperm.slane %v979, 2
        %v984 = vperm.slane %v979, 3
        %v985 = vperm.slane %v979, 4
        %v986 = vperm.slane %v979, 5
        %v987 = vperm.slane %v979, 6
        %v988 = vperm.slane %v979, 7
        %v1061 = vunpack.c.l.b16 %v467
        %v1062 = vunpack.c.h.b16 %v467
        %v1063 = vunpack.c.l.b16 %v468
        %v1064 = vunpack.c.h.b16 %v468
        %v1065 = vunpack.c.l.b16 %v469
        %v1066 = vunpack.c.h.b16 %v469
        %v1067 = vunpack.c.l.b16 %v470
        %v1068 = vunpack.c.l.b16 %v471
        %v1069 = vunpack.c.h.b16 %v471
        %v1070 = vunpack.c.l.b16 %v472
        %v1071 = vunpack.c.h.b16 %v472
        %v1072 = vunpack.c.l.b16 %v473
        %v1073 = vunpack.c.h.b16 %v473
        %v1074 = vunpack.c.l.b16 %v474
        %v1075 = vunpack.c.l.b16 %v475
        %v1076 = vunpack.c.h.b16 %v475
        %v1077 = vunpack.c.l.b16 %v476
        %v1078 = vunpack.c.h.b16 %v476
        %v1079 = vunpack.c.l.b16 %v477
        %v1080 = vunpack.c.h.b16 %v477
        %v1081 = vunpack.c.l.b16 %v478
        %v1082 = vunpack.c.l.b16 %v479
        %v1083 = vunpack.c.h.b16 %v479
        %v1084 = vunpack.c.l.b16 %v480
        %v1085 = vunpack.c.h.b16 %v480
        %v1086 = vunpack.c.l.b16 %v481
        %v1087 = vunpack.c.h.b16 %v481
        %v1088 = vunpack.c.l.b16 %v482
        %v1089 = vunpack.c.l.b16 %v483
        %v1090 = vunpack.c.h.b16 %v483
        %v1091 = vunpack.c.l.b16 %v484
        %v1092 = vunpack.c.h.b16 %v484
        %v1093 = vunpack.c.l.b16 %v485
        %v1094 = vunpack.c.h.b16 %v485
        %v1095 = vunpack.c.l.b16 %v486
        %v1096 = vunpack.c.l.b16 %v487
        %v1097 = vunpack.c.h.b16 %v487
        %v1098 = vunpack.c.l.b16 %v488
        %v1099 = vunpack.c.h.b16 %v488
        %v1100 = vunpack.c.l.b16 %v489
        %v1101 = vunpack.c.h.b16 %v489
        %v1102 = vunpack.c.l.b16 %v490
        %v1103 = vunpack.c.l.b16 %v491
        %v1104 = vunpack.c.h.b16 %v491
        %v1105 = vunpack.c.l.b16 %v492
        %v1106 = vunpack.c.h.b16 %v492
        %v1107 = vunpack.c.l.b16 %v493
        %v1108 = vunpack.c.h.b16 %v493
        %v1109 = vunpack.c.l.b16 %v494
        %v1110 = vunpack.c.l.b16 %v495
        %v1111 = vunpack.c.h.b16 %v495
        %v1112 = vunpack.c.l.b16 %v496
        %v1113 = vunpack.c.h.b16 %v496
        %v1114 = vunpack.c.l.b16 %v497
        %v1115 = vunpack.c.h.b16 %v497
        %v1116 = vunpack.c.l.b16 %v498
        %v1117 = vunpack.c.l.b16 %v499
        %v1118 = vunpack.c.h.b16 %v499
        %v1119 = vunpack.c.l.b16 %v500
        %v1120 = vunpack.c.h.b16 %v500
        %v1121 = vunpack.c.l.b16 %v501
        %v1122 = vunpack.c.h.b16 %v501
        %v1123 = vunpack.c.l.b16 %v502
        %v1124 = vunpack.c.l.b16 %v503
        %v1125 = vunpack.c.h.b16 %v503
        %v1126 = vunpack.c.l.b16 %v504
        %v1127 = vunpack.c.h.b16 %v504
        %v1128 = vunpack.c.l.b16 %v505
        %v1129 = vunpack.c.h.b16 %v505
        %v1130 = vunpack.c.l.b16 %v506
        %v1131 = vunpack.c.l.b16 %v507
        %v1132 = vunpack.c.h.b16 %v507
        %v1133 = vunpack.c.l.b16 %v508
        %v1134 = vunpack.c.h.b16 %v508
        %v1135 = vunpack.c.l.b16 %v509
        %v1136 = vunpack.c.h.b16 %v509
        %v1137 = vunpack.c.l.b16 %v510
        %v1138 = vunpack.c.l.b16 %v511
        %v1139 = vunpack.c.h.b16 %v511
        %v1140 = vunpack.c.l.b16 %v512
        %v1141 = vunpack.c.h.b16 %v512
        %v1142 = vunpack.c.l.b16 %v513
        %v1143 = vunpack.c.h.b16 %v513
        %v1144 = vunpack.c.l.b16 %v514
        %v1145 = vunpack.c.l.b16 %v515
        %v1146 = vunpack.c.h.b16 %v515
        %v1147 = vunpack.c.l.b16 %v516
        %v1148 = vunpack.c.h.b16 %v516
        %v1149 = vunpack.c.l.b16 %v517
        %v1150 = vunpack.c.h.b16 %v517
        %v1151 = vunpack.c.l.b16 %v518
        %v1152 = vunpack.c.l.b16 %v519
        %v1153 = vunpack.c.h.b16 %v519
        %v1154 = vunpack.c.l.b16 %v520
        %v1155 = vunpack.c.h.b16 %v520
        %v1156 = vunpack.c.l.b16 %v521
        %v1157 = vunpack.c.h.b16 %v521
        %v1158 = vunpack.c.l.b16 %v522
        %v1159 = vunpack.c.l.b16 %v523
        %v1160 = vunpack.c.h.b16 %v523
        %v1161 = vunpack.c.l.b16 %v524
        %v1162 = vunpack.c.h.b16 %v524
        %v1163 = vunpack.c.l.b16 %v525
        %v1164 = vunpack.c.h.b16 %v525
        %v1165 = vunpack.c.l.b16 %v526
        %v1166 = vunpack.c.l.b16 %v527
        %v1167 = vunpack.c.h.b16 %v527
        %v1168 = vunpack.c.l.b16 %v528
        %v1169 = vunpack.c.h.b16 %v528
        %v1170 = vunpack.c.l.b16 %v529
        %v1171 = vunpack.c.h.b16 %v529
        %v1172 = vunpack.c.l.b16 %v530
        %v1173 = vpack.c.b16 %v1068, %v1061
        %v1174 = vpack.c.b16 %v1069, %v1062
        %v1175 = vpack.c.b16 %v1070, %v1063
        %v1176 = vpack.c.b16 %v1071, %v1064
        %v1177 = vpack.c.b16 %v1072, %v1065
        %v1178 = vpack.c.b16 %v1073, %v1066
        %v1179 = vpack.c.b16 %v1074, %v1067
        %v1180 = vpack.c.b16 %v1082, %v1075
        %v1181 = vpack.c.b16 %v1083, %v1076
        %v1182 = vpack.c.b16 %v1084, %v1077
        %v1183 = vpack.c.b16 %v1085, %v1078
        %v1184 = vpack.c.b16 %v1086, %v1079
        %v1185 = vpack.c.b16 %v1087, %v1080
        %v1186 = vpack.c.b16 %v1088, %v1081
        %v1187 = vpack.c.b16 %v1096, %v1089
        %v1188 = vpack.c.b16 %v1097, %v1090
        %v1189 = vpack.c.b16 %v1098, %v1091
        %v1190 = vpack.c.b16 %v1099, %v1092
        %v1191 = vpack.c.b16 %v1100, %v1093
        %v1192 = vpack.c.b16 %v1101, %v1094
        %v1193 = vpack.c.b16 %v1102, %v1095
        %v1194 = vpack.c.b16 %v1110, %v1103
        %v1195 = vpack.c.b16 %v1111, %v1104
        %v1196 = vpack.c.b16 %v1112, %v1105
        %v1197 = vpack.c.b16 %v1113, %v1106
        %v1198 = vpack.c.b16 %v1114, %v1107
        %v1199 = vpack.c.b16 %v1115, %v1108
        %v1200 = vpack.c.b16 %v1116, %v1109
        %v1201 = vpack.c.b16 %v1124, %v1117
        %v1202 = vpack.c.b16 %v1125, %v1118
        %v1203 = vpack.c.b16 %v1126, %v1119
        %v1204 = vpack.c.b16 %v1127, %v1120
        %v1205 = vpack.c.b16 %v1128, %v1121
        %v1206 = vpack.c.b16 %v1129, %v1122
        %v1207 = vpack.c.b16 %v1130, %v1123
        %v1208 = vpack.c.b16 %v1138, %v1131
        %v1209 = vpack.c.b16 %v1139, %v1132
        %v1210 = vpack.c.b16 %v1140, %v1133
        %v1211 = vpack.c.b16 %v1141, %v1134
        %v1212 = vpack.c.b16 %v1142, %v1135
        %v1213 = vpack.c.b16 %v1143, %v1136
        %v1214 = vpack.c.b16 %v1144, %v1137
        %v1215 = vpack.c.b16 %v1152, %v1145
        %v1216 = vpack.c.b16 %v1153, %v1146
        %v1217 = vpack.c.b16 %v1154, %v1147
        %v1218 = vpack.c.b16 %v1155, %v1148
        %v1219 = vpack.c.b16 %v1156, %v1149
        %v1220 = vpack.c.b16 %v1157, %v1150
        %v1221 = vpack.c.b16 %v1158, %v1151
        %v1222 = vpack.c.b16 %v1166, %v1159
        %v1223 = vpack.c.b16 %v1167, %v1160
        %v1224 = vpack.c.b16 %v1168, %v1161
        %v1225 = vpack.c.b16 %v1169, %v1162
        %v1226 = vpack.c.b16 %v1170, %v1163
        %v1227 = vpack.c.b16 %v1171, %v1164
        %v1228 = vpack.c.b16 %v1172, %v1165
        %v1733 = vunpack.c.l.b16 %v531
        %v1734 = vunpack.c.h.b16 %v531
        %v1735 = vunpack.c.l.b16 %v532
        %v1736 = vunpack.c.h.b16 %v532
        %v1737 = vunpack.c.l.b16 %v533
        %v1738 = vunpack.c.h.b16 %v533
        %v1739 = vunpack.c.l.b16 %v534
        %v1740 = vunpack.c.h.b16 %v534
        %v1741 = vunpack.c.l.b16 %v535
        %v1742 = vunpack.c.h.b16 %v535
        %v1743 = vunpack.c.l.b16 %v536
        %v1744 = vunpack.c.h.b16 %v536
        %v1745 = vunpack.c.l.b16 %v537
        %v1746 = vunpack.c.h.b16 %v537
        %v1747 = vunpack.c.l.b16 %v538
        %v1748 = vunpack.c.h.b16 %v538
        %v1749 = vunpack.c.l.b16 %v539
        %v1750 = vunpack.c.h.b16 %v539
        %v1751 = vunpack.c.l.b16 %v540
        %v1752 = vunpack.c.h.b16 %v540
        %v1753 = vunpack.c.l.b16 %v541
        %v1754 = vunpack.c.h.b16 %v541
        %v1755 = vunpack.c.l.b16 %v542
        %v1756 = vunpack.c.h.b16 %v542
        %v1757 = vunpack.c.l.b16 %v543
        %v1758 = vunpack.c.h.b16 %v543
        %v1759 = vunpack.c.l.b16 %v544
        %v1760 = vunpack.c.h.b16 %v544
        %v1761 = vunpack.c.l.b16 %v545
        %v1762 = vunpack.c.h.b16 %v545
        %v1763 = vunpack.c.l.b16 %v546
        %v1764 = vunpack.c.h.b16 %v546
        %v1765 = vunpack.c.l.b16 %v547
        %v1766 = vunpack.c.h.b16 %v547
        %v1767 = vunpack.c.l.b16 %v548
        %v1768 = vunpack.c.h.b16 %v548
        %v1769 = vunpack.c.l.b16 %v549
        %v1770 = vunpack.c.h.b16 %v549
        %v1771 = vunpack.c.l.b16 %v550
        %v1772 = vunpack.c.h.b16 %v550
        %v1773 = vunpack.c.l.b16 %v551
        %v1774 = vunpack.c.h.b16 %v551
        %v1775 = vunpack.c.l.b16 %v552
        %v1776 = vunpack.c.h.b16 %v552
        %v1777 = vunpack.c.l.b16 %v553
        %v1778 = vunpack.c.h.b16 %v553
        %v1779 = vunpack.c.l.b16 %v554
        %v1780 = vunpack.c.h.b16 %v554
        %v1781 = vunpack.c.l.b16 %v555
        %v1782 = vunpack.c.h.b16 %v555
        %v1783 = vunpack.c.l.b16 %v556
        %v1784 = vunpack.c.h.b16 %v556
        %v1785 = vunpack.c.l.b16 %v557
        %v1786 = vunpack.c.h.b16 %v557
        %v1787 = vunpack.c.l.b16 %v558
        %v1788 = vunpack.c.h.b16 %v558
        %v1789 = vunpack.c.l.b16 %v559
        %v1790 = vunpack.c.h.b16 %v559
        %v1791 = vunpack.c.l.b16 %v560
        %v1792 = vunpack.c.h.b16 %v560
        %v1793 = vunpack.c.l.b16 %v561
        %v1794 = vunpack.c.h.b16 %v561
        %v1795 = vunpack.c.l.b16 %v562
        %v1796 = vunpack.c.h.b16 %v562
        %v1797 = vunpack.c.l.b16 %v563
        %v1798 = vunpack.c.h.b16 %v563
        %v1799 = vunpack.c.l.b16 %v564
        %v1800 = vunpack.c.h.b16 %v564
        %v1801 = vunpack.c.l.b16 %v565
        %v1802 = vunpack.c.h.b16 %v565
        %v1803 = vunpack.c.l.b16 %v566
        %v1804 = vunpack.c.h.b16 %v566
        %v1805 = vunpack.c.l.b16 %v567
        %v1806 = vunpack.c.h.b16 %v567
        %v1807 = vunpack.c.l.b16 %v568
        %v1808 = vunpack.c.h.b16 %v568
        %v1809 = vunpack.c.l.b16 %v569
        %v1810 = vunpack.c.h.b16 %v569
        %v1811 = vunpack.c.l.b16 %v570
        %v1812 = vunpack.c.h.b16 %v570
        %v1813 = vunpack.c.l.b16 %v571
        %v1814 = vunpack.c.h.b16 %v571
        %v1815 = vunpack.c.l.b16 %v572
        %v1816 = vunpack.c.h.b16 %v572
        %v1817 = vunpack.c.l.b16 %v573
        %v1818 = vunpack.c.h.b16 %v573
        %v1819 = vunpack.c.l.b16 %v574
        %v1820 = vunpack.c.h.b16 %v574
        %v1821 = vunpack.c.l.b16 %v575
        %v1822 = vunpack.c.h.b16 %v575
        %v1823 = vunpack.c.l.b16 %v576
        %v1824 = vunpack.c.h.b16 %v576
        %v1825 = vunpack.c.l.b16 %v577
        %v1826 = vunpack.c.h.b16 %v577
        %v1827 = vunpack.c.l.b16 %v578
        %v1828 = vunpack.c.h.b16 %v578
        %v1829 = vunpack.c.l.b16 %v579
        %v1830 = vunpack.c.h.b16 %v579
        %v1831 = vunpack.c.l.b16 %v580
        %v1832 = vunpack.c.h.b16 %v580
        %v1833 = vunpack.c.l.b16 %v581
        %v1834 = vunpack.c.h.b16 %v581
        %v1835 = vunpack.c.l.b16 %v582
        %v1836 = vunpack.c.h.b16 %v582
        %v1837 = vunpack.c.l.b16 %v583
        %v1838 = vunpack.c.h.b16 %v583
        %v1839 = vunpack.c.l.b16 %v584
        %v1840 = vunpack.c.h.b16 %v584
        %v1841 = vunpack.c.l.b16 %v585
        %v1842 = vunpack.c.h.b16 %v585
        %v1843 = vunpack.c.l.b16 %v586
        %v1844 = vunpack.c.h.b16 %v586
        %v1845 = vunpack.c.l.b16 %v587
        %v1846 = vunpack.c.h.b16 %v587
        %v1847 = vunpack.c.l.b16 %v588
        %v1848 = vunpack.c.h.b16 %v588
        %v1849 = vunpack.c.l.b16 %v589
        %v1850 = vunpack.c.h.b16 %v589
        %v1851 = vunpack.c.l.b16 %v590
        %v1852 = vunpack.c.h.b16 %v590
        %v1853 = vunpack.c.l.b16 %v591
        %v1854 = vunpack.c.h.b16 %v591
        %v1855 = vunpack.c.l.b16 %v592
        %v1856 = vunpack.c.h.b16 %v592
        %v1857 = vunpack.c.l.b16 %v593
        %v1858 = vunpack.c.h.b16 %v593
        %v1859 = vunpack.c.l.b16 %v594
        %v1860 = vunpack.c.h.b16 %v594
        %v1861 = vunpack.c.l.b16 %v595
        %v1862 = vunpack.c.h.b16 %v595
        %v1863 = vunpack.c.l.b16 %v596
        %v1864 = vunpack.c.h.b16 %v596
        %v1865 = vunpack.c.l.b16 %v597
        %v1866 = vunpack.c.h.b16 %v597
        %v1867 = vunpack.c.l.b16 %v598
        %v1868 = vunpack.c.h.b16 %v598
        %v1869 = vunpack.c.l.b16 %v599
        %v1870 = vunpack.c.h.b16 %v599
        %v1871 = vunpack.c.l.b16 %v600
        %v1872 = vunpack.c.h.b16 %v600
        %v1873 = vunpack.c.l.b16 %v601
        %v1874 = vunpack.c.h.b16 %v601
        %v1875 = vunpack.c.l.b16 %v602
        %v1876 = vunpack.c.h.b16 %v602
        %v1877 = vunpack.c.l.b16 %v603
        %v1878 = vunpack.c.h.b16 %v603
        %v1879 = vunpack.c.l.b16 %v604
        %v1880 = vunpack.c.h.b16 %v604
        %v1881 = vunpack.c.l.b16 %v605
        %v1882 = vunpack.c.h.b16 %v605
        %v1883 = vunpack.c.l.b16 %v606
        %v1884 = vunpack.c.h.b16 %v606
        %v1885 = vunpack.c.l.b16 %v607
        %v1886 = vunpack.c.h.b16 %v607
        %v1887 = vunpack.c.l.b16 %v608
        %v1888 = vunpack.c.h.b16 %v608
        %v1889 = vunpack.c.l.b16 %v609
        %v1890 = vunpack.c.h.b16 %v609
        %v1891 = vunpack.c.l.b16 %v610
        %v1892 = vunpack.c.h.b16 %v610
        %v1893 = vunpack.c.l.b16 %v611
        %v1894 = vunpack.c.h.b16 %v611
        %v1895 = vunpack.c.l.b16 %v612
        %v1896 = vunpack.c.h.b16 %v612
        %v1897 = vunpack.c.l.b16 %v613
        %v1898 = vunpack.c.h.b16 %v613
        %v1899 = vunpack.c.l.b16 %v614
        %v1900 = vunpack.c.h.b16 %v614
        %v1901 = vunpack.c.l.b16 %v615
        %v1902 = vunpack.c.h.b16 %v615
        %v1903 = vunpack.c.l.b16 %v616
        %v1904 = vunpack.c.h.b16 %v616
        %v1905 = vunpack.c.l.b16 %v617
        %v1906 = vunpack.c.h.b16 %v617
        %v1907 = vunpack.c.l.b16 %v618
        %v1908 = vunpack.c.h.b16 %v618
        %v1909 = vunpack.c.l.b16 %v619
        %v1910 = vunpack.c.h.b16 %v619
        %v1911 = vunpack.c.l.b16 %v620
        %v1912 = vunpack.c.h.b16 %v620
        %v1913 = vunpack.c.l.b16 %v621
        %v1914 = vunpack.c.h.b16 %v621
        %v1915 = vunpack.c.l.b16 %v622
        %v1916 = vunpack.c.h.b16 %v622
        %v1917 = vunpack.c.l.b16 %v623
        %v1918 = vunpack.c.h.b16 %v623
        %v1919 = vunpack.c.l.b16 %v624
        %v1920 = vunpack.c.h.b16 %v624
        %v1921 = vunpack.c.l.b16 %v625
        %v1922 = vunpack.c.h.b16 %v625
        %v1923 = vunpack.c.l.b16 %v626
        %v1924 = vunpack.c.h.b16 %v626
        %v1925 = vunpack.c.l.b16 %v627
        %v1926 = vunpack.c.h.b16 %v627
        %v1927 = vunpack.c.l.b16 %v628
        %v1928 = vunpack.c.h.b16 %v628
        %v1929 = vunpack.c.l.b16 %v629
        %v1930 = vunpack.c.h.b16 %v629
        %v1931 = vunpack.c.l.b16 %v630
        %v1932 = vunpack.c.h.b16 %v630
        %v1933 = vunpack.c.l.b16 %v631
        %v1934 = vunpack.c.h.b16 %v631
        %v1935 = vunpack.c.l.b16 %v632
        %v1936 = vunpack.c.h.b16 %v632
        %v1937 = vunpack.c.l.b16 %v633
        %v1938 = vunpack.c.h.b16 %v633
        %v1939 = vunpack.c.l.b16 %v634
        %v1940 = vunpack.c.h.b16 %v634
        %v1941 = vunpack.c.l.b16 %v635
        %v1942 = vunpack.c.h.b16 %v635
        %v1943 = vunpack.c.l.b16 %v636
        %v1944 = vunpack.c.h.b16 %v636
        %v1945 = vunpack.c.l.b16 %v637
        %v1946 = vunpack.c.h.b16 %v637
        %v1947 = vunpack.c.l.b16 %v638
        %v1948 = vunpack.c.h.b16 %v638
        %v1949 = vunpack.c.l.b16 %v639
        %v1950 = vunpack.c.h.b16 %v639
        %v1951 = vunpack.c.l.b16 %v640
        %v1952 = vunpack.c.h.b16 %v640
        %v1953 = vunpack.c.l.b16 %v641
        %v1954 = vunpack.c.h.b16 %v641
        %v1955 = vunpack.c.l.b16 %v642
        %v1956 = vunpack.c.h.b16 %v642
        %v1957 = vunpack.c.l.b16 %v643
        %v1958 = vunpack.c.h.b16 %v643
        %v1959 = vunpack.c.l.b16 %v644
        %v1960 = vunpack.c.h.b16 %v644
        %v1961 = vunpack.c.l.b16 %v645
        %v1962 = vunpack.c.h.b16 %v645
        %v1963 = vunpack.c.l.b16 %v646
        %v1964 = vunpack.c.h.b16 %v646
        %v1965 = vunpack.c.l.b16 %v647
        %v1966 = vunpack.c.h.b16 %v647
        %v1967 = vunpack.c.l.b16 %v648
        %v1968 = vunpack.c.h.b16 %v648
        %v1969 = vunpack.c.l.b16 %v649
        %v1970 = vunpack.c.h.b16 %v649
        %v1971 = vunpack.c.l.b16 %v650
        %v1972 = vunpack.c.h.b16 %v650
        %v1973 = vunpack.c.l.b16 %v651
        %v1974 = vunpack.c.h.b16 %v651
        %v1975 = vunpack.c.l.b16 %v652
        %v1976 = vunpack.c.h.b16 %v652
        %v1977 = vunpack.c.l.b16 %v653
        %v1978 = vunpack.c.h.b16 %v653
        %v1979 = vunpack.c.l.b16 %v654
        %v1980 = vunpack.c.h.b16 %v654
        %v1981 = vunpack.c.l.b16 %v655
        %v1982 = vunpack.c.h.b16 %v655
        %v1983 = vunpack.c.l.b16 %v656
        %v1984 = vunpack.c.h.b16 %v656
        %v1985 = vunpack.c.l.b16 %v657
        %v1986 = vunpack.c.h.b16 %v657
        %v1987 = vunpack.c.l.b16 %v658
        %v1988 = vunpack.c.h.b16 %v658
        %v1989 = vunpack.c.l.b16 %v659
        %v1990 = vunpack.c.h.b16 %v659
        %v1991 = vunpack.c.l.b16 %v660
        %v1992 = vunpack.c.h.b16 %v660
        %v1993 = vunpack.c.l.b16 %v661
        %v1994 = vunpack.c.h.b16 %v661
        %v1995 = vunpack.c.l.b16 %v662
        %v1996 = vunpack.c.h.b16 %v662
        %v1997 = vunpack.c.l.b16 %v663
        %v1998 = vunpack.c.h.b16 %v663
        %v1999 = vunpack.c.l.b16 %v664
        %v2000 = vunpack.c.h.b16 %v664
        %v2001 = vunpack.c.l.b16 %v665
        %v2002 = vunpack.c.h.b16 %v665
        %v2003 = vunpack.c.l.b16 %v666
        %v2004 = vunpack.c.h.b16 %v666
        %v2005 = vunpack.c.l.b16 %v667
        %v2006 = vunpack.c.h.b16 %v667
        %v2007 = vunpack.c.l.b16 %v668
        %v2008 = vunpack.c.h.b16 %v668
        %v2009 = vunpack.c.l.b16 %v669
        %v2010 = vunpack.c.h.b16 %v669
        %v2011 = vunpack.c.l.b16 %v670
        %v2012 = vunpack.c.h.b16 %v670
        %v2013 = vunpack.c.l.b16 %v671
        %v2014 = vunpack.c.h.b16 %v671
        %v2015 = vunpack.c.l.b16 %v672
        %v2016 = vunpack.c.h.b16 %v672
        %v2017 = vunpack.c.l.b16 %v673
        %v2018 = vunpack.c.h.b16 %v673
        %v2019 = vunpack.c.l.b16 %v674
        %v2020 = vunpack.c.h.b16 %v674
        %v2021 = vunpack.c.l.b16 %v675
        %v2022 = vunpack.c.h.b16 %v675
        %v2023 = vunpack.c.l.b16 %v676
        %v2024 = vunpack.c.h.b16 %v676
        %v2025 = vunpack.c.l.b16 %v677
        %v2026 = vunpack.c.h.b16 %v677
        %v2027 = vunpack.c.l.b16 %v678
        %v2028 = vunpack.c.h.b16 %v678
        %v2029 = vunpack.c.l.b16 %v679
        %v2030 = vunpack.c.h.b16 %v679
        %v2031 = vunpack.c.l.b16 %v680
        %v2032 = vunpack.c.h.b16 %v680
        %v2033 = vunpack.c.l.b16 %v681
        %v2034 = vunpack.c.h.b16 %v681
        %v2035 = vunpack.c.l.b16 %v682
        %v2036 = vunpack.c.h.b16 %v682
        %v2037 = vunpack.c.l.b16 %v683
        %v2038 = vunpack.c.h.b16 %v683
        %v2039 = vunpack.c.l.b16 %v684
        %v2040 = vunpack.c.h.b16 %v684
        %v2041 = vunpack.c.l.b16 %v685
        %v2042 = vunpack.c.h.b16 %v685
        %v2043 = vunpack.c.l.b16 %v686
        %v2044 = vunpack.c.h.b16 %v686
        %v2045 = vunpack.c.l.b16 %v687
        %v2046 = vunpack.c.h.b16 %v687
        %v2047 = vunpack.c.l.b16 %v688
        %v2048 = vunpack.c.h.b16 %v688
        %v2049 = vunpack.c.l.b16 %v689
        %v2050 = vunpack.c.h.b16 %v689
        %v2051 = vunpack.c.l.b16 %v690
        %v2052 = vunpack.c.h.b16 %v690
        %v2053 = vunpack.c.l.b16 %v691
        %v2054 = vunpack.c.h.b16 %v691
        %v2055 = vunpack.c.l.b16 %v692
        %v2056 = vunpack.c.h.b16 %v692
        %v2057 = vunpack.c.l.b16 %v693
        %v2058 = vunpack.c.h.b16 %v693
        %v2059 = vunpack.c.l.b16 %v694
        %v2060 = vunpack.c.h.b16 %v694
        %v2061 = vunpack.c.l.b16 %v695
        %v2062 = vunpack.c.h.b16 %v695
        %v2063 = vunpack.c.l.b16 %v696
        %v2064 = vunpack.c.h.b16 %v696
        %v2065 = vunpack.c.l.b16 %v697
        %v2066 = vunpack.c.h.b16 %v697
        %v2067 = vunpack.c.l.b16 %v698
        %v2068 = vunpack.c.h.b16 %v698
        %v2069 = vunpack.c.l.b16 %v699
        %v2070 = vunpack.c.h.b16 %v699
        %v2071 = vunpack.c.l.b16 %v700
        %v2072 = vunpack.c.h.b16 %v700
        %v2073 = vunpack.c.l.b16 %v701
        %v2074 = vunpack.c.h.b16 %v701
        %v2075 = vunpack.c.l.b16 %v702
        %v2076 = vunpack.c.h.b16 %v702
        %v2077 = vunpack.c.l.b16 %v703
        %v2078 = vunpack.c.h.b16 %v703
        %v2079 = vunpack.c.l.b16 %v704
        %v2080 = vunpack.c.h.b16 %v704
        %v2081 = vunpack.c.l.b16 %v705
        %v2082 = vunpack.c.h.b16 %v705
        %v2083 = vunpack.c.l.b16 %v706
        %v2084 = vunpack.c.h.b16 %v706
        %v2085 = vunpack.c.l.b16 %v707
        %v2086 = vunpack.c.h.b16 %v707
        %v2087 = vunpack.c.l.b16 %v708
        %v2088 = vunpack.c.h.b16 %v708
        %v2089 = vunpack.c.l.b16 %v709
        %v2090 = vunpack.c.h.b16 %v709
        %v2091 = vunpack.c.l.b16 %v710
        %v2092 = vunpack.c.h.b16 %v710
        %v2093 = vunpack.c.l.b16 %v711
        %v2094 = vunpack.c.h.b16 %v711
        %v2095 = vunpack.c.l.b16 %v712
        %v2096 = vunpack.c.h.b16 %v712
        %v2097 = vunpack.c.l.b16 %v713
        %v2098 = vunpack.c.h.b16 %v713
        %v2099 = vunpack.c.l.b16 %v714
        %v2100 = vunpack.c.h.b16 %v714
        %v2101 = vunpack.c.l.b16 %v715
        %v2102 = vunpack.c.h.b16 %v715
        %v2103 = vunpack.c.l.b16 %v716
        %v2104 = vunpack.c.h.b16 %v716
        %v2105 = vunpack.c.l.b16 %v717
        %v2106 = vunpack.c.h.b16 %v717
        %v2107 = vunpack.c.l.b16 %v718
        %v2108 = vunpack.c.h.b16 %v718
        %v2109 = vunpack.c.l.b16 %v719
        %v2110 = vunpack.c.h.b16 %v719
        %v2111 = vunpack.c.l.b16 %v720
        %v2112 = vunpack.c.h.b16 %v720
        %v2113 = vunpack.c.l.b16 %v721
        %v2114 = vunpack.c.h.b16 %v721
        %v2115 = vunpack.c.l.b16 %v722
        %v2116 = vunpack.c.h.b16 %v722
        %v2117 = vunpack.c.l.b16 %v723
        %v2118 = vunpack.c.h.b16 %v723
        %v2119 = vunpack.c.l.b16 %v724
        %v2120 = vunpack.c.h.b16 %v724
        %v2121 = vunpack.c.l.b16 %v725
        %v2122 = vunpack.c.h.b16 %v725
        %v2123 = vunpack.c.l.b16 %v726
        %v2124 = vunpack.c.h.b16 %v726
        %v2125 = vunpack.c.l.b16 %v727
        %v2126 = vunpack.c.h.b16 %v727
        %v2127 = vunpack.c.l.b16 %v728
        %v2128 = vunpack.c.h.b16 %v728
        %v2129 = vunpack.c.l.b16 %v729
        %v2130 = vunpack.c.h.b16 %v729
        %v2131 = vunpack.c.l.b16 %v730
        %v2132 = vunpack.c.h.b16 %v730
        %v2133 = vunpack.c.l.b16 %v731
        %v2134 = vunpack.c.h.b16 %v731
        %v2135 = vunpack.c.l.b16 %v732
        %v2136 = vunpack.c.h.b16 %v732
        %v2137 = vunpack.c.l.b16 %v733
        %v2138 = vunpack.c.h.b16 %v733
        %v2139 = vunpack.c.l.b16 %v734
        %v2140 = vunpack.c.h.b16 %v734
        %v2141 = vunpack.c.l.b16 %v735
        %v2142 = vunpack.c.h.b16 %v735
        %v2143 = vunpack.c.l.b16 %v736
        %v2144 = vunpack.c.h.b16 %v736
        %v2145 = vunpack.c.l.b16 %v737
        %v2146 = vunpack.c.h.b16 %v737
        %v2147 = vunpack.c.l.b16 %v738
        %v2148 = vunpack.c.h.b16 %v738
        %v2149 = vunpack.c.l.b16 %v739
        %v2150 = vunpack.c.h.b16 %v739
        %v2151 = vunpack.c.l.b16 %v740
        %v2152 = vunpack.c.h.b16 %v740
        %v2153 = vunpack.c.l.b16 %v741
        %v2154 = vunpack.c.h.b16 %v741
        %v2155 = vunpack.c.l.b16 %v742
        %v2156 = vunpack.c.h.b16 %v742
        %v2157 = vunpack.c.l.b16 %v743
        %v2158 = vunpack.c.h.b16 %v743
        %v2159 = vunpack.c.l.b16 %v744
        %v2160 = vunpack.c.h.b16 %v744
        %v2161 = vunpack.c.l.b16 %v745
        %v2162 = vunpack.c.h.b16 %v745
        %v2163 = vunpack.c.l.b16 %v746
        %v2164 = vunpack.c.h.b16 %v746
        %v2165 = vunpack.c.l.b16 %v747
        %v2166 = vunpack.c.h.b16 %v747
        %v2167 = vunpack.c.l.b16 %v748
        %v2168 = vunpack.c.h.b16 %v748
        %v2169 = vunpack.c.l.b16 %v749
        %v2170 = vunpack.c.h.b16 %v749
        %v2171 = vunpack.c.l.b16 %v750
        %v2172 = vunpack.c.h.b16 %v750
        %v2173 = vunpack.c.l.b16 %v751
        %v2174 = vunpack.c.h.b16 %v751
        %v2175 = vunpack.c.l.b16 %v752
        %v2176 = vunpack.c.h.b16 %v752
        %v2177 = vunpack.c.l.b16 %v753
        %v2178 = vunpack.c.h.b16 %v753
        %v2179 = vunpack.c.l.b16 %v754
        %v2180 = vunpack.c.h.b16 %v754
        %v2181 = vunpack.c.l.b16 %v755
        %v2182 = vunpack.c.h.b16 %v755
        %v2183 = vunpack.c.l.b16 %v756
        %v2184 = vunpack.c.h.b16 %v756
        %v2185 = vunpack.c.l.b16 %v757
        %v2186 = vunpack.c.h.b16 %v757
        %v2187 = vunpack.c.l.b16 %v758
        %v2188 = vunpack.c.h.b16 %v758
        %v2189 = vunpack.c.l.b16 %v759
        %v2190 = vunpack.c.h.b16 %v759
        %v2191 = vunpack.c.l.b16 %v760
        %v2192 = vunpack.c.h.b16 %v760
        %v2193 = vunpack.c.l.b16 %v761
        %v2194 = vunpack.c.h.b16 %v761
        %v2195 = vunpack.c.l.b16 %v762
        %v2196 = vunpack.c.h.b16 %v762
        %v2197 = vunpack.c.l.b16 %v763
        %v2198 = vunpack.c.h.b16 %v763
        %v2199 = vunpack.c.l.b16 %v764
        %v2200 = vunpack.c.h.b16 %v764
        %v2201 = vunpack.c.l.b16 %v765
        %v2202 = vunpack.c.h.b16 %v765
        %v2203 = vunpack.c.l.b16 %v766
        %v2204 = vunpack.c.h.b16 %v766
        %v2205 = vunpack.c.l.b16 %v767
        %v2206 = vunpack.c.h.b16 %v767
        %v2207 = vunpack.c.l.b16 %v768
        %v2208 = vunpack.c.h.b16 %v768
        %v2209 = vunpack.c.l.b16 %v769
        %v2210 = vunpack.c.h.b16 %v769
        %v2211 = vunpack.c.l.b16 %v770
        %v2212 = vunpack.c.h.b16 %v770
        %v2213 = vunpack.c.l.b16 %v771
        %v2214 = vunpack.c.h.b16 %v771
        %v2215 = vunpack.c.l.b16 %v772
        %v2216 = vunpack.c.h.b16 %v772
        %v2217 = vunpack.c.l.b16 %v773
        %v2218 = vunpack.c.h.b16 %v773
        %v2219 = vunpack.c.l.b16 %v774
        %v2220 = vunpack.c.h.b16 %v774
        %v2221 = vunpack.c.l.b16 %v775
        %v2222 = vunpack.c.h.b16 %v775
        %v2223 = vunpack.c.l.b16 %v776
        %v2224 = vunpack.c.h.b16 %v776
        %v2225 = vunpack.c.l.b16 %v777
        %v2226 = vunpack.c.h.b16 %v777
        %v2227 = vunpack.c.l.b16 %v778
        %v2228 = vunpack.c.h.b16 %v778
        %v2229 = vunpack.c.l.b16 %v779
        %v2230 = vunpack.c.h.b16 %v779
        %v2231 = vunpack.c.l.b16 %v780
        %v2232 = vunpack.c.h.b16 %v780
        %v2233 = vunpack.c.l.b16 %v781
        %v2234 = vunpack.c.h.b16 %v781
        %v2235 = vunpack.c.l.b16 %v782
        %v2236 = vunpack.c.h.b16 %v782
        %v2237 = vunpack.c.l.b16 %v783
        %v2238 = vunpack.c.h.b16 %v783
        %v2239 = vunpack.c.l.b16 %v784
        %v2240 = vunpack.c.h.b16 %v784
        %v2241 = vunpack.c.l.b16 %v785
        %v2242 = vunpack.c.h.b16 %v785
        %v2243 = vunpack.c.l.b16 %v786
        %v2244 = vunpack.c.h.b16 %v786
        %v2245 = vunpack.c.l.b16 %v787
        %v2246 = vunpack.c.h.b16 %v787
        %v2247 = vunpack.c.l.b16 %v788
        %v2248 = vunpack.c.h.b16 %v788
        %v2249 = vunpack.c.l.b16 %v789
        %v2250 = vunpack.c.h.b16 %v789
        %v2251 = vunpack.c.l.b16 %v790
        %v2252 = vunpack.c.h.b16 %v790
        %v2253 = vunpack.c.l.b16 %v791
        %v2254 = vunpack.c.h.b16 %v791
        %v2255 = vunpack.c.l.b16 %v792
        %v2256 = vunpack.c.h.b16 %v792
        %v2257 = vunpack.c.l.b16 %v793
        %v2258 = vunpack.c.h.b16 %v793
        %v2259 = vunpack.c.l.b16 %v794
        %v2260 = vunpack.c.h.b16 %v794
        %v2261 = vunpack.c.l.b16 %v795
        %v2262 = vunpack.c.h.b16 %v795
        %v2263 = vunpack.c.l.b16 %v796
        %v2264 = vunpack.c.h.b16 %v796
        %v2265 = vunpack.c.l.b16 %v797
        %v2266 = vunpack.c.h.b16 %v797
        %v2267 = vunpack.c.l.b16 %v798
        %v2268 = vunpack.c.h.b16 %v798
        %v2269 = vunpack.c.l.b16 %v799
        %v2270 = vunpack.c.h.b16 %v799
        %v2271 = vunpack.c.l.b16 %v800
        %v2272 = vunpack.c.h.b16 %v800
        %v2273 = vunpack.c.l.b16 %v801
        %v2274 = vunpack.c.h.b16 %v801
        %v2275 = vunpack.c.l.b16 %v802
        %v2276 = vunpack.c.h.b16 %v802
        %v2277 = vunpack.c.l.b16 %v803
        %v2278 = vunpack.c.h.b16 %v803
        %v2279 = vunpack.c.l.b16 %v804
        %v2280 = vunpack.c.h.b16 %v804
        %v2281 = vunpack.c.l.b16 %v805
        %v2282 = vunpack.c.h.b16 %v805
        %v2283 = vunpack.c.l.b16 %v806
        %v2284 = vunpack.c.h.b16 %v806
        %v2285 = vunpack.c.l.b16 %v807
        %v2286 = vunpack.c.h.b16 %v807
        %v2287 = vunpack.c.l.b16 %v808
        %v2288 = vunpack.c.h.b16 %v808
        %v2289 = vunpack.c.l.b16 %v809
        %v2290 = vunpack.c.h.b16 %v809
        %v2291 = vunpack.c.l.b16 %v810
        %v2292 = vunpack.c.h.b16 %v810
        %v2293 = vunpack.c.l.b16 %v811
        %v2294 = vunpack.c.h.b16 %v811
        %v2295 = vunpack.c.l.b16 %v812
        %v2296 = vunpack.c.h.b16 %v812
        %v2297 = vunpack.c.l.b16 %v813
        %v2298 = vunpack.c.h.b16 %v813
        %v2299 = vunpack.c.l.b16 %v814
        %v2300 = vunpack.c.h.b16 %v814
        %v2301 = vunpack.c.l.b16 %v815
        %v2302 = vunpack.c.h.b16 %v815
        %v2303 = vunpack.c.l.b16 %v816
        %v2304 = vunpack.c.h.b16 %v816
        %v2305 = vunpack.c.l.b16 %v817
        %v2306 = vunpack.c.h.b16 %v817
        %v2307 = vunpack.c.l.b16 %v818
        %v2308 = vunpack.c.h.b16 %v818
        %v2309 = vunpack.c.l.b16 %v819
        %v2310 = vunpack.c.h.b16 %v819
        %v2311 = vunpack.c.l.b16 %v820
        %v2312 = vunpack.c.h.b16 %v820
        %v2313 = vunpack.c.l.b16 %v821
        %v2314 = vunpack.c.h.b16 %v821
        %v2315 = vunpack.c.l.b16 %v822
        %v2316 = vunpack.c.h.b16 %v822
        %v2317 = vunpack.c.l.b16 %v823
        %v2318 = vunpack.c.h.b16 %v823
        %v2319 = vunpack.c.l.b16 %v824
        %v2320 = vunpack.c.h.b16 %v824
        %v2321 = vunpack.c.l.b16 %v825
        %v2322 = vunpack.c.h.b16 %v825
        %v2323 = vunpack.c.l.b16 %v826
        %v2324 = vunpack.c.h.b16 %v826
        %v2325 = vunpack.c.l.b16 %v827
        %v2326 = vunpack.c.h.b16 %v827
        %v2327 = vunpack.c.l.b16 %v828
        %v2328 = vunpack.c.h.b16 %v828
        %v2329 = vunpack.c.l.b16 %v829
        %v2330 = vunpack.c.h.b16 %v829
        %v2331 = vunpack.c.l.b16 %v830
        %v2332 = vunpack.c.h.b16 %v830
        %v2333 = vunpack.c.l.b16 %v831
        %v2334 = vunpack.c.h.b16 %v831
        %v2335 = vunpack.c.l.b16 %v832
        %v2336 = vunpack.c.h.b16 %v832
        %v2337 = vunpack.c.l.b16 %v833
        %v2338 = vunpack.c.h.b16 %v833
        %v2339 = vunpack.c.l.b16 %v834
        %v2340 = vunpack.c.h.b16 %v834
        %v2341 = vunpack.c.l.b16 %v835
        %v2342 = vunpack.c.h.b16 %v835
        %v2343 = vunpack.c.l.b16 %v836
        %v2344 = vunpack.c.h.b16 %v836
        %v2345 = vunpack.c.l.b16 %v837
        %v2346 = vunpack.c.h.b16 %v837
        %v2347 = vunpack.c.l.b16 %v838
        %v2348 = vunpack.c.h.b16 %v838
        %v2349 = vunpack.c.l.b16 %v839
        %v2350 = vunpack.c.h.b16 %v839
        %v2351 = vunpack.c.l.b16 %v840
        %v2352 = vunpack.c.h.b16 %v840
        %v2353 = vunpack.c.l.b16 %v841
        %v2354 = vunpack.c.h.b16 %v841
        %v2355 = vunpack.c.l.b16 %v842
        %v2356 = vunpack.c.h.b16 %v842
        %v2357 = vunpack.c.l.b16 %v843
        %v2358 = vunpack.c.h.b16 %v843
        %v2359 = vunpack.c.l.b16 %v844
        %v2360 = vunpack.c.h.b16 %v844
        %v2361 = vunpack.c.l.b16 %v845
        %v2362 = vunpack.c.h.b16 %v845
        %v2363 = vunpack.c.l.b16 %v846
        %v2364 = vunpack.c.h.b16 %v846
        %v2365 = vunpack.c.l.b16 %v847
        %v2366 = vunpack.c.h.b16 %v847
        %v2367 = vunpack.c.l.b16 %v848
        %v2368 = vunpack.c.h.b16 %v848
        %v2369 = vunpack.c.l.b16 %v849
        %v2370 = vunpack.c.h.b16 %v849
        %v2371 = vunpack.c.l.b16 %v850
        %v2372 = vunpack.c.h.b16 %v850
        %v2373 = vunpack.c.l.b16 %v851
        %v2374 = vunpack.c.h.b16 %v851
        %v2375 = vunpack.c.l.b16 %v852
        %v2376 = vunpack.c.h.b16 %v852
        %v2377 = vunpack.c.l.b16 %v853
        %v2378 = vunpack.c.h.b16 %v853
        %v2379 = vunpack.c.l.b16 %v854
        %v2380 = vunpack.c.h.b16 %v854
        %v2381 = vunpack.c.l.b16 %v855
        %v2382 = vunpack.c.h.b16 %v855
        %v2383 = vunpack.c.l.b16 %v856
        %v2384 = vunpack.c.h.b16 %v856
        %v2385 = vunpack.c.l.b16 %v857
        %v2386 = vunpack.c.h.b16 %v857
        %v2387 = vunpack.c.l.b16 %v858
        %v2388 = vunpack.c.h.b16 %v858
        %v2389 = vunpack.c.l.b16 %v859
        %v2390 = vunpack.c.h.b16 %v859
        %v2391 = vunpack.c.l.b16 %v860
        %v2392 = vunpack.c.h.b16 %v860
        %v2393 = vunpack.c.l.b16 %v861
        %v2394 = vunpack.c.h.b16 %v861
        %v2395 = vunpack.c.l.b16 %v862
        %v2396 = vunpack.c.h.b16 %v862
        %v2397 = vunpack.c.l.b16 %v863
        %v2398 = vunpack.c.h.b16 %v863
        %v2399 = vunpack.c.l.b16 %v864
        %v2400 = vunpack.c.h.b16 %v864
        %v2401 = vunpack.c.l.b16 %v865
        %v2402 = vunpack.c.h.b16 %v865
        %v2403 = vunpack.c.l.b16 %v866
        %v2404 = vunpack.c.h.b16 %v866
        %v2405 = vunpack.c.l.b16 %v867
        %v2406 = vunpack.c.h.b16 %v867
        %v2407 = vunpack.c.l.b16 %v868
        %v2408 = vunpack.c.h.b16 %v868
        %v2409 = vunpack.c.l.b16 %v869
        %v2410 = vunpack.c.h.b16 %v869
        %v2411 = vunpack.c.l.b16 %v870
        %v2412 = vunpack.c.h.b16 %v870
        %v2413 = vunpack.c.l.b16 %v871
        %v2414 = vunpack.c.h.b16 %v871
        %v2415 = vunpack.c.l.b16 %v872
        %v2416 = vunpack.c.h.b16 %v872
        %v2417 = vunpack.c.l.b16 %v873
        %v2418 = vunpack.c.h.b16 %v873
        %v2419 = vunpack.c.l.b16 %v874
        %v2420 = vunpack.c.h.b16 %v874
        %v2421 = vunpack.c.l.b16 %v875
        %v2422 = vunpack.c.h.b16 %v875
        %v2423 = vunpack.c.l.b16 %v876
        %v2424 = vunpack.c.h.b16 %v876
        %v2425 = vunpack.c.l.b16 %v877
        %v2426 = vunpack.c.h.b16 %v877
        %v2427 = vunpack.c.l.b16 %v878
        %v2428 = vunpack.c.h.b16 %v878
        %v2429 = vunpack.c.l.b16 %v879
        %v2430 = vunpack.c.h.b16 %v879
        %v2431 = vunpack.c.l.b16 %v880
        %v2432 = vunpack.c.h.b16 %v880
        %v2433 = vunpack.c.l.b16 %v881
        %v2434 = vunpack.c.h.b16 %v881
        %v2435 = vunpack.c.l.b16 %v882
        %v2436 = vunpack.c.h.b16 %v882
        %v2437 = vunpack.c.l.b16 %v883
        %v2438 = vunpack.c.h.b16 %v883
        %v2439 = vunpack.c.l.b16 %v884
        %v2440 = vunpack.c.h.b16 %v884
        %v2441 = vunpack.c.l.b16 %v885
        %v2442 = vunpack.c.h.b16 %v885
        %v2443 = vunpack.c.l.b16 %v886
        %v2444 = vunpack.c.h.b16 %v886
        %v2445 = vunpack.c.l.b16 %v887
        %v2446 = vunpack.c.h.b16 %v887
        %v2447 = vunpack.c.l.b16 %v888
        %v2448 = vunpack.c.h.b16 %v888
        %v2449 = vunpack.c.l.b16 %v889
        %v2450 = vunpack.c.h.b16 %v889
        %v2451 = vunpack.c.l.b16 %v890
        %v2452 = vunpack.c.h.b16 %v890
        %v2453 = vunpack.c.l.b16 %v891
        %v2454 = vunpack.c.h.b16 %v891
        %v2455 = vunpack.c.l.b16 %v892
        %v2456 = vunpack.c.h.b16 %v892
        %v2457 = vunpack.c.l.b16 %v893
        %v2458 = vunpack.c.h.b16 %v893
        %v2459 = vunpack.c.l.b16 %v894
        %v2460 = vunpack.c.h.b16 %v894
        %v2461 = vunpack.c.l.b16 %v895
        %v2462 = vunpack.c.h.b16 %v895
        %v2463 = vunpack.c.l.b16 %v896
        %v2464 = vunpack.c.h.b16 %v896
        %v2465 = vunpack.c.l.b16 %v897
        %v2466 = vunpack.c.h.b16 %v897
        %v2467 = vunpack.c.l.b16 %v898
        %v2468 = vunpack.c.h.b16 %v898
        %v2469 = vunpack.c.l.b16 %v899
        %v2470 = vunpack.c.h.b16 %v899
        %v2471 = vunpack.c.l.b16 %v900
        %v2472 = vunpack.c.h.b16 %v900
        %v2473 = vunpack.c.l.b16 %v901
        %v2474 = vunpack.c.h.b16 %v901
        %v2475 = vunpack.c.l.b16 %v902
        %v2476 = vunpack.c.h.b16 %v902
        %v2477 = vunpack.c.l.b16 %v903
        %v2478 = vunpack.c.h.b16 %v903
        %v2479 = vunpack.c.l.b16 %v904
        %v2480 = vunpack.c.h.b16 %v904
        %v2481 = vunpack.c.l.b16 %v905
        %v2482 = vunpack.c.h.b16 %v905
        %v2483 = vunpack.c.l.b16 %v906
        %v2484 = vunpack.c.h.b16 %v906
        %v2485 = vunpack.c.l.b16 %v907
        %v2486 = vunpack.c.h.b16 %v907
        %v2487 = vunpack.c.l.b16 %v908
        %v2488 = vunpack.c.h.b16 %v908
        %v2489 = vunpack.c.l.b16 %v909
        %v2490 = vunpack.c.h.b16 %v909
        %v2491 = vunpack.c.l.b16 %v910
        %v2492 = vunpack.c.h.b16 %v910
        %v2493 = vunpack.c.l.b16 %v911
        %v2494 = vunpack.c.h.b16 %v911
        %v2495 = vunpack.c.l.b16 %v912
        %v2496 = vunpack.c.h.b16 %v912
        %v2497 = vunpack.c.l.b16 %v913
        %v2498 = vunpack.c.h.b16 %v913
        %v2499 = vunpack.c.l.b16 %v914
        %v2500 = vunpack.c.h.b16 %v914
        %v2501 = vunpack.c.l.b16 %v915
        %v2502 = vunpack.c.h.b16 %v915
        %v2503 = vunpack.c.l.b16 %v916
        %v2504 = vunpack.c.h.b16 %v916
        %v2505 = vunpack.c.l.b16 %v917
        %v2506 = vunpack.c.h.b16 %v917
        %v2507 = vunpack.c.l.b16 %v918
        %v2508 = vunpack.c.h.b16 %v918
        %v2509 = vunpack.c.l.b16 %v919
        %v2510 = vunpack.c.h.b16 %v919
        %v2511 = vunpack.c.l.b16 %v920
        %v2512 = vunpack.c.h.b16 %v920
        %v2513 = vunpack.c.l.b16 %v921
        %v2514 = vunpack.c.h.b16 %v921
        %v2515 = vunpack.c.l.b16 %v922
        %v2516 = vunpack.c.h.b16 %v922
        %v2517 = vunpack.c.l.b16 %v923
        %v2518 = vunpack.c.h.b16 %v923
        %v2519 = vunpack.c.l.b16 %v924
        %v2520 = vunpack.c.h.b16 %v924
        %v2521 = vunpack.c.l.b16 %v925
        %v2522 = vunpack.c.h.b16 %v925
        %v2523 = vunpack.c.l.b16 %v926
        %v2524 = vunpack.c.h.b16 %v926
        %v2525 = vunpack.c.l.b16 %v927
        %v2526 = vunpack.c.h.b16 %v927
        %v2527 = vunpack.c.l.b16 %v928
        %v2528 = vunpack.c.h.b16 %v928
        %v2529 = vunpack.c.l.b16 %v929
        %v2530 = vunpack.c.h.b16 %v929
        %v2531 = vunpack.c.l.b16 %v930
        %v2532 = vunpack.c.h.b16 %v930
        %v2533 = vunpack.c.l.b16 %v931
        %v2534 = vunpack.c.h.b16 %v931
        %v2535 = vunpack.c.l.b16 %v932
        %v2536 = vunpack.c.h.b16 %v932
        %v2537 = vunpack.c.l.b16 %v933
        %v2538 = vunpack.c.h.b16 %v933
        %v2539 = vunpack.c.l.b16 %v934
        %v2540 = vunpack.c.h.b16 %v934
        %v2541 = vunpack.c.l.b16 %v935
        %v2542 = vunpack.c.h.b16 %v935
        %v2543 = vunpack.c.l.b16 %v936
        %v2544 = vunpack.c.h.b16 %v936
        %v2545 = vunpack.c.l.b16 %v937
        %v2546 = vunpack.c.h.b16 %v937
        %v2547 = vunpack.c.l.b16 %v938
        %v2548 = vunpack.c.h.b16 %v938
        %v2549 = vunpack.c.l.b16 %v939
        %v2550 = vunpack.c.h.b16 %v939
        %v2551 = vunpack.c.l.b16 %v940
        %v2552 = vunpack.c.h.b16 %v940
        %v2553 = vunpack.c.l.b16 %v941
        %v2554 = vunpack.c.h.b16 %v941
        %v2555 = vunpack.c.l.b16 %v942
        %v2556 = vunpack.c.h.b16 %v942
        %v2557 = vunpack.c.l.b16 %v943
        %v2558 = vunpack.c.h.b16 %v943
        %v2559 = vunpack.c.l.b16 %v944
        %v2560 = vunpack.c.h.b16 %v944
        %v2561 = vunpack.c.l.b16 %v945
        %v2562 = vunpack.c.h.b16 %v945
        %v2563 = vunpack.c.l.b16 %v946
        %v2564 = vunpack.c.h.b16 %v946
        %v2565 = vunpack.c.l.b16 %v947
        %v2566 = vunpack.c.h.b16 %v947
        %v2567 = vunpack.c.l.b16 %v948
        %v2568 = vunpack.c.h.b16 %v948
        %v2569 = vunpack.c.l.b16 %v949
        %v2570 = vunpack.c.h.b16 %v949
        %v2571 = vunpack.c.l.b16 %v950
        %v2572 = vunpack.c.h.b16 %v950
        %v2573 = vunpack.c.l.b16 %v951
        %v2574 = vunpack.c.h.b16 %v951
        %v2575 = vunpack.c.l.b16 %v952
        %v2576 = vunpack.c.h.b16 %v952
        %v2577 = vunpack.c.l.b16 %v953
        %v2578 = vunpack.c.h.b16 %v953
        %v2579 = vunpack.c.l.b16 %v954
        %v2580 = vunpack.c.h.b16 %v954
        %v2581 = vunpack.c.l.b16 %v955
        %v2582 = vunpack.c.h.b16 %v955
        %v2583 = vunpack.c.l.b16 %v956
        %v2584 = vunpack.c.h.b16 %v956
        %v2585 = vunpack.c.l.b16 %v957
        %v2586 = vunpack.c.h.b16 %v957
        %v2587 = vunpack.c.l.b16 %v958
        %v2588 = vunpack.c.h.b16 %v958
        %v2589 = vunpack.c.l.b16 %v959
        %v2590 = vunpack.c.h.b16 %v959
        %v2591 = vunpack.c.l.b16 %v960
        %v2592 = vunpack.c.h.b16 %v960
        %v2593 = vunpack.c.l.b16 %v961
        %v2594 = vunpack.c.h.b16 %v961
        %v2595 = vunpack.c.l.b16 %v962
        %v2596 = vunpack.c.h.b16 %v962
        %v2597 = vunpack.c.l.b16 %v963
        %v2598 = vunpack.c.h.b16 %v963
        %v2599 = vunpack.c.l.b16 %v964
        %v2600 = vunpack.c.h.b16 %v964
        %v2601 = vunpack.c.l.b16 %v965
        %v2602 = vunpack.c.h.b16 %v965
        %v2603 = vunpack.c.l.b16 %v966
        %v2604 = vunpack.c.h.b16 %v966
        %v2605 = vunpack.c.l.b16 %v967
        %v2606 = vunpack.c.h.b16 %v967
        %v2607 = vunpack.c.l.b16 %v968
        %v2608 = vunpack.c.h.b16 %v968
        %v2609 = vunpack.c.l.b16 %v969
        %v2610 = vunpack.c.h.b16 %v969
        %v2611 = vunpack.c.l.b16 %v970
        %v2612 = vunpack.c.h.b16 %v970
        %v2613 = vunpack.c.l.b16 %v971
        %v2614 = vunpack.c.h.b16 %v971
        %v2615 = vunpack.c.l.b16 %v972
        %v2616 = vunpack.c.h.b16 %v972
        %v2617 = vunpack.c.l.b16 %v973
        %v2618 = vunpack.c.h.b16 %v973
        %v2619 = vunpack.c.l.b16 %v974
        %v2620 = vunpack.c.h.b16 %v974
        %v2621 = vunpack.c.l.b16 %v975
        %v2622 = vunpack.c.h.b16 %v975
        %v2623 = vunpack.c.l.b16 %v976
        %v2624 = vunpack.c.h.b16 %v976
        %v2625 = vunpack.c.l.b16 %v977
        %v2626 = vunpack.c.h.b16 %v977
        %v2627 = vunpack.c.l.b16 %v978
        %v2628 = vunpack.c.h.b16 %v978
        %v2629 = vpack.c.b16 %v1741, %v1733
        %v2630 = vpack.c.b16 %v1742, %v1734
        %v2631 = vpack.c.b16 %v1743, %v1735
        %v2632 = vpack.c.b16 %v1744, %v1736
        %v2633 = vpack.c.b16 %v1745, %v1737
        %v2634 = vpack.c.b16 %v1746, %v1738
        %v2635 = vpack.c.b16 %v1747, %v1739
        %v2636 = vpack.c.b16 %v1748, %v1740
        %v2637 = vpack.c.b16 %v1757, %v1749
        %v2638 = vpack.c.b16 %v1758, %v1750
        %v2639 = vpack.c.b16 %v1759, %v1751
        %v2640 = vpack.c.b16 %v1760, %v1752
        %v2641 = vpack.c.b16 %v1761, %v1753
        %v2642 = vpack.c.b16 %v1762, %v1754
        %v2643 = vpack.c.b16 %v1763, %v1755
        %v2644 = vpack.c.b16 %v1764, %v1756
        %v2645 = vpack.c.b16 %v1773, %v1765
        %v2646 = vpack.c.b16 %v1774, %v1766
        %v2647 = vpack.c.b16 %v1775, %v1767
        %v2648 = vpack.c.b16 %v1776, %v1768
        %v2649 = vpack.c.b16 %v1777, %v1769
        %v2650 = vpack.c.b16 %v1778, %v1770
        %v2651 = vpack.c.b16 %v1779, %v1771
        %v2652 = vpack.c.b16 %v1780, %v1772
        %v2653 = vpack.c.b16 %v1789, %v1781
        %v2654 = vpack.c.b16 %v1790, %v1782
        %v2655 = vpack.c.b16 %v1791, %v1783
        %v2656 = vpack.c.b16 %v1792, %v1784
        %v2657 = vpack.c.b16 %v1793, %v1785
        %v2658 = vpack.c.b16 %v1794, %v1786
        %v2659 = vpack.c.b16 %v1795, %v1787
        %v2660 = vpack.c.b16 %v1796, %v1788
        %v2661 = vpack.c.b16 %v1805, %v1797
        %v2662 = vpack.c.b16 %v1806, %v1798
        %v2663 = vpack.c.b16 %v1807, %v1799
        %v2664 = vpack.c.b16 %v1808, %v1800
        %v2665 = vpack.c.b16 %v1809, %v1801
        %v2666 = vpack.c.b16 %v1810, %v1802
        %v2667 = vpack.c.b16 %v1811, %v1803
        %v2668 = vpack.c.b16 %v1812, %v1804
        %v2669 = vpack.c.b16 %v1821, %v1813
        %v2670 = vpack.c.b16 %v1822, %v1814
        %v2671 = vpack.c.b16 %v1823, %v1815
        %v2672 = vpack.c.b16 %v1824, %v1816
        %v2673 = vpack.c.b16 %v1825, %v1817
        %v2674 = vpack.c.b16 %v1826, %v1818
        %v2675 = vpack.c.b16 %v1827, %v1819
        %v2676 = vpack.c.b16 %v1828, %v1820
        %v2677 = vpack.c.b16 %v1837, %v1829
        %v2678 = vpack.c.b16 %v1838, %v1830
        %v2679 = vpack.c.b16 %v1839, %v1831
        %v2680 = vpack.c.b16 %v1840, %v1832
        %v2681 = vpack.c.b16 %v1841, %v1833
        %v2682 = vpack.c.b16 %v1842, %v1834
        %v2683 = vpack.c.b16 %v1843, %v1835
        %v2684 = vpack.c.b16 %v1844, %v1836
        %v2685 = vpack.c.b16 %v1853, %v1845
        %v2686 = vpack.c.b16 %v1854, %v1846
        %v2687 = vpack.c.b16 %v1855, %v1847
        %v2688 = vpack.c.b16 %v1856, %v1848
        %v2689 = vpack.c.b16 %v1857, %v1849
        %v2690 = vpack.c.b16 %v1858, %v1850
        %v2691 = vpack.c.b16 %v1859, %v1851
        %v2692 = vpack.c.b16 %v1860, %v1852
        %v2693 = vpack.c.b16 %v1869, %v1861
        %v2694 = vpack.c.b16 %v1870, %v1862
        %v2695 = vpack.c.b16 %v1871, %v1863
        %v2696 = vpack.c.b16 %v1872, %v1864
        %v2697 = vpack.c.b16 %v1873, %v1865
        %v2698 = vpack.c.b16 %v1874, %v1866
        %v2699 = vpack.c.b16 %v1875, %v1867
        %v2700 = vpack.c.b16 %v1876, %v1868
        %v2701 = vpack.c.b16 %v1885, %v1877
        %v2702 = vpack.c.b16 %v1886, %v1878
        %v2703 = vpack.c.b16 %v1887, %v1879
        %v2704 = vpack.c.b16 %v1888, %v1880
        %v2705 = vpack.c.b16 %v1889, %v1881
        %v2706 = vpack.c.b16 %v1890, %v1882
        %v2707 = vpack.c.b16 %v1891, %v1883
        %v2708 = vpack.c.b16 %v1892, %v1884
        %v2709 = vpack.c.b16 %v1901, %v1893
        %v2710 = vpack.c.b16 %v1902, %v1894
        %v2711 = vpack.c.b16 %v1903, %v1895
        %v2712 = vpack.c.b16 %v1904, %v1896
        %v2713 = vpack.c.b16 %v1905, %v1897
        %v2714 = vpack.c.b16 %v1906, %v1898
        %v2715 = vpack.c.b16 %v1907, %v1899
        %v2716 = vpack.c.b16 %v1908, %v1900
        %v2717 = vpack.c.b16 %v1917, %v1909
        %v2718 = vpack.c.b16 %v1918, %v1910
        %v2719 = vpack.c.b16 %v1919, %v1911
        %v2720 = vpack.c.b16 %v1920, %v1912
        %v2721 = vpack.c.b16 %v1921, %v1913
        %v2722 = vpack.c.b16 %v1922, %v1914
        %v2723 = vpack.c.b16 %v1923, %v1915
        %v2724 = vpack.c.b16 %v1924, %v1916
        %v2725 = vpack.c.b16 %v1933, %v1925
        %v2726 = vpack.c.b16 %v1934, %v1926
        %v2727 = vpack.c.b16 %v1935, %v1927
        %v2728 = vpack.c.b16 %v1936, %v1928
        %v2729 = vpack.c.b16 %v1937, %v1929
        %v2730 = vpack.c.b16 %v1938, %v1930
        %v2731 = vpack.c.b16 %v1939, %v1931
        %v2732 = vpack.c.b16 %v1940, %v1932
        %v2733 = vpack.c.b16 %v1949, %v1941
        %v2734 = vpack.c.b16 %v1950, %v1942
        %v2735 = vpack.c.b16 %v1951, %v1943
        %v2736 = vpack.c.b16 %v1952, %v1944
        %v2737 = vpack.c.b16 %v1953, %v1945
        %v2738 = vpack.c.b16 %v1954, %v1946
        %v2739 = vpack.c.b16 %v1955, %v1947
        %v2740 = vpack.c.b16 %v1956, %v1948
        %v2741 = vpack.c.b16 %v1965, %v1957
        %v2742 = vpack.c.b16 %v1966, %v1958
        %v2743 = vpack.c.b16 %v1967, %v1959
        %v2744 = vpack.c.b16 %v1968, %v1960
        %v2745 = vpack.c.b16 %v1969, %v1961
        %v2746 = vpack.c.b16 %v1970, %v1962
        %v2747 = vpack.c.b16 %v1971, %v1963
        %v2748 = vpack.c.b16 %v1972, %v1964
        %v2749 = vpack.c.b16 %v1981, %v1973
        %v2750 = vpack.c.b16 %v1982, %v1974
        %v2751 = vpack.c.b16 %v1983, %v1975
        %v2752 = vpack.c.b16 %v1984, %v1976
        %v2753 = vpack.c.b16 %v1985, %v1977
        %v2754 = vpack.c.b16 %v1986, %v1978
        %v2755 = vpack.c.b16 %v1987, %v1979
        %v2756 = vpack.c.b16 %v1988, %v1980
        %v2757 = vpack.c.b16 %v1997, %v1989
        %v2758 = vpack.c.b16 %v1998, %v1990
        %v2759 = vpack.c.b16 %v1999, %v1991
        %v2760 = vpack.c.b16 %v2000, %v1992
        %v2761 = vpack.c.b16 %v2001, %v1993
        %v2762 = vpack.c.b16 %v2002, %v1994
        %v2763 = vpack.c.b16 %v2003, %v1995
        %v2764 = vpack.c.b16 %v2004, %v1996
        %v2765 = vpack.c.b16 %v2013, %v2005
        %v2766 = vpack.c.b16 %v2014, %v2006
        %v2767 = vpack.c.b16 %v2015, %v2007
        %v2768 = vpack.c.b16 %v2016, %v2008
        %v2769 = vpack.c.b16 %v2017, %v2009
        %v2770 = vpack.c.b16 %v2018, %v2010
        %v2771 = vpack.c.b16 %v2019, %v2011
        %v2772 = vpack.c.b16 %v2020, %v2012
        %v2773 = vpack.c.b16 %v2029, %v2021
        %v2774 = vpack.c.b16 %v2030, %v2022
        %v2775 = vpack.c.b16 %v2031, %v2023
        %v2776 = vpack.c.b16 %v2032, %v2024
        %v2777 = vpack.c.b16 %v2033, %v2025
        %v2778 = vpack.c.b16 %v2034, %v2026
        %v2779 = vpack.c.b16 %v2035, %v2027
        %v2780 = vpack.c.b16 %v2036, %v2028
        %v2781 = vpack.c.b16 %v2045, %v2037
        %v2782 = vpack.c.b16 %v2046, %v2038
        %v2783 = vpack.c.b16 %v2047, %v2039
        %v2784 = vpack.c.b16 %v2048, %v2040
        %v2785 = vpack.c.b16 %v2049, %v2041
        %v2786 = vpack.c.b16 %v2050, %v2042
        %v2787 = vpack.c.b16 %v2051, %v2043
        %v2788 = vpack.c.b16 %v2052, %v2044
        %v2789 = vpack.c.b16 %v2061, %v2053
        %v2790 = vpack.c.b16 %v2062, %v2054
        %v2791 = vpack.c.b16 %v2063, %v2055
        %v2792 = vpack.c.b16 %v2064, %v2056
        %v2793 = vpack.c.b16 %v2065, %v2057
        %v2794 = vpack.c.b16 %v2066, %v2058
        %v2795 = vpack.c.b16 %v2067, %v2059
        %v2796 = vpack.c.b16 %v2068, %v2060
        %v2797 = vpack.c.b16 %v2077, %v2069
        %v2798 = vpack.c.b16 %v2078, %v2070
        %v2799 = vpack.c.b16 %v2079, %v2071
        %v2800 = vpack.c.b16 %v2080, %v2072
        %v2801 = vpack.c.b16 %v2081, %v2073
        %v2802 = vpack.c.b16 %v2082, %v2074
        %v2803 = vpack.c.b16 %v2083, %v2075
        %v2804 = vpack.c.b16 %v2084, %v2076
        %v2805 = vpack.c.b16 %v2093, %v2085
        %v2806 = vpack.c.b16 %v2094, %v2086
        %v2807 = vpack.c.b16 %v2095, %v2087
        %v2808 = vpack.c.b16 %v2096, %v2088
        %v2809 = vpack.c.b16 %v2097, %v2089
        %v2810 = vpack.c.b16 %v2098, %v2090
        %v2811 = vpack.c.b16 %v2099, %v2091
        %v2812 = vpack.c.b16 %v2100, %v2092
        %v2813 = vpack.c.b16 %v2109, %v2101
        %v2814 = vpack.c.b16 %v2110, %v2102
        %v2815 = vpack.c.b16 %v2111, %v2103
        %v2816 = vpack.c.b16 %v2112, %v2104
        %v2817 = vpack.c.b16 %v2113, %v2105
        %v2818 = vpack.c.b16 %v2114, %v2106
        %v2819 = vpack.c.b16 %v2115, %v2107
        %v2820 = vpack.c.b16 %v2116, %v2108
        %v2821 = vpack.c.b16 %v2125, %v2117
        %v2822 = vpack.c.b16 %v2126, %v2118
        %v2823 = vpack.c.b16 %v2127, %v2119
        %v2824 = vpack.c.b16 %v2128, %v2120
        %v2825 = vpack.c.b16 %v2129, %v2121
        %v2826 = vpack.c.b16 %v2130, %v2122
        %v2827 = vpack.c.b16 %v2131, %v2123
        %v2828 = vpack.c.b16 %v2132, %v2124
        %v2829 = vpack.c.b16 %v2141, %v2133
        %v2830 = vpack.c.b16 %v2142, %v2134
        %v2831 = vpack.c.b16 %v2143, %v2135
        %v2832 = vpack.c.b16 %v2144, %v2136
        %v2833 = vpack.c.b16 %v2145, %v2137
        %v2834 = vpack.c.b16 %v2146, %v2138
        %v2835 = vpack.c.b16 %v2147, %v2139
        %v2836 = vpack.c.b16 %v2148, %v2140
        %v2837 = vpack.c.b16 %v2157, %v2149
        %v2838 = vpack.c.b16 %v2158, %v2150
        %v2839 = vpack.c.b16 %v2159, %v2151
        %v2840 = vpack.c.b16 %v2160, %v2152
        %v2841 = vpack.c.b16 %v2161, %v2153
        %v2842 = vpack.c.b16 %v2162, %v2154
        %v2843 = vpack.c.b16 %v2163, %v2155
        %v2844 = vpack.c.b16 %v2164, %v2156
        %v2845 = vpack.c.b16 %v2173, %v2165
        %v2846 = vpack.c.b16 %v2174, %v2166
        %v2847 = vpack.c.b16 %v2175, %v2167
        %v2848 = vpack.c.b16 %v2176, %v2168
        %v2849 = vpack.c.b16 %v2177, %v2169
        %v2850 = vpack.c.b16 %v2178, %v2170
        %v2851 = vpack.c.b16 %v2179, %v2171
        %v2852 = vpack.c.b16 %v2180, %v2172
        %v2853 = vpack.c.b16 %v2189, %v2181
        %v2854 = vpack.c.b16 %v2190, %v2182
        %v2855 = vpack.c.b16 %v2191, %v2183
        %v2856 = vpack.c.b16 %v2192, %v2184
        %v2857 = vpack.c.b16 %v2193, %v2185
        %v2858 = vpack.c.b16 %v2194, %v2186
        %v2859 = vpack.c.b16 %v2195, %v2187
        %v2860 = vpack.c.b16 %v2196, %v2188
        %v2861 = vpack.c.b16 %v2205, %v2197
        %v2862 = vpack.c.b16 %v2206, %v2198
        %v2863 = vpack.c.b16 %v2207, %v2199
        %v2864 = vpack.c.b16 %v2208, %v2200
        %v2865 = vpack.c.b16 %v2209, %v2201
        %v2866 = vpack.c.b16 %v2210, %v2202
        %v2867 = vpack.c.b16 %v2211, %v2203
        %v2868 = vpack.c.b16 %v2212, %v2204
        %v2869 = vpack.c.b16 %v2221, %v2213
        %v2870 = vpack.c.b16 %v2222, %v2214
        %v2871 = vpack.c.b16 %v2223, %v2215
        %v2872 = vpack.c.b16 %v2224, %v2216
        %v2873 = vpack.c.b16 %v2225, %v2217
        %v2874 = vpack.c.b16 %v2226, %v2218
        %v2875 = vpack.c.b16 %v2227, %v2219
        %v2876 = vpack.c.b16 %v2228, %v2220
        %v2877 = vpack.c.b16 %v2237, %v2229
        %v2878 = vpack.c.b16 %v2238, %v2230
        %v2879 = vpack.c.b16 %v2239, %v2231
        %v2880 = vpack.c.b16 %v2240, %v2232
        %v2881 = vpack.c.b16 %v2241, %v2233
        %v2882 = vpack.c.b16 %v2242, %v2234
        %v2883 = vpack.c.b16 %v2243, %v2235
        %v2884 = vpack.c.b16 %v2244, %v2236
        %v2885 = vpack.c.b16 %v2253, %v2245
        %v2886 = vpack.c.b16 %v2254, %v2246
        %v2887 = vpack.c.b16 %v2255, %v2247
        %v2888 = vpack.c.b16 %v2256, %v2248
        %v2889 = vpack.c.b16 %v2257, %v2249
        %v2890 = vpack.c.b16 %v2258, %v2250
        %v2891 = vpack.c.b16 %v2259, %v2251
        %v2892 = vpack.c.b16 %v2260, %v2252
        %v2893 = vpack.c.b16 %v2269, %v2261
        %v2894 = vpack.c.b16 %v2270, %v2262
        %v2895 = vpack.c.b16 %v2271, %v2263
        %v2896 = vpack.c.b16 %v2272, %v2264
        %v2897 = vpack.c.b16 %v2273, %v2265
        %v2898 = vpack.c.b16 %v2274, %v2266
        %v2899 = vpack.c.b16 %v2275, %v2267
        %v2900 = vpack.c.b16 %v2276, %v2268
        %v2901 = vpack.c.b16 %v2285, %v2277
        %v2902 = vpack.c.b16 %v2286, %v2278
        %v2903 = vpack.c.b16 %v2287, %v2279
        %v2904 = vpack.c.b16 %v2288, %v2280
        %v2905 = vpack.c.b16 %v2289, %v2281
        %v2906 = vpack.c.b16 %v2290, %v2282
        %v2907 = vpack.c.b16 %v2291, %v2283
        %v2908 = vpack.c.b16 %v2292, %v2284
        %v2909 = vpack.c.b16 %v2301, %v2293
        %v2910 = vpack.c.b16 %v2302, %v2294
        %v2911 = vpack.c.b16 %v2303, %v2295
        %v2912 = vpack.c.b16 %v2304, %v2296
        %v2913 = vpack.c.b16 %v2305, %v2297
        %v2914 = vpack.c.b16 %v2306, %v2298
        %v2915 = vpack.c.b16 %v2307, %v2299
        %v2916 = vpack.c.b16 %v2308, %v2300
        %v2917 = vpack.c.b16 %v2317, %v2309
        %v2918 = vpack.c.b16 %v2318, %v2310
        %v2919 = vpack.c.b16 %v2319, %v2311
        %v2920 = vpack.c.b16 %v2320, %v2312
        %v2921 = vpack.c.b16 %v2321, %v2313
        %v2922 = vpack.c.b16 %v2322, %v2314
        %v2923 = vpack.c.b16 %v2323, %v2315
        %v2924 = vpack.c.b16 %v2324, %v2316
        %v2925 = vpack.c.b16 %v2333, %v2325
        %v2926 = vpack.c.b16 %v2334, %v2326
        %v2927 = vpack.c.b16 %v2335, %v2327
        %v2928 = vpack.c.b16 %v2336, %v2328
        %v2929 = vpack.c.b16 %v2337, %v2329
        %v2930 = vpack.c.b16 %v2338, %v2330
        %v2931 = vpack.c.b16 %v2339, %v2331
        %v2932 = vpack.c.b16 %v2340, %v2332
        %v2933 = vpack.c.b16 %v2349, %v2341
        %v2934 = vpack.c.b16 %v2350, %v2342
        %v2935 = vpack.c.b16 %v2351, %v2343
        %v2936 = vpack.c.b16 %v2352, %v2344
        %v2937 = vpack.c.b16 %v2353, %v2345
        %v2938 = vpack.c.b16 %v2354, %v2346
        %v2939 = vpack.c.b16 %v2355, %v2347
        %v2940 = vpack.c.b16 %v2356, %v2348
        %v2941 = vpack.c.b16 %v2365, %v2357
        %v2942 = vpack.c.b16 %v2366, %v2358
        %v2943 = vpack.c.b16 %v2367, %v2359
        %v2944 = vpack.c.b16 %v2368, %v2360
        %v2945 = vpack.c.b16 %v2369, %v2361
        %v2946 = vpack.c.b16 %v2370, %v2362
        %v2947 = vpack.c.b16 %v2371, %v2363
        %v2948 = vpack.c.b16 %v2372, %v2364
        %v2949 = vpack.c.b16 %v2381, %v2373
        %v2950 = vpack.c.b16 %v2382, %v2374
        %v2951 = vpack.c.b16 %v2383, %v2375
        %v2952 = vpack.c.b16 %v2384, %v2376
        %v2953 = vpack.c.b16 %v2385, %v2377
        %v2954 = vpack.c.b16 %v2386, %v2378
        %v2955 = vpack.c.b16 %v2387, %v2379
        %v2956 = vpack.c.b16 %v2388, %v2380
        %v2957 = vpack.c.b16 %v2397, %v2389
        %v2958 = vpack.c.b16 %v2398, %v2390
        %v2959 = vpack.c.b16 %v2399, %v2391
        %v2960 = vpack.c.b16 %v2400, %v2392
        %v2961 = vpack.c.b16 %v2401, %v2393
        %v2962 = vpack.c.b16 %v2402, %v2394
        %v2963 = vpack.c.b16 %v2403, %v2395
        %v2964 = vpack.c.b16 %v2404, %v2396
        %v2965 = vpack.c.b16 %v2413, %v2405
        %v2966 = vpack.c.b16 %v2414, %v2406
        %v2967 = vpack.c.b16 %v2415, %v2407
        %v2968 = vpack.c.b16 %v2416, %v2408
        %v2969 = vpack.c.b16 %v2417, %v2409
        %v2970 = vpack.c.b16 %v2418, %v2410
        %v2971 = vpack.c.b16 %v2419, %v2411
        %v2972 = vpack.c.b16 %v2420, %v2412
        %v2973 = vpack.c.b16 %v2429, %v2421
        %v2974 = vpack.c.b16 %v2430, %v2422
        %v2975 = vpack.c.b16 %v2431, %v2423
        %v2976 = vpack.c.b16 %v2432, %v2424
        %v2977 = vpack.c.b16 %v2433, %v2425
        %v2978 = vpack.c.b16 %v2434, %v2426
        %v2979 = vpack.c.b16 %v2435, %v2427
        %v2980 = vpack.c.b16 %v2436, %v2428
        %v2981 = vpack.c.b16 %v2445, %v2437
        %v2982 = vpack.c.b16 %v2446, %v2438
        %v2983 = vpack.c.b16 %v2447, %v2439
        %v2984 = vpack.c.b16 %v2448, %v2440
        %v2985 = vpack.c.b16 %v2449, %v2441
        %v2986 = vpack.c.b16 %v2450, %v2442
        %v2987 = vpack.c.b16 %v2451, %v2443
        %v2988 = vpack.c.b16 %v2452, %v2444
        %v2989 = vpack.c.b16 %v2461, %v2453
        %v2990 = vpack.c.b16 %v2462, %v2454
        %v2991 = vpack.c.b16 %v2463, %v2455
        %v2992 = vpack.c.b16 %v2464, %v2456
        %v2993 = vpack.c.b16 %v2465, %v2457
        %v2994 = vpack.c.b16 %v2466, %v2458
        %v2995 = vpack.c.b16 %v2467, %v2459
        %v2996 = vpack.c.b16 %v2468, %v2460
        %v2997 = vpack.c.b16 %v2477, %v2469
        %v2998 = vpack.c.b16 %v2478, %v2470
        %v2999 = vpack.c.b16 %v2479, %v2471
        %v3000 = vpack.c.b16 %v2480, %v2472
        %v3001 = vpack.c.b16 %v2481, %v2473
        %v3002 = vpack.c.b16 %v2482, %v2474
        %v3003 = vpack.c.b16 %v2483, %v2475
        %v3004 = vpack.c.b16 %v2484, %v2476
        %v3005 = vpack.c.b16 %v2493, %v2485
        %v3006 = vpack.c.b16 %v2494, %v2486
        %v3007 = vpack.c.b16 %v2495, %v2487
        %v3008 = vpack.c.b16 %v2496, %v2488
        %v3009 = vpack.c.b16 %v2497, %v2489
        %v3010 = vpack.c.b16 %v2498, %v2490
        %v3011 = vpack.c.b16 %v2499, %v2491
        %v3012 = vpack.c.b16 %v2500, %v2492
        %v3013 = vpack.c.b16 %v2509, %v2501
        %v3014 = vpack.c.b16 %v2510, %v2502
        %v3015 = vpack.c.b16 %v2511, %v2503
        %v3016 = vpack.c.b16 %v2512, %v2504
        %v3017 = vpack.c.b16 %v2513, %v2505
        %v3018 = vpack.c.b16 %v2514, %v2506
        %v3019 = vpack.c.b16 %v2515, %v2507
        %v3020 = vpack.c.b16 %v2516, %v2508
        %v3021 = vpack.c.b16 %v2525, %v2517
        %v3022 = vpack.c.b16 %v2526, %v2518
        %v3023 = vpack.c.b16 %v2527, %v2519
        %v3024 = vpack.c.b16 %v2528, %v2520
        %v3025 = vpack.c.b16 %v2529, %v2521
        %v3026 = vpack.c.b16 %v2530, %v2522
        %v3027 = vpack.c.b16 %v2531, %v2523
        %v3028 = vpack.c.b16 %v2532, %v2524
        %v3029 = vpack.c.b16 %v2541, %v2533
        %v3030 = vpack.c.b16 %v2542, %v2534
        %v3031 = vpack.c.b16 %v2543, %v2535
        %v3032 = vpack.c.b16 %v2544, %v2536
        %v3033 = vpack.c.b16 %v2545, %v2537
        %v3034 = vpack.c.b16 %v2546, %v2538
        %v3035 = vpack.c.b16 %v2547, %v2539
        %v3036 = vpack.c.b16 %v2548, %v2540
        %v3037 = vpack.c.b16 %v2557, %v2549
        %v3038 = vpack.c.b16 %v2558, %v2550
        %v3039 = vpack.c.b16 %v2559, %v2551
        %v3040 = vpack.c.b16 %v2560, %v2552
        %v3041 = vpack.c.b16 %v2561, %v2553
        %v3042 = vpack.c.b16 %v2562, %v2554
        %v3043 = vpack.c.b16 %v2563, %v2555
        %v3044 = vpack.c.b16 %v2564, %v2556
        %v3045 = vpack.c.b16 %v2573, %v2565
        %v3046 = vpack.c.b16 %v2574, %v2566
        %v3047 = vpack.c.b16 %v2575, %v2567
        %v3048 = vpack.c.b16 %v2576, %v2568
        %v3049 = vpack.c.b16 %v2577, %v2569
        %v3050 = vpack.c.b16 %v2578, %v2570
        %v3051 = vpack.c.b16 %v2579, %v2571
        %v3052 = vpack.c.b16 %v2580, %v2572
        %v3053 = vpack.c.b16 %v2589, %v2581
        %v3054 = vpack.c.b16 %v2590, %v2582
        %v3055 = vpack.c.b16 %v2591, %v2583
        %v3056 = vpack.c.b16 %v2592, %v2584
        %v3057 = vpack.c.b16 %v2593, %v2585
        %v3058 = vpack.c.b16 %v2594, %v2586
        %v3059 = vpack.c.b16 %v2595, %v2587
        %v3060 = vpack.c.b16 %v2596, %v2588
        %v3061 = vpack.c.b16 %v2605, %v2597
        %v3062 = vpack.c.b16 %v2606, %v2598
        %v3063 = vpack.c.b16 %v2607, %v2599
        %v3064 = vpack.c.b16 %v2608, %v2600
        %v3065 = vpack.c.b16 %v2609, %v2601
        %v3066 = vpack.c.b16 %v2610, %v2602
        %v3067 = vpack.c.b16 %v2611, %v2603
        %v3068 = vpack.c.b16 %v2612, %v2604
        %v3069 = vpack.c.b16 %v2621, %v2613
        %v3070 = vpack.c.b16 %v2622, %v2614
        %v3071 = vpack.c.b16 %v2623, %v2615
        %v3072 = vpack.c.b16 %v2624, %v2616
        %v3073 = vpack.c.b16 %v2625, %v2617
        %v3074 = vpack.c.b16 %v2626, %v2618
        %v3075 = vpack.c.b16 %v2627, %v2619
        %v3076 = vpack.c.b16 %v2628, %v2620
        %3525 = vmatpush.bf16.msra.mxu0 %v2685
        %3526 = vmatpush.bf16.msra.mxu0 %v2677
        %3527 = vmatpush.bf16.msra.mxu0 %v2669
        %3528 = vmatpush.bf16.msra.mxu0 %v2661
        %3529 = vmatpush.bf16.msra.mxu0 %v2653
        %3530 = vmatpush.bf16.msra.mxu0 %v2645
        %3531 = vmatpush.bf16.msra.mxu0 %v2637
        %3532 = vmatpush.bf16.msra.mxu0 %v2629
        %3533 = vmatmul.bf16.gmra.mxu0 %v1173
        %v3534 = vpop.f32.mrf.mxu0
        %v3535 = vadd.f32 %v981, %v3534
        %v3536 = vpop.f32.mrf.mxu0
        %v3537 = vadd.f32 %v981, %v3536
        %3538 = vmatmul.bf16.gmra.mxu0 %v1180
        %v3539 = vpop.f32.mrf.mxu0
        %v3540 = vadd.f32 %v981, %v3539
        %v3541 = vpop.f32.mrf.mxu0
        %v3542 = vadd.f32 %v981, %v3541
        %3543 = vmatmul.bf16.gmra.mxu0 %v1187
        %v3544 = vpop.f32.mrf.mxu0
        %v3545 = vadd.f32 %v981, %v3544
        %v3546 = vpop.f32.mrf.mxu0
        %v3547 = vadd.f32 %v981, %v3546
        %3548 = vmatmul.bf16.gmra.mxu0 %v1194
        %v3549 = vpop.f32.mrf.mxu0
        %v3550 = vadd.f32 %v981, %v3549
        %v3551 = vpop.f32.mrf.mxu0
        %v3552 = vadd.f32 %v981, %v3551
        %3553 = vmatmul.bf16.gmra.mxu0 %v1201
        %v3554 = vpop.f32.mrf.mxu0
        %v3555 = vadd.f32 %v981, %v3554
        %v3556 = vpop.f32.mrf.mxu0
        %v3557 = vadd.f32 %v981, %v3556
        %3558 = vmatmul.bf16.gmra.mxu0 %v1208
        %v3559 = vpop.f32.mrf.mxu0
        %v3560 = vadd.f32 %v981, %v3559
        %v3561 = vpop.f32.mrf.mxu0
        %v3562 = vadd.f32 %v981, %v3561
        %3563 = vmatmul.bf16.gmra.mxu0 %v1215
        %v3564 = vpop.f32.mrf.mxu0
        %v3565 = vadd.f32 %v981, %v3564
        %v3566 = vpop.f32.mrf.mxu0
        %v3567 = vadd.f32 %v981, %v3566
        %3568 = vmatmul.bf16.gmra.mxu0 %v1222
        %v3569 = vpop.f32.mrf.mxu0
        %v3570 = vadd.f32 %v981, %v3569
        %v3571 = vpop.f32.mrf.mxu0
        %v3572 = vadd.f32 %v981, %v3571
        %3573 = vdwg.mxu0
        %3574 = vmatpush.bf16.msra.mxu0 %v2749
        %3575 = vmatpush.bf16.msra.mxu0 %v2741
        %3576 = vmatpush.bf16.msra.mxu0 %v2733
        %3577 = vmatpush.bf16.msra.mxu0 %v2725
        %3578 = vmatpush.bf16.msra.mxu0 %v2717
        %3579 = vmatpush.bf16.msra.mxu0 %v2709
        %3580 = vmatpush.bf16.msra.mxu0 %v2701
        %3581 = vmatpush.bf16.msra.mxu0 %v2693
        %3582 = vmatmul.bf16.gmra.mxu0 %v1174
        %v3583 = vpop.f32.mrf.mxu0
        %v3584 = vadd.f32 %v3535, %v3583
        %v3585 = vpop.f32.mrf.mxu0
        %v3586 = vadd.f32 %v3537, %v3585
        %3587 = vmatmul.bf16.gmra.mxu0 %v1181
        %v3588 = vpop.f32.mrf.mxu0
        %v3589 = vadd.f32 %v3540, %v3588
        %v3590 = vpop.f32.mrf.mxu0
        %v3591 = vadd.f32 %v3542, %v3590
        %3592 = vmatmul.bf16.gmra.mxu0 %v1188
        %v3593 = vpop.f32.mrf.mxu0
        %v3594 = vadd.f32 %v3545, %v3593
        %v3595 = vpop.f32.mrf.mxu0
        %v3596 = vadd.f32 %v3547, %v3595
        %3597 = vmatmul.bf16.gmra.mxu0 %v1195
        %v3598 = vpop.f32.mrf.mxu0
        %v3599 = vadd.f32 %v3550, %v3598
        %v3600 = vpop.f32.mrf.mxu0
        %v3601 = vadd.f32 %v3552, %v3600
        %3602 = vmatmul.bf16.gmra.mxu0 %v1202
        %v3603 = vpop.f32.mrf.mxu0
        %v3604 = vadd.f32 %v3555, %v3603
        %v3605 = vpop.f32.mrf.mxu0
        %v3606 = vadd.f32 %v3557, %v3605
        %3607 = vmatmul.bf16.gmra.mxu0 %v1209
        %v3608 = vpop.f32.mrf.mxu0
        %v3609 = vadd.f32 %v3560, %v3608
        %v3610 = vpop.f32.mrf.mxu0
        %v3611 = vadd.f32 %v3562, %v3610
        %3612 = vmatmul.bf16.gmra.mxu0 %v1216
        %v3613 = vpop.f32.mrf.mxu0
        %v3614 = vadd.f32 %v3565, %v3613
        %v3615 = vpop.f32.mrf.mxu0
        %v3616 = vadd.f32 %v3567, %v3615
        %3617 = vmatmul.bf16.gmra.mxu0 %v1223
        %v3618 = vpop.f32.mrf.mxu0
        %v3619 = vadd.f32 %v3570, %v3618
        %v3620 = vpop.f32.mrf.mxu0
        %v3621 = vadd.f32 %v3572, %v3620
        %3622 = vdwg.mxu0
        %3623 = vmatpush.bf16.msra.mxu0 %v2813
        %3624 = vmatpush.bf16.msra.mxu0 %v2805
        %3625 = vmatpush.bf16.msra.mxu0 %v2797
        %3626 = vmatpush.bf16.msra.mxu0 %v2789
        %3627 = vmatpush.bf16.msra.mxu0 %v2781
        %3628 = vmatpush.bf16.msra.mxu0 %v2773
        %3629 = vmatpush.bf16.msra.mxu0 %v2765
        %3630 = vmatpush.bf16.msra.mxu0 %v2757
        %3631 = vmatmul.bf16.gmra.mxu0 %v1175
        %v3632 = vpop.f32.mrf.mxu0
        %v3633 = vadd.f32 %v3584, %v3632
        %v3634 = vpop.f32.mrf.mxu0
        %v3635 = vadd.f32 %v3586, %v3634
        %3636 = vmatmul.bf16.gmra.mxu0 %v1182
        %v3637 = vpop.f32.mrf.mxu0
        %v3638 = vadd.f32 %v3589, %v3637
        %v3639 = vpop.f32.mrf.mxu0
        %v3640 = vadd.f32 %v3591, %v3639
        %3641 = vmatmul.bf16.gmra.mxu0 %v1189
        %v3642 = vpop.f32.mrf.mxu0
        %v3643 = vadd.f32 %v3594, %v3642
        %v3644 = vpop.f32.mrf.mxu0
        %v3645 = vadd.f32 %v3596, %v3644
        %3646 = vmatmul.bf16.gmra.mxu0 %v1196
        %v3647 = vpop.f32.mrf.mxu0
        %v3648 = vadd.f32 %v3599, %v3647
        %v3649 = vpop.f32.mrf.mxu0
        %v3650 = vadd.f32 %v3601, %v3649
        %3651 = vmatmul.bf16.gmra.mxu0 %v1203
        %v3652 = vpop.f32.mrf.mxu0
        %v3653 = vadd.f32 %v3604, %v3652
        %v3654 = vpop.f32.mrf.mxu0
        %v3655 = vadd.f32 %v3606, %v3654
        %3656 = vmatmul.bf16.gmra.mxu0 %v1210
        %v3657 = vpop.f32.mrf.mxu0
        %v3658 = vadd.f32 %v3609, %v3657
        %v3659 = vpop.f32.mrf.mxu0
        %v3660 = vadd.f32 %v3611, %v3659
        %3661 = vmatmul.bf16.gmra.mxu0 %v1217
        %v3662 = vpop.f32.mrf.mxu0
        %v3663 = vadd.f32 %v3614, %v3662
        %v3664 = vpop.f32.mrf.mxu0
        %v3665 = vadd.f32 %v3616, %v3664
        %3666 = vmatmul.bf16.gmra.mxu0 %v1224
        %v3667 = vpop.f32.mrf.mxu0
        %v3668 = vadd.f32 %v3619, %v3667
        %v3669 = vpop.f32.mrf.mxu0
        %v3670 = vadd.f32 %v3621, %v3669
        %3671 = vdwg.mxu0
        %3672 = vmatpush.bf16.msra.mxu0 %v2877
        %3673 = vmatpush.bf16.msra.mxu0 %v2869
        %3674 = vmatpush.bf16.msra.mxu0 %v2861
        %3675 = vmatpush.bf16.msra.mxu0 %v2853
        %3676 = vmatpush.bf16.msra.mxu0 %v2845
        %3677 = vmatpush.bf16.msra.mxu0 %v2837
        %3678 = vmatpush.bf16.msra.mxu0 %v2829
        %3679 = vmatpush.bf16.msra.mxu0 %v2821
        %3680 = vmatmul.bf16.gmra.mxu0 %v1176
        %v3681 = vpop.f32.mrf.mxu0
        %v3682 = vadd.f32 %v3633, %v3681
        %v3683 = vpop.f32.mrf.mxu0
        %v3684 = vadd.f32 %v3635, %v3683
        %3685 = vmatmul.bf16.gmra.mxu0 %v1183
        %v3686 = vpop.f32.mrf.mxu0
        %v3687 = vadd.f32 %v3638, %v3686
        %v3688 = vpop.f32.mrf.mxu0
        %v3689 = vadd.f32 %v3640, %v3688
        %3690 = vmatmul.bf16.gmra.mxu0 %v1190
        %v3691 = vpop.f32.mrf.mxu0
        %v3692 = vadd.f32 %v3643, %v3691
        %v3693 = vpop.f32.mrf.mxu0
        %v3694 = vadd.f32 %v3645, %v3693
        %3695 = vmatmul.bf16.gmra.mxu0 %v1197
        %v3696 = vpop.f32.mrf.mxu0
        %v3697 = vadd.f32 %v3648, %v3696
        %v3698 = vpop.f32.mrf.mxu0
        %v3699 = vadd.f32 %v3650, %v3698
        %3700 = vmatmul.bf16.gmra.mxu0 %v1204
        %v3701 = vpop.f32.mrf.mxu0
        %v3702 = vadd.f32 %v3653, %v3701
        %v3703 = vpop.f32.mrf.mxu0
        %v3704 = vadd.f32 %v3655, %v3703
        %3705 = vmatmul.bf16.gmra.mxu0 %v1211
        %v3706 = vpop.f32.mrf.mxu0
        %v3707 = vadd.f32 %v3658, %v3706
        %v3708 = vpop.f32.mrf.mxu0
        %v3709 = vadd.f32 %v3660, %v3708
        %3710 = vmatmul.bf16.gmra.mxu0 %v1218
        %v3711 = vpop.f32.mrf.mxu0
        %v3712 = vadd.f32 %v3663, %v3711
        %v3713 = vpop.f32.mrf.mxu0
        %v3714 = vadd.f32 %v3665, %v3713
        %3715 = vmatmul.bf16.gmra.mxu0 %v1225
        %v3716 = vpop.f32.mrf.mxu0
        %v3717 = vadd.f32 %v3668, %v3716
        %v3718 = vpop.f32.mrf.mxu0
        %v3719 = vadd.f32 %v3670, %v3718
        %3720 = vdwg.mxu0
        %3721 = vmatpush.bf16.msra.mxu0 %v2941
        %3722 = vmatpush.bf16.msra.mxu0 %v2933
        %3723 = vmatpush.bf16.msra.mxu0 %v2925
        %3724 = vmatpush.bf16.msra.mxu0 %v2917
        %3725 = vmatpush.bf16.msra.mxu0 %v2909
        %3726 = vmatpush.bf16.msra.mxu0 %v2901
        %3727 = vmatpush.bf16.msra.mxu0 %v2893
        %3728 = vmatpush.bf16.msra.mxu0 %v2885
        %3729 = vmatmul.bf16.gmra.mxu0 %v1177
        %v3730 = vpop.f32.mrf.mxu0
        %v3731 = vadd.f32 %v3682, %v3730
        %v3732 = vpop.f32.mrf.mxu0
        %v3733 = vadd.f32 %v3684, %v3732
        %3734 = vmatmul.bf16.gmra.mxu0 %v1184
        %v3735 = vpop.f32.mrf.mxu0
        %v3736 = vadd.f32 %v3687, %v3735
        %v3737 = vpop.f32.mrf.mxu0
        %v3738 = vadd.f32 %v3689, %v3737
        %3739 = vmatmul.bf16.gmra.mxu0 %v1191
        %v3740 = vpop.f32.mrf.mxu0
        %v3741 = vadd.f32 %v3692, %v3740
        %v3742 = vpop.f32.mrf.mxu0
        %v3743 = vadd.f32 %v3694, %v3742
        %3744 = vmatmul.bf16.gmra.mxu0 %v1198
        %v3745 = vpop.f32.mrf.mxu0
        %v3746 = vadd.f32 %v3697, %v3745
        %v3747 = vpop.f32.mrf.mxu0
        %v3748 = vadd.f32 %v3699, %v3747
        %3749 = vmatmul.bf16.gmra.mxu0 %v1205
        %v3750 = vpop.f32.mrf.mxu0
        %v3751 = vadd.f32 %v3702, %v3750
        %v3752 = vpop.f32.mrf.mxu0
        %v3753 = vadd.f32 %v3704, %v3752
        %3754 = vmatmul.bf16.gmra.mxu0 %v1212
        %v3755 = vpop.f32.mrf.mxu0
        %v3756 = vadd.f32 %v3707, %v3755
        %v3757 = vpop.f32.mrf.mxu0
        %v3758 = vadd.f32 %v3709, %v3757
        %3759 = vmatmul.bf16.gmra.mxu0 %v1219
        %v3760 = vpop.f32.mrf.mxu0
        %v3761 = vadd.f32 %v3712, %v3760
        %v3762 = vpop.f32.mrf.mxu0
        %v3763 = vadd.f32 %v3714, %v3762
        %3764 = vmatmul.bf16.gmra.mxu0 %v1226
        %v3765 = vpop.f32.mrf.mxu0
        %v3766 = vadd.f32 %v3717, %v3765
        %v3767 = vpop.f32.mrf.mxu0
        %v3768 = vadd.f32 %v3719, %v3767
        %3769 = vdwg.mxu0
        %3770 = vmatpush.bf16.msra.mxu0 %v3005
        %3771 = vmatpush.bf16.msra.mxu0 %v2997
        %3772 = vmatpush.bf16.msra.mxu0 %v2989
        %3773 = vmatpush.bf16.msra.mxu0 %v2981
        %3774 = vmatpush.bf16.msra.mxu0 %v2973
        %3775 = vmatpush.bf16.msra.mxu0 %v2965
        %3776 = vmatpush.bf16.msra.mxu0 %v2957
        %3777 = vmatpush.bf16.msra.mxu0 %v2949
        %3778 = vmatmul.bf16.gmra.mxu0 %v1178
        %v3779 = vpop.f32.mrf.mxu0
        %v3780 = vadd.f32 %v3731, %v3779
        %v3781 = vpop.f32.mrf.mxu0
        %v3782 = vadd.f32 %v3733, %v3781
        %3783 = vmatmul.bf16.gmra.mxu0 %v1185
        %v3784 = vpop.f32.mrf.mxu0
        %v3785 = vadd.f32 %v3736, %v3784
        %v3786 = vpop.f32.mrf.mxu0
        %v3787 = vadd.f32 %v3738, %v3786
        %3788 = vmatmul.bf16.gmra.mxu0 %v1192
        %v3789 = vpop.f32.mrf.mxu0
        %v3790 = vadd.f32 %v3741, %v3789
        %v3791 = vpop.f32.mrf.mxu0
        %v3792 = vadd.f32 %v3743, %v3791
        %3793 = vmatmul.bf16.gmra.mxu0 %v1199
        %v3794 = vpop.f32.mrf.mxu0
        %v3795 = vadd.f32 %v3746, %v3794
        %v3796 = vpop.f32.mrf.mxu0
        %v3797 = vadd.f32 %v3748, %v3796
        %3798 = vmatmul.bf16.gmra.mxu0 %v1206
        %v3799 = vpop.f32.mrf.mxu0
        %v3800 = vadd.f32 %v3751, %v3799
        %v3801 = vpop.f32.mrf.mxu0
        %v3802 = vadd.f32 %v3753, %v3801
        %3803 = vmatmul.bf16.gmra.mxu0 %v1213
        %v3804 = vpop.f32.mrf.mxu0
        %v3805 = vadd.f32 %v3756, %v3804
        %v3806 = vpop.f32.mrf.mxu0
        %v3807 = vadd.f32 %v3758, %v3806
        %3808 = vmatmul.bf16.gmra.mxu0 %v1220
        %v3809 = vpop.f32.mrf.mxu0
        %v3810 = vadd.f32 %v3761, %v3809
        %v3811 = vpop.f32.mrf.mxu0
        %v3812 = vadd.f32 %v3763, %v3811
        %3813 = vmatmul.bf16.gmra.mxu0 %v1227
        %v3814 = vpop.f32.mrf.mxu0
        %v3815 = vadd.f32 %v3766, %v3814
        %v3816 = vpop.f32.mrf.mxu0
        %v3817 = vadd.f32 %v3768, %v3816
        %3818 = vdwg.mxu0
        %3819 = vmatpush.bf16.msra.mxu0 %v3069
        %3820 = vmatpush.bf16.msra.mxu0 %v3061
        %3821 = vmatpush.bf16.msra.mxu0 %v3053
        %3822 = vmatpush.bf16.msra.mxu0 %v3045
        %3823 = vmatpush.bf16.msra.mxu0 %v3037
        %3824 = vmatpush.bf16.msra.mxu0 %v3029
        %3825 = vmatpush.bf16.msra.mxu0 %v3021
        %3826 = vmatpush.bf16.msra.mxu0 %v3013
        %3827 = vmatmul.bf16.gmra.mxu0 %v1179
        %v3828 = vpop.f32.mrf.mxu0
        %v3829 = vadd.f32 %v3780, %v3828
        %v3830 = vpop.f32.mrf.mxu0
        %v3831 = vadd.f32 %v3782, %v3830
        %3832 = vmatmul.bf16.gmra.mxu0 %v1186
        %v3833 = vpop.f32.mrf.mxu0
        %v3834 = vadd.f32 %v3785, %v3833
        %v3835 = vpop.f32.mrf.mxu0
        %v3836 = vadd.f32 %v3787, %v3835
        %3837 = vmatmul.bf16.gmra.mxu0 %v1193
        %v3838 = vpop.f32.mrf.mxu0
        %v3839 = vadd.f32 %v3790, %v3838
        %v3840 = vpop.f32.mrf.mxu0
        %v3841 = vadd.f32 %v3792, %v3840
        %3842 = vmatmul.bf16.gmra.mxu0 %v1200
        %v3843 = vpop.f32.mrf.mxu0
        %v3844 = vadd.f32 %v3795, %v3843
        %v3845 = vpop.f32.mrf.mxu0
        %v3846 = vadd.f32 %v3797, %v3845
        %3847 = vmatmul.bf16.gmra.mxu0 %v1207
        %v3848 = vpop.f32.mrf.mxu0
        %v3849 = vadd.f32 %v3800, %v3848
        %v3850 = vpop.f32.mrf.mxu0
        %v3851 = vadd.f32 %v3802, %v3850
        %3852 = vmatmul.bf16.gmra.mxu0 %v1214
        %v3853 = vpop.f32.mrf.mxu0
        %v3854 = vadd.f32 %v3805, %v3853
        %v3855 = vpop.f32.mrf.mxu0
        %v3856 = vadd.f32 %v3807, %v3855
        %3857 = vmatmul.bf16.gmra.mxu0 %v1221
        %v3858 = vpop.f32.mrf.mxu0
        %v3859 = vadd.f32 %v3810, %v3858
        %v3860 = vpop.f32.mrf.mxu0
        %v3861 = vadd.f32 %v3812, %v3860
        %3862 = vmatmul.bf16.gmra.mxu0 %v1228
        %v3863 = vpop.f32.mrf.mxu0
        %v3864 = vadd.f32 %v3815, %v3863
        %v3865 = vpop.f32.mrf.mxu0
        %v3866 = vadd.f32 %v3817, %v3865
        %3867 = vdwg.mxu0
        %3868 = vmatpush.bf16.msra.mxu0 %v2686
        %3869 = vmatpush.bf16.msra.mxu0 %v2678
        %3870 = vmatpush.bf16.msra.mxu0 %v2670
        %3871 = vmatpush.bf16.msra.mxu0 %v2662
        %3872 = vmatpush.bf16.msra.mxu0 %v2654
        %3873 = vmatpush.bf16.msra.mxu0 %v2646
        %3874 = vmatpush.bf16.msra.mxu0 %v2638
        %3875 = vmatpush.bf16.msra.mxu0 %v2630
        %3876 = vmatmul.bf16.gmra.mxu0 %v1173
        %v3877 = vpop.f32.mrf.mxu0
        %v3878 = vadd.f32 %v982, %v3877
        %v3879 = vpop.f32.mrf.mxu0
        %v3880 = vadd.f32 %v982, %v3879
        %3881 = vmatmul.bf16.gmra.mxu0 %v1180
        %v3882 = vpop.f32.mrf.mxu0
        %v3883 = vadd.f32 %v982, %v3882
        %v3884 = vpop.f32.mrf.mxu0
        %v3885 = vadd.f32 %v982, %v3884
        %3886 = vmatmul.bf16.gmra.mxu0 %v1187
        %v3887 = vpop.f32.mrf.mxu0
        %v3888 = vadd.f32 %v982, %v3887
        %v3889 = vpop.f32.mrf.mxu0
        %v3890 = vadd.f32 %v982, %v3889
        %3891 = vmatmul.bf16.gmra.mxu0 %v1194
        %v3892 = vpop.f32.mrf.mxu0
        %v3893 = vadd.f32 %v982, %v3892
        %v3894 = vpop.f32.mrf.mxu0
        %v3895 = vadd.f32 %v982, %v3894
        %3896 = vmatmul.bf16.gmra.mxu0 %v1201
        %v3897 = vpop.f32.mrf.mxu0
        %v3898 = vadd.f32 %v982, %v3897
        %v3899 = vpop.f32.mrf.mxu0
        %v3900 = vadd.f32 %v982, %v3899
        %3901 = vmatmul.bf16.gmra.mxu0 %v1208
        %v3902 = vpop.f32.mrf.mxu0
        %v3903 = vadd.f32 %v982, %v3902
        %v3904 = vpop.f32.mrf.mxu0
        %v3905 = vadd.f32 %v982, %v3904
        %3906 = vmatmul.bf16.gmra.mxu0 %v1215
        %v3907 = vpop.f32.mrf.mxu0
        %v3908 = vadd.f32 %v982, %v3907
        %v3909 = vpop.f32.mrf.mxu0
        %v3910 = vadd.f32 %v982, %v3909
        %3911 = vmatmul.bf16.gmra.mxu0 %v1222
        %v3912 = vpop.f32.mrf.mxu0
        %v3913 = vadd.f32 %v982, %v3912
        %v3914 = vpop.f32.mrf.mxu0
        %v3915 = vadd.f32 %v982, %v3914
        %3916 = vdwg.mxu0
        %3917 = vmatpush.bf16.msra.mxu0 %v2750
        %3918 = vmatpush.bf16.msra.mxu0 %v2742
        %3919 = vmatpush.bf16.msra.mxu0 %v2734
        %3920 = vmatpush.bf16.msra.mxu0 %v2726
        %3921 = vmatpush.bf16.msra.mxu0 %v2718
        %3922 = vmatpush.bf16.msra.mxu0 %v2710
        %3923 = vmatpush.bf16.msra.mxu0 %v2702
        %3924 = vmatpush.bf16.msra.mxu0 %v2694
        %3925 = vmatmul.bf16.gmra.mxu0 %v1174
        %v3926 = vpop.f32.mrf.mxu0
        %v3927 = vadd.f32 %v3878, %v3926
        %v3928 = vpop.f32.mrf.mxu0
        %v3929 = vadd.f32 %v3880, %v3928
        %3930 = vmatmul.bf16.gmra.mxu0 %v1181
        %v3931 = vpop.f32.mrf.mxu0
        %v3932 = vadd.f32 %v3883, %v3931
        %v3933 = vpop.f32.mrf.mxu0
        %v3934 = vadd.f32 %v3885, %v3933
        %3935 = vmatmul.bf16.gmra.mxu0 %v1188
        %v3936 = vpop.f32.mrf.mxu0
        %v3937 = vadd.f32 %v3888, %v3936
        %v3938 = vpop.f32.mrf.mxu0
        %v3939 = vadd.f32 %v3890, %v3938
        %3940 = vmatmul.bf16.gmra.mxu0 %v1195
        %v3941 = vpop.f32.mrf.mxu0
        %v3942 = vadd.f32 %v3893, %v3941
        %v3943 = vpop.f32.mrf.mxu0
        %v3944 = vadd.f32 %v3895, %v3943
        %3945 = vmatmul.bf16.gmra.mxu0 %v1202
        %v3946 = vpop.f32.mrf.mxu0
        %v3947 = vadd.f32 %v3898, %v3946
        %v3948 = vpop.f32.mrf.mxu0
        %v3949 = vadd.f32 %v3900, %v3948
        %3950 = vmatmul.bf16.gmra.mxu0 %v1209
        %v3951 = vpop.f32.mrf.mxu0
        %v3952 = vadd.f32 %v3903, %v3951
        %v3953 = vpop.f32.mrf.mxu0
        %v3954 = vadd.f32 %v3905, %v3953
        %3955 = vmatmul.bf16.gmra.mxu0 %v1216
        %v3956 = vpop.f32.mrf.mxu0
        %v3957 = vadd.f32 %v3908, %v3956
        %v3958 = vpop.f32.mrf.mxu0
        %v3959 = vadd.f32 %v3910, %v3958
        %3960 = vmatmul.bf16.gmra.mxu0 %v1223
        %v3961 = vpop.f32.mrf.mxu0
        %v3962 = vadd.f32 %v3913, %v3961
        %v3963 = vpop.f32.mrf.mxu0
        %v3964 = vadd.f32 %v3915, %v3963
        %3965 = vdwg.mxu0
        %3966 = vmatpush.bf16.msra.mxu0 %v2814
        %3967 = vmatpush.bf16.msra.mxu0 %v2806
        %3968 = vmatpush.bf16.msra.mxu0 %v2798
        %3969 = vmatpush.bf16.msra.mxu0 %v2790
        %3970 = vmatpush.bf16.msra.mxu0 %v2782
        %3971 = vmatpush.bf16.msra.mxu0 %v2774
        %3972 = vmatpush.bf16.msra.mxu0 %v2766
        %3973 = vmatpush.bf16.msra.mxu0 %v2758
        %3974 = vmatmul.bf16.gmra.mxu0 %v1175
        %v3975 = vpop.f32.mrf.mxu0
        %v3976 = vadd.f32 %v3927, %v3975
        %v3977 = vpop.f32.mrf.mxu0
        %v3978 = vadd.f32 %v3929, %v3977
        %3979 = vmatmul.bf16.gmra.mxu0 %v1182
        %v3980 = vpop.f32.mrf.mxu0
        %v3981 = vadd.f32 %v3932, %v3980
        %v3982 = vpop.f32.mrf.mxu0
        %v3983 = vadd.f32 %v3934, %v3982
        %3984 = vmatmul.bf16.gmra.mxu0 %v1189
        %v3985 = vpop.f32.mrf.mxu0
        %v3986 = vadd.f32 %v3937, %v3985
        %v3987 = vpop.f32.mrf.mxu0
        %v3988 = vadd.f32 %v3939, %v3987
        %3989 = vmatmul.bf16.gmra.mxu0 %v1196
        %v3990 = vpop.f32.mrf.mxu0
        %v3991 = vadd.f32 %v3942, %v3990
        %v3992 = vpop.f32.mrf.mxu0
        %v3993 = vadd.f32 %v3944, %v3992
        %3994 = vmatmul.bf16.gmra.mxu0 %v1203
        %v3995 = vpop.f32.mrf.mxu0
        %v3996 = vadd.f32 %v3947, %v3995
        %v3997 = vpop.f32.mrf.mxu0
        %v3998 = vadd.f32 %v3949, %v3997
        %3999 = vmatmul.bf16.gmra.mxu0 %v1210
        %v4000 = vpop.f32.mrf.mxu0
        %v4001 = vadd.f32 %v3952, %v4000
        %v4002 = vpop.f32.mrf.mxu0
        %v4003 = vadd.f32 %v3954, %v4002
        %4004 = vmatmul.bf16.gmra.mxu0 %v1217
        %v4005 = vpop.f32.mrf.mxu0
        %v4006 = vadd.f32 %v3957, %v4005
        %v4007 = vpop.f32.mrf.mxu0
        %v4008 = vadd.f32 %v3959, %v4007
        %4009 = vmatmul.bf16.gmra.mxu0 %v1224
        %v4010 = vpop.f32.mrf.mxu0
        %v4011 = vadd.f32 %v3962, %v4010
        %v4012 = vpop.f32.mrf.mxu0
        %v4013 = vadd.f32 %v3964, %v4012
        %4014 = vdwg.mxu0
        %4015 = vmatpush.bf16.msra.mxu0 %v2878
        %4016 = vmatpush.bf16.msra.mxu0 %v2870
        %4017 = vmatpush.bf16.msra.mxu0 %v2862
        %4018 = vmatpush.bf16.msra.mxu0 %v2854
        %4019 = vmatpush.bf16.msra.mxu0 %v2846
        %4020 = vmatpush.bf16.msra.mxu0 %v2838
        %4021 = vmatpush.bf16.msra.mxu0 %v2830
        %4022 = vmatpush.bf16.msra.mxu0 %v2822
        %4023 = vmatmul.bf16.gmra.mxu0 %v1176
        %v4024 = vpop.f32.mrf.mxu0
        %v4025 = vadd.f32 %v3976, %v4024
        %v4026 = vpop.f32.mrf.mxu0
        %v4027 = vadd.f32 %v3978, %v4026
        %4028 = vmatmul.bf16.gmra.mxu0 %v1183
        %v4029 = vpop.f32.mrf.mxu0
        %v4030 = vadd.f32 %v3981, %v4029
        %v4031 = vpop.f32.mrf.mxu0
        %v4032 = vadd.f32 %v3983, %v4031
        %4033 = vmatmul.bf16.gmra.mxu0 %v1190
        %v4034 = vpop.f32.mrf.mxu0
        %v4035 = vadd.f32 %v3986, %v4034
        %v4036 = vpop.f32.mrf.mxu0
        %v4037 = vadd.f32 %v3988, %v4036
        %4038 = vmatmul.bf16.gmra.mxu0 %v1197
        %v4039 = vpop.f32.mrf.mxu0
        %v4040 = vadd.f32 %v3991, %v4039
        %v4041 = vpop.f32.mrf.mxu0
        %v4042 = vadd.f32 %v3993, %v4041
        %4043 = vmatmul.bf16.gmra.mxu0 %v1204
        %v4044 = vpop.f32.mrf.mxu0
        %v4045 = vadd.f32 %v3996, %v4044
        %v4046 = vpop.f32.mrf.mxu0
        %v4047 = vadd.f32 %v3998, %v4046
        %4048 = vmatmul.bf16.gmra.mxu0 %v1211
        %v4049 = vpop.f32.mrf.mxu0
        %v4050 = vadd.f32 %v4001, %v4049
        %v4051 = vpop.f32.mrf.mxu0
        %v4052 = vadd.f32 %v4003, %v4051
        %4053 = vmatmul.bf16.gmra.mxu0 %v1218
        %v4054 = vpop.f32.mrf.mxu0
        %v4055 = vadd.f32 %v4006, %v4054
        %v4056 = vpop.f32.mrf.mxu0
        %v4057 = vadd.f32 %v4008, %v4056
        %4058 = vmatmul.bf16.gmra.mxu0 %v1225
        %v4059 = vpop.f32.mrf.mxu0
        %v4060 = vadd.f32 %v4011, %v4059
        %v4061 = vpop.f32.mrf.mxu0
        %v4062 = vadd.f32 %v4013, %v4061
        %4063 = vdwg.mxu0
        %4064 = vmatpush.bf16.msra.mxu0 %v2942
        %4065 = vmatpush.bf16.msra.mxu0 %v2934
        %4066 = vmatpush.bf16.msra.mxu0 %v2926
        %4067 = vmatpush.bf16.msra.mxu0 %v2918
        %4068 = vmatpush.bf16.msra.mxu0 %v2910
        %4069 = vmatpush.bf16.msra.mxu0 %v2902
        %4070 = vmatpush.bf16.msra.mxu0 %v2894
        %4071 = vmatpush.bf16.msra.mxu0 %v2886
        %4072 = vmatmul.bf16.gmra.mxu0 %v1177
        %v4073 = vpop.f32.mrf.mxu0
        %v4074 = vadd.f32 %v4025, %v4073
        %v4075 = vpop.f32.mrf.mxu0
        %v4076 = vadd.f32 %v4027, %v4075
        %4077 = vmatmul.bf16.gmra.mxu0 %v1184
        %v4078 = vpop.f32.mrf.mxu0
        %v4079 = vadd.f32 %v4030, %v4078
        %v4080 = vpop.f32.mrf.mxu0
        %v4081 = vadd.f32 %v4032, %v4080
        %4082 = vmatmul.bf16.gmra.mxu0 %v1191
        %v4083 = vpop.f32.mrf.mxu0
        %v4084 = vadd.f32 %v4035, %v4083
        %v4085 = vpop.f32.mrf.mxu0
        %v4086 = vadd.f32 %v4037, %v4085
        %4087 = vmatmul.bf16.gmra.mxu0 %v1198
        %v4088 = vpop.f32.mrf.mxu0
        %v4089 = vadd.f32 %v4040, %v4088
        %v4090 = vpop.f32.mrf.mxu0
        %v4091 = vadd.f32 %v4042, %v4090
        %4092 = vmatmul.bf16.gmra.mxu0 %v1205
        %v4093 = vpop.f32.mrf.mxu0
        %v4094 = vadd.f32 %v4045, %v4093
        %v4095 = vpop.f32.mrf.mxu0
        %v4096 = vadd.f32 %v4047, %v4095
        %4097 = vmatmul.bf16.gmra.mxu0 %v1212
        %v4098 = vpop.f32.mrf.mxu0
        %v4099 = vadd.f32 %v4050, %v4098
        %v4100 = vpop.f32.mrf.mxu0
        %v4101 = vadd.f32 %v4052, %v4100
        %4102 = vmatmul.bf16.gmra.mxu0 %v1219
        %v4103 = vpop.f32.mrf.mxu0
        %v4104 = vadd.f32 %v4055, %v4103
        %v4105 = vpop.f32.mrf.mxu0
        %v4106 = vadd.f32 %v4057, %v4105
        %4107 = vmatmul.bf16.gmra.mxu0 %v1226
        %v4108 = vpop.f32.mrf.mxu0
        %v4109 = vadd.f32 %v4060, %v4108
        %v4110 = vpop.f32.mrf.mxu0
        %v4111 = vadd.f32 %v4062, %v4110
        %4112 = vdwg.mxu0
        %4113 = vmatpush.bf16.msra.mxu0 %v3006
        %4114 = vmatpush.bf16.msra.mxu0 %v2998
        %4115 = vmatpush.bf16.msra.mxu0 %v2990
        %4116 = vmatpush.bf16.msra.mxu0 %v2982
        %4117 = vmatpush.bf16.msra.mxu0 %v2974
        %4118 = vmatpush.bf16.msra.mxu0 %v2966
        %4119 = vmatpush.bf16.msra.mxu0 %v2958
        %4120 = vmatpush.bf16.msra.mxu0 %v2950
        %4121 = vmatmul.bf16.gmra.mxu0 %v1178
        %v4122 = vpop.f32.mrf.mxu0
        %v4123 = vadd.f32 %v4074, %v4122
        %v4124 = vpop.f32.mrf.mxu0
        %v4125 = vadd.f32 %v4076, %v4124
        %4126 = vmatmul.bf16.gmra.mxu0 %v1185
        %v4127 = vpop.f32.mrf.mxu0
        %v4128 = vadd.f32 %v4079, %v4127
        %v4129 = vpop.f32.mrf.mxu0
        %v4130 = vadd.f32 %v4081, %v4129
        %4131 = vmatmul.bf16.gmra.mxu0 %v1192
        %v4132 = vpop.f32.mrf.mxu0
        %v4133 = vadd.f32 %v4084, %v4132
        %v4134 = vpop.f32.mrf.mxu0
        %v4135 = vadd.f32 %v4086, %v4134
        %4136 = vmatmul.bf16.gmra.mxu0 %v1199
        %v4137 = vpop.f32.mrf.mxu0
        %v4138 = vadd.f32 %v4089, %v4137
        %v4139 = vpop.f32.mrf.mxu0
        %v4140 = vadd.f32 %v4091, %v4139
        %4141 = vmatmul.bf16.gmra.mxu0 %v1206
        %v4142 = vpop.f32.mrf.mxu0
        %v4143 = vadd.f32 %v4094, %v4142
        %v4144 = vpop.f32.mrf.mxu0
        %v4145 = vadd.f32 %v4096, %v4144
        %4146 = vmatmul.bf16.gmra.mxu0 %v1213
        %v4147 = vpop.f32.mrf.mxu0
        %v4148 = vadd.f32 %v4099, %v4147
        %v4149 = vpop.f32.mrf.mxu0
        %v4150 = vadd.f32 %v4101, %v4149
        %4151 = vmatmul.bf16.gmra.mxu0 %v1220
        %v4152 = vpop.f32.mrf.mxu0
        %v4153 = vadd.f32 %v4104, %v4152
        %v4154 = vpop.f32.mrf.mxu0
        %v4155 = vadd.f32 %v4106, %v4154
        %4156 = vmatmul.bf16.gmra.mxu0 %v1227
        %v4157 = vpop.f32.mrf.mxu0
        %v4158 = vadd.f32 %v4109, %v4157
        %v4159 = vpop.f32.mrf.mxu0
        %v4160 = vadd.f32 %v4111, %v4159
        %4161 = vdwg.mxu0
        %4162 = vmatpush.bf16.msra.mxu0 %v3070
        %4163 = vmatpush.bf16.msra.mxu0 %v3062
        %4164 = vmatpush.bf16.msra.mxu0 %v3054
        %4165 = vmatpush.bf16.msra.mxu0 %v3046
        %4166 = vmatpush.bf16.msra.mxu0 %v3038
        %4167 = vmatpush.bf16.msra.mxu0 %v3030
        %4168 = vmatpush.bf16.msra.mxu0 %v3022
        %4169 = vmatpush.bf16.msra.mxu0 %v3014
        %4170 = vmatmul.bf16.gmra.mxu0 %v1179
        %v4171 = vpop.f32.mrf.mxu0
        %v4172 = vadd.f32 %v4123, %v4171
        %v4173 = vpop.f32.mrf.mxu0
        %v4174 = vadd.f32 %v4125, %v4173
        %4175 = vmatmul.bf16.gmra.mxu0 %v1186
        %v4176 = vpop.f32.mrf.mxu0
        %v4177 = vadd.f32 %v4128, %v4176
        %v4178 = vpop.f32.mrf.mxu0
        %v4179 = vadd.f32 %v4130, %v4178
        %4180 = vmatmul.bf16.gmra.mxu0 %v1193
        %v4181 = vpop.f32.mrf.mxu0
        %v4182 = vadd.f32 %v4133, %v4181
        %v4183 = vpop.f32.mrf.mxu0
        %v4184 = vadd.f32 %v4135, %v4183
        %4185 = vmatmul.bf16.gmra.mxu0 %v1200
        %v4186 = vpop.f32.mrf.mxu0
        %v4187 = vadd.f32 %v4138, %v4186
        %v4188 = vpop.f32.mrf.mxu0
        %v4189 = vadd.f32 %v4140, %v4188
        %4190 = vmatmul.bf16.gmra.mxu0 %v1207
        %v4191 = vpop.f32.mrf.mxu0
        %v4192 = vadd.f32 %v4143, %v4191
        %v4193 = vpop.f32.mrf.mxu0
        %v4194 = vadd.f32 %v4145, %v4193
        %4195 = vmatmul.bf16.gmra.mxu0 %v1214
        %v4196 = vpop.f32.mrf.mxu0
        %v4197 = vadd.f32 %v4148, %v4196
        %v4198 = vpop.f32.mrf.mxu0
        %v4199 = vadd.f32 %v4150, %v4198
        %4200 = vmatmul.bf16.gmra.mxu0 %v1221
        %v4201 = vpop.f32.mrf.mxu0
        %v4202 = vadd.f32 %v4153, %v4201
        %v4203 = vpop.f32.mrf.mxu0
        %v4204 = vadd.f32 %v4155, %v4203
        %4205 = vmatmul.bf16.gmra.mxu0 %v1228
        %v4206 = vpop.f32.mrf.mxu0
        %v4207 = vadd.f32 %v4158, %v4206
        %v4208 = vpop.f32.mrf.mxu0
        %v4209 = vadd.f32 %v4160, %v4208
        %4210 = vdwg.mxu0
        %4211 = vmatpush.bf16.msra.mxu0 %v2687
        %4212 = vmatpush.bf16.msra.mxu0 %v2679
        %4213 = vmatpush.bf16.msra.mxu0 %v2671
        %4214 = vmatpush.bf16.msra.mxu0 %v2663
        %4215 = vmatpush.bf16.msra.mxu0 %v2655
        %4216 = vmatpush.bf16.msra.mxu0 %v2647
        %4217 = vmatpush.bf16.msra.mxu0 %v2639
        %4218 = vmatpush.bf16.msra.mxu0 %v2631
        %4219 = vmatmul.bf16.gmra.mxu0 %v1173
        %v4220 = vpop.f32.mrf.mxu0
        %v4221 = vadd.f32 %v983, %v4220
        %v4222 = vpop.f32.mrf.mxu0
        %v4223 = vadd.f32 %v983, %v4222
        %4224 = vmatmul.bf16.gmra.mxu0 %v1180
        %v4225 = vpop.f32.mrf.mxu0
        %v4226 = vadd.f32 %v983, %v4225
        %v4227 = vpop.f32.mrf.mxu0
        %v4228 = vadd.f32 %v983, %v4227
        %4229 = vmatmul.bf16.gmra.mxu0 %v1187
        %v4230 = vpop.f32.mrf.mxu0
        %v4231 = vadd.f32 %v983, %v4230
        %v4232 = vpop.f32.mrf.mxu0
        %v4233 = vadd.f32 %v983, %v4232
        %4234 = vmatmul.bf16.gmra.mxu0 %v1194
        %v4235 = vpop.f32.mrf.mxu0
        %v4236 = vadd.f32 %v983, %v4235
        %v4237 = vpop.f32.mrf.mxu0
        %v4238 = vadd.f32 %v983, %v4237
        %4239 = vmatmul.bf16.gmra.mxu0 %v1201
        %v4240 = vpop.f32.mrf.mxu0
        %v4241 = vadd.f32 %v983, %v4240
        %v4242 = vpop.f32.mrf.mxu0
        %v4243 = vadd.f32 %v983, %v4242
        %4244 = vmatmul.bf16.gmra.mxu0 %v1208
        %v4245 = vpop.f32.mrf.mxu0
        %v4246 = vadd.f32 %v983, %v4245
        %v4247 = vpop.f32.mrf.mxu0
        %v4248 = vadd.f32 %v983, %v4247
        %4249 = vmatmul.bf16.gmra.mxu0 %v1215
        %v4250 = vpop.f32.mrf.mxu0
        %v4251 = vadd.f32 %v983, %v4250
        %v4252 = vpop.f32.mrf.mxu0
        %v4253 = vadd.f32 %v983, %v4252
        %4254 = vmatmul.bf16.gmra.mxu0 %v1222
        %v4255 = vpop.f32.mrf.mxu0
        %v4256 = vadd.f32 %v983, %v4255
        %v4257 = vpop.f32.mrf.mxu0
        %v4258 = vadd.f32 %v983, %v4257
        %4259 = vdwg.mxu0
        %4260 = vmatpush.bf16.msra.mxu0 %v2751
        %4261 = vmatpush.bf16.msra.mxu0 %v2743
        %4262 = vmatpush.bf16.msra.mxu0 %v2735
        %4263 = vmatpush.bf16.msra.mxu0 %v2727
        %4264 = vmatpush.bf16.msra.mxu0 %v2719
        %4265 = vmatpush.bf16.msra.mxu0 %v2711
        %4266 = vmatpush.bf16.msra.mxu0 %v2703
        %4267 = vmatpush.bf16.msra.mxu0 %v2695
        %4268 = vmatmul.bf16.gmra.mxu0 %v1174
        %v4269 = vpop.f32.mrf.mxu0
        %v4270 = vadd.f32 %v4221, %v4269
        %v4271 = vpop.f32.mrf.mxu0
        %v4272 = vadd.f32 %v4223, %v4271
        %4273 = vmatmul.bf16.gmra.mxu0 %v1181
        %v4274 = vpop.f32.mrf.mxu0
        %v4275 = vadd.f32 %v4226, %v4274
        %v4276 = vpop.f32.mrf.mxu0
        %v4277 = vadd.f32 %v4228, %v4276
        %4278 = vmatmul.bf16.gmra.mxu0 %v1188
        %v4279 = vpop.f32.mrf.mxu0
        %v4280 = vadd.f32 %v4231, %v4279
        %v4281 = vpop.f32.mrf.mxu0
        %v4282 = vadd.f32 %v4233, %v4281
        %4283 = vmatmul.bf16.gmra.mxu0 %v1195
        %v4284 = vpop.f32.mrf.mxu0
        %v4285 = vadd.f32 %v4236, %v4284
        %v4286 = vpop.f32.mrf.mxu0
        %v4287 = vadd.f32 %v4238, %v4286
        %4288 = vmatmul.bf16.gmra.mxu0 %v1202
        %v4289 = vpop.f32.mrf.mxu0
        %v4290 = vadd.f32 %v4241, %v4289
        %v4291 = vpop.f32.mrf.mxu0
        %v4292 = vadd.f32 %v4243, %v4291
        %4293 = vmatmul.bf16.gmra.mxu0 %v1209
        %v4294 = vpop.f32.mrf.mxu0
        %v4295 = vadd.f32 %v4246, %v4294
        %v4296 = vpop.f32.mrf.mxu0
        %v4297 = vadd.f32 %v4248, %v4296
        %4298 = vmatmul.bf16.gmra.mxu0 %v1216
        %v4299 = vpop.f32.mrf.mxu0
        %v4300 = vadd.f32 %v4251, %v4299
        %v4301 = vpop.f32.mrf.mxu0
        %v4302 = vadd.f32 %v4253, %v4301
        %4303 = vmatmul.bf16.gmra.mxu0 %v1223
        %v4304 = vpop.f32.mrf.mxu0
        %v4305 = vadd.f32 %v4256, %v4304
        %v4306 = vpop.f32.mrf.mxu0
        %v4307 = vadd.f32 %v4258, %v4306
        %4308 = vdwg.mxu0
        %4309 = vmatpush.bf16.msra.mxu0 %v2815
        %4310 = vmatpush.bf16.msra.mxu0 %v2807
        %4311 = vmatpush.bf16.msra.mxu0 %v2799
        %4312 = vmatpush.bf16.msra.mxu0 %v2791
        %4313 = vmatpush.bf16.msra.mxu0 %v2783
        %4314 = vmatpush.bf16.msra.mxu0 %v2775
        %4315 = vmatpush.bf16.msra.mxu0 %v2767
        %4316 = vmatpush.bf16.msra.mxu0 %v2759
        %4317 = vmatmul.bf16.gmra.mxu0 %v1175
        %v4318 = vpop.f32.mrf.mxu0
        %v4319 = vadd.f32 %v4270, %v4318
        %v4320 = vpop.f32.mrf.mxu0
        %v4321 = vadd.f32 %v4272, %v4320
        %4322 = vmatmul.bf16.gmra.mxu0 %v1182
        %v4323 = vpop.f32.mrf.mxu0
        %v4324 = vadd.f32 %v4275, %v4323
        %v4325 = vpop.f32.mrf.mxu0
        %v4326 = vadd.f32 %v4277, %v4325
        %4327 = vmatmul.bf16.gmra.mxu0 %v1189
        %v4328 = vpop.f32.mrf.mxu0
        %v4329 = vadd.f32 %v4280, %v4328
        %v4330 = vpop.f32.mrf.mxu0
        %v4331 = vadd.f32 %v4282, %v4330
        %4332 = vmatmul.bf16.gmra.mxu0 %v1196
        %v4333 = vpop.f32.mrf.mxu0
        %v4334 = vadd.f32 %v4285, %v4333
        %v4335 = vpop.f32.mrf.mxu0
        %v4336 = vadd.f32 %v4287, %v4335
        %4337 = vmatmul.bf16.gmra.mxu0 %v1203
        %v4338 = vpop.f32.mrf.mxu0
        %v4339 = vadd.f32 %v4290, %v4338
        %v4340 = vpop.f32.mrf.mxu0
        %v4341 = vadd.f32 %v4292, %v4340
        %4342 = vmatmul.bf16.gmra.mxu0 %v1210
        %v4343 = vpop.f32.mrf.mxu0
        %v4344 = vadd.f32 %v4295, %v4343
        %v4345 = vpop.f32.mrf.mxu0
        %v4346 = vadd.f32 %v4297, %v4345
        %4347 = vmatmul.bf16.gmra.mxu0 %v1217
        %v4348 = vpop.f32.mrf.mxu0
        %v4349 = vadd.f32 %v4300, %v4348
        %v4350 = vpop.f32.mrf.mxu0
        %v4351 = vadd.f32 %v4302, %v4350
        %4352 = vmatmul.bf16.gmra.mxu0 %v1224
        %v4353 = vpop.f32.mrf.mxu0
        %v4354 = vadd.f32 %v4305, %v4353
        %v4355 = vpop.f32.mrf.mxu0
        %v4356 = vadd.f32 %v4307, %v4355
        %4357 = vdwg.mxu0
        %4358 = vmatpush.bf16.msra.mxu0 %v2879
        %4359 = vmatpush.bf16.msra.mxu0 %v2871
        %4360 = vmatpush.bf16.msra.mxu0 %v2863
        %4361 = vmatpush.bf16.msra.mxu0 %v2855
        %4362 = vmatpush.bf16.msra.mxu0 %v2847
        %4363 = vmatpush.bf16.msra.mxu0 %v2839
        %4364 = vmatpush.bf16.msra.mxu0 %v2831
        %4365 = vmatpush.bf16.msra.mxu0 %v2823
        %4366 = vmatmul.bf16.gmra.mxu0 %v1176
        %v4367 = vpop.f32.mrf.mxu0
        %v4368 = vadd.f32 %v4319, %v4367
        %v4369 = vpop.f32.mrf.mxu0
        %v4370 = vadd.f32 %v4321, %v4369
        %4371 = vmatmul.bf16.gmra.mxu0 %v1183
        %v4372 = vpop.f32.mrf.mxu0
        %v4373 = vadd.f32 %v4324, %v4372
        %v4374 = vpop.f32.mrf.mxu0
        %v4375 = vadd.f32 %v4326, %v4374
        %4376 = vmatmul.bf16.gmra.mxu0 %v1190
        %v4377 = vpop.f32.mrf.mxu0
        %v4378 = vadd.f32 %v4329, %v4377
        %v4379 = vpop.f32.mrf.mxu0
        %v4380 = vadd.f32 %v4331, %v4379
        %4381 = vmatmul.bf16.gmra.mxu0 %v1197
        %v4382 = vpop.f32.mrf.mxu0
        %v4383 = vadd.f32 %v4334, %v4382
        %v4384 = vpop.f32.mrf.mxu0
        %v4385 = vadd.f32 %v4336, %v4384
        %4386 = vmatmul.bf16.gmra.mxu0 %v1204
        %v4387 = vpop.f32.mrf.mxu0
        %v4388 = vadd.f32 %v4339, %v4387
        %v4389 = vpop.f32.mrf.mxu0
        %v4390 = vadd.f32 %v4341, %v4389
        %4391 = vmatmul.bf16.gmra.mxu0 %v1211
        %v4392 = vpop.f32.mrf.mxu0
        %v4393 = vadd.f32 %v4344, %v4392
        %v4394 = vpop.f32.mrf.mxu0
        %v4395 = vadd.f32 %v4346, %v4394
        %4396 = vmatmul.bf16.gmra.mxu0 %v1218
        %v4397 = vpop.f32.mrf.mxu0
        %v4398 = vadd.f32 %v4349, %v4397
        %v4399 = vpop.f32.mrf.mxu0
        %v4400 = vadd.f32 %v4351, %v4399
        %4401 = vmatmul.bf16.gmra.mxu0 %v1225
        %v4402 = vpop.f32.mrf.mxu0
        %v4403 = vadd.f32 %v4354, %v4402
        %v4404 = vpop.f32.mrf.mxu0
        %v4405 = vadd.f32 %v4356, %v4404
        %4406 = vdwg.mxu0
        %4407 = vmatpush.bf16.msra.mxu0 %v2943
        %4408 = vmatpush.bf16.msra.mxu0 %v2935
        %4409 = vmatpush.bf16.msra.mxu0 %v2927
        %4410 = vmatpush.bf16.msra.mxu0 %v2919
        %4411 = vmatpush.bf16.msra.mxu0 %v2911
        %4412 = vmatpush.bf16.msra.mxu0 %v2903
        %4413 = vmatpush.bf16.msra.mxu0 %v2895
        %4414 = vmatpush.bf16.msra.mxu0 %v2887
        %4415 = vmatmul.bf16.gmra.mxu0 %v1177
        %v4416 = vpop.f32.mrf.mxu0
        %v4417 = vadd.f32 %v4368, %v4416
        %v4418 = vpop.f32.mrf.mxu0
        %v4419 = vadd.f32 %v4370, %v4418
        %4420 = vmatmul.bf16.gmra.mxu0 %v1184
        %v4421 = vpop.f32.mrf.mxu0
        %v4422 = vadd.f32 %v4373, %v4421
        %v4423 = vpop.f32.mrf.mxu0
        %v4424 = vadd.f32 %v4375, %v4423
        %4425 = vmatmul.bf16.gmra.mxu0 %v1191
        %v4426 = vpop.f32.mrf.mxu0
        %v4427 = vadd.f32 %v4378, %v4426
        %v4428 = vpop.f32.mrf.mxu0
        %v4429 = vadd.f32 %v4380, %v4428
        %4430 = vmatmul.bf16.gmra.mxu0 %v1198
        %v4431 = vpop.f32.mrf.mxu0
        %v4432 = vadd.f32 %v4383, %v4431
        %v4433 = vpop.f32.mrf.mxu0
        %v4434 = vadd.f32 %v4385, %v4433
        %4435 = vmatmul.bf16.gmra.mxu0 %v1205
        %v4436 = vpop.f32.mrf.mxu0
        %v4437 = vadd.f32 %v4388, %v4436
        %v4438 = vpop.f32.mrf.mxu0
        %v4439 = vadd.f32 %v4390, %v4438
        %4440 = vmatmul.bf16.gmra.mxu0 %v1212
        %v4441 = vpop.f32.mrf.mxu0
        %v4442 = vadd.f32 %v4393, %v4441
        %v4443 = vpop.f32.mrf.mxu0
        %v4444 = vadd.f32 %v4395, %v4443
        %4445 = vmatmul.bf16.gmra.mxu0 %v1219
        %v4446 = vpop.f32.mrf.mxu0
        %v4447 = vadd.f32 %v4398, %v4446
        %v4448 = vpop.f32.mrf.mxu0
        %v4449 = vadd.f32 %v4400, %v4448
        %4450 = vmatmul.bf16.gmra.mxu0 %v1226
        %v4451 = vpop.f32.mrf.mxu0
        %v4452 = vadd.f32 %v4403, %v4451
        %v4453 = vpop.f32.mrf.mxu0
        %v4454 = vadd.f32 %v4405, %v4453
        %4455 = vdwg.mxu0
        %4456 = vmatpush.bf16.msra.mxu0 %v3007
        %4457 = vmatpush.bf16.msra.mxu0 %v2999
        %4458 = vmatpush.bf16.msra.mxu0 %v2991
        %4459 = vmatpush.bf16.msra.mxu0 %v2983
        %4460 = vmatpush.bf16.msra.mxu0 %v2975
        %4461 = vmatpush.bf16.msra.mxu0 %v2967
        %4462 = vmatpush.bf16.msra.mxu0 %v2959
        %4463 = vmatpush.bf16.msra.mxu0 %v2951
        %4464 = vmatmul.bf16.gmra.mxu0 %v1178
        %v4465 = vpop.f32.mrf.mxu0
        %v4466 = vadd.f32 %v4417, %v4465
        %v4467 = vpop.f32.mrf.mxu0
        %v4468 = vadd.f32 %v4419, %v4467
        %4469 = vmatmul.bf16.gmra.mxu0 %v1185
        %v4470 = vpop.f32.mrf.mxu0
        %v4471 = vadd.f32 %v4422, %v4470
        %v4472 = vpop.f32.mrf.mxu0
        %v4473 = vadd.f32 %v4424, %v4472
        %4474 = vmatmul.bf16.gmra.mxu0 %v1192
        %v4475 = vpop.f32.mrf.mxu0
        %v4476 = vadd.f32 %v4427, %v4475
        %v4477 = vpop.f32.mrf.mxu0
        %v4478 = vadd.f32 %v4429, %v4477
        %4479 = vmatmul.bf16.gmra.mxu0 %v1199
        %v4480 = vpop.f32.mrf.mxu0
        %v4481 = vadd.f32 %v4432, %v4480
        %v4482 = vpop.f32.mrf.mxu0
        %v4483 = vadd.f32 %v4434, %v4482
        %4484 = vmatmul.bf16.gmra.mxu0 %v1206
        %v4485 = vpop.f32.mrf.mxu0
        %v4486 = vadd.f32 %v4437, %v4485
        %v4487 = vpop.f32.mrf.mxu0
        %v4488 = vadd.f32 %v4439, %v4487
        %4489 = vmatmul.bf16.gmra.mxu0 %v1213
        %v4490 = vpop.f32.mrf.mxu0
        %v4491 = vadd.f32 %v4442, %v4490
        %v4492 = vpop.f32.mrf.mxu0
        %v4493 = vadd.f32 %v4444, %v4492
        %4494 = vmatmul.bf16.gmra.mxu0 %v1220
        %v4495 = vpop.f32.mrf.mxu0
        %v4496 = vadd.f32 %v4447, %v4495
        %v4497 = vpop.f32.mrf.mxu0
        %v4498 = vadd.f32 %v4449, %v4497
        %4499 = vmatmul.bf16.gmra.mxu0 %v1227
        %v4500 = vpop.f32.mrf.mxu0
        %v4501 = vadd.f32 %v4452, %v4500
        %v4502 = vpop.f32.mrf.mxu0
        %v4503 = vadd.f32 %v4454, %v4502
        %4504 = vdwg.mxu0
        %4505 = vmatpush.bf16.msra.mxu0 %v3071
        %4506 = vmatpush.bf16.msra.mxu0 %v3063
        %4507 = vmatpush.bf16.msra.mxu0 %v3055
        %4508 = vmatpush.bf16.msra.mxu0 %v3047
        %4509 = vmatpush.bf16.msra.mxu0 %v3039
        %4510 = vmatpush.bf16.msra.mxu0 %v3031
        %4511 = vmatpush.bf16.msra.mxu0 %v3023
        %4512 = vmatpush.bf16.msra.mxu0 %v3015
        %4513 = vmatmul.bf16.gmra.mxu0 %v1179
        %v4514 = vpop.f32.mrf.mxu0
        %v4515 = vadd.f32 %v4466, %v4514
        %v4516 = vpop.f32.mrf.mxu0
        %v4517 = vadd.f32 %v4468, %v4516
        %4518 = vmatmul.bf16.gmra.mxu0 %v1186
        %v4519 = vpop.f32.mrf.mxu0
        %v4520 = vadd.f32 %v4471, %v4519
        %v4521 = vpop.f32.mrf.mxu0
        %v4522 = vadd.f32 %v4473, %v4521
        %4523 = vmatmul.bf16.gmra.mxu0 %v1193
        %v4524 = vpop.f32.mrf.mxu0
        %v4525 = vadd.f32 %v4476, %v4524
        %v4526 = vpop.f32.mrf.mxu0
        %v4527 = vadd.f32 %v4478, %v4526
        %4528 = vmatmul.bf16.gmra.mxu0 %v1200
        %v4529 = vpop.f32.mrf.mxu0
        %v4530 = vadd.f32 %v4481, %v4529
        %v4531 = vpop.f32.mrf.mxu0
        %v4532 = vadd.f32 %v4483, %v4531
        %4533 = vmatmul.bf16.gmra.mxu0 %v1207
        %v4534 = vpop.f32.mrf.mxu0
        %v4535 = vadd.f32 %v4486, %v4534
        %v4536 = vpop.f32.mrf.mxu0
        %v4537 = vadd.f32 %v4488, %v4536
        %4538 = vmatmul.bf16.gmra.mxu0 %v1214
        %v4539 = vpop.f32.mrf.mxu0
        %v4540 = vadd.f32 %v4491, %v4539
        %v4541 = vpop.f32.mrf.mxu0
        %v4542 = vadd.f32 %v4493, %v4541
        %4543 = vmatmul.bf16.gmra.mxu0 %v1221
        %v4544 = vpop.f32.mrf.mxu0
        %v4545 = vadd.f32 %v4496, %v4544
        %v4546 = vpop.f32.mrf.mxu0
        %v4547 = vadd.f32 %v4498, %v4546
        %4548 = vmatmul.bf16.gmra.mxu0 %v1228
        %v4549 = vpop.f32.mrf.mxu0
        %v4550 = vadd.f32 %v4501, %v4549
        %v4551 = vpop.f32.mrf.mxu0
        %v4552 = vadd.f32 %v4503, %v4551
        %4553 = vdwg.mxu0
        %4554 = vmatpush.bf16.msra.mxu0 %v2688
        %4555 = vmatpush.bf16.msra.mxu0 %v2680
        %4556 = vmatpush.bf16.msra.mxu0 %v2672
        %4557 = vmatpush.bf16.msra.mxu0 %v2664
        %4558 = vmatpush.bf16.msra.mxu0 %v2656
        %4559 = vmatpush.bf16.msra.mxu0 %v2648
        %4560 = vmatpush.bf16.msra.mxu0 %v2640
        %4561 = vmatpush.bf16.msra.mxu0 %v2632
        %4562 = vmatmul.bf16.gmra.mxu0 %v1173
        %v4563 = vpop.f32.mrf.mxu0
        %v4564 = vadd.f32 %v984, %v4563
        %v4565 = vpop.f32.mrf.mxu0
        %v4566 = vadd.f32 %v984, %v4565
        %4567 = vmatmul.bf16.gmra.mxu0 %v1180
        %v4568 = vpop.f32.mrf.mxu0
        %v4569 = vadd.f32 %v984, %v4568
        %v4570 = vpop.f32.mrf.mxu0
        %v4571 = vadd.f32 %v984, %v4570
        %4572 = vmatmul.bf16.gmra.mxu0 %v1187
        %v4573 = vpop.f32.mrf.mxu0
        %v4574 = vadd.f32 %v984, %v4573
        %v4575 = vpop.f32.mrf.mxu0
        %v4576 = vadd.f32 %v984, %v4575
        %4577 = vmatmul.bf16.gmra.mxu0 %v1194
        %v4578 = vpop.f32.mrf.mxu0
        %v4579 = vadd.f32 %v984, %v4578
        %v4580 = vpop.f32.mrf.mxu0
        %v4581 = vadd.f32 %v984, %v4580
        %4582 = vmatmul.bf16.gmra.mxu0 %v1201
        %v4583 = vpop.f32.mrf.mxu0
        %v4584 = vadd.f32 %v984, %v4583
        %v4585 = vpop.f32.mrf.mxu0
        %v4586 = vadd.f32 %v984, %v4585
        %4587 = vmatmul.bf16.gmra.mxu0 %v1208
        %v4588 = vpop.f32.mrf.mxu0
        %v4589 = vadd.f32 %v984, %v4588
        %v4590 = vpop.f32.mrf.mxu0
        %v4591 = vadd.f32 %v984, %v4590
        %4592 = vmatmul.bf16.gmra.mxu0 %v1215
        %v4593 = vpop.f32.mrf.mxu0
        %v4594 = vadd.f32 %v984, %v4593
        %v4595 = vpop.f32.mrf.mxu0
        %v4596 = vadd.f32 %v984, %v4595
        %4597 = vmatmul.bf16.gmra.mxu0 %v1222
        %v4598 = vpop.f32.mrf.mxu0
        %v4599 = vadd.f32 %v984, %v4598
        %v4600 = vpop.f32.mrf.mxu0
        %v4601 = vadd.f32 %v984, %v4600
        %4602 = vdwg.mxu0
        %4603 = vmatpush.bf16.msra.mxu0 %v2752
        %4604 = vmatpush.bf16.msra.mxu0 %v2744
        %4605 = vmatpush.bf16.msra.mxu0 %v2736
        %4606 = vmatpush.bf16.msra.mxu0 %v2728
        %4607 = vmatpush.bf16.msra.mxu0 %v2720
        %4608 = vmatpush.bf16.msra.mxu0 %v2712
        %4609 = vmatpush.bf16.msra.mxu0 %v2704
        %4610 = vmatpush.bf16.msra.mxu0 %v2696
        %4611 = vmatmul.bf16.gmra.mxu0 %v1174
        %v4612 = vpop.f32.mrf.mxu0
        %v4613 = vadd.f32 %v4564, %v4612
        %v4614 = vpop.f32.mrf.mxu0
        %v4615 = vadd.f32 %v4566, %v4614
        %4616 = vmatmul.bf16.gmra.mxu0 %v1181
        %v4617 = vpop.f32.mrf.mxu0
        %v4618 = vadd.f32 %v4569, %v4617
        %v4619 = vpop.f32.mrf.mxu0
        %v4620 = vadd.f32 %v4571, %v4619
        %4621 = vmatmul.bf16.gmra.mxu0 %v1188
        %v4622 = vpop.f32.mrf.mxu0
        %v4623 = vadd.f32 %v4574, %v4622
        %v4624 = vpop.f32.mrf.mxu0
        %v4625 = vadd.f32 %v4576, %v4624
        %4626 = vmatmul.bf16.gmra.mxu0 %v1195
        %v4627 = vpop.f32.mrf.mxu0
        %v4628 = vadd.f32 %v4579, %v4627
        %v4629 = vpop.f32.mrf.mxu0
        %v4630 = vadd.f32 %v4581, %v4629
        %4631 = vmatmul.bf16.gmra.mxu0 %v1202
        %v4632 = vpop.f32.mrf.mxu0
        %v4633 = vadd.f32 %v4584, %v4632
        %v4634 = vpop.f32.mrf.mxu0
        %v4635 = vadd.f32 %v4586, %v4634
        %4636 = vmatmul.bf16.gmra.mxu0 %v1209
        %v4637 = vpop.f32.mrf.mxu0
        %v4638 = vadd.f32 %v4589, %v4637
        %v4639 = vpop.f32.mrf.mxu0
        %v4640 = vadd.f32 %v4591, %v4639
        %4641 = vmatmul.bf16.gmra.mxu0 %v1216
        %v4642 = vpop.f32.mrf.mxu0
        %v4643 = vadd.f32 %v4594, %v4642
        %v4644 = vpop.f32.mrf.mxu0
        %v4645 = vadd.f32 %v4596, %v4644
        %4646 = vmatmul.bf16.gmra.mxu0 %v1223
        %v4647 = vpop.f32.mrf.mxu0
        %v4648 = vadd.f32 %v4599, %v4647
        %v4649 = vpop.f32.mrf.mxu0
        %v4650 = vadd.f32 %v4601, %v4649
        %4651 = vdwg.mxu0
        %4652 = vmatpush.bf16.msra.mxu0 %v2816
        %4653 = vmatpush.bf16.msra.mxu0 %v2808
        %4654 = vmatpush.bf16.msra.mxu0 %v2800
        %4655 = vmatpush.bf16.msra.mxu0 %v2792
        %4656 = vmatpush.bf16.msra.mxu0 %v2784
        %4657 = vmatpush.bf16.msra.mxu0 %v2776
        %4658 = vmatpush.bf16.msra.mxu0 %v2768
        %4659 = vmatpush.bf16.msra.mxu0 %v2760
        %4660 = vmatmul.bf16.gmra.mxu0 %v1175
        %v4661 = vpop.f32.mrf.mxu0
        %v4662 = vadd.f32 %v4613, %v4661
        %v4663 = vpop.f32.mrf.mxu0
        %v4664 = vadd.f32 %v4615, %v4663
        %4665 = vmatmul.bf16.gmra.mxu0 %v1182
        %v4666 = vpop.f32.mrf.mxu0
        %v4667 = vadd.f32 %v4618, %v4666
        %v4668 = vpop.f32.mrf.mxu0
        %v4669 = vadd.f32 %v4620, %v4668
        %4670 = vmatmul.bf16.gmra.mxu0 %v1189
        %v4671 = vpop.f32.mrf.mxu0
        %v4672 = vadd.f32 %v4623, %v4671
        %v4673 = vpop.f32.mrf.mxu0
        %v4674 = vadd.f32 %v4625, %v4673
        %4675 = vmatmul.bf16.gmra.mxu0 %v1196
        %v4676 = vpop.f32.mrf.mxu0
        %v4677 = vadd.f32 %v4628, %v4676
        %v4678 = vpop.f32.mrf.mxu0
        %v4679 = vadd.f32 %v4630, %v4678
        %4680 = vmatmul.bf16.gmra.mxu0 %v1203
        %v4681 = vpop.f32.mrf.mxu0
        %v4682 = vadd.f32 %v4633, %v4681
        %v4683 = vpop.f32.mrf.mxu0
        %v4684 = vadd.f32 %v4635, %v4683
        %4685 = vmatmul.bf16.gmra.mxu0 %v1210
        %v4686 = vpop.f32.mrf.mxu0
        %v4687 = vadd.f32 %v4638, %v4686
        %v4688 = vpop.f32.mrf.mxu0
        %v4689 = vadd.f32 %v4640, %v4688
        %4690 = vmatmul.bf16.gmra.mxu0 %v1217
        %v4691 = vpop.f32.mrf.mxu0
        %v4692 = vadd.f32 %v4643, %v4691
        %v4693 = vpop.f32.mrf.mxu0
        %v4694 = vadd.f32 %v4645, %v4693
        %4695 = vmatmul.bf16.gmra.mxu0 %v1224
        %v4696 = vpop.f32.mrf.mxu0
        %v4697 = vadd.f32 %v4648, %v4696
        %v4698 = vpop.f32.mrf.mxu0
        %v4699 = vadd.f32 %v4650, %v4698
        %4700 = vdwg.mxu0
        %4701 = vmatpush.bf16.msra.mxu0 %v2880
        %4702 = vmatpush.bf16.msra.mxu0 %v2872
        %4703 = vmatpush.bf16.msra.mxu0 %v2864
        %4704 = vmatpush.bf16.msra.mxu0 %v2856
        %4705 = vmatpush.bf16.msra.mxu0 %v2848
        %4706 = vmatpush.bf16.msra.mxu0 %v2840
        %4707 = vmatpush.bf16.msra.mxu0 %v2832
        %4708 = vmatpush.bf16.msra.mxu0 %v2824
        %4709 = vmatmul.bf16.gmra.mxu0 %v1176
        %v4710 = vpop.f32.mrf.mxu0
        %v4711 = vadd.f32 %v4662, %v4710
        %v4712 = vpop.f32.mrf.mxu0
        %v4713 = vadd.f32 %v4664, %v4712
        %4714 = vmatmul.bf16.gmra.mxu0 %v1183
        %v4715 = vpop.f32.mrf.mxu0
        %v4716 = vadd.f32 %v4667, %v4715
        %v4717 = vpop.f32.mrf.mxu0
        %v4718 = vadd.f32 %v4669, %v4717
        %4719 = vmatmul.bf16.gmra.mxu0 %v1190
        %v4720 = vpop.f32.mrf.mxu0
        %v4721 = vadd.f32 %v4672, %v4720
        %v4722 = vpop.f32.mrf.mxu0
        %v4723 = vadd.f32 %v4674, %v4722
        %4724 = vmatmul.bf16.gmra.mxu0 %v1197
        %v4725 = vpop.f32.mrf.mxu0
        %v4726 = vadd.f32 %v4677, %v4725
        %v4727 = vpop.f32.mrf.mxu0
        %v4728 = vadd.f32 %v4679, %v4727
        %4729 = vmatmul.bf16.gmra.mxu0 %v1204
        %v4730 = vpop.f32.mrf.mxu0
        %v4731 = vadd.f32 %v4682, %v4730
        %v4732 = vpop.f32.mrf.mxu0
        %v4733 = vadd.f32 %v4684, %v4732
        %4734 = vmatmul.bf16.gmra.mxu0 %v1211
        %v4735 = vpop.f32.mrf.mxu0
        %v4736 = vadd.f32 %v4687, %v4735
        %v4737 = vpop.f32.mrf.mxu0
        %v4738 = vadd.f32 %v4689, %v4737
        %4739 = vmatmul.bf16.gmra.mxu0 %v1218
        %v4740 = vpop.f32.mrf.mxu0
        %v4741 = vadd.f32 %v4692, %v4740
        %v4742 = vpop.f32.mrf.mxu0
        %v4743 = vadd.f32 %v4694, %v4742
        %4744 = vmatmul.bf16.gmra.mxu0 %v1225
        %v4745 = vpop.f32.mrf.mxu0
        %v4746 = vadd.f32 %v4697, %v4745
        %v4747 = vpop.f32.mrf.mxu0
        %v4748 = vadd.f32 %v4699, %v4747
        %4749 = vdwg.mxu0
        %4750 = vmatpush.bf16.msra.mxu0 %v2944
        %4751 = vmatpush.bf16.msra.mxu0 %v2936
        %4752 = vmatpush.bf16.msra.mxu0 %v2928
        %4753 = vmatpush.bf16.msra.mxu0 %v2920
        %4754 = vmatpush.bf16.msra.mxu0 %v2912
        %4755 = vmatpush.bf16.msra.mxu0 %v2904
        %4756 = vmatpush.bf16.msra.mxu0 %v2896
        %4757 = vmatpush.bf16.msra.mxu0 %v2888
        %4758 = vmatmul.bf16.gmra.mxu0 %v1177
        %v4759 = vpop.f32.mrf.mxu0
        %v4760 = vadd.f32 %v4711, %v4759
        %v4761 = vpop.f32.mrf.mxu0
        %v4762 = vadd.f32 %v4713, %v4761
        %4763 = vmatmul.bf16.gmra.mxu0 %v1184
        %v4764 = vpop.f32.mrf.mxu0
        %v4765 = vadd.f32 %v4716, %v4764
        %v4766 = vpop.f32.mrf.mxu0
        %v4767 = vadd.f32 %v4718, %v4766
        %4768 = vmatmul.bf16.gmra.mxu0 %v1191
        %v4769 = vpop.f32.mrf.mxu0
        %v4770 = vadd.f32 %v4721, %v4769
        %v4771 = vpop.f32.mrf.mxu0
        %v4772 = vadd.f32 %v4723, %v4771
        %4773 = vmatmul.bf16.gmra.mxu0 %v1198
        %v4774 = vpop.f32.mrf.mxu0
        %v4775 = vadd.f32 %v4726, %v4774
        %v4776 = vpop.f32.mrf.mxu0
        %v4777 = vadd.f32 %v4728, %v4776
        %4778 = vmatmul.bf16.gmra.mxu0 %v1205
        %v4779 = vpop.f32.mrf.mxu0
        %v4780 = vadd.f32 %v4731, %v4779
        %v4781 = vpop.f32.mrf.mxu0
        %v4782 = vadd.f32 %v4733, %v4781
        %4783 = vmatmul.bf16.gmra.mxu0 %v1212
        %v4784 = vpop.f32.mrf.mxu0
        %v4785 = vadd.f32 %v4736, %v4784
        %v4786 = vpop.f32.mrf.mxu0
        %v4787 = vadd.f32 %v4738, %v4786
        %4788 = vmatmul.bf16.gmra.mxu0 %v1219
        %v4789 = vpop.f32.mrf.mxu0
        %v4790 = vadd.f32 %v4741, %v4789
        %v4791 = vpop.f32.mrf.mxu0
        %v4792 = vadd.f32 %v4743, %v4791
        %4793 = vmatmul.bf16.gmra.mxu0 %v1226
        %v4794 = vpop.f32.mrf.mxu0
        %v4795 = vadd.f32 %v4746, %v4794
        %v4796 = vpop.f32.mrf.mxu0
        %v4797 = vadd.f32 %v4748, %v4796
        %4798 = vdwg.mxu0
        %4799 = vmatpush.bf16.msra.mxu0 %v3008
        %4800 = vmatpush.bf16.msra.mxu0 %v3000
        %4801 = vmatpush.bf16.msra.mxu0 %v2992
        %4802 = vmatpush.bf16.msra.mxu0 %v2984
        %4803 = vmatpush.bf16.msra.mxu0 %v2976
        %4804 = vmatpush.bf16.msra.mxu0 %v2968
        %4805 = vmatpush.bf16.msra.mxu0 %v2960
        %4806 = vmatpush.bf16.msra.mxu0 %v2952
        %4807 = vmatmul.bf16.gmra.mxu0 %v1178
        %v4808 = vpop.f32.mrf.mxu0
        %v4809 = vadd.f32 %v4760, %v4808
        %v4810 = vpop.f32.mrf.mxu0
        %v4811 = vadd.f32 %v4762, %v4810
        %4812 = vmatmul.bf16.gmra.mxu0 %v1185
        %v4813 = vpop.f32.mrf.mxu0
        %v4814 = vadd.f32 %v4765, %v4813
        %v4815 = vpop.f32.mrf.mxu0
        %v4816 = vadd.f32 %v4767, %v4815
        %4817 = vmatmul.bf16.gmra.mxu0 %v1192
        %v4818 = vpop.f32.mrf.mxu0
        %v4819 = vadd.f32 %v4770, %v4818
        %v4820 = vpop.f32.mrf.mxu0
        %v4821 = vadd.f32 %v4772, %v4820
        %4822 = vmatmul.bf16.gmra.mxu0 %v1199
        %v4823 = vpop.f32.mrf.mxu0
        %v4824 = vadd.f32 %v4775, %v4823
        %v4825 = vpop.f32.mrf.mxu0
        %v4826 = vadd.f32 %v4777, %v4825
        %4827 = vmatmul.bf16.gmra.mxu0 %v1206
        %v4828 = vpop.f32.mrf.mxu0
        %v4829 = vadd.f32 %v4780, %v4828
        %v4830 = vpop.f32.mrf.mxu0
        %v4831 = vadd.f32 %v4782, %v4830
        %4832 = vmatmul.bf16.gmra.mxu0 %v1213
        %v4833 = vpop.f32.mrf.mxu0
        %v4834 = vadd.f32 %v4785, %v4833
        %v4835 = vpop.f32.mrf.mxu0
        %v4836 = vadd.f32 %v4787, %v4835
        %4837 = vmatmul.bf16.gmra.mxu0 %v1220
        %v4838 = vpop.f32.mrf.mxu0
        %v4839 = vadd.f32 %v4790, %v4838
        %v4840 = vpop.f32.mrf.mxu0
        %v4841 = vadd.f32 %v4792, %v4840
        %4842 = vmatmul.bf16.gmra.mxu0 %v1227
        %v4843 = vpop.f32.mrf.mxu0
        %v4844 = vadd.f32 %v4795, %v4843
        %v4845 = vpop.f32.mrf.mxu0
        %v4846 = vadd.f32 %v4797, %v4845
        %4847 = vdwg.mxu0
        %4848 = vmatpush.bf16.msra.mxu0 %v3072
        %4849 = vmatpush.bf16.msra.mxu0 %v3064
        %4850 = vmatpush.bf16.msra.mxu0 %v3056
        %4851 = vmatpush.bf16.msra.mxu0 %v3048
        %4852 = vmatpush.bf16.msra.mxu0 %v3040
        %4853 = vmatpush.bf16.msra.mxu0 %v3032
        %4854 = vmatpush.bf16.msra.mxu0 %v3024
        %4855 = vmatpush.bf16.msra.mxu0 %v3016
        %4856 = vmatmul.bf16.gmra.mxu0 %v1179
        %v4857 = vpop.f32.mrf.mxu0
        %v4858 = vadd.f32 %v4809, %v4857
        %v4859 = vpop.f32.mrf.mxu0
        %v4860 = vadd.f32 %v4811, %v4859
        %4861 = vmatmul.bf16.gmra.mxu0 %v1186
        %v4862 = vpop.f32.mrf.mxu0
        %v4863 = vadd.f32 %v4814, %v4862
        %v4864 = vpop.f32.mrf.mxu0
        %v4865 = vadd.f32 %v4816, %v4864
        %4866 = vmatmul.bf16.gmra.mxu0 %v1193
        %v4867 = vpop.f32.mrf.mxu0
        %v4868 = vadd.f32 %v4819, %v4867
        %v4869 = vpop.f32.mrf.mxu0
        %v4870 = vadd.f32 %v4821, %v4869
        %4871 = vmatmul.bf16.gmra.mxu0 %v1200
        %v4872 = vpop.f32.mrf.mxu0
        %v4873 = vadd.f32 %v4824, %v4872
        %v4874 = vpop.f32.mrf.mxu0
        %v4875 = vadd.f32 %v4826, %v4874
        %4876 = vmatmul.bf16.gmra.mxu0 %v1207
        %v4877 = vpop.f32.mrf.mxu0
        %v4878 = vadd.f32 %v4829, %v4877
        %v4879 = vpop.f32.mrf.mxu0
        %v4880 = vadd.f32 %v4831, %v4879
        %4881 = vmatmul.bf16.gmra.mxu0 %v1214
        %v4882 = vpop.f32.mrf.mxu0
        %v4883 = vadd.f32 %v4834, %v4882
        %v4884 = vpop.f32.mrf.mxu0
        %v4885 = vadd.f32 %v4836, %v4884
        %4886 = vmatmul.bf16.gmra.mxu0 %v1221
        %v4887 = vpop.f32.mrf.mxu0
        %v4888 = vadd.f32 %v4839, %v4887
        %v4889 = vpop.f32.mrf.mxu0
        %v4890 = vadd.f32 %v4841, %v4889
        %4891 = vmatmul.bf16.gmra.mxu0 %v1228
        %v4892 = vpop.f32.mrf.mxu0
        %v4893 = vadd.f32 %v4844, %v4892
        %v4894 = vpop.f32.mrf.mxu0
        %v4895 = vadd.f32 %v4846, %v4894
        %4896 = vdwg.mxu0
        %4897 = vmatpush.bf16.msra.mxu0 %v2689
        %4898 = vmatpush.bf16.msra.mxu0 %v2681
        %4899 = vmatpush.bf16.msra.mxu0 %v2673
        %4900 = vmatpush.bf16.msra.mxu0 %v2665
        %4901 = vmatpush.bf16.msra.mxu0 %v2657
        %4902 = vmatpush.bf16.msra.mxu0 %v2649
        %4903 = vmatpush.bf16.msra.mxu0 %v2641
        %4904 = vmatpush.bf16.msra.mxu0 %v2633
        %4905 = vmatmul.bf16.gmra.mxu0 %v1173
        %v4906 = vpop.f32.mrf.mxu0
        %v4907 = vadd.f32 %v985, %v4906
        %v4908 = vpop.f32.mrf.mxu0
        %v4909 = vadd.f32 %v985, %v4908
        %4910 = vmatmul.bf16.gmra.mxu0 %v1180
        %v4911 = vpop.f32.mrf.mxu0
        %v4912 = vadd.f32 %v985, %v4911
        %v4913 = vpop.f32.mrf.mxu0
        %v4914 = vadd.f32 %v985, %v4913
        %4915 = vmatmul.bf16.gmra.mxu0 %v1187
        %v4916 = vpop.f32.mrf.mxu0
        %v4917 = vadd.f32 %v985, %v4916
        %v4918 = vpop.f32.mrf.mxu0
        %v4919 = vadd.f32 %v985, %v4918
        %4920 = vmatmul.bf16.gmra.mxu0 %v1194
        %v4921 = vpop.f32.mrf.mxu0
        %v4922 = vadd.f32 %v985, %v4921
        %v4923 = vpop.f32.mrf.mxu0
        %v4924 = vadd.f32 %v985, %v4923
        %4925 = vmatmul.bf16.gmra.mxu0 %v1201
        %v4926 = vpop.f32.mrf.mxu0
        %v4927 = vadd.f32 %v985, %v4926
        %v4928 = vpop.f32.mrf.mxu0
        %v4929 = vadd.f32 %v985, %v4928
        %4930 = vmatmul.bf16.gmra.mxu0 %v1208
        %v4931 = vpop.f32.mrf.mxu0
        %v4932 = vadd.f32 %v985, %v4931
        %v4933 = vpop.f32.mrf.mxu0
        %v4934 = vadd.f32 %v985, %v4933
        %4935 = vmatmul.bf16.gmra.mxu0 %v1215
        %v4936 = vpop.f32.mrf.mxu0
        %v4937 = vadd.f32 %v985, %v4936
        %v4938 = vpop.f32.mrf.mxu0
        %v4939 = vadd.f32 %v985, %v4938
        %4940 = vmatmul.bf16.gmra.mxu0 %v1222
        %v4941 = vpop.f32.mrf.mxu0
        %v4942 = vadd.f32 %v985, %v4941
        %v4943 = vpop.f32.mrf.mxu0
        %v4944 = vadd.f32 %v985, %v4943
        %4945 = vdwg.mxu0
        %4946 = vmatpush.bf16.msra.mxu0 %v2753
        %4947 = vmatpush.bf16.msra.mxu0 %v2745
        %4948 = vmatpush.bf16.msra.mxu0 %v2737
        %4949 = vmatpush.bf16.msra.mxu0 %v2729
        %4950 = vmatpush.bf16.msra.mxu0 %v2721
        %4951 = vmatpush.bf16.msra.mxu0 %v2713
        %4952 = vmatpush.bf16.msra.mxu0 %v2705
        %4953 = vmatpush.bf16.msra.mxu0 %v2697
        %4954 = vmatmul.bf16.gmra.mxu0 %v1174
        %v4955 = vpop.f32.mrf.mxu0
        %v4956 = vadd.f32 %v4907, %v4955
        %v4957 = vpop.f32.mrf.mxu0
        %v4958 = vadd.f32 %v4909, %v4957
        %4959 = vmatmul.bf16.gmra.mxu0 %v1181
        %v4960 = vpop.f32.mrf.mxu0
        %v4961 = vadd.f32 %v4912, %v4960
        %v4962 = vpop.f32.mrf.mxu0
        %v4963 = vadd.f32 %v4914, %v4962
        %4964 = vmatmul.bf16.gmra.mxu0 %v1188
        %v4965 = vpop.f32.mrf.mxu0
        %v4966 = vadd.f32 %v4917, %v4965
        %v4967 = vpop.f32.mrf.mxu0
        %v4968 = vadd.f32 %v4919, %v4967
        %4969 = vmatmul.bf16.gmra.mxu0 %v1195
        %v4970 = vpop.f32.mrf.mxu0
        %v4971 = vadd.f32 %v4922, %v4970
        %v4972 = vpop.f32.mrf.mxu0
        %v4973 = vadd.f32 %v4924, %v4972
        %4974 = vmatmul.bf16.gmra.mxu0 %v1202
        %v4975 = vpop.f32.mrf.mxu0
        %v4976 = vadd.f32 %v4927, %v4975
        %v4977 = vpop.f32.mrf.mxu0
        %v4978 = vadd.f32 %v4929, %v4977
        %4979 = vmatmul.bf16.gmra.mxu0 %v1209
        %v4980 = vpop.f32.mrf.mxu0
        %v4981 = vadd.f32 %v4932, %v4980
        %v4982 = vpop.f32.mrf.mxu0
        %v4983 = vadd.f32 %v4934, %v4982
        %4984 = vmatmul.bf16.gmra.mxu0 %v1216
        %v4985 = vpop.f32.mrf.mxu0
        %v4986 = vadd.f32 %v4937, %v4985
        %v4987 = vpop.f32.mrf.mxu0
        %v4988 = vadd.f32 %v4939, %v4987
        %4989 = vmatmul.bf16.gmra.mxu0 %v1223
        %v4990 = vpop.f32.mrf.mxu0
        %v4991 = vadd.f32 %v4942, %v4990
        %v4992 = vpop.f32.mrf.mxu0
        %v4993 = vadd.f32 %v4944, %v4992
        %4994 = vdwg.mxu0
        %4995 = vmatpush.bf16.msra.mxu0 %v2817
        %4996 = vmatpush.bf16.msra.mxu0 %v2809
        %4997 = vmatpush.bf16.msra.mxu0 %v2801
        %4998 = vmatpush.bf16.msra.mxu0 %v2793
        %4999 = vmatpush.bf16.msra.mxu0 %v2785
        %5000 = vmatpush.bf16.msra.mxu0 %v2777
        %5001 = vmatpush.bf16.msra.mxu0 %v2769
        %5002 = vmatpush.bf16.msra.mxu0 %v2761
        %5003 = vmatmul.bf16.gmra.mxu0 %v1175
        %v5004 = vpop.f32.mrf.mxu0
        %v5005 = vadd.f32 %v4956, %v5004
        %v5006 = vpop.f32.mrf.mxu0
        %v5007 = vadd.f32 %v4958, %v5006
        %5008 = vmatmul.bf16.gmra.mxu0 %v1182
        %v5009 = vpop.f32.mrf.mxu0
        %v5010 = vadd.f32 %v4961, %v5009
        %v5011 = vpop.f32.mrf.mxu0
        %v5012 = vadd.f32 %v4963, %v5011
        %5013 = vmatmul.bf16.gmra.mxu0 %v1189
        %v5014 = vpop.f32.mrf.mxu0
        %v5015 = vadd.f32 %v4966, %v5014
        %v5016 = vpop.f32.mrf.mxu0
        %v5017 = vadd.f32 %v4968, %v5016
        %5018 = vmatmul.bf16.gmra.mxu0 %v1196
        %v5019 = vpop.f32.mrf.mxu0
        %v5020 = vadd.f32 %v4971, %v5019
        %v5021 = vpop.f32.mrf.mxu0
        %v5022 = vadd.f32 %v4973, %v5021
        %5023 = vmatmul.bf16.gmra.mxu0 %v1203
        %v5024 = vpop.f32.mrf.mxu0
        %v5025 = vadd.f32 %v4976, %v5024
        %v5026 = vpop.f32.mrf.mxu0
        %v5027 = vadd.f32 %v4978, %v5026
        %5028 = vmatmul.bf16.gmra.mxu0 %v1210
        %v5029 = vpop.f32.mrf.mxu0
        %v5030 = vadd.f32 %v4981, %v5029
        %v5031 = vpop.f32.mrf.mxu0
        %v5032 = vadd.f32 %v4983, %v5031
        %5033 = vmatmul.bf16.gmra.mxu0 %v1217
        %v5034 = vpop.f32.mrf.mxu0
        %v5035 = vadd.f32 %v4986, %v5034
        %v5036 = vpop.f32.mrf.mxu0
        %v5037 = vadd.f32 %v4988, %v5036
        %5038 = vmatmul.bf16.gmra.mxu0 %v1224
        %v5039 = vpop.f32.mrf.mxu0
        %v5040 = vadd.f32 %v4991, %v5039
        %v5041 = vpop.f32.mrf.mxu0
        %v5042 = vadd.f32 %v4993, %v5041
        %5043 = vdwg.mxu0
        %5044 = vmatpush.bf16.msra.mxu0 %v2881
        %5045 = vmatpush.bf16.msra.mxu0 %v2873
        %5046 = vmatpush.bf16.msra.mxu0 %v2865
        %5047 = vmatpush.bf16.msra.mxu0 %v2857
        %5048 = vmatpush.bf16.msra.mxu0 %v2849
        %5049 = vmatpush.bf16.msra.mxu0 %v2841
        %5050 = vmatpush.bf16.msra.mxu0 %v2833
        %5051 = vmatpush.bf16.msra.mxu0 %v2825
        %5052 = vmatmul.bf16.gmra.mxu0 %v1176
        %v5053 = vpop.f32.mrf.mxu0
        %v5054 = vadd.f32 %v5005, %v5053
        %v5055 = vpop.f32.mrf.mxu0
        %v5056 = vadd.f32 %v5007, %v5055
        %5057 = vmatmul.bf16.gmra.mxu0 %v1183
        %v5058 = vpop.f32.mrf.mxu0
        %v5059 = vadd.f32 %v5010, %v5058
        %v5060 = vpop.f32.mrf.mxu0
        %v5061 = vadd.f32 %v5012, %v5060
        %5062 = vmatmul.bf16.gmra.mxu0 %v1190
        %v5063 = vpop.f32.mrf.mxu0
        %v5064 = vadd.f32 %v5015, %v5063
        %v5065 = vpop.f32.mrf.mxu0
        %v5066 = vadd.f32 %v5017, %v5065
        %5067 = vmatmul.bf16.gmra.mxu0 %v1197
        %v5068 = vpop.f32.mrf.mxu0
        %v5069 = vadd.f32 %v5020, %v5068
        %v5070 = vpop.f32.mrf.mxu0
        %v5071 = vadd.f32 %v5022, %v5070
        %5072 = vmatmul.bf16.gmra.mxu0 %v1204
        %v5073 = vpop.f32.mrf.mxu0
        %v5074 = vadd.f32 %v5025, %v5073
        %v5075 = vpop.f32.mrf.mxu0
        %v5076 = vadd.f32 %v5027, %v5075
        %5077 = vmatmul.bf16.gmra.mxu0 %v1211
        %v5078 = vpop.f32.mrf.mxu0
        %v5079 = vadd.f32 %v5030, %v5078
        %v5080 = vpop.f32.mrf.mxu0
        %v5081 = vadd.f32 %v5032, %v5080
        %5082 = vmatmul.bf16.gmra.mxu0 %v1218
        %v5083 = vpop.f32.mrf.mxu0
        %v5084 = vadd.f32 %v5035, %v5083
        %v5085 = vpop.f32.mrf.mxu0
        %v5086 = vadd.f32 %v5037, %v5085
        %5087 = vmatmul.bf16.gmra.mxu0 %v1225
        %v5088 = vpop.f32.mrf.mxu0
        %v5089 = vadd.f32 %v5040, %v5088
        %v5090 = vpop.f32.mrf.mxu0
        %v5091 = vadd.f32 %v5042, %v5090
        %5092 = vdwg.mxu0
        %5093 = vmatpush.bf16.msra.mxu0 %v2945
        %5094 = vmatpush.bf16.msra.mxu0 %v2937
        %5095 = vmatpush.bf16.msra.mxu0 %v2929
        %5096 = vmatpush.bf16.msra.mxu0 %v2921
        %5097 = vmatpush.bf16.msra.mxu0 %v2913
        %5098 = vmatpush.bf16.msra.mxu0 %v2905
        %5099 = vmatpush.bf16.msra.mxu0 %v2897
        %5100 = vmatpush.bf16.msra.mxu0 %v2889
        %5101 = vmatmul.bf16.gmra.mxu0 %v1177
        %v5102 = vpop.f32.mrf.mxu0
        %v5103 = vadd.f32 %v5054, %v5102
        %v5104 = vpop.f32.mrf.mxu0
        %v5105 = vadd.f32 %v5056, %v5104
        %5106 = vmatmul.bf16.gmra.mxu0 %v1184
        %v5107 = vpop.f32.mrf.mxu0
        %v5108 = vadd.f32 %v5059, %v5107
        %v5109 = vpop.f32.mrf.mxu0
        %v5110 = vadd.f32 %v5061, %v5109
        %5111 = vmatmul.bf16.gmra.mxu0 %v1191
        %v5112 = vpop.f32.mrf.mxu0
        %v5113 = vadd.f32 %v5064, %v5112
        %v5114 = vpop.f32.mrf.mxu0
        %v5115 = vadd.f32 %v5066, %v5114
        %5116 = vmatmul.bf16.gmra.mxu0 %v1198
        %v5117 = vpop.f32.mrf.mxu0
        %v5118 = vadd.f32 %v5069, %v5117
        %v5119 = vpop.f32.mrf.mxu0
        %v5120 = vadd.f32 %v5071, %v5119
        %5121 = vmatmul.bf16.gmra.mxu0 %v1205
        %v5122 = vpop.f32.mrf.mxu0
        %v5123 = vadd.f32 %v5074, %v5122
        %v5124 = vpop.f32.mrf.mxu0
        %v5125 = vadd.f32 %v5076, %v5124
        %5126 = vmatmul.bf16.gmra.mxu0 %v1212
        %v5127 = vpop.f32.mrf.mxu0
        %v5128 = vadd.f32 %v5079, %v5127
        %v5129 = vpop.f32.mrf.mxu0
        %v5130 = vadd.f32 %v5081, %v5129
        %5131 = vmatmul.bf16.gmra.mxu0 %v1219
        %v5132 = vpop.f32.mrf.mxu0
        %v5133 = vadd.f32 %v5084, %v5132
        %v5134 = vpop.f32.mrf.mxu0
        %v5135 = vadd.f32 %v5086, %v5134
        %5136 = vmatmul.bf16.gmra.mxu0 %v1226
        %v5137 = vpop.f32.mrf.mxu0
        %v5138 = vadd.f32 %v5089, %v5137
        %v5139 = vpop.f32.mrf.mxu0
        %v5140 = vadd.f32 %v5091, %v5139
        %5141 = vdwg.mxu0
        %5142 = vmatpush.bf16.msra.mxu0 %v3009
        %5143 = vmatpush.bf16.msra.mxu0 %v3001
        %5144 = vmatpush.bf16.msra.mxu0 %v2993
        %5145 = vmatpush.bf16.msra.mxu0 %v2985
        %5146 = vmatpush.bf16.msra.mxu0 %v2977
        %5147 = vmatpush.bf16.msra.mxu0 %v2969
        %5148 = vmatpush.bf16.msra.mxu0 %v2961
        %5149 = vmatpush.bf16.msra.mxu0 %v2953
        %5150 = vmatmul.bf16.gmra.mxu0 %v1178
        %v5151 = vpop.f32.mrf.mxu0
        %v5152 = vadd.f32 %v5103, %v5151
        %v5153 = vpop.f32.mrf.mxu0
        %v5154 = vadd.f32 %v5105, %v5153
        %5155 = vmatmul.bf16.gmra.mxu0 %v1185
        %v5156 = vpop.f32.mrf.mxu0
        %v5157 = vadd.f32 %v5108, %v5156
        %v5158 = vpop.f32.mrf.mxu0
        %v5159 = vadd.f32 %v5110, %v5158
        %5160 = vmatmul.bf16.gmra.mxu0 %v1192
        %v5161 = vpop.f32.mrf.mxu0
        %v5162 = vadd.f32 %v5113, %v5161
        %v5163 = vpop.f32.mrf.mxu0
        %v5164 = vadd.f32 %v5115, %v5163
        %5165 = vmatmul.bf16.gmra.mxu0 %v1199
        %v5166 = vpop.f32.mrf.mxu0
        %v5167 = vadd.f32 %v5118, %v5166
        %v5168 = vpop.f32.mrf.mxu0
        %v5169 = vadd.f32 %v5120, %v5168
        %5170 = vmatmul.bf16.gmra.mxu0 %v1206
        %v5171 = vpop.f32.mrf.mxu0
        %v5172 = vadd.f32 %v5123, %v5171
        %v5173 = vpop.f32.mrf.mxu0
        %v5174 = vadd.f32 %v5125, %v5173
        %5175 = vmatmul.bf16.gmra.mxu0 %v1213
        %v5176 = vpop.f32.mrf.mxu0
        %v5177 = vadd.f32 %v5128, %v5176
        %v5178 = vpop.f32.mrf.mxu0
        %v5179 = vadd.f32 %v5130, %v5178
        %5180 = vmatmul.bf16.gmra.mxu0 %v1220
        %v5181 = vpop.f32.mrf.mxu0
        %v5182 = vadd.f32 %v5133, %v5181
        %v5183 = vpop.f32.mrf.mxu0
        %v5184 = vadd.f32 %v5135, %v5183
        %5185 = vmatmul.bf16.gmra.mxu0 %v1227
        %v5186 = vpop.f32.mrf.mxu0
        %v5187 = vadd.f32 %v5138, %v5186
        %v5188 = vpop.f32.mrf.mxu0
        %v5189 = vadd.f32 %v5140, %v5188
        %5190 = vdwg.mxu0
        %5191 = vmatpush.bf16.msra.mxu0 %v3073
        %5192 = vmatpush.bf16.msra.mxu0 %v3065
        %5193 = vmatpush.bf16.msra.mxu0 %v3057
        %5194 = vmatpush.bf16.msra.mxu0 %v3049
        %5195 = vmatpush.bf16.msra.mxu0 %v3041
        %5196 = vmatpush.bf16.msra.mxu0 %v3033
        %5197 = vmatpush.bf16.msra.mxu0 %v3025
        %5198 = vmatpush.bf16.msra.mxu0 %v3017
        %5199 = vmatmul.bf16.gmra.mxu0 %v1179
        %v5200 = vpop.f32.mrf.mxu0
        %v5201 = vadd.f32 %v5152, %v5200
        %v5202 = vpop.f32.mrf.mxu0
        %v5203 = vadd.f32 %v5154, %v5202
        %5204 = vmatmul.bf16.gmra.mxu0 %v1186
        %v5205 = vpop.f32.mrf.mxu0
        %v5206 = vadd.f32 %v5157, %v5205
        %v5207 = vpop.f32.mrf.mxu0
        %v5208 = vadd.f32 %v5159, %v5207
        %5209 = vmatmul.bf16.gmra.mxu0 %v1193
        %v5210 = vpop.f32.mrf.mxu0
        %v5211 = vadd.f32 %v5162, %v5210
        %v5212 = vpop.f32.mrf.mxu0
        %v5213 = vadd.f32 %v5164, %v5212
        %5214 = vmatmul.bf16.gmra.mxu0 %v1200
        %v5215 = vpop.f32.mrf.mxu0
        %v5216 = vadd.f32 %v5167, %v5215
        %v5217 = vpop.f32.mrf.mxu0
        %v5218 = vadd.f32 %v5169, %v5217
        %5219 = vmatmul.bf16.gmra.mxu0 %v1207
        %v5220 = vpop.f32.mrf.mxu0
        %v5221 = vadd.f32 %v5172, %v5220
        %v5222 = vpop.f32.mrf.mxu0
        %v5223 = vadd.f32 %v5174, %v5222
        %5224 = vmatmul.bf16.gmra.mxu0 %v1214
        %v5225 = vpop.f32.mrf.mxu0
        %v5226 = vadd.f32 %v5177, %v5225
        %v5227 = vpop.f32.mrf.mxu0
        %v5228 = vadd.f32 %v5179, %v5227
        %5229 = vmatmul.bf16.gmra.mxu0 %v1221
        %v5230 = vpop.f32.mrf.mxu0
        %v5231 = vadd.f32 %v5182, %v5230
        %v5232 = vpop.f32.mrf.mxu0
        %v5233 = vadd.f32 %v5184, %v5232
        %5234 = vmatmul.bf16.gmra.mxu0 %v1228
        %v5235 = vpop.f32.mrf.mxu0
        %v5236 = vadd.f32 %v5187, %v5235
        %v5237 = vpop.f32.mrf.mxu0
        %v5238 = vadd.f32 %v5189, %v5237
        %5239 = vdwg.mxu0
        %5240 = vmatpush.bf16.msra.mxu0 %v2690
        %5241 = vmatpush.bf16.msra.mxu0 %v2682
        %5242 = vmatpush.bf16.msra.mxu0 %v2674
        %5243 = vmatpush.bf16.msra.mxu0 %v2666
        %5244 = vmatpush.bf16.msra.mxu0 %v2658
        %5245 = vmatpush.bf16.msra.mxu0 %v2650
        %5246 = vmatpush.bf16.msra.mxu0 %v2642
        %5247 = vmatpush.bf16.msra.mxu0 %v2634
        %5248 = vmatmul.bf16.gmra.mxu0 %v1173
        %v5249 = vpop.f32.mrf.mxu0
        %v5250 = vadd.f32 %v986, %v5249
        %v5251 = vpop.f32.mrf.mxu0
        %v5252 = vadd.f32 %v986, %v5251
        %5253 = vmatmul.bf16.gmra.mxu0 %v1180
        %v5254 = vpop.f32.mrf.mxu0
        %v5255 = vadd.f32 %v986, %v5254
        %v5256 = vpop.f32.mrf.mxu0
        %v5257 = vadd.f32 %v986, %v5256
        %5258 = vmatmul.bf16.gmra.mxu0 %v1187
        %v5259 = vpop.f32.mrf.mxu0
        %v5260 = vadd.f32 %v986, %v5259
        %v5261 = vpop.f32.mrf.mxu0
        %v5262 = vadd.f32 %v986, %v5261
        %5263 = vmatmul.bf16.gmra.mxu0 %v1194
        %v5264 = vpop.f32.mrf.mxu0
        %v5265 = vadd.f32 %v986, %v5264
        %v5266 = vpop.f32.mrf.mxu0
        %v5267 = vadd.f32 %v986, %v5266
        %5268 = vmatmul.bf16.gmra.mxu0 %v1201
        %v5269 = vpop.f32.mrf.mxu0
        %v5270 = vadd.f32 %v986, %v5269
        %v5271 = vpop.f32.mrf.mxu0
        %v5272 = vadd.f32 %v986, %v5271
        %5273 = vmatmul.bf16.gmra.mxu0 %v1208
        %v5274 = vpop.f32.mrf.mxu0
        %v5275 = vadd.f32 %v986, %v5274
        %v5276 = vpop.f32.mrf.mxu0
        %v5277 = vadd.f32 %v986, %v5276
        %5278 = vmatmul.bf16.gmra.mxu0 %v1215
        %v5279 = vpop.f32.mrf.mxu0
        %v5280 = vadd.f32 %v986, %v5279
        %v5281 = vpop.f32.mrf.mxu0
        %v5282 = vadd.f32 %v986, %v5281
        %5283 = vmatmul.bf16.gmra.mxu0 %v1222
        %v5284 = vpop.f32.mrf.mxu0
        %v5285 = vadd.f32 %v986, %v5284
        %v5286 = vpop.f32.mrf.mxu0
        %v5287 = vadd.f32 %v986, %v5286
        %5288 = vdwg.mxu0
        %5289 = vmatpush.bf16.msra.mxu0 %v2754
        %5290 = vmatpush.bf16.msra.mxu0 %v2746
        %5291 = vmatpush.bf16.msra.mxu0 %v2738
        %5292 = vmatpush.bf16.msra.mxu0 %v2730
        %5293 = vmatpush.bf16.msra.mxu0 %v2722
        %5294 = vmatpush.bf16.msra.mxu0 %v2714
        %5295 = vmatpush.bf16.msra.mxu0 %v2706
        %5296 = vmatpush.bf16.msra.mxu0 %v2698
        %5297 = vmatmul.bf16.gmra.mxu0 %v1174
        %v5298 = vpop.f32.mrf.mxu0
        %v5299 = vadd.f32 %v5250, %v5298
        %v5300 = vpop.f32.mrf.mxu0
        %v5301 = vadd.f32 %v5252, %v5300
        %5302 = vmatmul.bf16.gmra.mxu0 %v1181
        %v5303 = vpop.f32.mrf.mxu0
        %v5304 = vadd.f32 %v5255, %v5303
        %v5305 = vpop.f32.mrf.mxu0
        %v5306 = vadd.f32 %v5257, %v5305
        %5307 = vmatmul.bf16.gmra.mxu0 %v1188
        %v5308 = vpop.f32.mrf.mxu0
        %v5309 = vadd.f32 %v5260, %v5308
        %v5310 = vpop.f32.mrf.mxu0
        %v5311 = vadd.f32 %v5262, %v5310
        %5312 = vmatmul.bf16.gmra.mxu0 %v1195
        %v5313 = vpop.f32.mrf.mxu0
        %v5314 = vadd.f32 %v5265, %v5313
        %v5315 = vpop.f32.mrf.mxu0
        %v5316 = vadd.f32 %v5267, %v5315
        %5317 = vmatmul.bf16.gmra.mxu0 %v1202
        %v5318 = vpop.f32.mrf.mxu0
        %v5319 = vadd.f32 %v5270, %v5318
        %v5320 = vpop.f32.mrf.mxu0
        %v5321 = vadd.f32 %v5272, %v5320
        %5322 = vmatmul.bf16.gmra.mxu0 %v1209
        %v5323 = vpop.f32.mrf.mxu0
        %v5324 = vadd.f32 %v5275, %v5323
        %v5325 = vpop.f32.mrf.mxu0
        %v5326 = vadd.f32 %v5277, %v5325
        %5327 = vmatmul.bf16.gmra.mxu0 %v1216
        %v5328 = vpop.f32.mrf.mxu0
        %v5329 = vadd.f32 %v5280, %v5328
        %v5330 = vpop.f32.mrf.mxu0
        %v5331 = vadd.f32 %v5282, %v5330
        %5332 = vmatmul.bf16.gmra.mxu0 %v1223
        %v5333 = vpop.f32.mrf.mxu0
        %v5334 = vadd.f32 %v5285, %v5333
        %v5335 = vpop.f32.mrf.mxu0
        %v5336 = vadd.f32 %v5287, %v5335
        %5337 = vdwg.mxu0
        %5338 = vmatpush.bf16.msra.mxu0 %v2818
        %5339 = vmatpush.bf16.msra.mxu0 %v2810
        %5340 = vmatpush.bf16.msra.mxu0 %v2802
        %5341 = vmatpush.bf16.msra.mxu0 %v2794
        %5342 = vmatpush.bf16.msra.mxu0 %v2786
        %5343 = vmatpush.bf16.msra.mxu0 %v2778
        %5344 = vmatpush.bf16.msra.mxu0 %v2770
        %5345 = vmatpush.bf16.msra.mxu0 %v2762
        %5346 = vmatmul.bf16.gmra.mxu0 %v1175
        %v5347 = vpop.f32.mrf.mxu0
        %v5348 = vadd.f32 %v5299, %v5347
        %v5349 = vpop.f32.mrf.mxu0
        %v5350 = vadd.f32 %v5301, %v5349
        %5351 = vmatmul.bf16.gmra.mxu0 %v1182
        %v5352 = vpop.f32.mrf.mxu0
        %v5353 = vadd.f32 %v5304, %v5352
        %v5354 = vpop.f32.mrf.mxu0
        %v5355 = vadd.f32 %v5306, %v5354
        %5356 = vmatmul.bf16.gmra.mxu0 %v1189
        %v5357 = vpop.f32.mrf.mxu0
        %v5358 = vadd.f32 %v5309, %v5357
        %v5359 = vpop.f32.mrf.mxu0
        %v5360 = vadd.f32 %v5311, %v5359
        %5361 = vmatmul.bf16.gmra.mxu0 %v1196
        %v5362 = vpop.f32.mrf.mxu0
        %v5363 = vadd.f32 %v5314, %v5362
        %v5364 = vpop.f32.mrf.mxu0
        %v5365 = vadd.f32 %v5316, %v5364
        %5366 = vmatmul.bf16.gmra.mxu0 %v1203
        %v5367 = vpop.f32.mrf.mxu0
        %v5368 = vadd.f32 %v5319, %v5367
        %v5369 = vpop.f32.mrf.mxu0
        %v5370 = vadd.f32 %v5321, %v5369
        %5371 = vmatmul.bf16.gmra.mxu0 %v1210
        %v5372 = vpop.f32.mrf.mxu0
        %v5373 = vadd.f32 %v5324, %v5372
        %v5374 = vpop.f32.mrf.mxu0
        %v5375 = vadd.f32 %v5326, %v5374
        %5376 = vmatmul.bf16.gmra.mxu0 %v1217
        %v5377 = vpop.f32.mrf.mxu0
        %v5378 = vadd.f32 %v5329, %v5377
        %v5379 = vpop.f32.mrf.mxu0
        %v5380 = vadd.f32 %v5331, %v5379
        %5381 = vmatmul.bf16.gmra.mxu0 %v1224
        %v5382 = vpop.f32.mrf.mxu0
        %v5383 = vadd.f32 %v5334, %v5382
        %v5384 = vpop.f32.mrf.mxu0
        %v5385 = vadd.f32 %v5336, %v5384
        %5386 = vdwg.mxu0
        %5387 = vmatpush.bf16.msra.mxu0 %v2882
        %5388 = vmatpush.bf16.msra.mxu0 %v2874
        %5389 = vmatpush.bf16.msra.mxu0 %v2866
        %5390 = vmatpush.bf16.msra.mxu0 %v2858
        %5391 = vmatpush.bf16.msra.mxu0 %v2850
        %5392 = vmatpush.bf16.msra.mxu0 %v2842
        %5393 = vmatpush.bf16.msra.mxu0 %v2834
        %5394 = vmatpush.bf16.msra.mxu0 %v2826
        %5395 = vmatmul.bf16.gmra.mxu0 %v1176
        %v5396 = vpop.f32.mrf.mxu0
        %v5397 = vadd.f32 %v5348, %v5396
        %v5398 = vpop.f32.mrf.mxu0
        %v5399 = vadd.f32 %v5350, %v5398
        %5400 = vmatmul.bf16.gmra.mxu0 %v1183
        %v5401 = vpop.f32.mrf.mxu0
        %v5402 = vadd.f32 %v5353, %v5401
        %v5403 = vpop.f32.mrf.mxu0
        %v5404 = vadd.f32 %v5355, %v5403
        %5405 = vmatmul.bf16.gmra.mxu0 %v1190
        %v5406 = vpop.f32.mrf.mxu0
        %v5407 = vadd.f32 %v5358, %v5406
        %v5408 = vpop.f32.mrf.mxu0
        %v5409 = vadd.f32 %v5360, %v5408
        %5410 = vmatmul.bf16.gmra.mxu0 %v1197
        %v5411 = vpop.f32.mrf.mxu0
        %v5412 = vadd.f32 %v5363, %v5411
        %v5413 = vpop.f32.mrf.mxu0
        %v5414 = vadd.f32 %v5365, %v5413
        %5415 = vmatmul.bf16.gmra.mxu0 %v1204
        %v5416 = vpop.f32.mrf.mxu0
        %v5417 = vadd.f32 %v5368, %v5416
        %v5418 = vpop.f32.mrf.mxu0
        %v5419 = vadd.f32 %v5370, %v5418
        %5420 = vmatmul.bf16.gmra.mxu0 %v1211
        %v5421 = vpop.f32.mrf.mxu0
        %v5422 = vadd.f32 %v5373, %v5421
        %v5423 = vpop.f32.mrf.mxu0
        %v5424 = vadd.f32 %v5375, %v5423
        %5425 = vmatmul.bf16.gmra.mxu0 %v1218
        %v5426 = vpop.f32.mrf.mxu0
        %v5427 = vadd.f32 %v5378, %v5426
        %v5428 = vpop.f32.mrf.mxu0
        %v5429 = vadd.f32 %v5380, %v5428
        %5430 = vmatmul.bf16.gmra.mxu0 %v1225
        %v5431 = vpop.f32.mrf.mxu0
        %v5432 = vadd.f32 %v5383, %v5431
        %v5433 = vpop.f32.mrf.mxu0
        %v5434 = vadd.f32 %v5385, %v5433
        %5435 = vdwg.mxu0
        %5436 = vmatpush.bf16.msra.mxu0 %v2946
        %5437 = vmatpush.bf16.msra.mxu0 %v2938
        %5438 = vmatpush.bf16.msra.mxu0 %v2930
        %5439 = vmatpush.bf16.msra.mxu0 %v2922
        %5440 = vmatpush.bf16.msra.mxu0 %v2914
        %5441 = vmatpush.bf16.msra.mxu0 %v2906
        %5442 = vmatpush.bf16.msra.mxu0 %v2898
        %5443 = vmatpush.bf16.msra.mxu0 %v2890
        %5444 = vmatmul.bf16.gmra.mxu0 %v1177
        %v5445 = vpop.f32.mrf.mxu0
        %v5446 = vadd.f32 %v5397, %v5445
        %v5447 = vpop.f32.mrf.mxu0
        %v5448 = vadd.f32 %v5399, %v5447
        %5449 = vmatmul.bf16.gmra.mxu0 %v1184
        %v5450 = vpop.f32.mrf.mxu0
        %v5451 = vadd.f32 %v5402, %v5450
        %v5452 = vpop.f32.mrf.mxu0
        %v5453 = vadd.f32 %v5404, %v5452
        %5454 = vmatmul.bf16.gmra.mxu0 %v1191
        %v5455 = vpop.f32.mrf.mxu0
        %v5456 = vadd.f32 %v5407, %v5455
        %v5457 = vpop.f32.mrf.mxu0
        %v5458 = vadd.f32 %v5409, %v5457
        %5459 = vmatmul.bf16.gmra.mxu0 %v1198
        %v5460 = vpop.f32.mrf.mxu0
        %v5461 = vadd.f32 %v5412, %v5460
        %v5462 = vpop.f32.mrf.mxu0
        %v5463 = vadd.f32 %v5414, %v5462
        %5464 = vmatmul.bf16.gmra.mxu0 %v1205
        %v5465 = vpop.f32.mrf.mxu0
        %v5466 = vadd.f32 %v5417, %v5465
        %v5467 = vpop.f32.mrf.mxu0
        %v5468 = vadd.f32 %v5419, %v5467
        %5469 = vmatmul.bf16.gmra.mxu0 %v1212
        %v5470 = vpop.f32.mrf.mxu0
        %v5471 = vadd.f32 %v5422, %v5470
        %v5472 = vpop.f32.mrf.mxu0
        %v5473 = vadd.f32 %v5424, %v5472
        %5474 = vmatmul.bf16.gmra.mxu0 %v1219
        %v5475 = vpop.f32.mrf.mxu0
        %v5476 = vadd.f32 %v5427, %v5475
        %v5477 = vpop.f32.mrf.mxu0
        %v5478 = vadd.f32 %v5429, %v5477
        %5479 = vmatmul.bf16.gmra.mxu0 %v1226
        %v5480 = vpop.f32.mrf.mxu0
        %v5481 = vadd.f32 %v5432, %v5480
        %v5482 = vpop.f32.mrf.mxu0
        %v5483 = vadd.f32 %v5434, %v5482
        %5484 = vdwg.mxu0
        %5485 = vmatpush.bf16.msra.mxu0 %v3010
        %5486 = vmatpush.bf16.msra.mxu0 %v3002
        %5487 = vmatpush.bf16.msra.mxu0 %v2994
        %5488 = vmatpush.bf16.msra.mxu0 %v2986
        %5489 = vmatpush.bf16.msra.mxu0 %v2978
        %5490 = vmatpush.bf16.msra.mxu0 %v2970
        %5491 = vmatpush.bf16.msra.mxu0 %v2962
        %5492 = vmatpush.bf16.msra.mxu0 %v2954
        %5493 = vmatmul.bf16.gmra.mxu0 %v1178
        %v5494 = vpop.f32.mrf.mxu0
        %v5495 = vadd.f32 %v5446, %v5494
        %v5496 = vpop.f32.mrf.mxu0
        %v5497 = vadd.f32 %v5448, %v5496
        %5498 = vmatmul.bf16.gmra.mxu0 %v1185
        %v5499 = vpop.f32.mrf.mxu0
        %v5500 = vadd.f32 %v5451, %v5499
        %v5501 = vpop.f32.mrf.mxu0
        %v5502 = vadd.f32 %v5453, %v5501
        %5503 = vmatmul.bf16.gmra.mxu0 %v1192
        %v5504 = vpop.f32.mrf.mxu0
        %v5505 = vadd.f32 %v5456, %v5504
        %v5506 = vpop.f32.mrf.mxu0
        %v5507 = vadd.f32 %v5458, %v5506
        %5508 = vmatmul.bf16.gmra.mxu0 %v1199
        %v5509 = vpop.f32.mrf.mxu0
        %v5510 = vadd.f32 %v5461, %v5509
        %v5511 = vpop.f32.mrf.mxu0
        %v5512 = vadd.f32 %v5463, %v5511
        %5513 = vmatmul.bf16.gmra.mxu0 %v1206
        %v5514 = vpop.f32.mrf.mxu0
        %v5515 = vadd.f32 %v5466, %v5514
        %v5516 = vpop.f32.mrf.mxu0
        %v5517 = vadd.f32 %v5468, %v5516
        %5518 = vmatmul.bf16.gmra.mxu0 %v1213
        %v5519 = vpop.f32.mrf.mxu0
        %v5520 = vadd.f32 %v5471, %v5519
        %v5521 = vpop.f32.mrf.mxu0
        %v5522 = vadd.f32 %v5473, %v5521
        %5523 = vmatmul.bf16.gmra.mxu0 %v1220
        %v5524 = vpop.f32.mrf.mxu0
        %v5525 = vadd.f32 %v5476, %v5524
        %v5526 = vpop.f32.mrf.mxu0
        %v5527 = vadd.f32 %v5478, %v5526
        %5528 = vmatmul.bf16.gmra.mxu0 %v1227
        %v5529 = vpop.f32.mrf.mxu0
        %v5530 = vadd.f32 %v5481, %v5529
        %v5531 = vpop.f32.mrf.mxu0
        %v5532 = vadd.f32 %v5483, %v5531
        %5533 = vdwg.mxu0
        %5534 = vmatpush.bf16.msra.mxu0 %v3074
        %5535 = vmatpush.bf16.msra.mxu0 %v3066
        %5536 = vmatpush.bf16.msra.mxu0 %v3058
        %5537 = vmatpush.bf16.msra.mxu0 %v3050
        %5538 = vmatpush.bf16.msra.mxu0 %v3042
        %5539 = vmatpush.bf16.msra.mxu0 %v3034
        %5540 = vmatpush.bf16.msra.mxu0 %v3026
        %5541 = vmatpush.bf16.msra.mxu0 %v3018
        %5542 = vmatmul.bf16.gmra.mxu0 %v1179
        %v5543 = vpop.f32.mrf.mxu0
        %v5544 = vadd.f32 %v5495, %v5543
        %v5545 = vpop.f32.mrf.mxu0
        %v5546 = vadd.f32 %v5497, %v5545
        %5547 = vmatmul.bf16.gmra.mxu0 %v1186
        %v5548 = vpop.f32.mrf.mxu0
        %v5549 = vadd.f32 %v5500, %v5548
        %v5550 = vpop.f32.mrf.mxu0
        %v5551 = vadd.f32 %v5502, %v5550
        %5552 = vmatmul.bf16.gmra.mxu0 %v1193
        %v5553 = vpop.f32.mrf.mxu0
        %v5554 = vadd.f32 %v5505, %v5553
        %v5555 = vpop.f32.mrf.mxu0
        %v5556 = vadd.f32 %v5507, %v5555
        %5557 = vmatmul.bf16.gmra.mxu0 %v1200
        %v5558 = vpop.f32.mrf.mxu0
        %v5559 = vadd.f32 %v5510, %v5558
        %v5560 = vpop.f32.mrf.mxu0
        %v5561 = vadd.f32 %v5512, %v5560
        %5562 = vmatmul.bf16.gmra.mxu0 %v1207
        %v5563 = vpop.f32.mrf.mxu0
        %v5564 = vadd.f32 %v5515, %v5563
        %v5565 = vpop.f32.mrf.mxu0
        %v5566 = vadd.f32 %v5517, %v5565
        %5567 = vmatmul.bf16.gmra.mxu0 %v1214
        %v5568 = vpop.f32.mrf.mxu0
        %v5569 = vadd.f32 %v5520, %v5568
        %v5570 = vpop.f32.mrf.mxu0
        %v5571 = vadd.f32 %v5522, %v5570
        %5572 = vmatmul.bf16.gmra.mxu0 %v1221
        %v5573 = vpop.f32.mrf.mxu0
        %v5574 = vadd.f32 %v5525, %v5573
        %v5575 = vpop.f32.mrf.mxu0
        %v5576 = vadd.f32 %v5527, %v5575
        %5577 = vmatmul.bf16.gmra.mxu0 %v1228
        %v5578 = vpop.f32.mrf.mxu0
        %v5579 = vadd.f32 %v5530, %v5578
        %v5580 = vpop.f32.mrf.mxu0
        %v5581 = vadd.f32 %v5532, %v5580
        %5582 = vdwg.mxu0
        %5583 = vmatpush.bf16.msra.mxu0 %v2691
        %5584 = vmatpush.bf16.msra.mxu0 %v2683
        %5585 = vmatpush.bf16.msra.mxu0 %v2675
        %5586 = vmatpush.bf16.msra.mxu0 %v2667
        %5587 = vmatpush.bf16.msra.mxu0 %v2659
        %5588 = vmatpush.bf16.msra.mxu0 %v2651
        %5589 = vmatpush.bf16.msra.mxu0 %v2643
        %5590 = vmatpush.bf16.msra.mxu0 %v2635
        %5591 = vmatmul.bf16.gmra.mxu0 %v1173
        %v5592 = vpop.f32.mrf.mxu0
        %v5593 = vadd.f32 %v987, %v5592
        %v5594 = vpop.f32.mrf.mxu0
        %v5595 = vadd.f32 %v987, %v5594
        %5596 = vmatmul.bf16.gmra.mxu0 %v1180
        %v5597 = vpop.f32.mrf.mxu0
        %v5598 = vadd.f32 %v987, %v5597
        %v5599 = vpop.f32.mrf.mxu0
        %v5600 = vadd.f32 %v987, %v5599
        %5601 = vmatmul.bf16.gmra.mxu0 %v1187
        %v5602 = vpop.f32.mrf.mxu0
        %v5603 = vadd.f32 %v987, %v5602
        %v5604 = vpop.f32.mrf.mxu0
        %v5605 = vadd.f32 %v987, %v5604
        %5606 = vmatmul.bf16.gmra.mxu0 %v1194
        %v5607 = vpop.f32.mrf.mxu0
        %v5608 = vadd.f32 %v987, %v5607
        %v5609 = vpop.f32.mrf.mxu0
        %v5610 = vadd.f32 %v987, %v5609
        %5611 = vmatmul.bf16.gmra.mxu0 %v1201
        %v5612 = vpop.f32.mrf.mxu0
        %v5613 = vadd.f32 %v987, %v5612
        %v5614 = vpop.f32.mrf.mxu0
        %v5615 = vadd.f32 %v987, %v5614
        %5616 = vmatmul.bf16.gmra.mxu0 %v1208
        %v5617 = vpop.f32.mrf.mxu0
        %v5618 = vadd.f32 %v987, %v5617
        %v5619 = vpop.f32.mrf.mxu0
        %v5620 = vadd.f32 %v987, %v5619
        %5621 = vmatmul.bf16.gmra.mxu0 %v1215
        %v5622 = vpop.f32.mrf.mxu0
        %v5623 = vadd.f32 %v987, %v5622
        %v5624 = vpop.f32.mrf.mxu0
        %v5625 = vadd.f32 %v987, %v5624
        %5626 = vmatmul.bf16.gmra.mxu0 %v1222
        %v5627 = vpop.f32.mrf.mxu0
        %v5628 = vadd.f32 %v987, %v5627
        %v5629 = vpop.f32.mrf.mxu0
        %v5630 = vadd.f32 %v987, %v5629
        %5631 = vdwg.mxu0
        %5632 = vmatpush.bf16.msra.mxu0 %v2755
        %5633 = vmatpush.bf16.msra.mxu0 %v2747
        %5634 = vmatpush.bf16.msra.mxu0 %v2739
        %5635 = vmatpush.bf16.msra.mxu0 %v2731
        %5636 = vmatpush.bf16.msra.mxu0 %v2723
        %5637 = vmatpush.bf16.msra.mxu0 %v2715
        %5638 = vmatpush.bf16.msra.mxu0 %v2707
        %5639 = vmatpush.bf16.msra.mxu0 %v2699
        %5640 = vmatmul.bf16.gmra.mxu0 %v1174
        %v5641 = vpop.f32.mrf.mxu0
        %v5642 = vadd.f32 %v5593, %v5641
        %v5643 = vpop.f32.mrf.mxu0
        %v5644 = vadd.f32 %v5595, %v5643
        %5645 = vmatmul.bf16.gmra.mxu0 %v1181
        %v5646 = vpop.f32.mrf.mxu0
        %v5647 = vadd.f32 %v5598, %v5646
        %v5648 = vpop.f32.mrf.mxu0
        %v5649 = vadd.f32 %v5600, %v5648
        %5650 = vmatmul.bf16.gmra.mxu0 %v1188
        %v5651 = vpop.f32.mrf.mxu0
        %v5652 = vadd.f32 %v5603, %v5651
        %v5653 = vpop.f32.mrf.mxu0
        %v5654 = vadd.f32 %v5605, %v5653
        %5655 = vmatmul.bf16.gmra.mxu0 %v1195
        %v5656 = vpop.f32.mrf.mxu0
        %v5657 = vadd.f32 %v5608, %v5656
        %v5658 = vpop.f32.mrf.mxu0
        %v5659 = vadd.f32 %v5610, %v5658
        %5660 = vmatmul.bf16.gmra.mxu0 %v1202
        %v5661 = vpop.f32.mrf.mxu0
        %v5662 = vadd.f32 %v5613, %v5661
        %v5663 = vpop.f32.mrf.mxu0
        %v5664 = vadd.f32 %v5615, %v5663
        %5665 = vmatmul.bf16.gmra.mxu0 %v1209
        %v5666 = vpop.f32.mrf.mxu0
        %v5667 = vadd.f32 %v5618, %v5666
        %v5668 = vpop.f32.mrf.mxu0
        %v5669 = vadd.f32 %v5620, %v5668
        %5670 = vmatmul.bf16.gmra.mxu0 %v1216
        %v5671 = vpop.f32.mrf.mxu0
        %v5672 = vadd.f32 %v5623, %v5671
        %v5673 = vpop.f32.mrf.mxu0
        %v5674 = vadd.f32 %v5625, %v5673
        %5675 = vmatmul.bf16.gmra.mxu0 %v1223
        %v5676 = vpop.f32.mrf.mxu0
        %v5677 = vadd.f32 %v5628, %v5676
        %v5678 = vpop.f32.mrf.mxu0
        %v5679 = vadd.f32 %v5630, %v5678
        %5680 = vdwg.mxu0
        %5681 = vmatpush.bf16.msra.mxu0 %v2819
        %5682 = vmatpush.bf16.msra.mxu0 %v2811
        %5683 = vmatpush.bf16.msra.mxu0 %v2803
        %5684 = vmatpush.bf16.msra.mxu0 %v2795
        %5685 = vmatpush.bf16.msra.mxu0 %v2787
        %5686 = vmatpush.bf16.msra.mxu0 %v2779
        %5687 = vmatpush.bf16.msra.mxu0 %v2771
        %5688 = vmatpush.bf16.msra.mxu0 %v2763
        %5689 = vmatmul.bf16.gmra.mxu0 %v1175
        %v5690 = vpop.f32.mrf.mxu0
        %v5691 = vadd.f32 %v5642, %v5690
        %v5692 = vpop.f32.mrf.mxu0
        %v5693 = vadd.f32 %v5644, %v5692
        %5694 = vmatmul.bf16.gmra.mxu0 %v1182
        %v5695 = vpop.f32.mrf.mxu0
        %v5696 = vadd.f32 %v5647, %v5695
        %v5697 = vpop.f32.mrf.mxu0
        %v5698 = vadd.f32 %v5649, %v5697
        %5699 = vmatmul.bf16.gmra.mxu0 %v1189
        %v5700 = vpop.f32.mrf.mxu0
        %v5701 = vadd.f32 %v5652, %v5700
        %v5702 = vpop.f32.mrf.mxu0
        %v5703 = vadd.f32 %v5654, %v5702
        %5704 = vmatmul.bf16.gmra.mxu0 %v1196
        %v5705 = vpop.f32.mrf.mxu0
        %v5706 = vadd.f32 %v5657, %v5705
        %v5707 = vpop.f32.mrf.mxu0
        %v5708 = vadd.f32 %v5659, %v5707
        %5709 = vmatmul.bf16.gmra.mxu0 %v1203
        %v5710 = vpop.f32.mrf.mxu0
        %v5711 = vadd.f32 %v5662, %v5710
        %v5712 = vpop.f32.mrf.mxu0
        %v5713 = vadd.f32 %v5664, %v5712
        %5714 = vmatmul.bf16.gmra.mxu0 %v1210
        %v5715 = vpop.f32.mrf.mxu0
        %v5716 = vadd.f32 %v5667, %v5715
        %v5717 = vpop.f32.mrf.mxu0
        %v5718 = vadd.f32 %v5669, %v5717
        %5719 = vmatmul.bf16.gmra.mxu0 %v1217
        %v5720 = vpop.f32.mrf.mxu0
        %v5721 = vadd.f32 %v5672, %v5720
        %v5722 = vpop.f32.mrf.mxu0
        %v5723 = vadd.f32 %v5674, %v5722
        %5724 = vmatmul.bf16.gmra.mxu0 %v1224
        %v5725 = vpop.f32.mrf.mxu0
        %v5726 = vadd.f32 %v5677, %v5725
        %v5727 = vpop.f32.mrf.mxu0
        %v5728 = vadd.f32 %v5679, %v5727
        %5729 = vdwg.mxu0
        %5730 = vmatpush.bf16.msra.mxu0 %v2883
        %5731 = vmatpush.bf16.msra.mxu0 %v2875
        %5732 = vmatpush.bf16.msra.mxu0 %v2867
        %5733 = vmatpush.bf16.msra.mxu0 %v2859
        %5734 = vmatpush.bf16.msra.mxu0 %v2851
        %5735 = vmatpush.bf16.msra.mxu0 %v2843
        %5736 = vmatpush.bf16.msra.mxu0 %v2835
        %5737 = vmatpush.bf16.msra.mxu0 %v2827
        %5738 = vmatmul.bf16.gmra.mxu0 %v1176
        %v5739 = vpop.f32.mrf.mxu0
        %v5740 = vadd.f32 %v5691, %v5739
        %v5741 = vpop.f32.mrf.mxu0
        %v5742 = vadd.f32 %v5693, %v5741
        %5743 = vmatmul.bf16.gmra.mxu0 %v1183
        %v5744 = vpop.f32.mrf.mxu0
        %v5745 = vadd.f32 %v5696, %v5744
        %v5746 = vpop.f32.mrf.mxu0
        %v5747 = vadd.f32 %v5698, %v5746
        %5748 = vmatmul.bf16.gmra.mxu0 %v1190
        %v5749 = vpop.f32.mrf.mxu0
        %v5750 = vadd.f32 %v5701, %v5749
        %v5751 = vpop.f32.mrf.mxu0
        %v5752 = vadd.f32 %v5703, %v5751
        %5753 = vmatmul.bf16.gmra.mxu0 %v1197
        %v5754 = vpop.f32.mrf.mxu0
        %v5755 = vadd.f32 %v5706, %v5754
        %v5756 = vpop.f32.mrf.mxu0
        %v5757 = vadd.f32 %v5708, %v5756
        %5758 = vmatmul.bf16.gmra.mxu0 %v1204
        %v5759 = vpop.f32.mrf.mxu0
        %v5760 = vadd.f32 %v5711, %v5759
        %v5761 = vpop.f32.mrf.mxu0
        %v5762 = vadd.f32 %v5713, %v5761
        %5763 = vmatmul.bf16.gmra.mxu0 %v1211
        %v5764 = vpop.f32.mrf.mxu0
        %v5765 = vadd.f32 %v5716, %v5764
        %v5766 = vpop.f32.mrf.mxu0
        %v5767 = vadd.f32 %v5718, %v5766
        %5768 = vmatmul.bf16.gmra.mxu0 %v1218
        %v5769 = vpop.f32.mrf.mxu0
        %v5770 = vadd.f32 %v5721, %v5769
        %v5771 = vpop.f32.mrf.mxu0
        %v5772 = vadd.f32 %v5723, %v5771
        %5773 = vmatmul.bf16.gmra.mxu0 %v1225
        %v5774 = vpop.f32.mrf.mxu0
        %v5775 = vadd.f32 %v5726, %v5774
        %v5776 = vpop.f32.mrf.mxu0
        %v5777 = vadd.f32 %v5728, %v5776
        %5778 = vdwg.mxu0
        %5779 = vmatpush.bf16.msra.mxu0 %v2947
        %5780 = vmatpush.bf16.msra.mxu0 %v2939
        %5781 = vmatpush.bf16.msra.mxu0 %v2931
        %5782 = vmatpush.bf16.msra.mxu0 %v2923
        %5783 = vmatpush.bf16.msra.mxu0 %v2915
        %5784 = vmatpush.bf16.msra.mxu0 %v2907
        %5785 = vmatpush.bf16.msra.mxu0 %v2899
        %5786 = vmatpush.bf16.msra.mxu0 %v2891
        %5787 = vmatmul.bf16.gmra.mxu0 %v1177
        %v5788 = vpop.f32.mrf.mxu0
        %v5789 = vadd.f32 %v5740, %v5788
        %v5790 = vpop.f32.mrf.mxu0
        %v5791 = vadd.f32 %v5742, %v5790
        %5792 = vmatmul.bf16.gmra.mxu0 %v1184
        %v5793 = vpop.f32.mrf.mxu0
        %v5794 = vadd.f32 %v5745, %v5793
        %v5795 = vpop.f32.mrf.mxu0
        %v5796 = vadd.f32 %v5747, %v5795
        %5797 = vmatmul.bf16.gmra.mxu0 %v1191
        %v5798 = vpop.f32.mrf.mxu0
        %v5799 = vadd.f32 %v5750, %v5798
        %v5800 = vpop.f32.mrf.mxu0
        %v5801 = vadd.f32 %v5752, %v5800
        %5802 = vmatmul.bf16.gmra.mxu0 %v1198
        %v5803 = vpop.f32.mrf.mxu0
        %v5804 = vadd.f32 %v5755, %v5803
        %v5805 = vpop.f32.mrf.mxu0
        %v5806 = vadd.f32 %v5757, %v5805
        %5807 = vmatmul.bf16.gmra.mxu0 %v1205
        %v5808 = vpop.f32.mrf.mxu0
        %v5809 = vadd.f32 %v5760, %v5808
        %v5810 = vpop.f32.mrf.mxu0
        %v5811 = vadd.f32 %v5762, %v5810
        %5812 = vmatmul.bf16.gmra.mxu0 %v1212
        %v5813 = vpop.f32.mrf.mxu0
        %v5814 = vadd.f32 %v5765, %v5813
        %v5815 = vpop.f32.mrf.mxu0
        %v5816 = vadd.f32 %v5767, %v5815
        %5817 = vmatmul.bf16.gmra.mxu0 %v1219
        %v5818 = vpop.f32.mrf.mxu0
        %v5819 = vadd.f32 %v5770, %v5818
        %v5820 = vpop.f32.mrf.mxu0
        %v5821 = vadd.f32 %v5772, %v5820
        %5822 = vmatmul.bf16.gmra.mxu0 %v1226
        %v5823 = vpop.f32.mrf.mxu0
        %v5824 = vadd.f32 %v5775, %v5823
        %v5825 = vpop.f32.mrf.mxu0
        %v5826 = vadd.f32 %v5777, %v5825
        %5827 = vdwg.mxu0
        %5828 = vmatpush.bf16.msra.mxu0 %v3011
        %5829 = vmatpush.bf16.msra.mxu0 %v3003
        %5830 = vmatpush.bf16.msra.mxu0 %v2995
        %5831 = vmatpush.bf16.msra.mxu0 %v2987
        %5832 = vmatpush.bf16.msra.mxu0 %v2979
        %5833 = vmatpush.bf16.msra.mxu0 %v2971
        %5834 = vmatpush.bf16.msra.mxu0 %v2963
        %5835 = vmatpush.bf16.msra.mxu0 %v2955
        %5836 = vmatmul.bf16.gmra.mxu0 %v1178
        %v5837 = vpop.f32.mrf.mxu0
        %v5838 = vadd.f32 %v5789, %v5837
        %v5839 = vpop.f32.mrf.mxu0
        %v5840 = vadd.f32 %v5791, %v5839
        %5841 = vmatmul.bf16.gmra.mxu0 %v1185
        %v5842 = vpop.f32.mrf.mxu0
        %v5843 = vadd.f32 %v5794, %v5842
        %v5844 = vpop.f32.mrf.mxu0
        %v5845 = vadd.f32 %v5796, %v5844
        %5846 = vmatmul.bf16.gmra.mxu0 %v1192
        %v5847 = vpop.f32.mrf.mxu0
        %v5848 = vadd.f32 %v5799, %v5847
        %v5849 = vpop.f32.mrf.mxu0
        %v5850 = vadd.f32 %v5801, %v5849
        %5851 = vmatmul.bf16.gmra.mxu0 %v1199
        %v5852 = vpop.f32.mrf.mxu0
        %v5853 = vadd.f32 %v5804, %v5852
        %v5854 = vpop.f32.mrf.mxu0
        %v5855 = vadd.f32 %v5806, %v5854
        %5856 = vmatmul.bf16.gmra.mxu0 %v1206
        %v5857 = vpop.f32.mrf.mxu0
        %v5858 = vadd.f32 %v5809, %v5857
        %v5859 = vpop.f32.mrf.mxu0
        %v5860 = vadd.f32 %v5811, %v5859
        %5861 = vmatmul.bf16.gmra.mxu0 %v1213
        %v5862 = vpop.f32.mrf.mxu0
        %v5863 = vadd.f32 %v5814, %v5862
        %v5864 = vpop.f32.mrf.mxu0
        %v5865 = vadd.f32 %v5816, %v5864
        %5866 = vmatmul.bf16.gmra.mxu0 %v1220
        %v5867 = vpop.f32.mrf.mxu0
        %v5868 = vadd.f32 %v5819, %v5867
        %v5869 = vpop.f32.mrf.mxu0
        %v5870 = vadd.f32 %v5821, %v5869
        %5871 = vmatmul.bf16.gmra.mxu0 %v1227
        %v5872 = vpop.f32.mrf.mxu0
        %v5873 = vadd.f32 %v5824, %v5872
        %v5874 = vpop.f32.mrf.mxu0
        %v5875 = vadd.f32 %v5826, %v5874
        %5876 = vdwg.mxu0
        %5877 = vmatpush.bf16.msra.mxu0 %v3075
        %5878 = vmatpush.bf16.msra.mxu0 %v3067
        %5879 = vmatpush.bf16.msra.mxu0 %v3059
        %5880 = vmatpush.bf16.msra.mxu0 %v3051
        %5881 = vmatpush.bf16.msra.mxu0 %v3043
        %5882 = vmatpush.bf16.msra.mxu0 %v3035
        %5883 = vmatpush.bf16.msra.mxu0 %v3027
        %5884 = vmatpush.bf16.msra.mxu0 %v3019
        %5885 = vmatmul.bf16.gmra.mxu0 %v1179
        %v5886 = vpop.f32.mrf.mxu0
        %v5887 = vadd.f32 %v5838, %v5886
        %v5888 = vpop.f32.mrf.mxu0
        %v5889 = vadd.f32 %v5840, %v5888
        %5890 = vmatmul.bf16.gmra.mxu0 %v1186
        %v5891 = vpop.f32.mrf.mxu0
        %v5892 = vadd.f32 %v5843, %v5891
        %v5893 = vpop.f32.mrf.mxu0
        %v5894 = vadd.f32 %v5845, %v5893
        %5895 = vmatmul.bf16.gmra.mxu0 %v1193
        %v5896 = vpop.f32.mrf.mxu0
        %v5897 = vadd.f32 %v5848, %v5896
        %v5898 = vpop.f32.mrf.mxu0
        %v5899 = vadd.f32 %v5850, %v5898
        %5900 = vmatmul.bf16.gmra.mxu0 %v1200
        %v5901 = vpop.f32.mrf.mxu0
        %v5902 = vadd.f32 %v5853, %v5901
        %v5903 = vpop.f32.mrf.mxu0
        %v5904 = vadd.f32 %v5855, %v5903
        %5905 = vmatmul.bf16.gmra.mxu0 %v1207
        %v5906 = vpop.f32.mrf.mxu0
        %v5907 = vadd.f32 %v5858, %v5906
        %v5908 = vpop.f32.mrf.mxu0
        %v5909 = vadd.f32 %v5860, %v5908
        %5910 = vmatmul.bf16.gmra.mxu0 %v1214
        %v5911 = vpop.f32.mrf.mxu0
        %v5912 = vadd.f32 %v5863, %v5911
        %v5913 = vpop.f32.mrf.mxu0
        %v5914 = vadd.f32 %v5865, %v5913
        %5915 = vmatmul.bf16.gmra.mxu0 %v1221
        %v5916 = vpop.f32.mrf.mxu0
        %v5917 = vadd.f32 %v5868, %v5916
        %v5918 = vpop.f32.mrf.mxu0
        %v5919 = vadd.f32 %v5870, %v5918
        %5920 = vmatmul.bf16.gmra.mxu0 %v1228
        %v5921 = vpop.f32.mrf.mxu0
        %v5922 = vadd.f32 %v5873, %v5921
        %v5923 = vpop.f32.mrf.mxu0
        %v5924 = vadd.f32 %v5875, %v5923
        %5925 = vdwg.mxu0
        %5926 = vmatpush.bf16.msra.mxu0 %v2692
        %5927 = vmatpush.bf16.msra.mxu0 %v2684
        %5928 = vmatpush.bf16.msra.mxu0 %v2676
        %5929 = vmatpush.bf16.msra.mxu0 %v2668
        %5930 = vmatpush.bf16.msra.mxu0 %v2660
        %5931 = vmatpush.bf16.msra.mxu0 %v2652
        %5932 = vmatpush.bf16.msra.mxu0 %v2644
        %5933 = vmatpush.bf16.msra.mxu0 %v2636
        %5934 = vmatmul.bf16.gmra.mxu0 %v1173
        %v5935 = vpop.f32.mrf.mxu0
        %v5936 = vadd.f32 %v988, %v5935
        %v5937 = vpop.f32.mrf.mxu0
        %v5938 = vadd.f32 %v988, %v5937
        %5939 = vmatmul.bf16.gmra.mxu0 %v1180
        %v5940 = vpop.f32.mrf.mxu0
        %v5941 = vadd.f32 %v988, %v5940
        %v5942 = vpop.f32.mrf.mxu0
        %v5943 = vadd.f32 %v988, %v5942
        %5944 = vmatmul.bf16.gmra.mxu0 %v1187
        %v5945 = vpop.f32.mrf.mxu0
        %v5946 = vadd.f32 %v988, %v5945
        %v5947 = vpop.f32.mrf.mxu0
        %v5948 = vadd.f32 %v988, %v5947
        %5949 = vmatmul.bf16.gmra.mxu0 %v1194
        %v5950 = vpop.f32.mrf.mxu0
        %v5951 = vadd.f32 %v988, %v5950
        %v5952 = vpop.f32.mrf.mxu0
        %v5953 = vadd.f32 %v988, %v5952
        %5954 = vmatmul.bf16.gmra.mxu0 %v1201
        %v5955 = vpop.f32.mrf.mxu0
        %v5956 = vadd.f32 %v988, %v5955
        %v5957 = vpop.f32.mrf.mxu0
        %v5958 = vadd.f32 %v988, %v5957
        %5959 = vmatmul.bf16.gmra.mxu0 %v1208
        %v5960 = vpop.f32.mrf.mxu0
        %v5961 = vadd.f32 %v988, %v5960
        %v5962 = vpop.f32.mrf.mxu0
        %v5963 = vadd.f32 %v988, %v5962
        %5964 = vmatmul.bf16.gmra.mxu0 %v1215
        %v5965 = vpop.f32.mrf.mxu0
        %v5966 = vadd.f32 %v988, %v5965
        %v5967 = vpop.f32.mrf.mxu0
        %v5968 = vadd.f32 %v988, %v5967
        %5969 = vmatmul.bf16.gmra.mxu0 %v1222
        %v5970 = vpop.f32.mrf.mxu0
        %v5971 = vadd.f32 %v988, %v5970
        %v5972 = vpop.f32.mrf.mxu0
        %v5973 = vadd.f32 %v988, %v5972
        %5974 = vdwg.mxu0
        %5975 = vmatpush.bf16.msra.mxu0 %v2756
        %5976 = vmatpush.bf16.msra.mxu0 %v2748
        %5977 = vmatpush.bf16.msra.mxu0 %v2740
        %5978 = vmatpush.bf16.msra.mxu0 %v2732
        %5979 = vmatpush.bf16.msra.mxu0 %v2724
        %5980 = vmatpush.bf16.msra.mxu0 %v2716
        %5981 = vmatpush.bf16.msra.mxu0 %v2708
        %5982 = vmatpush.bf16.msra.mxu0 %v2700
        %5983 = vmatmul.bf16.gmra.mxu0 %v1174
        %v5984 = vpop.f32.mrf.mxu0
        %v5985 = vadd.f32 %v5936, %v5984
        %v5986 = vpop.f32.mrf.mxu0
        %v5987 = vadd.f32 %v5938, %v5986
        %5988 = vmatmul.bf16.gmra.mxu0 %v1181
        %v5989 = vpop.f32.mrf.mxu0
        %v5990 = vadd.f32 %v5941, %v5989
        %v5991 = vpop.f32.mrf.mxu0
        %v5992 = vadd.f32 %v5943, %v5991
        %5993 = vmatmul.bf16.gmra.mxu0 %v1188
        %v5994 = vpop.f32.mrf.mxu0
        %v5995 = vadd.f32 %v5946, %v5994
        %v5996 = vpop.f32.mrf.mxu0
        %v5997 = vadd.f32 %v5948, %v5996
        %5998 = vmatmul.bf16.gmra.mxu0 %v1195
        %v5999 = vpop.f32.mrf.mxu0
        %v6000 = vadd.f32 %v5951, %v5999
        %v6001 = vpop.f32.mrf.mxu0
        %v6002 = vadd.f32 %v5953, %v6001
        %6003 = vmatmul.bf16.gmra.mxu0 %v1202
        %v6004 = vpop.f32.mrf.mxu0
        %v6005 = vadd.f32 %v5956, %v6004
        %v6006 = vpop.f32.mrf.mxu0
        %v6007 = vadd.f32 %v5958, %v6006
        %6008 = vmatmul.bf16.gmra.mxu0 %v1209
        %v6009 = vpop.f32.mrf.mxu0
        %v6010 = vadd.f32 %v5961, %v6009
        %v6011 = vpop.f32.mrf.mxu0
        %v6012 = vadd.f32 %v5963, %v6011
        %6013 = vmatmul.bf16.gmra.mxu0 %v1216
        %v6014 = vpop.f32.mrf.mxu0
        %v6015 = vadd.f32 %v5966, %v6014
        %v6016 = vpop.f32.mrf.mxu0
        %v6017 = vadd.f32 %v5968, %v6016
        %6018 = vmatmul.bf16.gmra.mxu0 %v1223
        %v6019 = vpop.f32.mrf.mxu0
        %v6020 = vadd.f32 %v5971, %v6019
        %v6021 = vpop.f32.mrf.mxu0
        %v6022 = vadd.f32 %v5973, %v6021
        %6023 = vdwg.mxu0
        %6024 = vmatpush.bf16.msra.mxu0 %v2820
        %6025 = vmatpush.bf16.msra.mxu0 %v2812
        %6026 = vmatpush.bf16.msra.mxu0 %v2804
        %6027 = vmatpush.bf16.msra.mxu0 %v2796
        %6028 = vmatpush.bf16.msra.mxu0 %v2788
        %6029 = vmatpush.bf16.msra.mxu0 %v2780
        %6030 = vmatpush.bf16.msra.mxu0 %v2772
        %6031 = vmatpush.bf16.msra.mxu0 %v2764
        %6032 = vmatmul.bf16.gmra.mxu0 %v1175
        %v6033 = vpop.f32.mrf.mxu0
        %v6034 = vadd.f32 %v5985, %v6033
        %v6035 = vpop.f32.mrf.mxu0
        %v6036 = vadd.f32 %v5987, %v6035
        %6037 = vmatmul.bf16.gmra.mxu0 %v1182
        %v6038 = vpop.f32.mrf.mxu0
        %v6039 = vadd.f32 %v5990, %v6038
        %v6040 = vpop.f32.mrf.mxu0
        %v6041 = vadd.f32 %v5992, %v6040
        %6042 = vmatmul.bf16.gmra.mxu0 %v1189
        %v6043 = vpop.f32.mrf.mxu0
        %v6044 = vadd.f32 %v5995, %v6043
        %v6045 = vpop.f32.mrf.mxu0
        %v6046 = vadd.f32 %v5997, %v6045
        %6047 = vmatmul.bf16.gmra.mxu0 %v1196
        %v6048 = vpop.f32.mrf.mxu0
        %v6049 = vadd.f32 %v6000, %v6048
        %v6050 = vpop.f32.mrf.mxu0
        %v6051 = vadd.f32 %v6002, %v6050
        %6052 = vmatmul.bf16.gmra.mxu0 %v1203
        %v6053 = vpop.f32.mrf.mxu0
        %v6054 = vadd.f32 %v6005, %v6053
        %v6055 = vpop.f32.mrf.mxu0
        %v6056 = vadd.f32 %v6007, %v6055
        %6057 = vmatmul.bf16.gmra.mxu0 %v1210
        %v6058 = vpop.f32.mrf.mxu0
        %v6059 = vadd.f32 %v6010, %v6058
        %v6060 = vpop.f32.mrf.mxu0
        %v6061 = vadd.f32 %v6012, %v6060
        %6062 = vmatmul.bf16.gmra.mxu0 %v1217
        %v6063 = vpop.f32.mrf.mxu0
        %v6064 = vadd.f32 %v6015, %v6063
        %v6065 = vpop.f32.mrf.mxu0
        %v6066 = vadd.f32 %v6017, %v6065
        %6067 = vmatmul.bf16.gmra.mxu0 %v1224
        %v6068 = vpop.f32.mrf.mxu0
        %v6069 = vadd.f32 %v6020, %v6068
        %v6070 = vpop.f32.mrf.mxu0
        %v6071 = vadd.f32 %v6022, %v6070
        %6072 = vdwg.mxu0
        %6073 = vmatpush.bf16.msra.mxu0 %v2884
        %6074 = vmatpush.bf16.msra.mxu0 %v2876
        %6075 = vmatpush.bf16.msra.mxu0 %v2868
        %6076 = vmatpush.bf16.msra.mxu0 %v2860
        %6077 = vmatpush.bf16.msra.mxu0 %v2852
        %6078 = vmatpush.bf16.msra.mxu0 %v2844
        %6079 = vmatpush.bf16.msra.mxu0 %v2836
        %6080 = vmatpush.bf16.msra.mxu0 %v2828
        %6081 = vmatmul.bf16.gmra.mxu0 %v1176
        %v6082 = vpop.f32.mrf.mxu0
        %v6083 = vadd.f32 %v6034, %v6082
        %v6084 = vpop.f32.mrf.mxu0
        %v6085 = vadd.f32 %v6036, %v6084
        %6086 = vmatmul.bf16.gmra.mxu0 %v1183
        %v6087 = vpop.f32.mrf.mxu0
        %v6088 = vadd.f32 %v6039, %v6087
        %v6089 = vpop.f32.mrf.mxu0
        %v6090 = vadd.f32 %v6041, %v6089
        %6091 = vmatmul.bf16.gmra.mxu0 %v1190
        %v6092 = vpop.f32.mrf.mxu0
        %v6093 = vadd.f32 %v6044, %v6092
        %v6094 = vpop.f32.mrf.mxu0
        %v6095 = vadd.f32 %v6046, %v6094
        %6096 = vmatmul.bf16.gmra.mxu0 %v1197
        %v6097 = vpop.f32.mrf.mxu0
        %v6098 = vadd.f32 %v6049, %v6097
        %v6099 = vpop.f32.mrf.mxu0
        %v6100 = vadd.f32 %v6051, %v6099
        %6101 = vmatmul.bf16.gmra.mxu0 %v1204
        %v6102 = vpop.f32.mrf.mxu0
        %v6103 = vadd.f32 %v6054, %v6102
        %v6104 = vpop.f32.mrf.mxu0
        %v6105 = vadd.f32 %v6056, %v6104
        %6106 = vmatmul.bf16.gmra.mxu0 %v1211
        %v6107 = vpop.f32.mrf.mxu0
        %v6108 = vadd.f32 %v6059, %v6107
        %v6109 = vpop.f32.mrf.mxu0
        %v6110 = vadd.f32 %v6061, %v6109
        %6111 = vmatmul.bf16.gmra.mxu0 %v1218
        %v6112 = vpop.f32.mrf.mxu0
        %v6113 = vadd.f32 %v6064, %v6112
        %v6114 = vpop.f32.mrf.mxu0
        %v6115 = vadd.f32 %v6066, %v6114
        %6116 = vmatmul.bf16.gmra.mxu0 %v1225
        %v6117 = vpop.f32.mrf.mxu0
        %v6118 = vadd.f32 %v6069, %v6117
        %v6119 = vpop.f32.mrf.mxu0
        %v6120 = vadd.f32 %v6071, %v6119
        %6121 = vdwg.mxu0
        %6122 = vmatpush.bf16.msra.mxu0 %v2948
        %6123 = vmatpush.bf16.msra.mxu0 %v2940
        %6124 = vmatpush.bf16.msra.mxu0 %v2932
        %6125 = vmatpush.bf16.msra.mxu0 %v2924
        %6126 = vmatpush.bf16.msra.mxu0 %v2916
        %6127 = vmatpush.bf16.msra.mxu0 %v2908
        %6128 = vmatpush.bf16.msra.mxu0 %v2900
        %6129 = vmatpush.bf16.msra.mxu0 %v2892
        %6130 = vmatmul.bf16.gmra.mxu0 %v1177
        %v6131 = vpop.f32.mrf.mxu0
        %v6132 = vadd.f32 %v6083, %v6131
        %v6133 = vpop.f32.mrf.mxu0
        %v6134 = vadd.f32 %v6085, %v6133
        %6135 = vmatmul.bf16.gmra.mxu0 %v1184
        %v6136 = vpop.f32.mrf.mxu0
        %v6137 = vadd.f32 %v6088, %v6136
        %v6138 = vpop.f32.mrf.mxu0
        %v6139 = vadd.f32 %v6090, %v6138
        %6140 = vmatmul.bf16.gmra.mxu0 %v1191
        %v6141 = vpop.f32.mrf.mxu0
        %v6142 = vadd.f32 %v6093, %v6141
        %v6143 = vpop.f32.mrf.mxu0
        %v6144 = vadd.f32 %v6095, %v6143
        %6145 = vmatmul.bf16.gmra.mxu0 %v1198
        %v6146 = vpop.f32.mrf.mxu0
        %v6147 = vadd.f32 %v6098, %v6146
        %v6148 = vpop.f32.mrf.mxu0
        %v6149 = vadd.f32 %v6100, %v6148
        %6150 = vmatmul.bf16.gmra.mxu0 %v1205
        %v6151 = vpop.f32.mrf.mxu0
        %v6152 = vadd.f32 %v6103, %v6151
        %v6153 = vpop.f32.mrf.mxu0
        %v6154 = vadd.f32 %v6105, %v6153
        %6155 = vmatmul.bf16.gmra.mxu0 %v1212
        %v6156 = vpop.f32.mrf.mxu0
        %v6157 = vadd.f32 %v6108, %v6156
        %v6158 = vpop.f32.mrf.mxu0
        %v6159 = vadd.f32 %v6110, %v6158
        %6160 = vmatmul.bf16.gmra.mxu0 %v1219
        %v6161 = vpop.f32.mrf.mxu0
        %v6162 = vadd.f32 %v6113, %v6161
        %v6163 = vpop.f32.mrf.mxu0
        %v6164 = vadd.f32 %v6115, %v6163
        %6165 = vmatmul.bf16.gmra.mxu0 %v1226
        %v6166 = vpop.f32.mrf.mxu0
        %v6167 = vadd.f32 %v6118, %v6166
        %v6168 = vpop.f32.mrf.mxu0
        %v6169 = vadd.f32 %v6120, %v6168
        %6170 = vdwg.mxu0
        %6171 = vmatpush.bf16.msra.mxu0 %v3012
        %6172 = vmatpush.bf16.msra.mxu0 %v3004
        %6173 = vmatpush.bf16.msra.mxu0 %v2996
        %6174 = vmatpush.bf16.msra.mxu0 %v2988
        %6175 = vmatpush.bf16.msra.mxu0 %v2980
        %6176 = vmatpush.bf16.msra.mxu0 %v2972
        %6177 = vmatpush.bf16.msra.mxu0 %v2964
        %6178 = vmatpush.bf16.msra.mxu0 %v2956
        %6179 = vmatmul.bf16.gmra.mxu0 %v1178
        %v6180 = vpop.f32.mrf.mxu0
        %v6181 = vadd.f32 %v6132, %v6180
        %v6182 = vpop.f32.mrf.mxu0
        %v6183 = vadd.f32 %v6134, %v6182
        %6184 = vmatmul.bf16.gmra.mxu0 %v1185
        %v6185 = vpop.f32.mrf.mxu0
        %v6186 = vadd.f32 %v6137, %v6185
        %v6187 = vpop.f32.mrf.mxu0
        %v6188 = vadd.f32 %v6139, %v6187
        %6189 = vmatmul.bf16.gmra.mxu0 %v1192
        %v6190 = vpop.f32.mrf.mxu0
        %v6191 = vadd.f32 %v6142, %v6190
        %v6192 = vpop.f32.mrf.mxu0
        %v6193 = vadd.f32 %v6144, %v6192
        %6194 = vmatmul.bf16.gmra.mxu0 %v1199
        %v6195 = vpop.f32.mrf.mxu0
        %v6196 = vadd.f32 %v6147, %v6195
        %v6197 = vpop.f32.mrf.mxu0
        %v6198 = vadd.f32 %v6149, %v6197
        %6199 = vmatmul.bf16.gmra.mxu0 %v1206
        %v6200 = vpop.f32.mrf.mxu0
        %v6201 = vadd.f32 %v6152, %v6200
        %v6202 = vpop.f32.mrf.mxu0
        %v6203 = vadd.f32 %v6154, %v6202
        %6204 = vmatmul.bf16.gmra.mxu0 %v1213
        %v6205 = vpop.f32.mrf.mxu0
        %v6206 = vadd.f32 %v6157, %v6205
        %v6207 = vpop.f32.mrf.mxu0
        %v6208 = vadd.f32 %v6159, %v6207
        %6209 = vmatmul.bf16.gmra.mxu0 %v1220
        %v6210 = vpop.f32.mrf.mxu0
        %v6211 = vadd.f32 %v6162, %v6210
        %v6212 = vpop.f32.mrf.mxu0
        %v6213 = vadd.f32 %v6164, %v6212
        %6214 = vmatmul.bf16.gmra.mxu0 %v1227
        %v6215 = vpop.f32.mrf.mxu0
        %v6216 = vadd.f32 %v6167, %v6215
        %v6217 = vpop.f32.mrf.mxu0
        %v6218 = vadd.f32 %v6169, %v6217
        %6219 = vdwg.mxu0
        %6220 = vmatpush.bf16.msra.mxu0 %v3076
        %6221 = vmatpush.bf16.msra.mxu0 %v3068
        %6222 = vmatpush.bf16.msra.mxu0 %v3060
        %6223 = vmatpush.bf16.msra.mxu0 %v3052
        %6224 = vmatpush.bf16.msra.mxu0 %v3044
        %6225 = vmatpush.bf16.msra.mxu0 %v3036
        %6226 = vmatpush.bf16.msra.mxu0 %v3028
        %6227 = vmatpush.bf16.msra.mxu0 %v3020
        %6228 = vmatmul.bf16.gmra.mxu0 %v1179
        %v6229 = vpop.f32.mrf.mxu0
        %v6230 = vadd.f32 %v6181, %v6229
        %v6231 = vpop.f32.mrf.mxu0
        %v6232 = vadd.f32 %v6183, %v6231
        %6233 = vmatmul.bf16.gmra.mxu0 %v1186
        %v6234 = vpop.f32.mrf.mxu0
        %v6235 = vadd.f32 %v6186, %v6234
        %v6236 = vpop.f32.mrf.mxu0
        %v6237 = vadd.f32 %v6188, %v6236
        %6238 = vmatmul.bf16.gmra.mxu0 %v1193
        %v6239 = vpop.f32.mrf.mxu0
        %v6240 = vadd.f32 %v6191, %v6239
        %v6241 = vpop.f32.mrf.mxu0
        %v6242 = vadd.f32 %v6193, %v6241
        %6243 = vmatmul.bf16.gmra.mxu0 %v1200
        %v6244 = vpop.f32.mrf.mxu0
        %v6245 = vadd.f32 %v6196, %v6244
        %v6246 = vpop.f32.mrf.mxu0
        %v6247 = vadd.f32 %v6198, %v6246
        %6248 = vmatmul.bf16.gmra.mxu0 %v1207
        %v6249 = vpop.f32.mrf.mxu0
        %v6250 = vadd.f32 %v6201, %v6249
        %v6251 = vpop.f32.mrf.mxu0
        %v6252 = vadd.f32 %v6203, %v6251
        %6253 = vmatmul.bf16.gmra.mxu0 %v1214
        %v6254 = vpop.f32.mrf.mxu0
        %v6255 = vadd.f32 %v6206, %v6254
        %v6256 = vpop.f32.mrf.mxu0
        %v6257 = vadd.f32 %v6208, %v6256
        %6258 = vmatmul.bf16.gmra.mxu0 %v1221
        %v6259 = vpop.f32.mrf.mxu0
        %v6260 = vadd.f32 %v6211, %v6259
        %v6261 = vpop.f32.mrf.mxu0
        %v6262 = vadd.f32 %v6213, %v6261
        %6263 = vmatmul.bf16.gmra.mxu0 %v1228
        %v6264 = vpop.f32.mrf.mxu0
        %v6265 = vadd.f32 %v6216, %v6264
        %v6266 = vpop.f32.mrf.mxu0
        %v6267 = vadd.f32 %v6218, %v6266
        %6268 = vdwg.mxu0
        %vm6269 = vcmp.gt.f32.partialorder %v3829, 0.0
        %vm6270 = vcmp.gt.f32.partialorder %v4172, 0.0
        %vm6271 = vcmp.gt.f32.partialorder %v4515, 0.0
        %vm6272 = vcmp.gt.f32.partialorder %v4858, 0.0
        %vm6273 = vcmp.gt.f32.partialorder %v5201, 0.0
        %vm6274 = vcmp.gt.f32.partialorder %v5544, 0.0
        %vm6275 = vcmp.gt.f32.partialorder %v5887, 0.0
        %vm6276 = vcmp.gt.f32.partialorder %v6230, 0.0
        %vm6277 = vcmp.gt.f32.partialorder %v3831, 0.0
        %vm6278 = vcmp.gt.f32.partialorder %v4174, 0.0
        %vm6279 = vcmp.gt.f32.partialorder %v4517, 0.0
        %vm6280 = vcmp.gt.f32.partialorder %v4860, 0.0
        %vm6281 = vcmp.gt.f32.partialorder %v5203, 0.0
        %vm6282 = vcmp.gt.f32.partialorder %v5546, 0.0
        %vm6283 = vcmp.gt.f32.partialorder %v5889, 0.0
        %vm6284 = vcmp.gt.f32.partialorder %v6232, 0.0
        %vm6285 = vcmp.gt.f32.partialorder %v3834, 0.0
        %vm6286 = vcmp.gt.f32.partialorder %v4177, 0.0
        %vm6287 = vcmp.gt.f32.partialorder %v4520, 0.0
        %vm6288 = vcmp.gt.f32.partialorder %v4863, 0.0
        %vm6289 = vcmp.gt.f32.partialorder %v5206, 0.0
        %vm6290 = vcmp.gt.f32.partialorder %v5549, 0.0
        %vm6291 = vcmp.gt.f32.partialorder %v5892, 0.0
        %vm6292 = vcmp.gt.f32.partialorder %v6235, 0.0
        %vm6293 = vcmp.gt.f32.partialorder %v3836, 0.0
        %vm6294 = vcmp.gt.f32.partialorder %v4179, 0.0
        %vm6295 = vcmp.gt.f32.partialorder %v4522, 0.0
        %vm6296 = vcmp.gt.f32.partialorder %v4865, 0.0
        %vm6297 = vcmp.gt.f32.partialorder %v5208, 0.0
        %vm6298 = vcmp.gt.f32.partialorder %v5551, 0.0
        %vm6299 = vcmp.gt.f32.partialorder %v5894, 0.0
        %vm6300 = vcmp.gt.f32.partialorder %v6237, 0.0
        %vm6301 = vcmp.gt.f32.partialorder %v3839, 0.0
        %vm6302 = vcmp.gt.f32.partialorder %v4182, 0.0
        %vm6303 = vcmp.gt.f32.partialorder %v4525, 0.0
        %vm6304 = vcmp.gt.f32.partialorder %v4868, 0.0
        %vm6305 = vcmp.gt.f32.partialorder %v5211, 0.0
        %vm6306 = vcmp.gt.f32.partialorder %v5554, 0.0
        %vm6307 = vcmp.gt.f32.partialorder %v5897, 0.0
        %vm6308 = vcmp.gt.f32.partialorder %v6240, 0.0
        %vm6309 = vcmp.gt.f32.partialorder %v3841, 0.0
        %vm6310 = vcmp.gt.f32.partialorder %v4184, 0.0
        %vm6311 = vcmp.gt.f32.partialorder %v4527, 0.0
        %vm6312 = vcmp.gt.f32.partialorder %v4870, 0.0
        %vm6313 = vcmp.gt.f32.partialorder %v5213, 0.0
        %vm6314 = vcmp.gt.f32.partialorder %v5556, 0.0
        %vm6315 = vcmp.gt.f32.partialorder %v5899, 0.0
        %vm6316 = vcmp.gt.f32.partialorder %v6242, 0.0
        %vm6317 = vcmp.gt.f32.partialorder %v3844, 0.0
        %vm6318 = vcmp.gt.f32.partialorder %v4187, 0.0
        %vm6319 = vcmp.gt.f32.partialorder %v4530, 0.0
        %vm6320 = vcmp.gt.f32.partialorder %v4873, 0.0
        %vm6321 = vcmp.gt.f32.partialorder %v5216, 0.0
        %vm6322 = vcmp.gt.f32.partialorder %v5559, 0.0
        %vm6323 = vcmp.gt.f32.partialorder %v5902, 0.0
        %vm6324 = vcmp.gt.f32.partialorder %v6245, 0.0
        %vm6325 = vcmp.gt.f32.partialorder %v3846, 0.0
        %vm6326 = vcmp.gt.f32.partialorder %v4189, 0.0
        %vm6327 = vcmp.gt.f32.partialorder %v4532, 0.0
        %vm6328 = vcmp.gt.f32.partialorder %v4875, 0.0
        %vm6329 = vcmp.gt.f32.partialorder %v5218, 0.0
        %vm6330 = vcmp.gt.f32.partialorder %v5561, 0.0
        %vm6331 = vcmp.gt.f32.partialorder %v5904, 0.0
        %vm6332 = vcmp.gt.f32.partialorder %v6247, 0.0
        %vm6333 = vcmp.gt.f32.partialorder %v3849, 0.0
        %vm6334 = vcmp.gt.f32.partialorder %v4192, 0.0
        %vm6335 = vcmp.gt.f32.partialorder %v4535, 0.0
        %vm6336 = vcmp.gt.f32.partialorder %v4878, 0.0
        %vm6337 = vcmp.gt.f32.partialorder %v5221, 0.0
        %vm6338 = vcmp.gt.f32.partialorder %v5564, 0.0
        %vm6339 = vcmp.gt.f32.partialorder %v5907, 0.0
        %vm6340 = vcmp.gt.f32.partialorder %v6250, 0.0
        %vm6341 = vcmp.gt.f32.partialorder %v3851, 0.0
        %vm6342 = vcmp.gt.f32.partialorder %v4194, 0.0
        %vm6343 = vcmp.gt.f32.partialorder %v4537, 0.0
        %vm6344 = vcmp.gt.f32.partialorder %v4880, 0.0
        %vm6345 = vcmp.gt.f32.partialorder %v5223, 0.0
        %vm6346 = vcmp.gt.f32.partialorder %v5566, 0.0
        %vm6347 = vcmp.gt.f32.partialorder %v5909, 0.0
        %vm6348 = vcmp.gt.f32.partialorder %v6252, 0.0
        %vm6349 = vcmp.gt.f32.partialorder %v3854, 0.0
        %vm6350 = vcmp.gt.f32.partialorder %v4197, 0.0
        %vm6351 = vcmp.gt.f32.partialorder %v4540, 0.0
        %vm6352 = vcmp.gt.f32.partialorder %v4883, 0.0
        %vm6353 = vcmp.gt.f32.partialorder %v5226, 0.0
        %vm6354 = vcmp.gt.f32.partialorder %v5569, 0.0
        %vm6355 = vcmp.gt.f32.partialorder %v5912, 0.0
        %vm6356 = vcmp.gt.f32.partialorder %v6255, 0.0
        %vm6357 = vcmp.gt.f32.partialorder %v3856, 0.0
        %vm6358 = vcmp.gt.f32.partialorder %v4199, 0.0
        %vm6359 = vcmp.gt.f32.partialorder %v4542, 0.0
        %vm6360 = vcmp.gt.f32.partialorder %v4885, 0.0
        %vm6361 = vcmp.gt.f32.partialorder %v5228, 0.0
        %vm6362 = vcmp.gt.f32.partialorder %v5571, 0.0
        %vm6363 = vcmp.gt.f32.partialorder %v5914, 0.0
        %vm6364 = vcmp.gt.f32.partialorder %v6257, 0.0
        %vm6365 = vcmp.gt.f32.partialorder %v3859, 0.0
        %vm6366 = vcmp.gt.f32.partialorder %v4202, 0.0
        %vm6367 = vcmp.gt.f32.partialorder %v4545, 0.0
        %vm6368 = vcmp.gt.f32.partialorder %v4888, 0.0
        %vm6369 = vcmp.gt.f32.partialorder %v5231, 0.0
        %vm6370 = vcmp.gt.f32.partialorder %v5574, 0.0
        %vm6371 = vcmp.gt.f32.partialorder %v5917, 0.0
        %vm6372 = vcmp.gt.f32.partialorder %v6260, 0.0
        %vm6373 = vcmp.gt.f32.partialorder %v3861, 0.0
        %vm6374 = vcmp.gt.f32.partialorder %v4204, 0.0
        %vm6375 = vcmp.gt.f32.partialorder %v4547, 0.0
        %vm6376 = vcmp.gt.f32.partialorder %v4890, 0.0
        %vm6377 = vcmp.gt.f32.partialorder %v5233, 0.0
        %vm6378 = vcmp.gt.f32.partialorder %v5576, 0.0
        %vm6379 = vcmp.gt.f32.partialorder %v5919, 0.0
        %vm6380 = vcmp.gt.f32.partialorder %v6262, 0.0
        %vm6381 = vcmp.gt.f32.partialorder %v3864, 0.0
        %vm6382 = vcmp.gt.f32.partialorder %v4207, 0.0
        %vm6383 = vcmp.gt.f32.partialorder %v4550, 0.0
        %vm6384 = vcmp.gt.f32.partialorder %v4893, 0.0
        %vm6385 = vcmp.gt.f32.partialorder %v5236, 0.0
        %vm6386 = vcmp.gt.f32.partialorder %v5579, 0.0
        %vm6387 = vcmp.gt.f32.partialorder %v5922, 0.0
        %vm6388 = vcmp.gt.f32.partialorder %v6265, 0.0
        %vm6389 = vcmp.gt.f32.partialorder %v3866, 0.0
        %vm6390 = vcmp.gt.f32.partialorder %v4209, 0.0
        %vm6391 = vcmp.gt.f32.partialorder %v4552, 0.0
        %vm6392 = vcmp.gt.f32.partialorder %v4895, 0.0
        %vm6393 = vcmp.gt.f32.partialorder %v5238, 0.0
        %vm6394 = vcmp.gt.f32.partialorder %v5581, 0.0
        %vm6395 = vcmp.gt.f32.partialorder %v5924, 0.0
        %vm6396 = vcmp.gt.f32.partialorder %v6267, 0.0
        %v6397 = vmul.f32 %v3829, 0.2
        %v6398 = vmul.f32 %v4172, 0.2
        %v6399 = vmul.f32 %v4515, 0.2
        %v6400 = vmul.f32 %v4858, 0.2
        %v6401 = vmul.f32 %v5201, 0.2
        %v6402 = vmul.f32 %v5544, 0.2
        %v6403 = vmul.f32 %v5887, 0.2
        %v6404 = vmul.f32 %v6230, 0.2
        %v6405 = vmul.f32 %v3831, 0.2
        %v6406 = vmul.f32 %v4174, 0.2
        %v6407 = vmul.f32 %v4517, 0.2
        %v6408 = vmul.f32 %v4860, 0.2
        %v6409 = vmul.f32 %v5203, 0.2
        %v6410 = vmul.f32 %v5546, 0.2
        %v6411 = vmul.f32 %v5889, 0.2
        %v6412 = vmul.f32 %v6232, 0.2
        %v6413 = vmul.f32 %v3834, 0.2
        %v6414 = vmul.f32 %v4177, 0.2
        %v6415 = vmul.f32 %v4520, 0.2
        %v6416 = vmul.f32 %v4863, 0.2
        %v6417 = vmul.f32 %v5206, 0.2
        %v6418 = vmul.f32 %v5549, 0.2
        %v6419 = vmul.f32 %v5892, 0.2
        %v6420 = vmul.f32 %v6235, 0.2
        %v6421 = vmul.f32 %v3836, 0.2
        %v6422 = vmul.f32 %v4179, 0.2
        %v6423 = vmul.f32 %v4522, 0.2
        %v6424 = vmul.f32 %v4865, 0.2
        %v6425 = vmul.f32 %v5208, 0.2
        %v6426 = vmul.f32 %v5551, 0.2
        %v6427 = vmul.f32 %v5894, 0.2
        %v6428 = vmul.f32 %v6237, 0.2
        %v6429 = vmul.f32 %v3839, 0.2
        %v6430 = vmul.f32 %v4182, 0.2
        %v6431 = vmul.f32 %v4525, 0.2
        %v6432 = vmul.f32 %v4868, 0.2
        %v6433 = vmul.f32 %v5211, 0.2
        %v6434 = vmul.f32 %v5554, 0.2
        %v6435 = vmul.f32 %v5897, 0.2
        %v6436 = vmul.f32 %v6240, 0.2
        %v6437 = vmul.f32 %v3841, 0.2
        %v6438 = vmul.f32 %v4184, 0.2
        %v6439 = vmul.f32 %v4527, 0.2
        %v6440 = vmul.f32 %v4870, 0.2
        %v6441 = vmul.f32 %v5213, 0.2
        %v6442 = vmul.f32 %v5556, 0.2
        %v6443 = vmul.f32 %v5899, 0.2
        %v6444 = vmul.f32 %v6242, 0.2
        %v6445 = vmul.f32 %v3844, 0.2
        %v6446 = vmul.f32 %v4187, 0.2
        %v6447 = vmul.f32 %v4530, 0.2
        %v6448 = vmul.f32 %v4873, 0.2
        %v6449 = vmul.f32 %v5216, 0.2
        %v6450 = vmul.f32 %v5559, 0.2
        %v6451 = vmul.f32 %v5902, 0.2
        %v6452 = vmul.f32 %v6245, 0.2
        %v6453 = vmul.f32 %v3846, 0.2
        %v6454 = vmul.f32 %v4189, 0.2
        %v6455 = vmul.f32 %v4532, 0.2
        %v6456 = vmul.f32 %v4875, 0.2
        %v6457 = vmul.f32 %v5218, 0.2
        %v6458 = vmul.f32 %v5561, 0.2
        %v6459 = vmul.f32 %v5904, 0.2
        %v6460 = vmul.f32 %v6247, 0.2
        %v6461 = vmul.f32 %v3849, 0.2
        %v6462 = vmul.f32 %v4192, 0.2
        %v6463 = vmul.f32 %v4535, 0.2
        %v6464 = vmul.f32 %v4878, 0.2
        %v6465 = vmul.f32 %v5221, 0.2
        %v6466 = vmul.f32 %v5564, 0.2
        %v6467 = vmul.f32 %v5907, 0.2
        %v6468 = vmul.f32 %v6250, 0.2
        %v6469 = vmul.f32 %v3851, 0.2
        %v6470 = vmul.f32 %v4194, 0.2
        %v6471 = vmul.f32 %v4537, 0.2
        %v6472 = vmul.f32 %v4880, 0.2
        %v6473 = vmul.f32 %v5223, 0.2
        %v6474 = vmul.f32 %v5566, 0.2
        %v6475 = vmul.f32 %v5909, 0.2
        %v6476 = vmul.f32 %v6252, 0.2
        %v6477 = vmul.f32 %v3854, 0.2
        %v6478 = vmul.f32 %v4197, 0.2
        %v6479 = vmul.f32 %v4540, 0.2
        %v6480 = vmul.f32 %v4883, 0.2
        %v6481 = vmul.f32 %v5226, 0.2
        %v6482 = vmul.f32 %v5569, 0.2
        %v6483 = vmul.f32 %v5912, 0.2
        %v6484 = vmul.f32 %v6255, 0.2
        %v6485 = vmul.f32 %v3856, 0.2
        %v6486 = vmul.f32 %v4199, 0.2
        %v6487 = vmul.f32 %v4542, 0.2
        %v6488 = vmul.f32 %v4885, 0.2
        %v6489 = vmul.f32 %v5228, 0.2
        %v6490 = vmul.f32 %v5571, 0.2
        %v6491 = vmul.f32 %v5914, 0.2
        %v6492 = vmul.f32 %v6257, 0.2
        %v6493 = vmul.f32 %v3859, 0.2
        %v6494 = vmul.f32 %v4202, 0.2
        %v6495 = vmul.f32 %v4545, 0.2
        %v6496 = vmul.f32 %v4888, 0.2
        %v6497 = vmul.f32 %v5231, 0.2
        %v6498 = vmul.f32 %v5574, 0.2
        %v6499 = vmul.f32 %v5917, 0.2
        %v6500 = vmul.f32 %v6260, 0.2
        %v6501 = vmul.f32 %v3861, 0.2
        %v6502 = vmul.f32 %v4204, 0.2
        %v6503 = vmul.f32 %v4547, 0.2
        %v6504 = vmul.f32 %v4890, 0.2
        %v6505 = vmul.f32 %v5233, 0.2
        %v6506 = vmul.f32 %v5576, 0.2
        %v6507 = vmul.f32 %v5919, 0.2
        %v6508 = vmul.f32 %v6262, 0.2
        %v6509 = vmul.f32 %v3864, 0.2
        %v6510 = vmul.f32 %v4207, 0.2
        %v6511 = vmul.f32 %v4550, 0.2
        %v6512 = vmul.f32 %v4893, 0.2
        %v6513 = vmul.f32 %v5236, 0.2
        %v6514 = vmul.f32 %v5579, 0.2
        %v6515 = vmul.f32 %v5922, 0.2
        %v6516 = vmul.f32 %v6265, 0.2
        %v6517 = vmul.f32 %v3866, 0.2
        %v6518 = vmul.f32 %v4209, 0.2
        %v6519 = vmul.f32 %v4552, 0.2
        %v6520 = vmul.f32 %v4895, 0.2
        %v6521 = vmul.f32 %v5238, 0.2
        %v6522 = vmul.f32 %v5581, 0.2
        %v6523 = vmul.f32 %v5924, 0.2
        %v6524 = vmul.f32 %v6267, 0.2
        %v6525 = vsel %vm6269, %v3829, %v6397
        %v6526 = vsel %vm6270, %v4172, %v6398
        %v6527 = vsel %vm6271, %v4515, %v6399
        %v6528 = vsel %vm6272, %v4858, %v6400
        %v6529 = vsel %vm6273, %v5201, %v6401
        %v6530 = vsel %vm6274, %v5544, %v6402
        %v6531 = vsel %vm6275, %v5887, %v6403
        %v6532 = vsel %vm6276, %v6230, %v6404
        %v6533 = vsel %vm6277, %v3831, %v6405
        %v6534 = vsel %vm6278, %v4174, %v6406
        %v6535 = vsel %vm6279, %v4517, %v6407
        %v6536 = vsel %vm6280, %v4860, %v6408
        %v6537 = vsel %vm6281, %v5203, %v6409
        %v6538 = vsel %vm6282, %v5546, %v6410
        %v6539 = vsel %vm6283, %v5889, %v6411
        %v6540 = vsel %vm6284, %v6232, %v6412
        %v6541 = vsel %vm6285, %v3834, %v6413
        %v6542 = vsel %vm6286, %v4177, %v6414
        %v6543 = vsel %vm6287, %v4520, %v6415
        %v6544 = vsel %vm6288, %v4863, %v6416
        %v6545 = vsel %vm6289, %v5206, %v6417
        %v6546 = vsel %vm6290, %v5549, %v6418
        %v6547 = vsel %vm6291, %v5892, %v6419
        %v6548 = vsel %vm6292, %v6235, %v6420
        %v6549 = vsel %vm6293, %v3836, %v6421
        %v6550 = vsel %vm6294, %v4179, %v6422
        %v6551 = vsel %vm6295, %v4522, %v6423
        %v6552 = vsel %vm6296, %v4865, %v6424
        %v6553 = vsel %vm6297, %v5208, %v6425
        %v6554 = vsel %vm6298, %v5551, %v6426
        %v6555 = vsel %vm6299, %v5894, %v6427
        %v6556 = vsel %vm6300, %v6237, %v6428
        %v6557 = vsel %vm6301, %v3839, %v6429
        %v6558 = vsel %vm6302, %v4182, %v6430
        %v6559 = vsel %vm6303, %v4525, %v6431
        %v6560 = vsel %vm6304, %v4868, %v6432
        %v6561 = vsel %vm6305, %v5211, %v6433
        %v6562 = vsel %vm6306, %v5554, %v6434
        %v6563 = vsel %vm6307, %v5897, %v6435
        %v6564 = vsel %vm6308, %v6240, %v6436
        %v6565 = vsel %vm6309, %v3841, %v6437
        %v6566 = vsel %vm6310, %v4184, %v6438
        %v6567 = vsel %vm6311, %v4527, %v6439
        %v6568 = vsel %vm6312, %v4870, %v6440
        %v6569 = vsel %vm6313, %v5213, %v6441
        %v6570 = vsel %vm6314, %v5556, %v6442
        %v6571 = vsel %vm6315, %v5899, %v6443
        %v6572 = vsel %vm6316, %v6242, %v6444
        %v6573 = vsel %vm6317, %v3844, %v6445
        %v6574 = vsel %vm6318, %v4187, %v6446
        %v6575 = vsel %vm6319, %v4530, %v6447
        %v6576 = vsel %vm6320, %v4873, %v6448
        %v6577 = vsel %vm6321, %v5216, %v6449
        %v6578 = vsel %vm6322, %v5559, %v6450
        %v6579 = vsel %vm6323, %v5902, %v6451
        %v6580 = vsel %vm6324, %v6245, %v6452
        %v6581 = vsel %vm6325, %v3846, %v6453
        %v6582 = vsel %vm6326, %v4189, %v6454
        %v6583 = vsel %vm6327, %v4532, %v6455
        %v6584 = vsel %vm6328, %v4875, %v6456
        %v6585 = vsel %vm6329, %v5218, %v6457
        %v6586 = vsel %vm6330, %v5561, %v6458
        %v6587 = vsel %vm6331, %v5904, %v6459
        %v6588 = vsel %vm6332, %v6247, %v6460
        %v6589 = vsel %vm6333, %v3849, %v6461
        %v6590 = vsel %vm6334, %v4192, %v6462
        %v6591 = vsel %vm6335, %v4535, %v6463
        %v6592 = vsel %vm6336, %v4878, %v6464
        %v6593 = vsel %vm6337, %v5221, %v6465
        %v6594 = vsel %vm6338, %v5564, %v6466
        %v6595 = vsel %vm6339, %v5907, %v6467
        %v6596 = vsel %vm6340, %v6250, %v6468
        %v6597 = vsel %vm6341, %v3851, %v6469
        %v6598 = vsel %vm6342, %v4194, %v6470
        %v6599 = vsel %vm6343, %v4537, %v6471
        %v6600 = vsel %vm6344, %v4880, %v6472
        %v6601 = vsel %vm6345, %v5223, %v6473
        %v6602 = vsel %vm6346, %v5566, %v6474
        %v6603 = vsel %vm6347, %v5909, %v6475
        %v6604 = vsel %vm6348, %v6252, %v6476
        %v6605 = vsel %vm6349, %v3854, %v6477
        %v6606 = vsel %vm6350, %v4197, %v6478
        %v6607 = vsel %vm6351, %v4540, %v6479
        %v6608 = vsel %vm6352, %v4883, %v6480
        %v6609 = vsel %vm6353, %v5226, %v6481
        %v6610 = vsel %vm6354, %v5569, %v6482
        %v6611 = vsel %vm6355, %v5912, %v6483
        %v6612 = vsel %vm6356, %v6255, %v6484
        %v6613 = vsel %vm6357, %v3856, %v6485
        %v6614 = vsel %vm6358, %v4199, %v6486
        %v6615 = vsel %vm6359, %v4542, %v6487
        %v6616 = vsel %vm6360, %v4885, %v6488
        %v6617 = vsel %vm6361, %v5228, %v6489
        %v6618 = vsel %vm6362, %v5571, %v6490
        %v6619 = vsel %vm6363, %v5914, %v6491
        %v6620 = vsel %vm6364, %v6257, %v6492
        %v6621 = vsel %vm6365, %v3859, %v6493
        %v6622 = vsel %vm6366, %v4202, %v6494
        %v6623 = vsel %vm6367, %v4545, %v6495
        %v6624 = vsel %vm6368, %v4888, %v6496
        %v6625 = vsel %vm6369, %v5231, %v6497
        %v6626 = vsel %vm6370, %v5574, %v6498
        %v6627 = vsel %vm6371, %v5917, %v6499
        %v6628 = vsel %vm6372, %v6260, %v6500
        %v6629 = vsel %vm6373, %v3861, %v6501
        %v6630 = vsel %vm6374, %v4204, %v6502
        %v6631 = vsel %vm6375, %v4547, %v6503
        %v6632 = vsel %vm6376, %v4890, %v6504
        %v6633 = vsel %vm6377, %v5233, %v6505
        %v6634 = vsel %vm6378, %v5576, %v6506
        %v6635 = vsel %vm6379, %v5919, %v6507
        %v6636 = vsel %vm6380, %v6262, %v6508
        %v6637 = vsel %vm6381, %v3864, %v6509
        %v6638 = vsel %vm6382, %v4207, %v6510
        %v6639 = vsel %vm6383, %v4550, %v6511
        %v6640 = vsel %vm6384, %v4893, %v6512
        %v6641 = vsel %vm6385, %v5236, %v6513
        %v6642 = vsel %vm6386, %v5579, %v6514
        %v6643 = vsel %vm6387, %v5922, %v6515
        %v6644 = vsel %vm6388, %v6265, %v6516
        %v6645 = vsel %vm6389, %v3866, %v6517
        %v6646 = vsel %vm6390, %v4209, %v6518
        %v6647 = vsel %vm6391, %v4552, %v6519
        %v6648 = vsel %vm6392, %v4895, %v6520
        %v6649 = vsel %vm6393, %v5238, %v6521
        %v6650 = vsel %vm6394, %v5581, %v6522
        %v6651 = vsel %vm6395, %v5924, %v6523
        %v6652 = vsel %vm6396, %v6267, %v6524
        %v6653 = vpack.c.bf16 %v6533, %v6525
        %v6654 = vpack.c.bf16 %v6534, %v6526
        %v6655 = vpack.c.bf16 %v6535, %v6527
        %v6656 = vpack.c.bf16 %v6536, %v6528
        %v6657 = vpack.c.bf16 %v6537, %v6529
        %v6658 = vpack.c.bf16 %v6538, %v6530
        %v6659 = vpack.c.bf16 %v6539, %v6531
        %v6660 = vpack.c.bf16 %v6540, %v6532
        %v6661 = vpack.c.bf16 %v6549, %v6541
        %v6662 = vpack.c.bf16 %v6550, %v6542
        %v6663 = vpack.c.bf16 %v6551, %v6543
        %v6664 = vpack.c.bf16 %v6552, %v6544
        %v6665 = vpack.c.bf16 %v6553, %v6545
        %v6666 = vpack.c.bf16 %v6554, %v6546
        %v6667 = vpack.c.bf16 %v6555, %v6547
        %v6668 = vpack.c.bf16 %v6556, %v6548
        %v6669 = vpack.c.bf16 %v6565, %v6557
        %v6670 = vpack.c.bf16 %v6566, %v6558
        %v6671 = vpack.c.bf16 %v6567, %v6559
        %v6672 = vpack.c.bf16 %v6568, %v6560
        %v6673 = vpack.c.bf16 %v6569, %v6561
        %v6674 = vpack.c.bf16 %v6570, %v6562
        %v6675 = vpack.c.bf16 %v6571, %v6563
        %v6676 = vpack.c.bf16 %v6572, %v6564
        %v6677 = vpack.c.bf16 %v6581, %v6573
        %v6678 = vpack.c.bf16 %v6582, %v6574
        %v6679 = vpack.c.bf16 %v6583, %v6575
        %v6680 = vpack.c.bf16 %v6584, %v6576
        %v6681 = vpack.c.bf16 %v6585, %v6577
        %v6682 = vpack.c.bf16 %v6586, %v6578
        %v6683 = vpack.c.bf16 %v6587, %v6579
        %v6684 = vpack.c.bf16 %v6588, %v6580
        %v6685 = vpack.c.bf16 %v6597, %v6589
        %v6686 = vpack.c.bf16 %v6598, %v6590
        %v6687 = vpack.c.bf16 %v6599, %v6591
        %v6688 = vpack.c.bf16 %v6600, %v6592
        %v6689 = vpack.c.bf16 %v6601, %v6593
        %v6690 = vpack.c.bf16 %v6602, %v6594
        %v6691 = vpack.c.bf16 %v6603, %v6595
        %v6692 = vpack.c.bf16 %v6604, %v6596
        %v6693 = vpack.c.bf16 %v6613, %v6605
        %v6694 = vpack.c.bf16 %v6614, %v6606
        %v6695 = vpack.c.bf16 %v6615, %v6607
        %v6696 = vpack.c.bf16 %v6616, %v6608
        %v6697 = vpack.c.bf16 %v6617, %v6609
        %v6698 = vpack.c.bf16 %v6618, %v6610
        %v6699 = vpack.c.bf16 %v6619, %v6611
        %v6700 = vpack.c.bf16 %v6620, %v6612
        %v6701 = vpack.c.bf16 %v6629, %v6621
        %v6702 = vpack.c.bf16 %v6630, %v6622
        %v6703 = vpack.c.bf16 %v6631, %v6623
        %v6704 = vpack.c.bf16 %v6632, %v6624
        %v6705 = vpack.c.bf16 %v6633, %v6625
        %v6706 = vpack.c.bf16 %v6634, %v6626
        %v6707 = vpack.c.bf16 %v6635, %v6627
        %v6708 = vpack.c.bf16 %v6636, %v6628
        %v6709 = vpack.c.bf16 %v6645, %v6637
        %v6710 = vpack.c.bf16 %v6646, %v6638
        %v6711 = vpack.c.bf16 %v6647, %v6639
        %v6712 = vpack.c.bf16 %v6648, %v6640
        %v6713 = vpack.c.bf16 %v6649, %v6641
        %v6714 = vpack.c.bf16 %v6650, %v6642
        %v6715 = vpack.c.bf16 %v6651, %v6643
        %v6716 = vpack.c.bf16 %v6652, %v6644
        %v6717 = vld [vmem:[#allocation8] sm:$0xff]
        %v6718 = vld [vmem:[#allocation8 + $0x8] sm:$0xff]
        %v6719 = vld [vmem:[#allocation8 + $0x10] sm:$0xff]
        %v6720 = vld [vmem:[#allocation8 + $0x18] sm:$0xff]
        %v6721 = vld [vmem:[#allocation8 + $0x20] sm:$0xff]
        %v6722 = vld [vmem:[#allocation8 + $0x28] sm:$0xff]
        %v6723 = vld [vmem:[#allocation8 + $0x30] sm:$0xff]
        %v6724 = vld [vmem:[#allocation8 + $0x38] sm:$0xff]
        %v6725 = vld [vmem:[#allocation8 + $0x40] sm:$0xff]
        %v6726 = vld [vmem:[#allocation8 + $0x48] sm:$0xff]
        %v6727 = vld [vmem:[#allocation8 + $0x50] sm:$0xff]
        %v6728 = vld [vmem:[#allocation8 + $0x58] sm:$0xff]
        %v6729 = vld [vmem:[#allocation8 + $0x60] sm:$0xff]
        %v6730 = vld [vmem:[#allocation8 + $0x68] sm:$0xff]
        %v6731 = vld [vmem:[#allocation8 + $0x70] sm:$0xff]
        %v6732 = vld [vmem:[#allocation8 + $0x78] sm:$0xff]
        %v6733 = vld [vmem:[#allocation8 + $0x80] sm:$0xff]
        %v6734 = vld [vmem:[#allocation8 + $0x88] sm:$0xff]
        %v6735 = vld [vmem:[#allocation8 + $0x90] sm:$0xff]
        %v6736 = vld [vmem:[#allocation8 + $0x98] sm:$0xff]
        %v6737 = vld [vmem:[#allocation8 + $0xa0] sm:$0xff]
        %v6738 = vld [vmem:[#allocation8 + $0xa8] sm:$0xff]
        %v6739 = vld [vmem:[#allocation8 + $0xb0] sm:$0xff]
        %v6740 = vld [vmem:[#allocation8 + $0xb8] sm:$0xff]
        %v6741 = vld [vmem:[#allocation8 + $0xc0] sm:$0xff]
        %v6742 = vld [vmem:[#allocation8 + $0xc8] sm:$0xff]
        %v6743 = vld [vmem:[#allocation8 + $0xd0] sm:$0xff]
        %v6744 = vld [vmem:[#allocation8 + $0xd8] sm:$0xff]
        %v6745 = vld [vmem:[#allocation8 + $0xe0] sm:$0xff]
        %v6746 = vld [vmem:[#allocation8 + $0xe8] sm:$0xff]
        %v6747 = vld [vmem:[#allocation8 + $0xf0] sm:$0xff]
        %v6748 = vld [vmem:[#allocation8 + $0xf8] sm:$0xff]
        %v6749 = vld [vmem:[#allocation8 + $0x100] sm:$0xff]
        %v6750 = vld [vmem:[#allocation8 + $0x108] sm:$0xff]
        %v6751 = vld [vmem:[#allocation8 + $0x110] sm:$0xff]
        %v6752 = vld [vmem:[#allocation8 + $0x118] sm:$0xff]
        %v6753 = vld [vmem:[#allocation8 + $0x120] sm:$0xff]
        %v6754 = vld [vmem:[#allocation8 + $0x128] sm:$0xff]
        %v6755 = vld [vmem:[#allocation8 + $0x130] sm:$0xff]
        %v6756 = vld [vmem:[#allocation8 + $0x138] sm:$0xff]
        %v6757 = vld [vmem:[#allocation8 + $0x140] sm:$0xff]
        %v6758 = vld [vmem:[#allocation8 + $0x148] sm:$0xff]
        %v6759 = vld [vmem:[#allocation8 + $0x150] sm:$0xff]
        %v6760 = vld [vmem:[#allocation8 + $0x158] sm:$0xff]
        %v6761 = vld [vmem:[#allocation8 + $0x160] sm:$0xff]
        %v6762 = vld [vmem:[#allocation8 + $0x168] sm:$0xff]
        %v6763 = vld [vmem:[#allocation8 + $0x170] sm:$0xff]
        %v6764 = vld [vmem:[#allocation8 + $0x178] sm:$0xff]
        %v6765 = vld [vmem:[#allocation8 + $0x180] sm:$0xff]
        %v6766 = vld [vmem:[#allocation8 + $0x188] sm:$0xff]
        %v6767 = vld [vmem:[#allocation8 + $0x190] sm:$0xff]
        %v6768 = vld [vmem:[#allocation8 + $0x198] sm:$0xff]
        %v6769 = vld [vmem:[#allocation8 + $0x1a0] sm:$0xff]
        %v6770 = vld [vmem:[#allocation8 + $0x1a8] sm:$0xff]
        %v6771 = vld [vmem:[#allocation8 + $0x1b0] sm:$0xff]
        %v6772 = vld [vmem:[#allocation8 + $0x1b8] sm:$0xff]
        %v6773 = vld [vmem:[#allocation8 + $0x1c0] sm:$0xff]
        %v6774 = vld [vmem:[#allocation8 + $0x1c8] sm:$0xff]
        %v6775 = vld [vmem:[#allocation8 + $0x1d0] sm:$0xff]
        %v6776 = vld [vmem:[#allocation8 + $0x1d8] sm:$0xff]
        %v6777 = vld [vmem:[#allocation8 + $0x1e0] sm:$0xff]
        %v6778 = vld [vmem:[#allocation8 + $0x1e8] sm:$0xff]
        %v6779 = vld [vmem:[#allocation8 + $0x1f0] sm:$0xff]
        %v6780 = vld [vmem:[#allocation8 + $0x1f8] sm:$0xff]
        %v6781 = vld [vmem:[#allocation8 + $0x200] sm:$0xff]
        %v6782 = vld [vmem:[#allocation8 + $0x208] sm:$0xff]
        %v6783 = vld [vmem:[#allocation8 + $0x210] sm:$0xff]
        %v6784 = vld [vmem:[#allocation8 + $0x218] sm:$0xff]
        %v6785 = vld [vmem:[#allocation8 + $0x220] sm:$0xff]
        %v6786 = vld [vmem:[#allocation8 + $0x228] sm:$0xff]
        %v6787 = vld [vmem:[#allocation8 + $0x230] sm:$0xff]
        %v6788 = vld [vmem:[#allocation8 + $0x238] sm:$0xff]
        %v6789 = vld [vmem:[#allocation8 + $0x240] sm:$0xff]
        %v6790 = vld [vmem:[#allocation8 + $0x248] sm:$0xff]
        %v6791 = vld [vmem:[#allocation8 + $0x250] sm:$0xff]
        %v6792 = vld [vmem:[#allocation8 + $0x258] sm:$0xff]
        %v6793 = vld [vmem:[#allocation8 + $0x260] sm:$0xff]
        %v6794 = vld [vmem:[#allocation8 + $0x268] sm:$0xff]
        %v6795 = vld [vmem:[#allocation8 + $0x270] sm:$0xff]
        %v6796 = vld [vmem:[#allocation8 + $0x278] sm:$0xff]
        %v6797 = vld [vmem:[#allocation8 + $0x280] sm:$0xff]
        %v6798 = vld [vmem:[#allocation8 + $0x288] sm:$0xff]
        %v6799 = vld [vmem:[#allocation8 + $0x290] sm:$0xff]
        %v6800 = vld [vmem:[#allocation8 + $0x298] sm:$0xff]
        %v6801 = vld [vmem:[#allocation8 + $0x2a0] sm:$0xff]
        %v6802 = vld [vmem:[#allocation8 + $0x2a8] sm:$0xff]
        %v6803 = vld [vmem:[#allocation8 + $0x2b0] sm:$0xff]
        %v6804 = vld [vmem:[#allocation8 + $0x2b8] sm:$0xff]
        %v6805 = vld [vmem:[#allocation8 + $0x2c0] sm:$0xff]
        %v6806 = vld [vmem:[#allocation8 + $0x2c8] sm:$0xff]
        %v6807 = vld [vmem:[#allocation8 + $0x2d0] sm:$0xff]
        %v6808 = vld [vmem:[#allocation8 + $0x2d8] sm:$0xff]
        %v6809 = vld [vmem:[#allocation8 + $0x2e0] sm:$0xff]
        %v6810 = vld [vmem:[#allocation8 + $0x2e8] sm:$0xff]
        %v6811 = vld [vmem:[#allocation8 + $0x2f0] sm:$0xff]
        %v6812 = vld [vmem:[#allocation8 + $0x2f8] sm:$0xff]
        %v6813 = vld [vmem:[#allocation8 + $0x300] sm:$0xff]
        %v6814 = vld [vmem:[#allocation8 + $0x308] sm:$0xff]
        %v6815 = vld [vmem:[#allocation8 + $0x310] sm:$0xff]
        %v6816 = vld [vmem:[#allocation8 + $0x318] sm:$0xff]
        %v6817 = vld [vmem:[#allocation8 + $0x320] sm:$0xff]
        %v6818 = vld [vmem:[#allocation8 + $0x328] sm:$0xff]
        %v6819 = vld [vmem:[#allocation8 + $0x330] sm:$0xff]
        %v6820 = vld [vmem:[#allocation8 + $0x338] sm:$0xff]
        %v6821 = vld [vmem:[#allocation8 + $0x340] sm:$0xff]
        %v6822 = vld [vmem:[#allocation8 + $0x348] sm:$0xff]
        %v6823 = vld [vmem:[#allocation8 + $0x350] sm:$0xff]
        %v6824 = vld [vmem:[#allocation8 + $0x358] sm:$0xff]
        %v6825 = vld [vmem:[#allocation8 + $0x360] sm:$0xff]
        %v6826 = vld [vmem:[#allocation8 + $0x368] sm:$0xff]
        %v6827 = vld [vmem:[#allocation8 + $0x370] sm:$0xff]
        %v6828 = vld [vmem:[#allocation8 + $0x378] sm:$0xff]
        %v6829 = vld [vmem:[#allocation8 + $0x380] sm:$0xff]
        %v6830 = vld [vmem:[#allocation8 + $0x388] sm:$0xff]
        %v6831 = vld [vmem:[#allocation8 + $0x390] sm:$0xff]
        %v6832 = vld [vmem:[#allocation8 + $0x398] sm:$0xff]
        %v6833 = vld [vmem:[#allocation8 + $0x3a0] sm:$0xff]
        %v6834 = vld [vmem:[#allocation8 + $0x3a8] sm:$0xff]
        %v6835 = vld [vmem:[#allocation8 + $0x3b0] sm:$0xff]
        %v6836 = vld [vmem:[#allocation8 + $0x3b8] sm:$0xff]
        %v6837 = vld [vmem:[#allocation8 + $0x3c0] sm:$0xff]
        %v6838 = vld [vmem:[#allocation8 + $0x3c8] sm:$0xff]
        %v6839 = vld [vmem:[#allocation8 + $0x3d0] sm:$0xff]
        %v6840 = vld [vmem:[#allocation8 + $0x3d8] sm:$0xff]
        %v6841 = vld [vmem:[#allocation8 + $0x3e0] sm:$0xff]
        %v6842 = vld [vmem:[#allocation8 + $0x3e8] sm:$0xff]
        %v6843 = vld [vmem:[#allocation8 + $0x3f0] sm:$0xff]
        %v6844 = vld [vmem:[#allocation8 + $0x3f8] sm:$0xff]
        %v6845 = vld [vmem:[#allocation8 + $0x400] sm:$0xff]
        %v6846 = vld [vmem:[#allocation8 + $0x408] sm:$0xff]
        %v6847 = vld [vmem:[#allocation8 + $0x410] sm:$0xff]
        %v6848 = vld [vmem:[#allocation8 + $0x418] sm:$0xff]
        %v6849 = vld [vmem:[#allocation8 + $0x420] sm:$0xff]
        %v6850 = vld [vmem:[#allocation8 + $0x428] sm:$0xff]
        %v6851 = vld [vmem:[#allocation8 + $0x430] sm:$0xff]
        %v6852 = vld [vmem:[#allocation8 + $0x438] sm:$0xff]
        %v6853 = vld [vmem:[#allocation8 + $0x440] sm:$0xff]
        %v6854 = vld [vmem:[#allocation8 + $0x448] sm:$0xff]
        %v6855 = vld [vmem:[#allocation8 + $0x450] sm:$0xff]
        %v6856 = vld [vmem:[#allocation8 + $0x458] sm:$0xff]
        %v6857 = vld [vmem:[#allocation8 + $0x460] sm:$0xff]
        %v6858 = vld [vmem:[#allocation8 + $0x468] sm:$0xff]
        %v6859 = vld [vmem:[#allocation8 + $0x470] sm:$0xff]
        %v6860 = vld [vmem:[#allocation8 + $0x478] sm:$0xff]
        %v6861 = vld [vmem:[#allocation8 + $0x480] sm:$0xff]
        %v6862 = vld [vmem:[#allocation8 + $0x488] sm:$0xff]
        %v6863 = vld [vmem:[#allocation8 + $0x490] sm:$0xff]
        %v6864 = vld [vmem:[#allocation8 + $0x498] sm:$0xff]
        %v6865 = vld [vmem:[#allocation8 + $0x4a0] sm:$0xff]
        %v6866 = vld [vmem:[#allocation8 + $0x4a8] sm:$0xff]
        %v6867 = vld [vmem:[#allocation8 + $0x4b0] sm:$0xff]
        %v6868 = vld [vmem:[#allocation8 + $0x4b8] sm:$0xff]
        %v6869 = vld [vmem:[#allocation8 + $0x4c0] sm:$0xff]
        %v6870 = vld [vmem:[#allocation8 + $0x4c8] sm:$0xff]
        %v6871 = vld [vmem:[#allocation8 + $0x4d0] sm:$0xff]
        %v6872 = vld [vmem:[#allocation8 + $0x4d8] sm:$0xff]
        %v6873 = vld [vmem:[#allocation8 + $0x4e0] sm:$0xff]
        %v6874 = vld [vmem:[#allocation8 + $0x4e8] sm:$0xff]
        %v6875 = vld [vmem:[#allocation8 + $0x4f0] sm:$0xff]
        %v6876 = vld [vmem:[#allocation8 + $0x4f8] sm:$0xff]
        %v6877 = vld [vmem:[#allocation8 + $0x500] sm:$0xff]
        %v6878 = vld [vmem:[#allocation8 + $0x508] sm:$0xff]
        %v6879 = vld [vmem:[#allocation8 + $0x510] sm:$0xff]
        %v6880 = vld [vmem:[#allocation8 + $0x518] sm:$0xff]
        %v6881 = vld [vmem:[#allocation8 + $0x520] sm:$0xff]
        %v6882 = vld [vmem:[#allocation8 + $0x528] sm:$0xff]
        %v6883 = vld [vmem:[#allocation8 + $0x530] sm:$0xff]
        %v6884 = vld [vmem:[#allocation8 + $0x538] sm:$0xff]
        %v6885 = vld [vmem:[#allocation8 + $0x540] sm:$0xff]
        %v6886 = vld [vmem:[#allocation8 + $0x548] sm:$0xff]
        %v6887 = vld [vmem:[#allocation8 + $0x550] sm:$0xff]
        %v6888 = vld [vmem:[#allocation8 + $0x558] sm:$0xff]
        %v6889 = vld [vmem:[#allocation8 + $0x560] sm:$0xff]
        %v6890 = vld [vmem:[#allocation8 + $0x568] sm:$0xff]
        %v6891 = vld [vmem:[#allocation8 + $0x570] sm:$0xff]
        %v6892 = vld [vmem:[#allocation8 + $0x578] sm:$0xff]
        %v6893 = vld [vmem:[#allocation8 + $0x580] sm:$0xff]
        %v6894 = vld [vmem:[#allocation8 + $0x588] sm:$0xff]
        %v6895 = vld [vmem:[#allocation8 + $0x590] sm:$0xff]
        %v6896 = vld [vmem:[#allocation8 + $0x598] sm:$0xff]
        %v6897 = vld [vmem:[#allocation8 + $0x5a0] sm:$0xff]
        %v6898 = vld [vmem:[#allocation8 + $0x5a8] sm:$0xff]
        %v6899 = vld [vmem:[#allocation8 + $0x5b0] sm:$0xff]
        %v6900 = vld [vmem:[#allocation8 + $0x5b8] sm:$0xff]
        %v6901 = vld [vmem:[#allocation8 + $0x5c0] sm:$0xff]
        %v6902 = vld [vmem:[#allocation8 + $0x5c8] sm:$0xff]
        %v6903 = vld [vmem:[#allocation8 + $0x5d0] sm:$0xff]
        %v6904 = vld [vmem:[#allocation8 + $0x5d8] sm:$0xff]
        %v6905 = vld [vmem:[#allocation8 + $0x5e0] sm:$0xff]
        %v6906 = vld [vmem:[#allocation8 + $0x5e8] sm:$0xff]
        %v6907 = vld [vmem:[#allocation8 + $0x5f0] sm:$0xff]
        %v6908 = vld [vmem:[#allocation8 + $0x5f8] sm:$0xff]
        %v6909 = vld [vmem:[#allocation8 + $0x600] sm:$0xff]
        %v6910 = vld [vmem:[#allocation8 + $0x608] sm:$0xff]
        %v6911 = vld [vmem:[#allocation8 + $0x610] sm:$0xff]
        %v6912 = vld [vmem:[#allocation8 + $0x618] sm:$0xff]
        %v6913 = vld [vmem:[#allocation8 + $0x620] sm:$0xff]
        %v6914 = vld [vmem:[#allocation8 + $0x628] sm:$0xff]
        %v6915 = vld [vmem:[#allocation8 + $0x630] sm:$0xff]
        %v6916 = vld [vmem:[#allocation8 + $0x638] sm:$0xff]
        %v6917 = vld [vmem:[#allocation8 + $0x640] sm:$0xff]
        %v6918 = vld [vmem:[#allocation8 + $0x648] sm:$0xff]
        %v6919 = vld [vmem:[#allocation8 + $0x650] sm:$0xff]
        %v6920 = vld [vmem:[#allocation8 + $0x658] sm:$0xff]
        %v6921 = vld [vmem:[#allocation8 + $0x660] sm:$0xff]
        %v6922 = vld [vmem:[#allocation8 + $0x668] sm:$0xff]
        %v6923 = vld [vmem:[#allocation8 + $0x670] sm:$0xff]
        %v6924 = vld [vmem:[#allocation8 + $0x678] sm:$0xff]
        %v6925 = vld [vmem:[#allocation8 + $0x680] sm:$0xff]
        %v6926 = vld [vmem:[#allocation8 + $0x688] sm:$0xff]
        %v6927 = vld [vmem:[#allocation8 + $0x690] sm:$0xff]
        %v6928 = vld [vmem:[#allocation8 + $0x698] sm:$0xff]
        %v6929 = vld [vmem:[#allocation8 + $0x6a0] sm:$0xff]
        %v6930 = vld [vmem:[#allocation8 + $0x6a8] sm:$0xff]
        %v6931 = vld [vmem:[#allocation8 + $0x6b0] sm:$0xff]
        %v6932 = vld [vmem:[#allocation8 + $0x6b8] sm:$0xff]
        %v6933 = vld [vmem:[#allocation8 + $0x6c0] sm:$0xff]
        %v6934 = vld [vmem:[#allocation8 + $0x6c8] sm:$0xff]
        %v6935 = vld [vmem:[#allocation8 + $0x6d0] sm:$0xff]
        %v6936 = vld [vmem:[#allocation8 + $0x6d8] sm:$0xff]
        %v6937 = vld [vmem:[#allocation8 + $0x6e0] sm:$0xff]
        %v6938 = vld [vmem:[#allocation8 + $0x6e8] sm:$0xff]
        %v6939 = vld [vmem:[#allocation8 + $0x6f0] sm:$0xff]
        %v6940 = vld [vmem:[#allocation8 + $0x6f8] sm:$0xff]
        %v6941 = vld [vmem:[#allocation8 + $0x700] sm:$0xff]
        %v6942 = vld [vmem:[#allocation8 + $0x708] sm:$0xff]
        %v6943 = vld [vmem:[#allocation8 + $0x710] sm:$0xff]
        %v6944 = vld [vmem:[#allocation8 + $0x718] sm:$0xff]
        %v6945 = vld [vmem:[#allocation8 + $0x720] sm:$0xff]
        %v6946 = vld [vmem:[#allocation8 + $0x728] sm:$0xff]
        %v6947 = vld [vmem:[#allocation8 + $0x730] sm:$0xff]
        %v6948 = vld [vmem:[#allocation8 + $0x738] sm:$0xff]
        %v6949 = vld [vmem:[#allocation8 + $0x740] sm:$0xff]
        %v6950 = vld [vmem:[#allocation8 + $0x748] sm:$0xff]
        %v6951 = vld [vmem:[#allocation8 + $0x750] sm:$0xff]
        %v6952 = vld [vmem:[#allocation8 + $0x758] sm:$0xff]
        %v6953 = vld [vmem:[#allocation8 + $0x760] sm:$0xff]
        %v6954 = vld [vmem:[#allocation8 + $0x768] sm:$0xff]
        %v6955 = vld [vmem:[#allocation8 + $0x770] sm:$0xff]
        %v6956 = vld [vmem:[#allocation8 + $0x778] sm:$0xff]
        %v6957 = vld [vmem:[#allocation8 + $0x780] sm:$0xff]
        %v6958 = vld [vmem:[#allocation8 + $0x788] sm:$0xff]
        %v6959 = vld [vmem:[#allocation8 + $0x790] sm:$0xff]
        %v6960 = vld [vmem:[#allocation8 + $0x798] sm:$0xff]
        %v6961 = vld [vmem:[#allocation8 + $0x7a0] sm:$0xff]
        %v6962 = vld [vmem:[#allocation8 + $0x7a8] sm:$0xff]
        %v6963 = vld [vmem:[#allocation8 + $0x7b0] sm:$0xff]
        %v6964 = vld [vmem:[#allocation8 + $0x7b8] sm:$0xff]
        %v6965 = vld [vmem:[#allocation8 + $0x7c0] sm:$0xff]
        %v6966 = vld [vmem:[#allocation8 + $0x7c8] sm:$0xff]
        %v6967 = vld [vmem:[#allocation8 + $0x7d0] sm:$0xff]
        %v6968 = vld [vmem:[#allocation8 + $0x7d8] sm:$0xff]
        %v6969 = vld [vmem:[#allocation8 + $0x7e0] sm:$0xff]
        %v6970 = vld [vmem:[#allocation8 + $0x7e8] sm:$0xff]
        %v6971 = vld [vmem:[#allocation8 + $0x7f0] sm:$0xff]
        %v6972 = vld [vmem:[#allocation8 + $0x7f8] sm:$0xff]
        %v6973 = vld [vmem:[#allocation10] sm:$0xf]
        %v6975 = vperm.slane %v6973, 0
        %v6976 = vperm.slane %v6973, 1
        %v6977 = vperm.slane %v6973, 2
        %v6978 = vperm.slane %v6973, 3
        %v7239 = vunpack.c.l.b16 %v6717
        %v7240 = vunpack.c.h.b16 %v6717
        %v7241 = vunpack.c.l.b16 %v6718
        %v7242 = vunpack.c.h.b16 %v6718
        %v7243 = vunpack.c.l.b16 %v6719
        %v7244 = vunpack.c.h.b16 %v6719
        %v7245 = vunpack.c.l.b16 %v6720
        %v7246 = vunpack.c.h.b16 %v6720
        %v7247 = vunpack.c.l.b16 %v6721
        %v7248 = vunpack.c.h.b16 %v6721
        %v7249 = vunpack.c.l.b16 %v6722
        %v7250 = vunpack.c.h.b16 %v6722
        %v7251 = vunpack.c.l.b16 %v6723
        %v7252 = vunpack.c.h.b16 %v6723
        %v7253 = vunpack.c.l.b16 %v6724
        %v7254 = vunpack.c.h.b16 %v6724
        %v7255 = vunpack.c.l.b16 %v6725
        %v7256 = vunpack.c.h.b16 %v6725
        %v7257 = vunpack.c.l.b16 %v6726
        %v7258 = vunpack.c.h.b16 %v6726
        %v7259 = vunpack.c.l.b16 %v6727
        %v7260 = vunpack.c.h.b16 %v6727
        %v7261 = vunpack.c.l.b16 %v6728
        %v7262 = vunpack.c.h.b16 %v6728
        %v7263 = vunpack.c.l.b16 %v6729
        %v7264 = vunpack.c.h.b16 %v6729
        %v7265 = vunpack.c.l.b16 %v6730
        %v7266 = vunpack.c.h.b16 %v6730
        %v7267 = vunpack.c.l.b16 %v6731
        %v7268 = vunpack.c.h.b16 %v6731
        %v7269 = vunpack.c.l.b16 %v6732
        %v7270 = vunpack.c.h.b16 %v6732
        %v7271 = vunpack.c.l.b16 %v6733
        %v7272 = vunpack.c.h.b16 %v6733
        %v7273 = vunpack.c.l.b16 %v6734
        %v7274 = vunpack.c.h.b16 %v6734
        %v7275 = vunpack.c.l.b16 %v6735
        %v7276 = vunpack.c.h.b16 %v6735
        %v7277 = vunpack.c.l.b16 %v6736
        %v7278 = vunpack.c.h.b16 %v6736
        %v7279 = vunpack.c.l.b16 %v6737
        %v7280 = vunpack.c.h.b16 %v6737
        %v7281 = vunpack.c.l.b16 %v6738
        %v7282 = vunpack.c.h.b16 %v6738
        %v7283 = vunpack.c.l.b16 %v6739
        %v7284 = vunpack.c.h.b16 %v6739
        %v7285 = vunpack.c.l.b16 %v6740
        %v7286 = vunpack.c.h.b16 %v6740
        %v7287 = vunpack.c.l.b16 %v6741
        %v7288 = vunpack.c.h.b16 %v6741
        %v7289 = vunpack.c.l.b16 %v6742
        %v7290 = vunpack.c.h.b16 %v6742
        %v7291 = vunpack.c.l.b16 %v6743
        %v7292 = vunpack.c.h.b16 %v6743
        %v7293 = vunpack.c.l.b16 %v6744
        %v7294 = vunpack.c.h.b16 %v6744
        %v7295 = vunpack.c.l.b16 %v6745
        %v7296 = vunpack.c.h.b16 %v6745
        %v7297 = vunpack.c.l.b16 %v6746
        %v7298 = vunpack.c.h.b16 %v6746
        %v7299 = vunpack.c.l.b16 %v6747
        %v7300 = vunpack.c.h.b16 %v6747
        %v7301 = vunpack.c.l.b16 %v6748
        %v7302 = vunpack.c.h.b16 %v6748
        %v7303 = vunpack.c.l.b16 %v6749
        %v7304 = vunpack.c.h.b16 %v6749
        %v7305 = vunpack.c.l.b16 %v6750
        %v7306 = vunpack.c.h.b16 %v6750
        %v7307 = vunpack.c.l.b16 %v6751
        %v7308 = vunpack.c.h.b16 %v6751
        %v7309 = vunpack.c.l.b16 %v6752
        %v7310 = vunpack.c.h.b16 %v6752
        %v7311 = vunpack.c.l.b16 %v6753
        %v7312 = vunpack.c.h.b16 %v6753
        %v7313 = vunpack.c.l.b16 %v6754
        %v7314 = vunpack.c.h.b16 %v6754
        %v7315 = vunpack.c.l.b16 %v6755
        %v7316 = vunpack.c.h.b16 %v6755
        %v7317 = vunpack.c.l.b16 %v6756
        %v7318 = vunpack.c.h.b16 %v6756
        %v7319 = vunpack.c.l.b16 %v6757
        %v7320 = vunpack.c.h.b16 %v6757
        %v7321 = vunpack.c.l.b16 %v6758
        %v7322 = vunpack.c.h.b16 %v6758
        %v7323 = vunpack.c.l.b16 %v6759
        %v7324 = vunpack.c.h.b16 %v6759
        %v7325 = vunpack.c.l.b16 %v6760
        %v7326 = vunpack.c.h.b16 %v6760
        %v7327 = vunpack.c.l.b16 %v6761
        %v7328 = vunpack.c.h.b16 %v6761
        %v7329 = vunpack.c.l.b16 %v6762
        %v7330 = vunpack.c.h.b16 %v6762
        %v7331 = vunpack.c.l.b16 %v6763
        %v7332 = vunpack.c.h.b16 %v6763
        %v7333 = vunpack.c.l.b16 %v6764
        %v7334 = vunpack.c.h.b16 %v6764
        %v7335 = vunpack.c.l.b16 %v6765
        %v7336 = vunpack.c.h.b16 %v6765
        %v7337 = vunpack.c.l.b16 %v6766
        %v7338 = vunpack.c.h.b16 %v6766
        %v7339 = vunpack.c.l.b16 %v6767
        %v7340 = vunpack.c.h.b16 %v6767
        %v7341 = vunpack.c.l.b16 %v6768
        %v7342 = vunpack.c.h.b16 %v6768
        %v7343 = vunpack.c.l.b16 %v6769
        %v7344 = vunpack.c.h.b16 %v6769
        %v7345 = vunpack.c.l.b16 %v6770
        %v7346 = vunpack.c.h.b16 %v6770
        %v7347 = vunpack.c.l.b16 %v6771
        %v7348 = vunpack.c.h.b16 %v6771
        %v7349 = vunpack.c.l.b16 %v6772
        %v7350 = vunpack.c.h.b16 %v6772
        %v7351 = vunpack.c.l.b16 %v6773
        %v7352 = vunpack.c.h.b16 %v6773
        %v7353 = vunpack.c.l.b16 %v6774
        %v7354 = vunpack.c.h.b16 %v6774
        %v7355 = vunpack.c.l.b16 %v6775
        %v7356 = vunpack.c.h.b16 %v6775
        %v7357 = vunpack.c.l.b16 %v6776
        %v7358 = vunpack.c.h.b16 %v6776
        %v7359 = vunpack.c.l.b16 %v6777
        %v7360 = vunpack.c.h.b16 %v6777
        %v7361 = vunpack.c.l.b16 %v6778
        %v7362 = vunpack.c.h.b16 %v6778
        %v7363 = vunpack.c.l.b16 %v6779
        %v7364 = vunpack.c.h.b16 %v6779
        %v7365 = vunpack.c.l.b16 %v6780
        %v7366 = vunpack.c.h.b16 %v6780
        %v7367 = vunpack.c.l.b16 %v6781
        %v7368 = vunpack.c.h.b16 %v6781
        %v7369 = vunpack.c.l.b16 %v6782
        %v7370 = vunpack.c.h.b16 %v6782
        %v7371 = vunpack.c.l.b16 %v6783
        %v7372 = vunpack.c.h.b16 %v6783
        %v7373 = vunpack.c.l.b16 %v6784
        %v7374 = vunpack.c.h.b16 %v6784
        %v7375 = vunpack.c.l.b16 %v6785
        %v7376 = vunpack.c.h.b16 %v6785
        %v7377 = vunpack.c.l.b16 %v6786
        %v7378 = vunpack.c.h.b16 %v6786
        %v7379 = vunpack.c.l.b16 %v6787
        %v7380 = vunpack.c.h.b16 %v6787
        %v7381 = vunpack.c.l.b16 %v6788
        %v7382 = vunpack.c.h.b16 %v6788
        %v7383 = vunpack.c.l.b16 %v6789
        %v7384 = vunpack.c.h.b16 %v6789
        %v7385 = vunpack.c.l.b16 %v6790
        %v7386 = vunpack.c.h.b16 %v6790
        %v7387 = vunpack.c.l.b16 %v6791
        %v7388 = vunpack.c.h.b16 %v6791
        %v7389 = vunpack.c.l.b16 %v6792
        %v7390 = vunpack.c.h.b16 %v6792
        %v7391 = vunpack.c.l.b16 %v6793
        %v7392 = vunpack.c.h.b16 %v6793
        %v7393 = vunpack.c.l.b16 %v6794
        %v7394 = vunpack.c.h.b16 %v6794
        %v7395 = vunpack.c.l.b16 %v6795
        %v7396 = vunpack.c.h.b16 %v6795
        %v7397 = vunpack.c.l.b16 %v6796
        %v7398 = vunpack.c.h.b16 %v6796
        %v7399 = vunpack.c.l.b16 %v6797
        %v7400 = vunpack.c.h.b16 %v6797
        %v7401 = vunpack.c.l.b16 %v6798
        %v7402 = vunpack.c.h.b16 %v6798
        %v7403 = vunpack.c.l.b16 %v6799
        %v7404 = vunpack.c.h.b16 %v6799
        %v7405 = vunpack.c.l.b16 %v6800
        %v7406 = vunpack.c.h.b16 %v6800
        %v7407 = vunpack.c.l.b16 %v6801
        %v7408 = vunpack.c.h.b16 %v6801
        %v7409 = vunpack.c.l.b16 %v6802
        %v7410 = vunpack.c.h.b16 %v6802
        %v7411 = vunpack.c.l.b16 %v6803
        %v7412 = vunpack.c.h.b16 %v6803
        %v7413 = vunpack.c.l.b16 %v6804
        %v7414 = vunpack.c.h.b16 %v6804
        %v7415 = vunpack.c.l.b16 %v6805
        %v7416 = vunpack.c.h.b16 %v6805
        %v7417 = vunpack.c.l.b16 %v6806
        %v7418 = vunpack.c.h.b16 %v6806
        %v7419 = vunpack.c.l.b16 %v6807
        %v7420 = vunpack.c.h.b16 %v6807
        %v7421 = vunpack.c.l.b16 %v6808
        %v7422 = vunpack.c.h.b16 %v6808
        %v7423 = vunpack.c.l.b16 %v6809
        %v7424 = vunpack.c.h.b16 %v6809
        %v7425 = vunpack.c.l.b16 %v6810
        %v7426 = vunpack.c.h.b16 %v6810
        %v7427 = vunpack.c.l.b16 %v6811
        %v7428 = vunpack.c.h.b16 %v6811
        %v7429 = vunpack.c.l.b16 %v6812
        %v7430 = vunpack.c.h.b16 %v6812
        %v7431 = vunpack.c.l.b16 %v6813
        %v7432 = vunpack.c.h.b16 %v6813
        %v7433 = vunpack.c.l.b16 %v6814
        %v7434 = vunpack.c.h.b16 %v6814
        %v7435 = vunpack.c.l.b16 %v6815
        %v7436 = vunpack.c.h.b16 %v6815
        %v7437 = vunpack.c.l.b16 %v6816
        %v7438 = vunpack.c.h.b16 %v6816
        %v7439 = vunpack.c.l.b16 %v6817
        %v7440 = vunpack.c.h.b16 %v6817
        %v7441 = vunpack.c.l.b16 %v6818
        %v7442 = vunpack.c.h.b16 %v6818
        %v7443 = vunpack.c.l.b16 %v6819
        %v7444 = vunpack.c.h.b16 %v6819
        %v7445 = vunpack.c.l.b16 %v6820
        %v7446 = vunpack.c.h.b16 %v6820
        %v7447 = vunpack.c.l.b16 %v6821
        %v7448 = vunpack.c.h.b16 %v6821
        %v7449 = vunpack.c.l.b16 %v6822
        %v7450 = vunpack.c.h.b16 %v6822
        %v7451 = vunpack.c.l.b16 %v6823
        %v7452 = vunpack.c.h.b16 %v6823
        %v7453 = vunpack.c.l.b16 %v6824
        %v7454 = vunpack.c.h.b16 %v6824
        %v7455 = vunpack.c.l.b16 %v6825
        %v7456 = vunpack.c.h.b16 %v6825
        %v7457 = vunpack.c.l.b16 %v6826
        %v7458 = vunpack.c.h.b16 %v6826
        %v7459 = vunpack.c.l.b16 %v6827
        %v7460 = vunpack.c.h.b16 %v6827
        %v7461 = vunpack.c.l.b16 %v6828
        %v7462 = vunpack.c.h.b16 %v6828
        %v7463 = vunpack.c.l.b16 %v6829
        %v7464 = vunpack.c.h.b16 %v6829
        %v7465 = vunpack.c.l.b16 %v6830
        %v7466 = vunpack.c.h.b16 %v6830
        %v7467 = vunpack.c.l.b16 %v6831
        %v7468 = vunpack.c.h.b16 %v6831
        %v7469 = vunpack.c.l.b16 %v6832
        %v7470 = vunpack.c.h.b16 %v6832
        %v7471 = vunpack.c.l.b16 %v6833
        %v7472 = vunpack.c.h.b16 %v6833
        %v7473 = vunpack.c.l.b16 %v6834
        %v7474 = vunpack.c.h.b16 %v6834
        %v7475 = vunpack.c.l.b16 %v6835
        %v7476 = vunpack.c.h.b16 %v6835
        %v7477 = vunpack.c.l.b16 %v6836
        %v7478 = vunpack.c.h.b16 %v6836
        %v7479 = vunpack.c.l.b16 %v6837
        %v7480 = vunpack.c.h.b16 %v6837
        %v7481 = vunpack.c.l.b16 %v6838
        %v7482 = vunpack.c.h.b16 %v6838
        %v7483 = vunpack.c.l.b16 %v6839
        %v7484 = vunpack.c.h.b16 %v6839
        %v7485 = vunpack.c.l.b16 %v6840
        %v7486 = vunpack.c.h.b16 %v6840
        %v7487 = vunpack.c.l.b16 %v6841
        %v7488 = vunpack.c.h.b16 %v6841
        %v7489 = vunpack.c.l.b16 %v6842
        %v7490 = vunpack.c.h.b16 %v6842
        %v7491 = vunpack.c.l.b16 %v6843
        %v7492 = vunpack.c.h.b16 %v6843
        %v7493 = vunpack.c.l.b16 %v6844
        %v7494 = vunpack.c.h.b16 %v6844
        %v7495 = vunpack.c.l.b16 %v6845
        %v7496 = vunpack.c.h.b16 %v6845
        %v7497 = vunpack.c.l.b16 %v6846
        %v7498 = vunpack.c.h.b16 %v6846
        %v7499 = vunpack.c.l.b16 %v6847
        %v7500 = vunpack.c.h.b16 %v6847
        %v7501 = vunpack.c.l.b16 %v6848
        %v7502 = vunpack.c.h.b16 %v6848
        %v7503 = vunpack.c.l.b16 %v6849
        %v7504 = vunpack.c.h.b16 %v6849
        %v7505 = vunpack.c.l.b16 %v6850
        %v7506 = vunpack.c.h.b16 %v6850
        %v7507 = vunpack.c.l.b16 %v6851
        %v7508 = vunpack.c.h.b16 %v6851
        %v7509 = vunpack.c.l.b16 %v6852
        %v7510 = vunpack.c.h.b16 %v6852
        %v7511 = vunpack.c.l.b16 %v6853
        %v7512 = vunpack.c.h.b16 %v6853
        %v7513 = vunpack.c.l.b16 %v6854
        %v7514 = vunpack.c.h.b16 %v6854
        %v7515 = vunpack.c.l.b16 %v6855
        %v7516 = vunpack.c.h.b16 %v6855
        %v7517 = vunpack.c.l.b16 %v6856
        %v7518 = vunpack.c.h.b16 %v6856
        %v7519 = vunpack.c.l.b16 %v6857
        %v7520 = vunpack.c.h.b16 %v6857
        %v7521 = vunpack.c.l.b16 %v6858
        %v7522 = vunpack.c.h.b16 %v6858
        %v7523 = vunpack.c.l.b16 %v6859
        %v7524 = vunpack.c.h.b16 %v6859
        %v7525 = vunpack.c.l.b16 %v6860
        %v7526 = vunpack.c.h.b16 %v6860
        %v7527 = vunpack.c.l.b16 %v6861
        %v7528 = vunpack.c.h.b16 %v6861
        %v7529 = vunpack.c.l.b16 %v6862
        %v7530 = vunpack.c.h.b16 %v6862
        %v7531 = vunpack.c.l.b16 %v6863
        %v7532 = vunpack.c.h.b16 %v6863
        %v7533 = vunpack.c.l.b16 %v6864
        %v7534 = vunpack.c.h.b16 %v6864
        %v7535 = vunpack.c.l.b16 %v6865
        %v7536 = vunpack.c.h.b16 %v6865
        %v7537 = vunpack.c.l.b16 %v6866
        %v7538 = vunpack.c.h.b16 %v6866
        %v7539 = vunpack.c.l.b16 %v6867
        %v7540 = vunpack.c.h.b16 %v6867
        %v7541 = vunpack.c.l.b16 %v6868
        %v7542 = vunpack.c.h.b16 %v6868
        %v7543 = vunpack.c.l.b16 %v6869
        %v7544 = vunpack.c.h.b16 %v6869
        %v7545 = vunpack.c.l.b16 %v6870
        %v7546 = vunpack.c.h.b16 %v6870
        %v7547 = vunpack.c.l.b16 %v6871
        %v7548 = vunpack.c.h.b16 %v6871
        %v7549 = vunpack.c.l.b16 %v6872
        %v7550 = vunpack.c.h.b16 %v6872
        %v7551 = vunpack.c.l.b16 %v6873
        %v7552 = vunpack.c.h.b16 %v6873
        %v7553 = vunpack.c.l.b16 %v6874
        %v7554 = vunpack.c.h.b16 %v6874
        %v7555 = vunpack.c.l.b16 %v6875
        %v7556 = vunpack.c.h.b16 %v6875
        %v7557 = vunpack.c.l.b16 %v6876
        %v7558 = vunpack.c.h.b16 %v6876
        %v7559 = vunpack.c.l.b16 %v6877
        %v7560 = vunpack.c.h.b16 %v6877
        %v7561 = vunpack.c.l.b16 %v6878
        %v7562 = vunpack.c.h.b16 %v6878
        %v7563 = vunpack.c.l.b16 %v6879
        %v7564 = vunpack.c.h.b16 %v6879
        %v7565 = vunpack.c.l.b16 %v6880
        %v7566 = vunpack.c.h.b16 %v6880
        %v7567 = vunpack.c.l.b16 %v6881
        %v7568 = vunpack.c.h.b16 %v6881
        %v7569 = vunpack.c.l.b16 %v6882
        %v7570 = vunpack.c.h.b16 %v6882
        %v7571 = vunpack.c.l.b16 %v6883
        %v7572 = vunpack.c.h.b16 %v6883
        %v7573 = vunpack.c.l.b16 %v6884
        %v7574 = vunpack.c.h.b16 %v6884
        %v7575 = vunpack.c.l.b16 %v6885
        %v7576 = vunpack.c.h.b16 %v6885
        %v7577 = vunpack.c.l.b16 %v6886
        %v7578 = vunpack.c.h.b16 %v6886
        %v7579 = vunpack.c.l.b16 %v6887
        %v7580 = vunpack.c.h.b16 %v6887
        %v7581 = vunpack.c.l.b16 %v6888
        %v7582 = vunpack.c.h.b16 %v6888
        %v7583 = vunpack.c.l.b16 %v6889
        %v7584 = vunpack.c.h.b16 %v6889
        %v7585 = vunpack.c.l.b16 %v6890
        %v7586 = vunpack.c.h.b16 %v6890
        %v7587 = vunpack.c.l.b16 %v6891
        %v7588 = vunpack.c.h.b16 %v6891
        %v7589 = vunpack.c.l.b16 %v6892
        %v7590 = vunpack.c.h.b16 %v6892
        %v7591 = vunpack.c.l.b16 %v6893
        %v7592 = vunpack.c.h.b16 %v6893
        %v7593 = vunpack.c.l.b16 %v6894
        %v7594 = vunpack.c.h.b16 %v6894
        %v7595 = vunpack.c.l.b16 %v6895
        %v7596 = vunpack.c.h.b16 %v6895
        %v7597 = vunpack.c.l.b16 %v6896
        %v7598 = vunpack.c.h.b16 %v6896
        %v7599 = vunpack.c.l.b16 %v6897
        %v7600 = vunpack.c.h.b16 %v6897
        %v7601 = vunpack.c.l.b16 %v6898
        %v7602 = vunpack.c.h.b16 %v6898
        %v7603 = vunpack.c.l.b16 %v6899
        %v7604 = vunpack.c.h.b16 %v6899
        %v7605 = vunpack.c.l.b16 %v6900
        %v7606 = vunpack.c.h.b16 %v6900
        %v7607 = vunpack.c.l.b16 %v6901
        %v7608 = vunpack.c.h.b16 %v6901
        %v7609 = vunpack.c.l.b16 %v6902
        %v7610 = vunpack.c.h.b16 %v6902
        %v7611 = vunpack.c.l.b16 %v6903
        %v7612 = vunpack.c.h.b16 %v6903
        %v7613 = vunpack.c.l.b16 %v6904
        %v7614 = vunpack.c.h.b16 %v6904
        %v7615 = vunpack.c.l.b16 %v6905
        %v7616 = vunpack.c.h.b16 %v6905
        %v7617 = vunpack.c.l.b16 %v6906
        %v7618 = vunpack.c.h.b16 %v6906
        %v7619 = vunpack.c.l.b16 %v6907
        %v7620 = vunpack.c.h.b16 %v6907
        %v7621 = vunpack.c.l.b16 %v6908
        %v7622 = vunpack.c.h.b16 %v6908
        %v7623 = vunpack.c.l.b16 %v6909
        %v7624 = vunpack.c.h.b16 %v6909
        %v7625 = vunpack.c.l.b16 %v6910
        %v7626 = vunpack.c.h.b16 %v6910
        %v7627 = vunpack.c.l.b16 %v6911
        %v7628 = vunpack.c.h.b16 %v6911
        %v7629 = vunpack.c.l.b16 %v6912
        %v7630 = vunpack.c.h.b16 %v6912
        %v7631 = vunpack.c.l.b16 %v6913
        %v7632 = vunpack.c.h.b16 %v6913
        %v7633 = vunpack.c.l.b16 %v6914
        %v7634 = vunpack.c.h.b16 %v6914
        %v7635 = vunpack.c.l.b16 %v6915
        %v7636 = vunpack.c.h.b16 %v6915
        %v7637 = vunpack.c.l.b16 %v6916
        %v7638 = vunpack.c.h.b16 %v6916
        %v7639 = vunpack.c.l.b16 %v6917
        %v7640 = vunpack.c.h.b16 %v6917
        %v7641 = vunpack.c.l.b16 %v6918
        %v7642 = vunpack.c.h.b16 %v6918
        %v7643 = vunpack.c.l.b16 %v6919
        %v7644 = vunpack.c.h.b16 %v6919
        %v7645 = vunpack.c.l.b16 %v6920
        %v7646 = vunpack.c.h.b16 %v6920
        %v7647 = vunpack.c.l.b16 %v6921
        %v7648 = vunpack.c.h.b16 %v6921
        %v7649 = vunpack.c.l.b16 %v6922
        %v7650 = vunpack.c.h.b16 %v6922
        %v7651 = vunpack.c.l.b16 %v6923
        %v7652 = vunpack.c.h.b16 %v6923
        %v7653 = vunpack.c.l.b16 %v6924
        %v7654 = vunpack.c.h.b16 %v6924
        %v7655 = vunpack.c.l.b16 %v6925
        %v7656 = vunpack.c.h.b16 %v6925
        %v7657 = vunpack.c.l.b16 %v6926
        %v7658 = vunpack.c.h.b16 %v6926
        %v7659 = vunpack.c.l.b16 %v6927
        %v7660 = vunpack.c.h.b16 %v6927
        %v7661 = vunpack.c.l.b16 %v6928
        %v7662 = vunpack.c.h.b16 %v6928
        %v7663 = vunpack.c.l.b16 %v6929
        %v7664 = vunpack.c.h.b16 %v6929
        %v7665 = vunpack.c.l.b16 %v6930
        %v7666 = vunpack.c.h.b16 %v6930
        %v7667 = vunpack.c.l.b16 %v6931
        %v7668 = vunpack.c.h.b16 %v6931
        %v7669 = vunpack.c.l.b16 %v6932
        %v7670 = vunpack.c.h.b16 %v6932
        %v7671 = vunpack.c.l.b16 %v6933
        %v7672 = vunpack.c.h.b16 %v6933
        %v7673 = vunpack.c.l.b16 %v6934
        %v7674 = vunpack.c.h.b16 %v6934
        %v7675 = vunpack.c.l.b16 %v6935
        %v7676 = vunpack.c.h.b16 %v6935
        %v7677 = vunpack.c.l.b16 %v6936
        %v7678 = vunpack.c.h.b16 %v6936
        %v7679 = vunpack.c.l.b16 %v6937
        %v7680 = vunpack.c.h.b16 %v6937
        %v7681 = vunpack.c.l.b16 %v6938
        %v7682 = vunpack.c.h.b16 %v6938
        %v7683 = vunpack.c.l.b16 %v6939
        %v7684 = vunpack.c.h.b16 %v6939
        %v7685 = vunpack.c.l.b16 %v6940
        %v7686 = vunpack.c.h.b16 %v6940
        %v7687 = vunpack.c.l.b16 %v6941
        %v7688 = vunpack.c.h.b16 %v6941
        %v7689 = vunpack.c.l.b16 %v6942
        %v7690 = vunpack.c.h.b16 %v6942
        %v7691 = vunpack.c.l.b16 %v6943
        %v7692 = vunpack.c.h.b16 %v6943
        %v7693 = vunpack.c.l.b16 %v6944
        %v7694 = vunpack.c.h.b16 %v6944
        %v7695 = vunpack.c.l.b16 %v6945
        %v7696 = vunpack.c.h.b16 %v6945
        %v7697 = vunpack.c.l.b16 %v6946
        %v7698 = vunpack.c.h.b16 %v6946
        %v7699 = vunpack.c.l.b16 %v6947
        %v7700 = vunpack.c.h.b16 %v6947
        %v7701 = vunpack.c.l.b16 %v6948
        %v7702 = vunpack.c.h.b16 %v6948
        %v7703 = vunpack.c.l.b16 %v6949
        %v7704 = vunpack.c.h.b16 %v6949
        %v7705 = vunpack.c.l.b16 %v6950
        %v7706 = vunpack.c.h.b16 %v6950
        %v7707 = vunpack.c.l.b16 %v6951
        %v7708 = vunpack.c.h.b16 %v6951
        %v7709 = vunpack.c.l.b16 %v6952
        %v7710 = vunpack.c.h.b16 %v6952
        %v7711 = vunpack.c.l.b16 %v6953
        %v7712 = vunpack.c.h.b16 %v6953
        %v7713 = vunpack.c.l.b16 %v6954
        %v7714 = vunpack.c.h.b16 %v6954
        %v7715 = vunpack.c.l.b16 %v6955
        %v7716 = vunpack.c.h.b16 %v6955
        %v7717 = vunpack.c.l.b16 %v6956
        %v7718 = vunpack.c.h.b16 %v6956
        %v7719 = vunpack.c.l.b16 %v6957
        %v7720 = vunpack.c.h.b16 %v6957
        %v7721 = vunpack.c.l.b16 %v6958
        %v7722 = vunpack.c.h.b16 %v6958
        %v7723 = vunpack.c.l.b16 %v6959
        %v7724 = vunpack.c.h.b16 %v6959
        %v7725 = vunpack.c.l.b16 %v6960
        %v7726 = vunpack.c.h.b16 %v6960
        %v7727 = vunpack.c.l.b16 %v6961
        %v7728 = vunpack.c.h.b16 %v6961
        %v7729 = vunpack.c.l.b16 %v6962
        %v7730 = vunpack.c.h.b16 %v6962
        %v7731 = vunpack.c.l.b16 %v6963
        %v7732 = vunpack.c.h.b16 %v6963
        %v7733 = vunpack.c.l.b16 %v6964
        %v7734 = vunpack.c.h.b16 %v6964
        %v7735 = vunpack.c.l.b16 %v6965
        %v7736 = vunpack.c.h.b16 %v6965
        %v7737 = vunpack.c.l.b16 %v6966
        %v7738 = vunpack.c.h.b16 %v6966
        %v7739 = vunpack.c.l.b16 %v6967
        %v7740 = vunpack.c.h.b16 %v6967
        %v7741 = vunpack.c.l.b16 %v6968
        %v7742 = vunpack.c.h.b16 %v6968
        %v7743 = vunpack.c.l.b16 %v6969
        %v7744 = vunpack.c.h.b16 %v6969
        %v7745 = vunpack.c.l.b16 %v6970
        %v7746 = vunpack.c.h.b16 %v6970
        %v7747 = vunpack.c.l.b16 %v6971
        %v7748 = vunpack.c.h.b16 %v6971
        %v7749 = vunpack.c.l.b16 %v6972
        %v7750 = vunpack.c.h.b16 %v6972
        %v7751 = vpack.c.b16 %v7243, %v7239
        %v7752 = vpack.c.b16 %v7244, %v7240
        %v7753 = vpack.c.b16 %v7245, %v7241
        %v7754 = vpack.c.b16 %v7246, %v7242
        %v7755 = vpack.c.b16 %v7251, %v7247
        %v7756 = vpack.c.b16 %v7252, %v7248
        %v7757 = vpack.c.b16 %v7253, %v7249
        %v7758 = vpack.c.b16 %v7254, %v7250
        %v7759 = vpack.c.b16 %v7259, %v7255
        %v7760 = vpack.c.b16 %v7260, %v7256
        %v7761 = vpack.c.b16 %v7261, %v7257
        %v7762 = vpack.c.b16 %v7262, %v7258
        %v7763 = vpack.c.b16 %v7267, %v7263
        %v7764 = vpack.c.b16 %v7268, %v7264
        %v7765 = vpack.c.b16 %v7269, %v7265
        %v7766 = vpack.c.b16 %v7270, %v7266
        %v7767 = vpack.c.b16 %v7275, %v7271
        %v7768 = vpack.c.b16 %v7276, %v7272
        %v7769 = vpack.c.b16 %v7277, %v7273
        %v7770 = vpack.c.b16 %v7278, %v7274
        %v7771 = vpack.c.b16 %v7283, %v7279
        %v7772 = vpack.c.b16 %v7284, %v7280
        %v7773 = vpack.c.b16 %v7285, %v7281
        %v7774 = vpack.c.b16 %v7286, %v7282
        %v7775 = vpack.c.b16 %v7291, %v7287
        %v7776 = vpack.c.b16 %v7292, %v7288
        %v7777 = vpack.c.b16 %v7293, %v7289
        %v7778 = vpack.c.b16 %v7294, %v7290
        %v7779 = vpack.c.b16 %v7299, %v7295
        %v7780 = vpack.c.b16 %v7300, %v7296
        %v7781 = vpack.c.b16 %v7301, %v7297
        %v7782 = vpack.c.b16 %v7302, %v7298
        %v7783 = vpack.c.b16 %v7307, %v7303
        %v7784 = vpack.c.b16 %v7308, %v7304
        %v7785 = vpack.c.b16 %v7309, %v7305
        %v7786 = vpack.c.b16 %v7310, %v7306
        %v7787 = vpack.c.b16 %v7315, %v7311
        %v7788 = vpack.c.b16 %v7316, %v7312
        %v7789 = vpack.c.b16 %v7317, %v7313
        %v7790 = vpack.c.b16 %v7318, %v7314
        %v7791 = vpack.c.b16 %v7323, %v7319
        %v7792 = vpack.c.b16 %v7324, %v7320
        %v7793 = vpack.c.b16 %v7325, %v7321
        %v7794 = vpack.c.b16 %v7326, %v7322
        %v7795 = vpack.c.b16 %v7331, %v7327
        %v7796 = vpack.c.b16 %v7332, %v7328
        %v7797 = vpack.c.b16 %v7333, %v7329
        %v7798 = vpack.c.b16 %v7334, %v7330
        %v7799 = vpack.c.b16 %v7339, %v7335
        %v7800 = vpack.c.b16 %v7340, %v7336
        %v7801 = vpack.c.b16 %v7341, %v7337
        %v7802 = vpack.c.b16 %v7342, %v7338
        %v7803 = vpack.c.b16 %v7347, %v7343
        %v7804 = vpack.c.b16 %v7348, %v7344
        %v7805 = vpack.c.b16 %v7349, %v7345
        %v7806 = vpack.c.b16 %v7350, %v7346
        %v7807 = vpack.c.b16 %v7355, %v7351
        %v7808 = vpack.c.b16 %v7356, %v7352
        %v7809 = vpack.c.b16 %v7357, %v7353
        %v7810 = vpack.c.b16 %v7358, %v7354
        %v7811 = vpack.c.b16 %v7363, %v7359
        %v7812 = vpack.c.b16 %v7364, %v7360
        %v7813 = vpack.c.b16 %v7365, %v7361
        %v7814 = vpack.c.b16 %v7366, %v7362
        %v7815 = vpack.c.b16 %v7371, %v7367
        %v7816 = vpack.c.b16 %v7372, %v7368
        %v7817 = vpack.c.b16 %v7373, %v7369
        %v7818 = vpack.c.b16 %v7374, %v7370
        %v7819 = vpack.c.b16 %v7379, %v7375
        %v7820 = vpack.c.b16 %v7380, %v7376
        %v7821 = vpack.c.b16 %v7381, %v7377
        %v7822 = vpack.c.b16 %v7382, %v7378
        %v7823 = vpack.c.b16 %v7387, %v7383
        %v7824 = vpack.c.b16 %v7388, %v7384
        %v7825 = vpack.c.b16 %v7389, %v7385
        %v7826 = vpack.c.b16 %v7390, %v7386
        %v7827 = vpack.c.b16 %v7395, %v7391
        %v7828 = vpack.c.b16 %v7396, %v7392
        %v7829 = vpack.c.b16 %v7397, %v7393
        %v7830 = vpack.c.b16 %v7398, %v7394
        %v7831 = vpack.c.b16 %v7403, %v7399
        %v7832 = vpack.c.b16 %v7404, %v7400
        %v7833 = vpack.c.b16 %v7405, %v7401
        %v7834 = vpack.c.b16 %v7406, %v7402
        %v7835 = vpack.c.b16 %v7411, %v7407
        %v7836 = vpack.c.b16 %v7412, %v7408
        %v7837 = vpack.c.b16 %v7413, %v7409
        %v7838 = vpack.c.b16 %v7414, %v7410
        %v7839 = vpack.c.b16 %v7419, %v7415
        %v7840 = vpack.c.b16 %v7420, %v7416
        %v7841 = vpack.c.b16 %v7421, %v7417
        %v7842 = vpack.c.b16 %v7422, %v7418
        %v7843 = vpack.c.b16 %v7427, %v7423
        %v7844 = vpack.c.b16 %v7428, %v7424
        %v7845 = vpack.c.b16 %v7429, %v7425
        %v7846 = vpack.c.b16 %v7430, %v7426
        %v7847 = vpack.c.b16 %v7435, %v7431
        %v7848 = vpack.c.b16 %v7436, %v7432
        %v7849 = vpack.c.b16 %v7437, %v7433
        %v7850 = vpack.c.b16 %v7438, %v7434
        %v7851 = vpack.c.b16 %v7443, %v7439
        %v7852 = vpack.c.b16 %v7444, %v7440
        %v7853 = vpack.c.b16 %v7445, %v7441
        %v7854 = vpack.c.b16 %v7446, %v7442
        %v7855 = vpack.c.b16 %v7451, %v7447
        %v7856 = vpack.c.b16 %v7452, %v7448
        %v7857 = vpack.c.b16 %v7453, %v7449
        %v7858 = vpack.c.b16 %v7454, %v7450
        %v7859 = vpack.c.b16 %v7459, %v7455
        %v7860 = vpack.c.b16 %v7460, %v7456
        %v7861 = vpack.c.b16 %v7461, %v7457
        %v7862 = vpack.c.b16 %v7462, %v7458
        %v7863 = vpack.c.b16 %v7467, %v7463
        %v7864 = vpack.c.b16 %v7468, %v7464
        %v7865 = vpack.c.b16 %v7469, %v7465
        %v7866 = vpack.c.b16 %v7470, %v7466
        %v7867 = vpack.c.b16 %v7475, %v7471
        %v7868 = vpack.c.b16 %v7476, %v7472
        %v7869 = vpack.c.b16 %v7477, %v7473
        %v7870 = vpack.c.b16 %v7478, %v7474
        %v7871 = vpack.c.b16 %v7483, %v7479
        %v7872 = vpack.c.b16 %v7484, %v7480
        %v7873 = vpack.c.b16 %v7485, %v7481
        %v7874 = vpack.c.b16 %v7486, %v7482
        %v7875 = vpack.c.b16 %v7491, %v7487
        %v7876 = vpack.c.b16 %v7492, %v7488
        %v7877 = vpack.c.b16 %v7493, %v7489
        %v7878 = vpack.c.b16 %v7494, %v7490
        %v7879 = vpack.c.b16 %v7499, %v7495
        %v7880 = vpack.c.b16 %v7500, %v7496
        %v7881 = vpack.c.b16 %v7501, %v7497
        %v7882 = vpack.c.b16 %v7502, %v7498
        %v7883 = vpack.c.b16 %v7507, %v7503
        %v7884 = vpack.c.b16 %v7508, %v7504
        %v7885 = vpack.c.b16 %v7509, %v7505
        %v7886 = vpack.c.b16 %v7510, %v7506
        %v7887 = vpack.c.b16 %v7515, %v7511
        %v7888 = vpack.c.b16 %v7516, %v7512
        %v7889 = vpack.c.b16 %v7517, %v7513
        %v7890 = vpack.c.b16 %v7518, %v7514
        %v7891 = vpack.c.b16 %v7523, %v7519
        %v7892 = vpack.c.b16 %v7524, %v7520
        %v7893 = vpack.c.b16 %v7525, %v7521
        %v7894 = vpack.c.b16 %v7526, %v7522
        %v7895 = vpack.c.b16 %v7531, %v7527
        %v7896 = vpack.c.b16 %v7532, %v7528
        %v7897 = vpack.c.b16 %v7533, %v7529
        %v7898 = vpack.c.b16 %v7534, %v7530
        %v7899 = vpack.c.b16 %v7539, %v7535
        %v7900 = vpack.c.b16 %v7540, %v7536
        %v7901 = vpack.c.b16 %v7541, %v7537
        %v7902 = vpack.c.b16 %v7542, %v7538
        %v7903 = vpack.c.b16 %v7547, %v7543
        %v7904 = vpack.c.b16 %v7548, %v7544
        %v7905 = vpack.c.b16 %v7549, %v7545
        %v7906 = vpack.c.b16 %v7550, %v7546
        %v7907 = vpack.c.b16 %v7555, %v7551
        %v7908 = vpack.c.b16 %v7556, %v7552
        %v7909 = vpack.c.b16 %v7557, %v7553
        %v7910 = vpack.c.b16 %v7558, %v7554
        %v7911 = vpack.c.b16 %v7563, %v7559
        %v7912 = vpack.c.b16 %v7564, %v7560
        %v7913 = vpack.c.b16 %v7565, %v7561
        %v7914 = vpack.c.b16 %v7566, %v7562
        %v7915 = vpack.c.b16 %v7571, %v7567
        %v7916 = vpack.c.b16 %v7572, %v7568
        %v7917 = vpack.c.b16 %v7573, %v7569
        %v7918 = vpack.c.b16 %v7574, %v7570
        %v7919 = vpack.c.b16 %v7579, %v7575
        %v7920 = vpack.c.b16 %v7580, %v7576
        %v7921 = vpack.c.b16 %v7581, %v7577
        %v7922 = vpack.c.b16 %v7582, %v7578
        %v7923 = vpack.c.b16 %v7587, %v7583
        %v7924 = vpack.c.b16 %v7588, %v7584
        %v7925 = vpack.c.b16 %v7589, %v7585
        %v7926 = vpack.c.b16 %v7590, %v7586
        %v7927 = vpack.c.b16 %v7595, %v7591
        %v7928 = vpack.c.b16 %v7596, %v7592
        %v7929 = vpack.c.b16 %v7597, %v7593
        %v7930 = vpack.c.b16 %v7598, %v7594
        %v7931 = vpack.c.b16 %v7603, %v7599
        %v7932 = vpack.c.b16 %v7604, %v7600
        %v7933 = vpack.c.b16 %v7605, %v7601
        %v7934 = vpack.c.b16 %v7606, %v7602
        %v7935 = vpack.c.b16 %v7611, %v7607
        %v7936 = vpack.c.b16 %v7612, %v7608
        %v7937 = vpack.c.b16 %v7613, %v7609
        %v7938 = vpack.c.b16 %v7614, %v7610
        %v7939 = vpack.c.b16 %v7619, %v7615
        %v7940 = vpack.c.b16 %v7620, %v7616
        %v7941 = vpack.c.b16 %v7621, %v7617
        %v7942 = vpack.c.b16 %v7622, %v7618
        %v7943 = vpack.c.b16 %v7627, %v7623
        %v7944 = vpack.c.b16 %v7628, %v7624
        %v7945 = vpack.c.b16 %v7629, %v7625
        %v7946 = vpack.c.b16 %v7630, %v7626
        %v7947 = vpack.c.b16 %v7635, %v7631
        %v7948 = vpack.c.b16 %v7636, %v7632
        %v7949 = vpack.c.b16 %v7637, %v7633
        %v7950 = vpack.c.b16 %v7638, %v7634
        %v7951 = vpack.c.b16 %v7643, %v7639
        %v7952 = vpack.c.b16 %v7644, %v7640
        %v7953 = vpack.c.b16 %v7645, %v7641
        %v7954 = vpack.c.b16 %v7646, %v7642
        %v7955 = vpack.c.b16 %v7651, %v7647
        %v7956 = vpack.c.b16 %v7652, %v7648
        %v7957 = vpack.c.b16 %v7653, %v7649
        %v7958 = vpack.c.b16 %v7654, %v7650
        %v7959 = vpack.c.b16 %v7659, %v7655
        %v7960 = vpack.c.b16 %v7660, %v7656
        %v7961 = vpack.c.b16 %v7661, %v7657
        %v7962 = vpack.c.b16 %v7662, %v7658
        %v7963 = vpack.c.b16 %v7667, %v7663
        %v7964 = vpack.c.b16 %v7668, %v7664
        %v7965 = vpack.c.b16 %v7669, %v7665
        %v7966 = vpack.c.b16 %v7670, %v7666
        %v7967 = vpack.c.b16 %v7675, %v7671
        %v7968 = vpack.c.b16 %v7676, %v7672
        %v7969 = vpack.c.b16 %v7677, %v7673
        %v7970 = vpack.c.b16 %v7678, %v7674
        %v7971 = vpack.c.b16 %v7683, %v7679
        %v7972 = vpack.c.b16 %v7684, %v7680
        %v7973 = vpack.c.b16 %v7685, %v7681
        %v7974 = vpack.c.b16 %v7686, %v7682
        %v7975 = vpack.c.b16 %v7691, %v7687
        %v7976 = vpack.c.b16 %v7692, %v7688
        %v7977 = vpack.c.b16 %v7693, %v7689
        %v7978 = vpack.c.b16 %v7694, %v7690
        %v7979 = vpack.c.b16 %v7699, %v7695
        %v7980 = vpack.c.b16 %v7700, %v7696
        %v7981 = vpack.c.b16 %v7701, %v7697
        %v7982 = vpack.c.b16 %v7702, %v7698
        %v7983 = vpack.c.b16 %v7707, %v7703
        %v7984 = vpack.c.b16 %v7708, %v7704
        %v7985 = vpack.c.b16 %v7709, %v7705
        %v7986 = vpack.c.b16 %v7710, %v7706
        %v7987 = vpack.c.b16 %v7715, %v7711
        %v7988 = vpack.c.b16 %v7716, %v7712
        %v7989 = vpack.c.b16 %v7717, %v7713
        %v7990 = vpack.c.b16 %v7718, %v7714
        %v7991 = vpack.c.b16 %v7723, %v7719
        %v7992 = vpack.c.b16 %v7724, %v7720
        %v7993 = vpack.c.b16 %v7725, %v7721
        %v7994 = vpack.c.b16 %v7726, %v7722
        %v7995 = vpack.c.b16 %v7731, %v7727
        %v7996 = vpack.c.b16 %v7732, %v7728
        %v7997 = vpack.c.b16 %v7733, %v7729
        %v7998 = vpack.c.b16 %v7734, %v7730
        %v7999 = vpack.c.b16 %v7739, %v7735
        %v8000 = vpack.c.b16 %v7740, %v7736
        %v8001 = vpack.c.b16 %v7741, %v7737
        %v8002 = vpack.c.b16 %v7742, %v7738
        %v8003 = vpack.c.b16 %v7747, %v7743
        %v8004 = vpack.c.b16 %v7748, %v7744
        %v8005 = vpack.c.b16 %v7749, %v7745
        %v8006 = vpack.c.b16 %v7750, %v7746
        %8263 = vmatpush.bf16.msra.mxu0 %v7779
        %8264 = vmatpush.bf16.msra.mxu0 %v7775
        %8265 = vmatpush.bf16.msra.mxu0 %v7771
        %8266 = vmatpush.bf16.msra.mxu0 %v7767
        %8267 = vmatpush.bf16.msra.mxu0 %v7763
        %8268 = vmatpush.bf16.msra.mxu0 %v7759
        %8269 = vmatpush.bf16.msra.mxu0 %v7755
        %8270 = vmatpush.bf16.msra.mxu0 %v7751
        %8271 = vmatmul.bf16.gmra.mxu0 %v6653
        %v8272 = vpop.f32.mrf.mxu0
        %v8273 = vadd.f32 %v6975, %v8272
        %v8274 = vpop.f32.mrf.mxu0
        %v8275 = vadd.f32 %v6975, %v8274
        %8276 = vmatmul.bf16.gmra.mxu0 %v6661
        %v8277 = vpop.f32.mrf.mxu0
        %v8278 = vadd.f32 %v6975, %v8277
        %v8279 = vpop.f32.mrf.mxu0
        %v8280 = vadd.f32 %v6975, %v8279
        %8281 = vmatmul.bf16.gmra.mxu0 %v6669
        %v8282 = vpop.f32.mrf.mxu0
        %v8283 = vadd.f32 %v6975, %v8282
        %v8284 = vpop.f32.mrf.mxu0
        %v8285 = vadd.f32 %v6975, %v8284
        %8286 = vmatmul.bf16.gmra.mxu0 %v6677
        %v8287 = vpop.f32.mrf.mxu0
        %v8288 = vadd.f32 %v6975, %v8287
        %v8289 = vpop.f32.mrf.mxu0
        %v8290 = vadd.f32 %v6975, %v8289
        %8291 = vmatmul.bf16.gmra.mxu0 %v6685
        %v8292 = vpop.f32.mrf.mxu0
        %v8293 = vadd.f32 %v6975, %v8292
        %v8294 = vpop.f32.mrf.mxu0
        %v8295 = vadd.f32 %v6975, %v8294
        %8296 = vmatmul.bf16.gmra.mxu0 %v6693
        %v8297 = vpop.f32.mrf.mxu0
        %v8298 = vadd.f32 %v6975, %v8297
        %v8299 = vpop.f32.mrf.mxu0
        %v8300 = vadd.f32 %v6975, %v8299
        %8301 = vmatmul.bf16.gmra.mxu0 %v6701
        %v8302 = vpop.f32.mrf.mxu0
        %v8303 = vadd.f32 %v6975, %v8302
        %v8304 = vpop.f32.mrf.mxu0
        %v8305 = vadd.f32 %v6975, %v8304
        %8306 = vmatmul.bf16.gmra.mxu0 %v6709
        %v8307 = vpop.f32.mrf.mxu0
        %v8308 = vadd.f32 %v6975, %v8307
        %v8309 = vpop.f32.mrf.mxu0
        %v8310 = vadd.f32 %v6975, %v8309
        %8311 = vdwg.mxu0
        %8312 = vmatpush.bf16.msra.mxu0 %v7811
        %8313 = vmatpush.bf16.msra.mxu0 %v7807
        %8314 = vmatpush.bf16.msra.mxu0 %v7803
        %8315 = vmatpush.bf16.msra.mxu0 %v7799
        %8316 = vmatpush.bf16.msra.mxu0 %v7795
        %8317 = vmatpush.bf16.msra.mxu0 %v7791
        %8318 = vmatpush.bf16.msra.mxu0 %v7787
        %8319 = vmatpush.bf16.msra.mxu0 %v7783
        %8320 = vmatmul.bf16.gmra.mxu0 %v6654
        %v8321 = vpop.f32.mrf.mxu0
        %v8322 = vadd.f32 %v8273, %v8321
        %v8323 = vpop.f32.mrf.mxu0
        %v8324 = vadd.f32 %v8275, %v8323
        %8325 = vmatmul.bf16.gmra.mxu0 %v6662
        %v8326 = vpop.f32.mrf.mxu0
        %v8327 = vadd.f32 %v8278, %v8326
        %v8328 = vpop.f32.mrf.mxu0
        %v8329 = vadd.f32 %v8280, %v8328
        %8330 = vmatmul.bf16.gmra.mxu0 %v6670
        %v8331 = vpop.f32.mrf.mxu0
        %v8332 = vadd.f32 %v8283, %v8331
        %v8333 = vpop.f32.mrf.mxu0
        %v8334 = vadd.f32 %v8285, %v8333
        %8335 = vmatmul.bf16.gmra.mxu0 %v6678
        %v8336 = vpop.f32.mrf.mxu0
        %v8337 = vadd.f32 %v8288, %v8336
        %v8338 = vpop.f32.mrf.mxu0
        %v8339 = vadd.f32 %v8290, %v8338
        %8340 = vmatmul.bf16.gmra.mxu0 %v6686
        %v8341 = vpop.f32.mrf.mxu0
        %v8342 = vadd.f32 %v8293, %v8341
        %v8343 = vpop.f32.mrf.mxu0
        %v8344 = vadd.f32 %v8295, %v8343
        %8345 = vmatmul.bf16.gmra.mxu0 %v6694
        %v8346 = vpop.f32.mrf.mxu0
        %v8347 = vadd.f32 %v8298, %v8346
        %v8348 = vpop.f32.mrf.mxu0
        %v8349 = vadd.f32 %v8300, %v8348
        %8350 = vmatmul.bf16.gmra.mxu0 %v6702
        %v8351 = vpop.f32.mrf.mxu0
        %v8352 = vadd.f32 %v8303, %v8351
        %v8353 = vpop.f32.mrf.mxu0
        %v8354 = vadd.f32 %v8305, %v8353
        %8355 = vmatmul.bf16.gmra.mxu0 %v6710
        %v8356 = vpop.f32.mrf.mxu0
        %v8357 = vadd.f32 %v8308, %v8356
        %v8358 = vpop.f32.mrf.mxu0
        %v8359 = vadd.f32 %v8310, %v8358
        %8360 = vdwg.mxu0
        %8361 = vmatpush.bf16.msra.mxu0 %v7843
        %8362 = vmatpush.bf16.msra.mxu0 %v7839
        %8363 = vmatpush.bf16.msra.mxu0 %v7835
        %8364 = vmatpush.bf16.msra.mxu0 %v7831
        %8365 = vmatpush.bf16.msra.mxu0 %v7827
        %8366 = vmatpush.bf16.msra.mxu0 %v7823
        %8367 = vmatpush.bf16.msra.mxu0 %v7819
        %8368 = vmatpush.bf16.msra.mxu0 %v7815
        %8369 = vmatmul.bf16.gmra.mxu0 %v6655
        %v8370 = vpop.f32.mrf.mxu0
        %v8371 = vadd.f32 %v8322, %v8370
        %v8372 = vpop.f32.mrf.mxu0
        %v8373 = vadd.f32 %v8324, %v8372
        %8374 = vmatmul.bf16.gmra.mxu0 %v6663
        %v8375 = vpop.f32.mrf.mxu0
        %v8376 = vadd.f32 %v8327, %v8375
        %v8377 = vpop.f32.mrf.mxu0
        %v8378 = vadd.f32 %v8329, %v8377
        %8379 = vmatmul.bf16.gmra.mxu0 %v6671
        %v8380 = vpop.f32.mrf.mxu0
        %v8381 = vadd.f32 %v8332, %v8380
        %v8382 = vpop.f32.mrf.mxu0
        %v8383 = vadd.f32 %v8334, %v8382
        %8384 = vmatmul.bf16.gmra.mxu0 %v6679
        %v8385 = vpop.f32.mrf.mxu0
        %v8386 = vadd.f32 %v8337, %v8385
        %v8387 = vpop.f32.mrf.mxu0
        %v8388 = vadd.f32 %v8339, %v8387
        %8389 = vmatmul.bf16.gmra.mxu0 %v6687
        %v8390 = vpop.f32.mrf.mxu0
        %v8391 = vadd.f32 %v8342, %v8390
        %v8392 = vpop.f32.mrf.mxu0
        %v8393 = vadd.f32 %v8344, %v8392
        %8394 = vmatmul.bf16.gmra.mxu0 %v6695
        %v8395 = vpop.f32.mrf.mxu0
        %v8396 = vadd.f32 %v8347, %v8395
        %v8397 = vpop.f32.mrf.mxu0
        %v8398 = vadd.f32 %v8349, %v8397
        %8399 = vmatmul.bf16.gmra.mxu0 %v6703
        %v8400 = vpop.f32.mrf.mxu0
        %v8401 = vadd.f32 %v8352, %v8400
        %v8402 = vpop.f32.mrf.mxu0
        %v8403 = vadd.f32 %v8354, %v8402
        %8404 = vmatmul.bf16.gmra.mxu0 %v6711
        %v8405 = vpop.f32.mrf.mxu0
        %v8406 = vadd.f32 %v8357, %v8405
        %v8407 = vpop.f32.mrf.mxu0
        %v8408 = vadd.f32 %v8359, %v8407
        %8409 = vdwg.mxu0
        %8410 = vmatpush.bf16.msra.mxu0 %v7875
        %8411 = vmatpush.bf16.msra.mxu0 %v7871
        %8412 = vmatpush.bf16.msra.mxu0 %v7867
        %8413 = vmatpush.bf16.msra.mxu0 %v7863
        %8414 = vmatpush.bf16.msra.mxu0 %v7859
        %8415 = vmatpush.bf16.msra.mxu0 %v7855
        %8416 = vmatpush.bf16.msra.mxu0 %v7851
        %8417 = vmatpush.bf16.msra.mxu0 %v7847
        %8418 = vmatmul.bf16.gmra.mxu0 %v6656
        %v8419 = vpop.f32.mrf.mxu0
        %v8420 = vadd.f32 %v8371, %v8419
        %v8421 = vpop.f32.mrf.mxu0
        %v8422 = vadd.f32 %v8373, %v8421
        %8423 = vmatmul.bf16.gmra.mxu0 %v6664
        %v8424 = vpop.f32.mrf.mxu0
        %v8425 = vadd.f32 %v8376, %v8424
        %v8426 = vpop.f32.mrf.mxu0
        %v8427 = vadd.f32 %v8378, %v8426
        %8428 = vmatmul.bf16.gmra.mxu0 %v6672
        %v8429 = vpop.f32.mrf.mxu0
        %v8430 = vadd.f32 %v8381, %v8429
        %v8431 = vpop.f32.mrf.mxu0
        %v8432 = vadd.f32 %v8383, %v8431
        %8433 = vmatmul.bf16.gmra.mxu0 %v6680
        %v8434 = vpop.f32.mrf.mxu0
        %v8435 = vadd.f32 %v8386, %v8434
        %v8436 = vpop.f32.mrf.mxu0
        %v8437 = vadd.f32 %v8388, %v8436
        %8438 = vmatmul.bf16.gmra.mxu0 %v6688
        %v8439 = vpop.f32.mrf.mxu0
        %v8440 = vadd.f32 %v8391, %v8439
        %v8441 = vpop.f32.mrf.mxu0
        %v8442 = vadd.f32 %v8393, %v8441
        %8443 = vmatmul.bf16.gmra.mxu0 %v6696
        %v8444 = vpop.f32.mrf.mxu0
        %v8445 = vadd.f32 %v8396, %v8444
        %v8446 = vpop.f32.mrf.mxu0
        %v8447 = vadd.f32 %v8398, %v8446
        %8448 = vmatmul.bf16.gmra.mxu0 %v6704
        %v8449 = vpop.f32.mrf.mxu0
        %v8450 = vadd.f32 %v8401, %v8449
        %v8451 = vpop.f32.mrf.mxu0
        %v8452 = vadd.f32 %v8403, %v8451
        %8453 = vmatmul.bf16.gmra.mxu0 %v6712
        %v8454 = vpop.f32.mrf.mxu0
        %v8455 = vadd.f32 %v8406, %v8454
        %v8456 = vpop.f32.mrf.mxu0
        %v8457 = vadd.f32 %v8408, %v8456
        %8458 = vdwg.mxu0
        %8459 = vmatpush.bf16.msra.mxu0 %v7907
        %8460 = vmatpush.bf16.msra.mxu0 %v7903
        %8461 = vmatpush.bf16.msra.mxu0 %v7899
        %8462 = vmatpush.bf16.msra.mxu0 %v7895
        %8463 = vmatpush.bf16.msra.mxu0 %v7891
        %8464 = vmatpush.bf16.msra.mxu0 %v7887
        %8465 = vmatpush.bf16.msra.mxu0 %v7883
        %8466 = vmatpush.bf16.msra.mxu0 %v7879
        %8467 = vmatmul.bf16.gmra.mxu0 %v6657
        %v8468 = vpop.f32.mrf.mxu0
        %v8469 = vadd.f32 %v8420, %v8468
        %v8470 = vpop.f32.mrf.mxu0
        %v8471 = vadd.f32 %v8422, %v8470
        %8472 = vmatmul.bf16.gmra.mxu0 %v6665
        %v8473 = vpop.f32.mrf.mxu0
        %v8474 = vadd.f32 %v8425, %v8473
        %v8475 = vpop.f32.mrf.mxu0
        %v8476 = vadd.f32 %v8427, %v8475
        %8477 = vmatmul.bf16.gmra.mxu0 %v6673
        %v8478 = vpop.f32.mrf.mxu0
        %v8479 = vadd.f32 %v8430, %v8478
        %v8480 = vpop.f32.mrf.mxu0
        %v8481 = vadd.f32 %v8432, %v8480
        %8482 = vmatmul.bf16.gmra.mxu0 %v6681
        %v8483 = vpop.f32.mrf.mxu0
        %v8484 = vadd.f32 %v8435, %v8483
        %v8485 = vpop.f32.mrf.mxu0
        %v8486 = vadd.f32 %v8437, %v8485
        %8487 = vmatmul.bf16.gmra.mxu0 %v6689
        %v8488 = vpop.f32.mrf.mxu0
        %v8489 = vadd.f32 %v8440, %v8488
        %v8490 = vpop.f32.mrf.mxu0
        %v8491 = vadd.f32 %v8442, %v8490
        %8492 = vmatmul.bf16.gmra.mxu0 %v6697
        %v8493 = vpop.f32.mrf.mxu0
        %v8494 = vadd.f32 %v8445, %v8493
        %v8495 = vpop.f32.mrf.mxu0
        %v8496 = vadd.f32 %v8447, %v8495
        %8497 = vmatmul.bf16.gmra.mxu0 %v6705
        %v8498 = vpop.f32.mrf.mxu0
        %v8499 = vadd.f32 %v8450, %v8498
        %v8500 = vpop.f32.mrf.mxu0
        %v8501 = vadd.f32 %v8452, %v8500
        %8502 = vmatmul.bf16.gmra.mxu0 %v6713
        %v8503 = vpop.f32.mrf.mxu0
        %v8504 = vadd.f32 %v8455, %v8503
        %v8505 = vpop.f32.mrf.mxu0
        %v8506 = vadd.f32 %v8457, %v8505
        %8507 = vdwg.mxu0
        %8508 = vmatpush.bf16.msra.mxu0 %v7939
        %8509 = vmatpush.bf16.msra.mxu0 %v7935
        %8510 = vmatpush.bf16.msra.mxu0 %v7931
        %8511 = vmatpush.bf16.msra.mxu0 %v7927
        %8512 = vmatpush.bf16.msra.mxu0 %v7923
        %8513 = vmatpush.bf16.msra.mxu0 %v7919
        %8514 = vmatpush.bf16.msra.mxu0 %v7915
        %8515 = vmatpush.bf16.msra.mxu0 %v7911
        %8516 = vmatmul.bf16.gmra.mxu0 %v6658
        %v8517 = vpop.f32.mrf.mxu0
        %v8518 = vadd.f32 %v8469, %v8517
        %v8519 = vpop.f32.mrf.mxu0
        %v8520 = vadd.f32 %v8471, %v8519
        %8521 = vmatmul.bf16.gmra.mxu0 %v6666
        %v8522 = vpop.f32.mrf.mxu0
        %v8523 = vadd.f32 %v8474, %v8522
        %v8524 = vpop.f32.mrf.mxu0
        %v8525 = vadd.f32 %v8476, %v8524
        %8526 = vmatmul.bf16.gmra.mxu0 %v6674
        %v8527 = vpop.f32.mrf.mxu0
        %v8528 = vadd.f32 %v8479, %v8527
        %v8529 = vpop.f32.mrf.mxu0
        %v8530 = vadd.f32 %v8481, %v8529
        %8531 = vmatmul.bf16.gmra.mxu0 %v6682
        %v8532 = vpop.f32.mrf.mxu0
        %v8533 = vadd.f32 %v8484, %v8532
        %v8534 = vpop.f32.mrf.mxu0
        %v8535 = vadd.f32 %v8486, %v8534
        %8536 = vmatmul.bf16.gmra.mxu0 %v6690
        %v8537 = vpop.f32.mrf.mxu0
        %v8538 = vadd.f32 %v8489, %v8537
        %v8539 = vpop.f32.mrf.mxu0
        %v8540 = vadd.f32 %v8491, %v8539
        %8541 = vmatmul.bf16.gmra.mxu0 %v6698
        %v8542 = vpop.f32.mrf.mxu0
        %v8543 = vadd.f32 %v8494, %v8542
        %v8544 = vpop.f32.mrf.mxu0
        %v8545 = vadd.f32 %v8496, %v8544
        %8546 = vmatmul.bf16.gmra.mxu0 %v6706
        %v8547 = vpop.f32.mrf.mxu0
        %v8548 = vadd.f32 %v8499, %v8547
        %v8549 = vpop.f32.mrf.mxu0
        %v8550 = vadd.f32 %v8501, %v8549
        %8551 = vmatmul.bf16.gmra.mxu0 %v6714
        %v8552 = vpop.f32.mrf.mxu0
        %v8553 = vadd.f32 %v8504, %v8552
        %v8554 = vpop.f32.mrf.mxu0
        %v8555 = vadd.f32 %v8506, %v8554
        %8556 = vdwg.mxu0
        %8557 = vmatpush.bf16.msra.mxu0 %v7971
        %8558 = vmatpush.bf16.msra.mxu0 %v7967
        %8559 = vmatpush.bf16.msra.mxu0 %v7963
        %8560 = vmatpush.bf16.msra.mxu0 %v7959
        %8561 = vmatpush.bf16.msra.mxu0 %v7955
        %8562 = vmatpush.bf16.msra.mxu0 %v7951
        %8563 = vmatpush.bf16.msra.mxu0 %v7947
        %8564 = vmatpush.bf16.msra.mxu0 %v7943
        %8565 = vmatmul.bf16.gmra.mxu0 %v6659
        %v8566 = vpop.f32.mrf.mxu0
        %v8567 = vadd.f32 %v8518, %v8566
        %v8568 = vpop.f32.mrf.mxu0
        %v8569 = vadd.f32 %v8520, %v8568
        %8570 = vmatmul.bf16.gmra.mxu0 %v6667
        %v8571 = vpop.f32.mrf.mxu0
        %v8572 = vadd.f32 %v8523, %v8571
        %v8573 = vpop.f32.mrf.mxu0
        %v8574 = vadd.f32 %v8525, %v8573
        %8575 = vmatmul.bf16.gmra.mxu0 %v6675
        %v8576 = vpop.f32.mrf.mxu0
        %v8577 = vadd.f32 %v8528, %v8576
        %v8578 = vpop.f32.mrf.mxu0
        %v8579 = vadd.f32 %v8530, %v8578
        %8580 = vmatmul.bf16.gmra.mxu0 %v6683
        %v8581 = vpop.f32.mrf.mxu0
        %v8582 = vadd.f32 %v8533, %v8581
        %v8583 = vpop.f32.mrf.mxu0
        %v8584 = vadd.f32 %v8535, %v8583
        %8585 = vmatmul.bf16.gmra.mxu0 %v6691
        %v8586 = vpop.f32.mrf.mxu0
        %v8587 = vadd.f32 %v8538, %v8586
        %v8588 = vpop.f32.mrf.mxu0
        %v8589 = vadd.f32 %v8540, %v8588
        %8590 = vmatmul.bf16.gmra.mxu0 %v6699
        %v8591 = vpop.f32.mrf.mxu0
        %v8592 = vadd.f32 %v8543, %v8591
        %v8593 = vpop.f32.mrf.mxu0
        %v8594 = vadd.f32 %v8545, %v8593
        %8595 = vmatmul.bf16.gmra.mxu0 %v6707
        %v8596 = vpop.f32.mrf.mxu0
        %v8597 = vadd.f32 %v8548, %v8596
        %v8598 = vpop.f32.mrf.mxu0
        %v8599 = vadd.f32 %v8550, %v8598
        %8600 = vmatmul.bf16.gmra.mxu0 %v6715
        %v8601 = vpop.f32.mrf.mxu0
        %v8602 = vadd.f32 %v8553, %v8601
        %v8603 = vpop.f32.mrf.mxu0
        %v8604 = vadd.f32 %v8555, %v8603
        %8605 = vdwg.mxu0
        %8606 = vmatpush.bf16.msra.mxu0 %v8003
        %8607 = vmatpush.bf16.msra.mxu0 %v7999
        %8608 = vmatpush.bf16.msra.mxu0 %v7995
        %8609 = vmatpush.bf16.msra.mxu0 %v7991
        %8610 = vmatpush.bf16.msra.mxu0 %v7987
        %8611 = vmatpush.bf16.msra.mxu0 %v7983
        %8612 = vmatpush.bf16.msra.mxu0 %v7979
        %8613 = vmatpush.bf16.msra.mxu0 %v7975
        %8614 = vmatmul.bf16.gmra.mxu0 %v6660
        %v8615 = vpop.f32.mrf.mxu0
        %v8616 = vadd.f32 %v8567, %v8615
        %v8617 = vpop.f32.mrf.mxu0
        %v8618 = vadd.f32 %v8569, %v8617
        %8619 = vmatmul.bf16.gmra.mxu0 %v6668
        %v8620 = vpop.f32.mrf.mxu0
        %v8621 = vadd.f32 %v8572, %v8620
        %v8622 = vpop.f32.mrf.mxu0
        %v8623 = vadd.f32 %v8574, %v8622
        %8624 = vmatmul.bf16.gmra.mxu0 %v6676
        %v8625 = vpop.f32.mrf.mxu0
        %v8626 = vadd.f32 %v8577, %v8625
        %v8627 = vpop.f32.mrf.mxu0
        %v8628 = vadd.f32 %v8579, %v8627
        %8629 = vmatmul.bf16.gmra.mxu0 %v6684
        %v8630 = vpop.f32.mrf.mxu0
        %v8631 = vadd.f32 %v8582, %v8630
        %v8632 = vpop.f32.mrf.mxu0
        %v8633 = vadd.f32 %v8584, %v8632
        %8634 = vmatmul.bf16.gmra.mxu0 %v6692
        %v8635 = vpop.f32.mrf.mxu0
        %v8636 = vadd.f32 %v8587, %v8635
        %v8637 = vpop.f32.mrf.mxu0
        %v8638 = vadd.f32 %v8589, %v8637
        %8639 = vmatmul.bf16.gmra.mxu0 %v6700
        %v8640 = vpop.f32.mrf.mxu0
        %v8641 = vadd.f32 %v8592, %v8640
        %v8642 = vpop.f32.mrf.mxu0
        %v8643 = vadd.f32 %v8594, %v8642
        %8644 = vmatmul.bf16.gmra.mxu0 %v6708
        %v8645 = vpop.f32.mrf.mxu0
        %v8646 = vadd.f32 %v8597, %v8645
        %v8647 = vpop.f32.mrf.mxu0
        %v8648 = vadd.f32 %v8599, %v8647
        %8649 = vmatmul.bf16.gmra.mxu0 %v6716
        %v8650 = vpop.f32.mrf.mxu0
        %v8651 = vadd.f32 %v8602, %v8650
        %v8652 = vpop.f32.mrf.mxu0
        %v8653 = vadd.f32 %v8604, %v8652
        %8654 = vdwg.mxu0
        %8655 = vmatpush.bf16.msra.mxu0 %v7780
        %8656 = vmatpush.bf16.msra.mxu0 %v7776
        %8657 = vmatpush.bf16.msra.mxu0 %v7772
        %8658 = vmatpush.bf16.msra.mxu0 %v7768
        %8659 = vmatpush.bf16.msra.mxu0 %v7764
        %8660 = vmatpush.bf16.msra.mxu0 %v7760
        %8661 = vmatpush.bf16.msra.mxu0 %v7756
        %8662 = vmatpush.bf16.msra.mxu0 %v7752
        %8663 = vmatmul.bf16.gmra.mxu0 %v6653
        %v8664 = vpop.f32.mrf.mxu0
        %v8665 = vadd.f32 %v6976, %v8664
        %v8666 = vpop.f32.mrf.mxu0
        %v8667 = vadd.f32 %v6976, %v8666
        %8668 = vmatmul.bf16.gmra.mxu0 %v6661
        %v8669 = vpop.f32.mrf.mxu0
        %v8670 = vadd.f32 %v6976, %v8669
        %v8671 = vpop.f32.mrf.mxu0
        %v8672 = vadd.f32 %v6976, %v8671
        %8673 = vmatmul.bf16.gmra.mxu0 %v6669
        %v8674 = vpop.f32.mrf.mxu0
        %v8675 = vadd.f32 %v6976, %v8674
        %v8676 = vpop.f32.mrf.mxu0
        %v8677 = vadd.f32 %v6976, %v8676
        %8678 = vmatmul.bf16.gmra.mxu0 %v6677
        %v8679 = vpop.f32.mrf.mxu0
        %v8680 = vadd.f32 %v6976, %v8679
        %v8681 = vpop.f32.mrf.mxu0
        %v8682 = vadd.f32 %v6976, %v8681
        %8683 = vmatmul.bf16.gmra.mxu0 %v6685
        %v8684 = vpop.f32.mrf.mxu0
        %v8685 = vadd.f32 %v6976, %v8684
        %v8686 = vpop.f32.mrf.mxu0
        %v8687 = vadd.f32 %v6976, %v8686
        %8688 = vmatmul.bf16.gmra.mxu0 %v6693
        %v8689 = vpop.f32.mrf.mxu0
        %v8690 = vadd.f32 %v6976, %v8689
        %v8691 = vpop.f32.mrf.mxu0
        %v8692 = vadd.f32 %v6976, %v8691
        %8693 = vmatmul.bf16.gmra.mxu0 %v6701
        %v8694 = vpop.f32.mrf.mxu0
        %v8695 = vadd.f32 %v6976, %v8694
        %v8696 = vpop.f32.mrf.mxu0
        %v8697 = vadd.f32 %v6976, %v8696
        %8698 = vmatmul.bf16.gmra.mxu0 %v6709
        %v8699 = vpop.f32.mrf.mxu0
        %v8700 = vadd.f32 %v6976, %v8699
        %v8701 = vpop.f32.mrf.mxu0
        %v8702 = vadd.f32 %v6976, %v8701
        %8703 = vdwg.mxu0
        %8704 = vmatpush.bf16.msra.mxu0 %v7812
        %8705 = vmatpush.bf16.msra.mxu0 %v7808
        %8706 = vmatpush.bf16.msra.mxu0 %v7804
        %8707 = vmatpush.bf16.msra.mxu0 %v7800
        %8708 = vmatpush.bf16.msra.mxu0 %v7796
        %8709 = vmatpush.bf16.msra.mxu0 %v7792
        %8710 = vmatpush.bf16.msra.mxu0 %v7788
        %8711 = vmatpush.bf16.msra.mxu0 %v7784
        %8712 = vmatmul.bf16.gmra.mxu0 %v6654
        %v8713 = vpop.f32.mrf.mxu0
        %v8714 = vadd.f32 %v8665, %v8713
        %v8715 = vpop.f32.mrf.mxu0
        %v8716 = vadd.f32 %v8667, %v8715
        %8717 = vmatmul.bf16.gmra.mxu0 %v6662
        %v8718 = vpop.f32.mrf.mxu0
        %v8719 = vadd.f32 %v8670, %v8718
        %v8720 = vpop.f32.mrf.mxu0
        %v8721 = vadd.f32 %v8672, %v8720
        %8722 = vmatmul.bf16.gmra.mxu0 %v6670
        %v8723 = vpop.f32.mrf.mxu0
        %v8724 = vadd.f32 %v8675, %v8723
        %v8725 = vpop.f32.mrf.mxu0
        %v8726 = vadd.f32 %v8677, %v8725
        %8727 = vmatmul.bf16.gmra.mxu0 %v6678
        %v8728 = vpop.f32.mrf.mxu0
        %v8729 = vadd.f32 %v8680, %v8728
        %v8730 = vpop.f32.mrf.mxu0
        %v8731 = vadd.f32 %v8682, %v8730
        %8732 = vmatmul.bf16.gmra.mxu0 %v6686
        %v8733 = vpop.f32.mrf.mxu0
        %v8734 = vadd.f32 %v8685, %v8733
        %v8735 = vpop.f32.mrf.mxu0
        %v8736 = vadd.f32 %v8687, %v8735
        %8737 = vmatmul.bf16.gmra.mxu0 %v6694
        %v8738 = vpop.f32.mrf.mxu0
        %v8739 = vadd.f32 %v8690, %v8738
        %v8740 = vpop.f32.mrf.mxu0
        %v8741 = vadd.f32 %v8692, %v8740
        %8742 = vmatmul.bf16.gmra.mxu0 %v6702
        %v8743 = vpop.f32.mrf.mxu0
        %v8744 = vadd.f32 %v8695, %v8743
        %v8745 = vpop.f32.mrf.mxu0
        %v8746 = vadd.f32 %v8697, %v8745
        %8747 = vmatmul.bf16.gmra.mxu0 %v6710
        %v8748 = vpop.f32.mrf.mxu0
        %v8749 = vadd.f32 %v8700, %v8748
        %v8750 = vpop.f32.mrf.mxu0
        %v8751 = vadd.f32 %v8702, %v8750
        %8752 = vdwg.mxu0
        %8753 = vmatpush.bf16.msra.mxu0 %v7844
        %8754 = vmatpush.bf16.msra.mxu0 %v7840
        %8755 = vmatpush.bf16.msra.mxu0 %v7836
        %8756 = vmatpush.bf16.msra.mxu0 %v7832
        %8757 = vmatpush.bf16.msra.mxu0 %v7828
        %8758 = vmatpush.bf16.msra.mxu0 %v7824
        %8759 = vmatpush.bf16.msra.mxu0 %v7820
        %8760 = vmatpush.bf16.msra.mxu0 %v7816
        %8761 = vmatmul.bf16.gmra.mxu0 %v6655
        %v8762 = vpop.f32.mrf.mxu0
        %v8763 = vadd.f32 %v8714, %v8762
        %v8764 = vpop.f32.mrf.mxu0
        %v8765 = vadd.f32 %v8716, %v8764
        %8766 = vmatmul.bf16.gmra.mxu0 %v6663
        %v8767 = vpop.f32.mrf.mxu0
        %v8768 = vadd.f32 %v8719, %v8767
        %v8769 = vpop.f32.mrf.mxu0
        %v8770 = vadd.f32 %v8721, %v8769
        %8771 = vmatmul.bf16.gmra.mxu0 %v6671
        %v8772 = vpop.f32.mrf.mxu0
        %v8773 = vadd.f32 %v8724, %v8772
        %v8774 = vpop.f32.mrf.mxu0
        %v8775 = vadd.f32 %v8726, %v8774
        %8776 = vmatmul.bf16.gmra.mxu0 %v6679
        %v8777 = vpop.f32.mrf.mxu0
        %v8778 = vadd.f32 %v8729, %v8777
        %v8779 = vpop.f32.mrf.mxu0
        %v8780 = vadd.f32 %v8731, %v8779
        %8781 = vmatmul.bf16.gmra.mxu0 %v6687
        %v8782 = vpop.f32.mrf.mxu0
        %v8783 = vadd.f32 %v8734, %v8782
        %v8784 = vpop.f32.mrf.mxu0
        %v8785 = vadd.f32 %v8736, %v8784
        %8786 = vmatmul.bf16.gmra.mxu0 %v6695
        %v8787 = vpop.f32.mrf.mxu0
        %v8788 = vadd.f32 %v8739, %v8787
        %v8789 = vpop.f32.mrf.mxu0
        %v8790 = vadd.f32 %v8741, %v8789
        %8791 = vmatmul.bf16.gmra.mxu0 %v6703
        %v8792 = vpop.f32.mrf.mxu0
        %v8793 = vadd.f32 %v8744, %v8792
        %v8794 = vpop.f32.mrf.mxu0
        %v8795 = vadd.f32 %v8746, %v8794
        %8796 = vmatmul.bf16.gmra.mxu0 %v6711
        %v8797 = vpop.f32.mrf.mxu0
        %v8798 = vadd.f32 %v8749, %v8797
        %v8799 = vpop.f32.mrf.mxu0
        %v8800 = vadd.f32 %v8751, %v8799
        %8801 = vdwg.mxu0
        %8802 = vmatpush.bf16.msra.mxu0 %v7876
        %8803 = vmatpush.bf16.msra.mxu0 %v7872
        %8804 = vmatpush.bf16.msra.mxu0 %v7868
        %8805 = vmatpush.bf16.msra.mxu0 %v7864
        %8806 = vmatpush.bf16.msra.mxu0 %v7860
        %8807 = vmatpush.bf16.msra.mxu0 %v7856
        %8808 = vmatpush.bf16.msra.mxu0 %v7852
        %8809 = vmatpush.bf16.msra.mxu0 %v7848
        %8810 = vmatmul.bf16.gmra.mxu0 %v6656
        %v8811 = vpop.f32.mrf.mxu0
        %v8812 = vadd.f32 %v8763, %v8811
        %v8813 = vpop.f32.mrf.mxu0
        %v8814 = vadd.f32 %v8765, %v8813
        %8815 = vmatmul.bf16.gmra.mxu0 %v6664
        %v8816 = vpop.f32.mrf.mxu0
        %v8817 = vadd.f32 %v8768, %v8816
        %v8818 = vpop.f32.mrf.mxu0
        %v8819 = vadd.f32 %v8770, %v8818
        %8820 = vmatmul.bf16.gmra.mxu0 %v6672
        %v8821 = vpop.f32.mrf.mxu0
        %v8822 = vadd.f32 %v8773, %v8821
        %v8823 = vpop.f32.mrf.mxu0
        %v8824 = vadd.f32 %v8775, %v8823
        %8825 = vmatmul.bf16.gmra.mxu0 %v6680
        %v8826 = vpop.f32.mrf.mxu0
        %v8827 = vadd.f32 %v8778, %v8826
        %v8828 = vpop.f32.mrf.mxu0
        %v8829 = vadd.f32 %v8780, %v8828
        %8830 = vmatmul.bf16.gmra.mxu0 %v6688
        %v8831 = vpop.f32.mrf.mxu0
        %v8832 = vadd.f32 %v8783, %v8831
        %v8833 = vpop.f32.mrf.mxu0
        %v8834 = vadd.f32 %v8785, %v8833
        %8835 = vmatmul.bf16.gmra.mxu0 %v6696
        %v8836 = vpop.f32.mrf.mxu0
        %v8837 = vadd.f32 %v8788, %v8836
        %v8838 = vpop.f32.mrf.mxu0
        %v8839 = vadd.f32 %v8790, %v8838
        %8840 = vmatmul.bf16.gmra.mxu0 %v6704
        %v8841 = vpop.f32.mrf.mxu0
        %v8842 = vadd.f32 %v8793, %v8841
        %v8843 = vpop.f32.mrf.mxu0
        %v8844 = vadd.f32 %v8795, %v8843
        %8845 = vmatmul.bf16.gmra.mxu0 %v6712
        %v8846 = vpop.f32.mrf.mxu0
        %v8847 = vadd.f32 %v8798, %v8846
        %v8848 = vpop.f32.mrf.mxu0
        %v8849 = vadd.f32 %v8800, %v8848
        %8850 = vdwg.mxu0
        %8851 = vmatpush.bf16.msra.mxu0 %v7908
        %8852 = vmatpush.bf16.msra.mxu0 %v7904
        %8853 = vmatpush.bf16.msra.mxu0 %v7900
        %8854 = vmatpush.bf16.msra.mxu0 %v7896
        %8855 = vmatpush.bf16.msra.mxu0 %v7892
        %8856 = vmatpush.bf16.msra.mxu0 %v7888
        %8857 = vmatpush.bf16.msra.mxu0 %v7884
        %8858 = vmatpush.bf16.msra.mxu0 %v7880
        %8859 = vmatmul.bf16.gmra.mxu0 %v6657
        %v8860 = vpop.f32.mrf.mxu0
        %v8861 = vadd.f32 %v8812, %v8860
        %v8862 = vpop.f32.mrf.mxu0
        %v8863 = vadd.f32 %v8814, %v8862
        %8864 = vmatmul.bf16.gmra.mxu0 %v6665
        %v8865 = vpop.f32.mrf.mxu0
        %v8866 = vadd.f32 %v8817, %v8865
        %v8867 = vpop.f32.mrf.mxu0
        %v8868 = vadd.f32 %v8819, %v8867
        %8869 = vmatmul.bf16.gmra.mxu0 %v6673
        %v8870 = vpop.f32.mrf.mxu0
        %v8871 = vadd.f32 %v8822, %v8870
        %v8872 = vpop.f32.mrf.mxu0
        %v8873 = vadd.f32 %v8824, %v8872
        %8874 = vmatmul.bf16.gmra.mxu0 %v6681
        %v8875 = vpop.f32.mrf.mxu0
        %v8876 = vadd.f32 %v8827, %v8875
        %v8877 = vpop.f32.mrf.mxu0
        %v8878 = vadd.f32 %v8829, %v8877
        %8879 = vmatmul.bf16.gmra.mxu0 %v6689
        %v8880 = vpop.f32.mrf.mxu0
        %v8881 = vadd.f32 %v8832, %v8880
        %v8882 = vpop.f32.mrf.mxu0
        %v8883 = vadd.f32 %v8834, %v8882
        %8884 = vmatmul.bf16.gmra.mxu0 %v6697
        %v8885 = vpop.f32.mrf.mxu0
        %v8886 = vadd.f32 %v8837, %v8885
        %v8887 = vpop.f32.mrf.mxu0
        %v8888 = vadd.f32 %v8839, %v8887
        %8889 = vmatmul.bf16.gmra.mxu0 %v6705
        %v8890 = vpop.f32.mrf.mxu0
        %v8891 = vadd.f32 %v8842, %v8890
        %v8892 = vpop.f32.mrf.mxu0
        %v8893 = vadd.f32 %v8844, %v8892
        %8894 = vmatmul.bf16.gmra.mxu0 %v6713
        %v8895 = vpop.f32.mrf.mxu0
        %v8896 = vadd.f32 %v8847, %v8895
        %v8897 = vpop.f32.mrf.mxu0
        %v8898 = vadd.f32 %v8849, %v8897
        %8899 = vdwg.mxu0
        %8900 = vmatpush.bf16.msra.mxu0 %v7940
        %8901 = vmatpush.bf16.msra.mxu0 %v7936
        %8902 = vmatpush.bf16.msra.mxu0 %v7932
        %8903 = vmatpush.bf16.msra.mxu0 %v7928
        %8904 = vmatpush.bf16.msra.mxu0 %v7924
        %8905 = vmatpush.bf16.msra.mxu0 %v7920
        %8906 = vmatpush.bf16.msra.mxu0 %v7916
        %8907 = vmatpush.bf16.msra.mxu0 %v7912
        %8908 = vmatmul.bf16.gmra.mxu0 %v6658
        %v8909 = vpop.f32.mrf.mxu0
        %v8910 = vadd.f32 %v8861, %v8909
        %v8911 = vpop.f32.mrf.mxu0
        %v8912 = vadd.f32 %v8863, %v8911
        %8913 = vmatmul.bf16.gmra.mxu0 %v6666
        %v8914 = vpop.f32.mrf.mxu0
        %v8915 = vadd.f32 %v8866, %v8914
        %v8916 = vpop.f32.mrf.mxu0
        %v8917 = vadd.f32 %v8868, %v8916
        %8918 = vmatmul.bf16.gmra.mxu0 %v6674
        %v8919 = vpop.f32.mrf.mxu0
        %v8920 = vadd.f32 %v8871, %v8919
        %v8921 = vpop.f32.mrf.mxu0
        %v8922 = vadd.f32 %v8873, %v8921
        %8923 = vmatmul.bf16.gmra.mxu0 %v6682
        %v8924 = vpop.f32.mrf.mxu0
        %v8925 = vadd.f32 %v8876, %v8924
        %v8926 = vpop.f32.mrf.mxu0
        %v8927 = vadd.f32 %v8878, %v8926
        %8928 = vmatmul.bf16.gmra.mxu0 %v6690
        %v8929 = vpop.f32.mrf.mxu0
        %v8930 = vadd.f32 %v8881, %v8929
        %v8931 = vpop.f32.mrf.mxu0
        %v8932 = vadd.f32 %v8883, %v8931
        %8933 = vmatmul.bf16.gmra.mxu0 %v6698
        %v8934 = vpop.f32.mrf.mxu0
        %v8935 = vadd.f32 %v8886, %v8934
        %v8936 = vpop.f32.mrf.mxu0
        %v8937 = vadd.f32 %v8888, %v8936
        %8938 = vmatmul.bf16.gmra.mxu0 %v6706
        %v8939 = vpop.f32.mrf.mxu0
        %v8940 = vadd.f32 %v8891, %v8939
        %v8941 = vpop.f32.mrf.mxu0
        %v8942 = vadd.f32 %v8893, %v8941
        %8943 = vmatmul.bf16.gmra.mxu0 %v6714
        %v8944 = vpop.f32.mrf.mxu0
        %v8945 = vadd.f32 %v8896, %v8944
        %v8946 = vpop.f32.mrf.mxu0
        %v8947 = vadd.f32 %v8898, %v8946
        %8948 = vdwg.mxu0
        %8949 = vmatpush.bf16.msra.mxu0 %v7972
        %8950 = vmatpush.bf16.msra.mxu0 %v7968
        %8951 = vmatpush.bf16.msra.mxu0 %v7964
        %8952 = vmatpush.bf16.msra.mxu0 %v7960
        %8953 = vmatpush.bf16.msra.mxu0 %v7956
        %8954 = vmatpush.bf16.msra.mxu0 %v7952
        %8955 = vmatpush.bf16.msra.mxu0 %v7948
        %8956 = vmatpush.bf16.msra.mxu0 %v7944
        %8957 = vmatmul.bf16.gmra.mxu0 %v6659
        %v8958 = vpop.f32.mrf.mxu0
        %v8959 = vadd.f32 %v8910, %v8958
        %v8960 = vpop.f32.mrf.mxu0
        %v8961 = vadd.f32 %v8912, %v8960
        %8962 = vmatmul.bf16.gmra.mxu0 %v6667
        %v8963 = vpop.f32.mrf.mxu0
        %v8964 = vadd.f32 %v8915, %v8963
        %v8965 = vpop.f32.mrf.mxu0
        %v8966 = vadd.f32 %v8917, %v8965
        %8967 = vmatmul.bf16.gmra.mxu0 %v6675
        %v8968 = vpop.f32.mrf.mxu0
        %v8969 = vadd.f32 %v8920, %v8968
        %v8970 = vpop.f32.mrf.mxu0
        %v8971 = vadd.f32 %v8922, %v8970
        %8972 = vmatmul.bf16.gmra.mxu0 %v6683
        %v8973 = vpop.f32.mrf.mxu0
        %v8974 = vadd.f32 %v8925, %v8973
        %v8975 = vpop.f32.mrf.mxu0
        %v8976 = vadd.f32 %v8927, %v8975
        %8977 = vmatmul.bf16.gmra.mxu0 %v6691
        %v8978 = vpop.f32.mrf.mxu0
        %v8979 = vadd.f32 %v8930, %v8978
        %v8980 = vpop.f32.mrf.mxu0
        %v8981 = vadd.f32 %v8932, %v8980
        %8982 = vmatmul.bf16.gmra.mxu0 %v6699
        %v8983 = vpop.f32.mrf.mxu0
        %v8984 = vadd.f32 %v8935, %v8983
        %v8985 = vpop.f32.mrf.mxu0
        %v8986 = vadd.f32 %v8937, %v8985
        %8987 = vmatmul.bf16.gmra.mxu0 %v6707
        %v8988 = vpop.f32.mrf.mxu0
        %v8989 = vadd.f32 %v8940, %v8988
        %v8990 = vpop.f32.mrf.mxu0
        %v8991 = vadd.f32 %v8942, %v8990
        %8992 = vmatmul.bf16.gmra.mxu0 %v6715
        %v8993 = vpop.f32.mrf.mxu0
        %v8994 = vadd.f32 %v8945, %v8993
        %v8995 = vpop.f32.mrf.mxu0
        %v8996 = vadd.f32 %v8947, %v8995
        %8997 = vdwg.mxu0
        %8998 = vmatpush.bf16.msra.mxu0 %v8004
        %8999 = vmatpush.bf16.msra.mxu0 %v8000
        %9000 = vmatpush.bf16.msra.mxu0 %v7996
        %9001 = vmatpush.bf16.msra.mxu0 %v7992
        %9002 = vmatpush.bf16.msra.mxu0 %v7988
        %9003 = vmatpush.bf16.msra.mxu0 %v7984
        %9004 = vmatpush.bf16.msra.mxu0 %v7980
        %9005 = vmatpush.bf16.msra.mxu0 %v7976
        %9006 = vmatmul.bf16.gmra.mxu0 %v6660
        %v9007 = vpop.f32.mrf.mxu0
        %v9008 = vadd.f32 %v8959, %v9007
        %v9009 = vpop.f32.mrf.mxu0
        %v9010 = vadd.f32 %v8961, %v9009
        %9011 = vmatmul.bf16.gmra.mxu0 %v6668
        %v9012 = vpop.f32.mrf.mxu0
        %v9013 = vadd.f32 %v8964, %v9012
        %v9014 = vpop.f32.mrf.mxu0
        %v9015 = vadd.f32 %v8966, %v9014
        %9016 = vmatmul.bf16.gmra.mxu0 %v6676
        %v9017 = vpop.f32.mrf.mxu0
        %v9018 = vadd.f32 %v8969, %v9017
        %v9019 = vpop.f32.mrf.mxu0
        %v9020 = vadd.f32 %v8971, %v9019
        %9021 = vmatmul.bf16.gmra.mxu0 %v6684
        %v9022 = vpop.f32.mrf.mxu0
        %v9023 = vadd.f32 %v8974, %v9022
        %v9024 = vpop.f32.mrf.mxu0
        %v9025 = vadd.f32 %v8976, %v9024
        %9026 = vmatmul.bf16.gmra.mxu0 %v6692
        %v9027 = vpop.f32.mrf.mxu0
        %v9028 = vadd.f32 %v8979, %v9027
        %v9029 = vpop.f32.mrf.mxu0
        %v9030 = vadd.f32 %v8981, %v9029
        %9031 = vmatmul.bf16.gmra.mxu0 %v6700
        %v9032 = vpop.f32.mrf.mxu0
        %v9033 = vadd.f32 %v8984, %v9032
        %v9034 = vpop.f32.mrf.mxu0
        %v9035 = vadd.f32 %v8986, %v9034
        %9036 = vmatmul.bf16.gmra.mxu0 %v6708
        %v9037 = vpop.f32.mrf.mxu0
        %v9038 = vadd.f32 %v8989, %v9037
        %v9039 = vpop.f32.mrf.mxu0
        %v9040 = vadd.f32 %v8991, %v9039
        %9041 = vmatmul.bf16.gmra.mxu0 %v6716
        %v9042 = vpop.f32.mrf.mxu0
        %v9043 = vadd.f32 %v8994, %v9042
        %v9044 = vpop.f32.mrf.mxu0
        %v9045 = vadd.f32 %v8996, %v9044
        %9046 = vdwg.mxu0
        %9047 = vmatpush.bf16.msra.mxu0 %v7781
        %9048 = vmatpush.bf16.msra.mxu0 %v7777
        %9049 = vmatpush.bf16.msra.mxu0 %v7773
        %9050 = vmatpush.bf16.msra.mxu0 %v7769
        %9051 = vmatpush.bf16.msra.mxu0 %v7765
        %9052 = vmatpush.bf16.msra.mxu0 %v7761
        %9053 = vmatpush.bf16.msra.mxu0 %v7757
        %9054 = vmatpush.bf16.msra.mxu0 %v7753
        %9055 = vmatmul.bf16.gmra.mxu0 %v6653
        %v9056 = vpop.f32.mrf.mxu0
        %v9057 = vadd.f32 %v6977, %v9056
        %v9058 = vpop.f32.mrf.mxu0
        %v9059 = vadd.f32 %v6977, %v9058
        %9060 = vmatmul.bf16.gmra.mxu0 %v6661
        %v9061 = vpop.f32.mrf.mxu0
        %v9062 = vadd.f32 %v6977, %v9061
        %v9063 = vpop.f32.mrf.mxu0
        %v9064 = vadd.f32 %v6977, %v9063
        %9065 = vmatmul.bf16.gmra.mxu0 %v6669
        %v9066 = vpop.f32.mrf.mxu0
        %v9067 = vadd.f32 %v6977, %v9066
        %v9068 = vpop.f32.mrf.mxu0
        %v9069 = vadd.f32 %v6977, %v9068
        %9070 = vmatmul.bf16.gmra.mxu0 %v6677
        %v9071 = vpop.f32.mrf.mxu0
        %v9072 = vadd.f32 %v6977, %v9071
        %v9073 = vpop.f32.mrf.mxu0
        %v9074 = vadd.f32 %v6977, %v9073
        %9075 = vmatmul.bf16.gmra.mxu0 %v6685
        %v9076 = vpop.f32.mrf.mxu0
        %v9077 = vadd.f32 %v6977, %v9076
        %v9078 = vpop.f32.mrf.mxu0
        %v9079 = vadd.f32 %v6977, %v9078
        %9080 = vmatmul.bf16.gmra.mxu0 %v6693
        %v9081 = vpop.f32.mrf.mxu0
        %v9082 = vadd.f32 %v6977, %v9081
        %v9083 = vpop.f32.mrf.mxu0
        %v9084 = vadd.f32 %v6977, %v9083
        %9085 = vmatmul.bf16.gmra.mxu0 %v6701
        %v9086 = vpop.f32.mrf.mxu0
        %v9087 = vadd.f32 %v6977, %v9086
        %v9088 = vpop.f32.mrf.mxu0
        %v9089 = vadd.f32 %v6977, %v9088
        %9090 = vmatmul.bf16.gmra.mxu0 %v6709
        %v9091 = vpop.f32.mrf.mxu0
        %v9092 = vadd.f32 %v6977, %v9091
        %v9093 = vpop.f32.mrf.mxu0
        %v9094 = vadd.f32 %v6977, %v9093
        %9095 = vdwg.mxu0
        %9096 = vmatpush.bf16.msra.mxu0 %v7813
        %9097 = vmatpush.bf16.msra.mxu0 %v7809
        %9098 = vmatpush.bf16.msra.mxu0 %v7805
        %9099 = vmatpush.bf16.msra.mxu0 %v7801
        %9100 = vmatpush.bf16.msra.mxu0 %v7797
        %9101 = vmatpush.bf16.msra.mxu0 %v7793
        %9102 = vmatpush.bf16.msra.mxu0 %v7789
        %9103 = vmatpush.bf16.msra.mxu0 %v7785
        %9104 = vmatmul.bf16.gmra.mxu0 %v6654
        %v9105 = vpop.f32.mrf.mxu0
        %v9106 = vadd.f32 %v9057, %v9105
        %v9107 = vpop.f32.mrf.mxu0
        %v9108 = vadd.f32 %v9059, %v9107
        %9109 = vmatmul.bf16.gmra.mxu0 %v6662
        %v9110 = vpop.f32.mrf.mxu0
        %v9111 = vadd.f32 %v9062, %v9110
        %v9112 = vpop.f32.mrf.mxu0
        %v9113 = vadd.f32 %v9064, %v9112
        %9114 = vmatmul.bf16.gmra.mxu0 %v6670
        %v9115 = vpop.f32.mrf.mxu0
        %v9116 = vadd.f32 %v9067, %v9115
        %v9117 = vpop.f32.mrf.mxu0
        %v9118 = vadd.f32 %v9069, %v9117
        %9119 = vmatmul.bf16.gmra.mxu0 %v6678
        %v9120 = vpop.f32.mrf.mxu0
        %v9121 = vadd.f32 %v9072, %v9120
        %v9122 = vpop.f32.mrf.mxu0
        %v9123 = vadd.f32 %v9074, %v9122
        %9124 = vmatmul.bf16.gmra.mxu0 %v6686
        %v9125 = vpop.f32.mrf.mxu0
        %v9126 = vadd.f32 %v9077, %v9125
        %v9127 = vpop.f32.mrf.mxu0
        %v9128 = vadd.f32 %v9079, %v9127
        %9129 = vmatmul.bf16.gmra.mxu0 %v6694
        %v9130 = vpop.f32.mrf.mxu0
        %v9131 = vadd.f32 %v9082, %v9130
        %v9132 = vpop.f32.mrf.mxu0
        %v9133 = vadd.f32 %v9084, %v9132
        %9134 = vmatmul.bf16.gmra.mxu0 %v6702
        %v9135 = vpop.f32.mrf.mxu0
        %v9136 = vadd.f32 %v9087, %v9135
        %v9137 = vpop.f32.mrf.mxu0
        %v9138 = vadd.f32 %v9089, %v9137
        %9139 = vmatmul.bf16.gmra.mxu0 %v6710
        %v9140 = vpop.f32.mrf.mxu0
        %v9141 = vadd.f32 %v9092, %v9140
        %v9142 = vpop.f32.mrf.mxu0
        %v9143 = vadd.f32 %v9094, %v9142
        %9144 = vdwg.mxu0
        %9145 = vmatpush.bf16.msra.mxu0 %v7845
        %9146 = vmatpush.bf16.msra.mxu0 %v7841
        %9147 = vmatpush.bf16.msra.mxu0 %v7837
        %9148 = vmatpush.bf16.msra.mxu0 %v7833
        %9149 = vmatpush.bf16.msra.mxu0 %v7829
        %9150 = vmatpush.bf16.msra.mxu0 %v7825
        %9151 = vmatpush.bf16.msra.mxu0 %v7821
        %9152 = vmatpush.bf16.msra.mxu0 %v7817
        %9153 = vmatmul.bf16.gmra.mxu0 %v6655
        %v9154 = vpop.f32.mrf.mxu0
        %v9155 = vadd.f32 %v9106, %v9154
        %v9156 = vpop.f32.mrf.mxu0
        %v9157 = vadd.f32 %v9108, %v9156
        %9158 = vmatmul.bf16.gmra.mxu0 %v6663
        %v9159 = vpop.f32.mrf.mxu0
        %v9160 = vadd.f32 %v9111, %v9159
        %v9161 = vpop.f32.mrf.mxu0
        %v9162 = vadd.f32 %v9113, %v9161
        %9163 = vmatmul.bf16.gmra.mxu0 %v6671
        %v9164 = vpop.f32.mrf.mxu0
        %v9165 = vadd.f32 %v9116, %v9164
        %v9166 = vpop.f32.mrf.mxu0
        %v9167 = vadd.f32 %v9118, %v9166
        %9168 = vmatmul.bf16.gmra.mxu0 %v6679
        %v9169 = vpop.f32.mrf.mxu0
        %v9170 = vadd.f32 %v9121, %v9169
        %v9171 = vpop.f32.mrf.mxu0
        %v9172 = vadd.f32 %v9123, %v9171
        %9173 = vmatmul.bf16.gmra.mxu0 %v6687
        %v9174 = vpop.f32.mrf.mxu0
        %v9175 = vadd.f32 %v9126, %v9174
        %v9176 = vpop.f32.mrf.mxu0
        %v9177 = vadd.f32 %v9128, %v9176
        %9178 = vmatmul.bf16.gmra.mxu0 %v6695
        %v9179 = vpop.f32.mrf.mxu0
        %v9180 = vadd.f32 %v9131, %v9179
        %v9181 = vpop.f32.mrf.mxu0
        %v9182 = vadd.f32 %v9133, %v9181
        %9183 = vmatmul.bf16.gmra.mxu0 %v6703
        %v9184 = vpop.f32.mrf.mxu0
        %v9185 = vadd.f32 %v9136, %v9184
        %v9186 = vpop.f32.mrf.mxu0
        %v9187 = vadd.f32 %v9138, %v9186
        %9188 = vmatmul.bf16.gmra.mxu0 %v6711
        %v9189 = vpop.f32.mrf.mxu0
        %v9190 = vadd.f32 %v9141, %v9189
        %v9191 = vpop.f32.mrf.mxu0
        %v9192 = vadd.f32 %v9143, %v9191
        %9193 = vdwg.mxu0
        %9194 = vmatpush.bf16.msra.mxu0 %v7877
        %9195 = vmatpush.bf16.msra.mxu0 %v7873
        %9196 = vmatpush.bf16.msra.mxu0 %v7869
        %9197 = vmatpush.bf16.msra.mxu0 %v7865
        %9198 = vmatpush.bf16.msra.mxu0 %v7861
        %9199 = vmatpush.bf16.msra.mxu0 %v7857
        %9200 = vmatpush.bf16.msra.mxu0 %v7853
        %9201 = vmatpush.bf16.msra.mxu0 %v7849
        %9202 = vmatmul.bf16.gmra.mxu0 %v6656
        %v9203 = vpop.f32.mrf.mxu0
        %v9204 = vadd.f32 %v9155, %v9203
        %v9205 = vpop.f32.mrf.mxu0
        %v9206 = vadd.f32 %v9157, %v9205
        %9207 = vmatmul.bf16.gmra.mxu0 %v6664
        %v9208 = vpop.f32.mrf.mxu0
        %v9209 = vadd.f32 %v9160, %v9208
        %v9210 = vpop.f32.mrf.mxu0
        %v9211 = vadd.f32 %v9162, %v9210
        %9212 = vmatmul.bf16.gmra.mxu0 %v6672
        %v9213 = vpop.f32.mrf.mxu0
        %v9214 = vadd.f32 %v9165, %v9213
        %v9215 = vpop.f32.mrf.mxu0
        %v9216 = vadd.f32 %v9167, %v9215
        %9217 = vmatmul.bf16.gmra.mxu0 %v6680
        %v9218 = vpop.f32.mrf.mxu0
        %v9219 = vadd.f32 %v9170, %v9218
        %v9220 = vpop.f32.mrf.mxu0
        %v9221 = vadd.f32 %v9172, %v9220
        %9222 = vmatmul.bf16.gmra.mxu0 %v6688
        %v9223 = vpop.f32.mrf.mxu0
        %v9224 = vadd.f32 %v9175, %v9223
        %v9225 = vpop.f32.mrf.mxu0
        %v9226 = vadd.f32 %v9177, %v9225
        %9227 = vmatmul.bf16.gmra.mxu0 %v6696
        %v9228 = vpop.f32.mrf.mxu0
        %v9229 = vadd.f32 %v9180, %v9228
        %v9230 = vpop.f32.mrf.mxu0
        %v9231 = vadd.f32 %v9182, %v9230
        %9232 = vmatmul.bf16.gmra.mxu0 %v6704
        %v9233 = vpop.f32.mrf.mxu0
        %v9234 = vadd.f32 %v9185, %v9233
        %v9235 = vpop.f32.mrf.mxu0
        %v9236 = vadd.f32 %v9187, %v9235
        %9237 = vmatmul.bf16.gmra.mxu0 %v6712
        %v9238 = vpop.f32.mrf.mxu0
        %v9239 = vadd.f32 %v9190, %v9238
        %v9240 = vpop.f32.mrf.mxu0
        %v9241 = vadd.f32 %v9192, %v9240
        %9242 = vdwg.mxu0
        %9243 = vmatpush.bf16.msra.mxu0 %v7909
        %9244 = vmatpush.bf16.msra.mxu0 %v7905
        %9245 = vmatpush.bf16.msra.mxu0 %v7901
        %9246 = vmatpush.bf16.msra.mxu0 %v7897
        %9247 = vmatpush.bf16.msra.mxu0 %v7893
        %9248 = vmatpush.bf16.msra.mxu0 %v7889
        %9249 = vmatpush.bf16.msra.mxu0 %v7885
        %9250 = vmatpush.bf16.msra.mxu0 %v7881
        %9251 = vmatmul.bf16.gmra.mxu0 %v6657
        %v9252 = vpop.f32.mrf.mxu0
        %v9253 = vadd.f32 %v9204, %v9252
        %v9254 = vpop.f32.mrf.mxu0
        %v9255 = vadd.f32 %v9206, %v9254
        %9256 = vmatmul.bf16.gmra.mxu0 %v6665
        %v9257 = vpop.f32.mrf.mxu0
        %v9258 = vadd.f32 %v9209, %v9257
        %v9259 = vpop.f32.mrf.mxu0
        %v9260 = vadd.f32 %v9211, %v9259
        %9261 = vmatmul.bf16.gmra.mxu0 %v6673
        %v9262 = vpop.f32.mrf.mxu0
        %v9263 = vadd.f32 %v9214, %v9262
        %v9264 = vpop.f32.mrf.mxu0
        %v9265 = vadd.f32 %v9216, %v9264
        %9266 = vmatmul.bf16.gmra.mxu0 %v6681
        %v9267 = vpop.f32.mrf.mxu0
        %v9268 = vadd.f32 %v9219, %v9267
        %v9269 = vpop.f32.mrf.mxu0
        %v9270 = vadd.f32 %v9221, %v9269
        %9271 = vmatmul.bf16.gmra.mxu0 %v6689
        %v9272 = vpop.f32.mrf.mxu0
        %v9273 = vadd.f32 %v9224, %v9272
        %v9274 = vpop.f32.mrf.mxu0
        %v9275 = vadd.f32 %v9226, %v9274
        %9276 = vmatmul.bf16.gmra.mxu0 %v6697
        %v9277 = vpop.f32.mrf.mxu0
        %v9278 = vadd.f32 %v9229, %v9277
        %v9279 = vpop.f32.mrf.mxu0
        %v9280 = vadd.f32 %v9231, %v9279
        %9281 = vmatmul.bf16.gmra.mxu0 %v6705
        %v9282 = vpop.f32.mrf.mxu0
        %v9283 = vadd.f32 %v9234, %v9282
        %v9284 = vpop.f32.mrf.mxu0
        %v9285 = vadd.f32 %v9236, %v9284
        %9286 = vmatmul.bf16.gmra.mxu0 %v6713
        %v9287 = vpop.f32.mrf.mxu0
        %v9288 = vadd.f32 %v9239, %v9287
        %v9289 = vpop.f32.mrf.mxu0
        %v9290 = vadd.f32 %v9241, %v9289
        %9291 = vdwg.mxu0
        %9292 = vmatpush.bf16.msra.mxu0 %v7941
        %9293 = vmatpush.bf16.msra.mxu0 %v7937
        %9294 = vmatpush.bf16.msra.mxu0 %v7933
        %9295 = vmatpush.bf16.msra.mxu0 %v7929
        %9296 = vmatpush.bf16.msra.mxu0 %v7925
        %9297 = vmatpush.bf16.msra.mxu0 %v7921
        %9298 = vmatpush.bf16.msra.mxu0 %v7917
        %9299 = vmatpush.bf16.msra.mxu0 %v7913
        %9300 = vmatmul.bf16.gmra.mxu0 %v6658
        %v9301 = vpop.f32.mrf.mxu0
        %v9302 = vadd.f32 %v9253, %v9301
        %v9303 = vpop.f32.mrf.mxu0
        %v9304 = vadd.f32 %v9255, %v9303
        %9305 = vmatmul.bf16.gmra.mxu0 %v6666
        %v9306 = vpop.f32.mrf.mxu0
        %v9307 = vadd.f32 %v9258, %v9306
        %v9308 = vpop.f32.mrf.mxu0
        %v9309 = vadd.f32 %v9260, %v9308
        %9310 = vmatmul.bf16.gmra.mxu0 %v6674
        %v9311 = vpop.f32.mrf.mxu0
        %v9312 = vadd.f32 %v9263, %v9311
        %v9313 = vpop.f32.mrf.mxu0
        %v9314 = vadd.f32 %v9265, %v9313
        %9315 = vmatmul.bf16.gmra.mxu0 %v6682
        %v9316 = vpop.f32.mrf.mxu0
        %v9317 = vadd.f32 %v9268, %v9316
        %v9318 = vpop.f32.mrf.mxu0
        %v9319 = vadd.f32 %v9270, %v9318
        %9320 = vmatmul.bf16.gmra.mxu0 %v6690
        %v9321 = vpop.f32.mrf.mxu0
        %v9322 = vadd.f32 %v9273, %v9321
        %v9323 = vpop.f32.mrf.mxu0
        %v9324 = vadd.f32 %v9275, %v9323
        %9325 = vmatmul.bf16.gmra.mxu0 %v6698
        %v9326 = vpop.f32.mrf.mxu0
        %v9327 = vadd.f32 %v9278, %v9326
        %v9328 = vpop.f32.mrf.mxu0
        %v9329 = vadd.f32 %v9280, %v9328
        %9330 = vmatmul.bf16.gmra.mxu0 %v6706
        %v9331 = vpop.f32.mrf.mxu0
        %v9332 = vadd.f32 %v9283, %v9331
        %v9333 = vpop.f32.mrf.mxu0
        %v9334 = vadd.f32 %v9285, %v9333
        %9335 = vmatmul.bf16.gmra.mxu0 %v6714
        %v9336 = vpop.f32.mrf.mxu0
        %v9337 = vadd.f32 %v9288, %v9336
        %v9338 = vpop.f32.mrf.mxu0
        %v9339 = vadd.f32 %v9290, %v9338
        %9340 = vdwg.mxu0
        %9341 = vmatpush.bf16.msra.mxu0 %v7973
        %9342 = vmatpush.bf16.msra.mxu0 %v7969
        %9343 = vmatpush.bf16.msra.mxu0 %v7965
        %9344 = vmatpush.bf16.msra.mxu0 %v7961
        %9345 = vmatpush.bf16.msra.mxu0 %v7957
        %9346 = vmatpush.bf16.msra.mxu0 %v7953
        %9347 = vmatpush.bf16.msra.mxu0 %v7949
        %9348 = vmatpush.bf16.msra.mxu0 %v7945
        %9349 = vmatmul.bf16.gmra.mxu0 %v6659
        %v9350 = vpop.f32.mrf.mxu0
        %v9351 = vadd.f32 %v9302, %v9350
        %v9352 = vpop.f32.mrf.mxu0
        %v9353 = vadd.f32 %v9304, %v9352
        %9354 = vmatmul.bf16.gmra.mxu0 %v6667
        %v9355 = vpop.f32.mrf.mxu0
        %v9356 = vadd.f32 %v9307, %v9355
        %v9357 = vpop.f32.mrf.mxu0
        %v9358 = vadd.f32 %v9309, %v9357
        %9359 = vmatmul.bf16.gmra.mxu0 %v6675
        %v9360 = vpop.f32.mrf.mxu0
        %v9361 = vadd.f32 %v9312, %v9360
        %v9362 = vpop.f32.mrf.mxu0
        %v9363 = vadd.f32 %v9314, %v9362
        %9364 = vmatmul.bf16.gmra.mxu0 %v6683
        %v9365 = vpop.f32.mrf.mxu0
        %v9366 = vadd.f32 %v9317, %v9365
        %v9367 = vpop.f32.mrf.mxu0
        %v9368 = vadd.f32 %v9319, %v9367
        %9369 = vmatmul.bf16.gmra.mxu0 %v6691
        %v9370 = vpop.f32.mrf.mxu0
        %v9371 = vadd.f32 %v9322, %v9370
        %v9372 = vpop.f32.mrf.mxu0
        %v9373 = vadd.f32 %v9324, %v9372
        %9374 = vmatmul.bf16.gmra.mxu0 %v6699
        %v9375 = vpop.f32.mrf.mxu0
        %v9376 = vadd.f32 %v9327, %v9375
        %v9377 = vpop.f32.mrf.mxu0
        %v9378 = vadd.f32 %v9329, %v9377
        %9379 = vmatmul.bf16.gmra.mxu0 %v6707
        %v9380 = vpop.f32.mrf.mxu0
        %v9381 = vadd.f32 %v9332, %v9380
        %v9382 = vpop.f32.mrf.mxu0
        %v9383 = vadd.f32 %v9334, %v9382
        %9384 = vmatmul.bf16.gmra.mxu0 %v6715
        %v9385 = vpop.f32.mrf.mxu0
        %v9386 = vadd.f32 %v9337, %v9385
        %v9387 = vpop.f32.mrf.mxu0
        %v9388 = vadd.f32 %v9339, %v9387
        %9389 = vdwg.mxu0
        %9390 = vmatpush.bf16.msra.mxu0 %v8005
        %9391 = vmatpush.bf16.msra.mxu0 %v8001
        %9392 = vmatpush.bf16.msra.mxu0 %v7997
        %9393 = vmatpush.bf16.msra.mxu0 %v7993
        %9394 = vmatpush.bf16.msra.mxu0 %v7989
        %9395 = vmatpush.bf16.msra.mxu0 %v7985
        %9396 = vmatpush.bf16.msra.mxu0 %v7981
        %9397 = vmatpush.bf16.msra.mxu0 %v7977
        %9398 = vmatmul.bf16.gmra.mxu0 %v6660
        %v9399 = vpop.f32.mrf.mxu0
        %v9400 = vadd.f32 %v9351, %v9399
        %v9401 = vpop.f32.mrf.mxu0
        %v9402 = vadd.f32 %v9353, %v9401
        %9403 = vmatmul.bf16.gmra.mxu0 %v6668
        %v9404 = vpop.f32.mrf.mxu0
        %v9405 = vadd.f32 %v9356, %v9404
        %v9406 = vpop.f32.mrf.mxu0
        %v9407 = vadd.f32 %v9358, %v9406
        %9408 = vmatmul.bf16.gmra.mxu0 %v6676
        %v9409 = vpop.f32.mrf.mxu0
        %v9410 = vadd.f32 %v9361, %v9409
        %v9411 = vpop.f32.mrf.mxu0
        %v9412 = vadd.f32 %v9363, %v9411
        %9413 = vmatmul.bf16.gmra.mxu0 %v6684
        %v9414 = vpop.f32.mrf.mxu0
        %v9415 = vadd.f32 %v9366, %v9414
        %v9416 = vpop.f32.mrf.mxu0
        %v9417 = vadd.f32 %v9368, %v9416
        %9418 = vmatmul.bf16.gmra.mxu0 %v6692
        %v9419 = vpop.f32.mrf.mxu0
        %v9420 = vadd.f32 %v9371, %v9419
        %v9421 = vpop.f32.mrf.mxu0
        %v9422 = vadd.f32 %v9373, %v9421
        %9423 = vmatmul.bf16.gmra.mxu0 %v6700
        %v9424 = vpop.f32.mrf.mxu0
        %v9425 = vadd.f32 %v9376, %v9424
        %v9426 = vpop.f32.mrf.mxu0
        %v9427 = vadd.f32 %v9378, %v9426
        %9428 = vmatmul.bf16.gmra.mxu0 %v6708
        %v9429 = vpop.f32.mrf.mxu0
        %v9430 = vadd.f32 %v9381, %v9429
        %v9431 = vpop.f32.mrf.mxu0
        %v9432 = vadd.f32 %v9383, %v9431
        %9433 = vmatmul.bf16.gmra.mxu0 %v6716
        %v9434 = vpop.f32.mrf.mxu0
        %v9435 = vadd.f32 %v9386, %v9434
        %v9436 = vpop.f32.mrf.mxu0
        %v9437 = vadd.f32 %v9388, %v9436
        %9438 = vdwg.mxu0
        %9439 = vmatpush.bf16.msra.mxu0 %v7782
        %9440 = vmatpush.bf16.msra.mxu0 %v7778
        %9441 = vmatpush.bf16.msra.mxu0 %v7774
        %9442 = vmatpush.bf16.msra.mxu0 %v7770
        %9443 = vmatpush.bf16.msra.mxu0 %v7766
        %9444 = vmatpush.bf16.msra.mxu0 %v7762
        %9445 = vmatpush.bf16.msra.mxu0 %v7758
        %9446 = vmatpush.bf16.msra.mxu0 %v7754
        %9447 = vmatmul.bf16.gmra.mxu0 %v6653
        %v9448 = vpop.f32.mrf.mxu0
        %v9449 = vadd.f32 %v6978, %v9448
        %v9450 = vpop.f32.mrf.mxu0
        %v9451 = vadd.f32 %v6978, %v9450
        %9452 = vmatmul.bf16.gmra.mxu0 %v6661
        %v9453 = vpop.f32.mrf.mxu0
        %v9454 = vadd.f32 %v6978, %v9453
        %v9455 = vpop.f32.mrf.mxu0
        %v9456 = vadd.f32 %v6978, %v9455
        %9457 = vmatmul.bf16.gmra.mxu0 %v6669
        %v9458 = vpop.f32.mrf.mxu0
        %v9459 = vadd.f32 %v6978, %v9458
        %v9460 = vpop.f32.mrf.mxu0
        %v9461 = vadd.f32 %v6978, %v9460
        %9462 = vmatmul.bf16.gmra.mxu0 %v6677
        %v9463 = vpop.f32.mrf.mxu0
        %v9464 = vadd.f32 %v6978, %v9463
        %v9465 = vpop.f32.mrf.mxu0
        %v9466 = vadd.f32 %v6978, %v9465
        %9467 = vmatmul.bf16.gmra.mxu0 %v6685
        %v9468 = vpop.f32.mrf.mxu0
        %v9469 = vadd.f32 %v6978, %v9468
        %v9470 = vpop.f32.mrf.mxu0
        %v9471 = vadd.f32 %v6978, %v9470
        %9472 = vmatmul.bf16.gmra.mxu0 %v6693
        %v9473 = vpop.f32.mrf.mxu0
        %v9474 = vadd.f32 %v6978, %v9473
        %v9475 = vpop.f32.mrf.mxu0
        %v9476 = vadd.f32 %v6978, %v9475
        %9477 = vmatmul.bf16.gmra.mxu0 %v6701
        %v9478 = vpop.f32.mrf.mxu0
        %v9479 = vadd.f32 %v6978, %v9478
        %v9480 = vpop.f32.mrf.mxu0
        %v9481 = vadd.f32 %v6978, %v9480
        %9482 = vmatmul.bf16.gmra.mxu0 %v6709
        %v9483 = vpop.f32.mrf.mxu0
        %v9484 = vadd.f32 %v6978, %v9483
        %v9485 = vpop.f32.mrf.mxu0
        %v9486 = vadd.f32 %v6978, %v9485
        %9487 = vdwg.mxu0
        %9488 = vmatpush.bf16.msra.mxu0 %v7814
        %9489 = vmatpush.bf16.msra.mxu0 %v7810
        %9490 = vmatpush.bf16.msra.mxu0 %v7806
        %9491 = vmatpush.bf16.msra.mxu0 %v7802
        %9492 = vmatpush.bf16.msra.mxu0 %v7798
        %9493 = vmatpush.bf16.msra.mxu0 %v7794
        %9494 = vmatpush.bf16.msra.mxu0 %v7790
        %9495 = vmatpush.bf16.msra.mxu0 %v7786
        %9496 = vmatmul.bf16.gmra.mxu0 %v6654
        %v9497 = vpop.f32.mrf.mxu0
        %v9498 = vadd.f32 %v9449, %v9497
        %v9499 = vpop.f32.mrf.mxu0
        %v9500 = vadd.f32 %v9451, %v9499
        %9501 = vmatmul.bf16.gmra.mxu0 %v6662
        %v9502 = vpop.f32.mrf.mxu0
        %v9503 = vadd.f32 %v9454, %v9502
        %v9504 = vpop.f32.mrf.mxu0
        %v9505 = vadd.f32 %v9456, %v9504
        %9506 = vmatmul.bf16.gmra.mxu0 %v6670
        %v9507 = vpop.f32.mrf.mxu0
        %v9508 = vadd.f32 %v9459, %v9507
        %v9509 = vpop.f32.mrf.mxu0
        %v9510 = vadd.f32 %v9461, %v9509
        %9511 = vmatmul.bf16.gmra.mxu0 %v6678
        %v9512 = vpop.f32.mrf.mxu0
        %v9513 = vadd.f32 %v9464, %v9512
        %v9514 = vpop.f32.mrf.mxu0
        %v9515 = vadd.f32 %v9466, %v9514
        %9516 = vmatmul.bf16.gmra.mxu0 %v6686
        %v9517 = vpop.f32.mrf.mxu0
        %v9518 = vadd.f32 %v9469, %v9517
        %v9519 = vpop.f32.mrf.mxu0
        %v9520 = vadd.f32 %v9471, %v9519
        %9521 = vmatmul.bf16.gmra.mxu0 %v6694
        %v9522 = vpop.f32.mrf.mxu0
        %v9523 = vadd.f32 %v9474, %v9522
        %v9524 = vpop.f32.mrf.mxu0
        %v9525 = vadd.f32 %v9476, %v9524
        %9526 = vmatmul.bf16.gmra.mxu0 %v6702
        %v9527 = vpop.f32.mrf.mxu0
        %v9528 = vadd.f32 %v9479, %v9527
        %v9529 = vpop.f32.mrf.mxu0
        %v9530 = vadd.f32 %v9481, %v9529
        %9531 = vmatmul.bf16.gmra.mxu0 %v6710
        %v9532 = vpop.f32.mrf.mxu0
        %v9533 = vadd.f32 %v9484, %v9532
        %v9534 = vpop.f32.mrf.mxu0
        %v9535 = vadd.f32 %v9486, %v9534
        %9536 = vdwg.mxu0
        %9537 = vmatpush.bf16.msra.mxu0 %v7846
        %9538 = vmatpush.bf16.msra.mxu0 %v7842
        %9539 = vmatpush.bf16.msra.mxu0 %v7838
        %9540 = vmatpush.bf16.msra.mxu0 %v7834
        %9541 = vmatpush.bf16.msra.mxu0 %v7830
        %9542 = vmatpush.bf16.msra.mxu0 %v7826
        %9543 = vmatpush.bf16.msra.mxu0 %v7822
        %9544 = vmatpush.bf16.msra.mxu0 %v7818
        %9545 = vmatmul.bf16.gmra.mxu0 %v6655
        %v9546 = vpop.f32.mrf.mxu0
        %v9547 = vadd.f32 %v9498, %v9546
        %v9548 = vpop.f32.mrf.mxu0
        %v9549 = vadd.f32 %v9500, %v9548
        %9550 = vmatmul.bf16.gmra.mxu0 %v6663
        %v9551 = vpop.f32.mrf.mxu0
        %v9552 = vadd.f32 %v9503, %v9551
        %v9553 = vpop.f32.mrf.mxu0
        %v9554 = vadd.f32 %v9505, %v9553
        %9555 = vmatmul.bf16.gmra.mxu0 %v6671
        %v9556 = vpop.f32.mrf.mxu0
        %v9557 = vadd.f32 %v9508, %v9556
        %v9558 = vpop.f32.mrf.mxu0
        %v9559 = vadd.f32 %v9510, %v9558
        %9560 = vmatmul.bf16.gmra.mxu0 %v6679
        %v9561 = vpop.f32.mrf.mxu0
        %v9562 = vadd.f32 %v9513, %v9561
        %v9563 = vpop.f32.mrf.mxu0
        %v9564 = vadd.f32 %v9515, %v9563
        %9565 = vmatmul.bf16.gmra.mxu0 %v6687
        %v9566 = vpop.f32.mrf.mxu0
        %v9567 = vadd.f32 %v9518, %v9566
        %v9568 = vpop.f32.mrf.mxu0
        %v9569 = vadd.f32 %v9520, %v9568
        %9570 = vmatmul.bf16.gmra.mxu0 %v6695
        %v9571 = vpop.f32.mrf.mxu0
        %v9572 = vadd.f32 %v9523, %v9571
        %v9573 = vpop.f32.mrf.mxu0
        %v9574 = vadd.f32 %v9525, %v9573
        %9575 = vmatmul.bf16.gmra.mxu0 %v6703
        %v9576 = vpop.f32.mrf.mxu0
        %v9577 = vadd.f32 %v9528, %v9576
        %v9578 = vpop.f32.mrf.mxu0
        %v9579 = vadd.f32 %v9530, %v9578
        %9580 = vmatmul.bf16.gmra.mxu0 %v6711
        %v9581 = vpop.f32.mrf.mxu0
        %v9582 = vadd.f32 %v9533, %v9581
        %v9583 = vpop.f32.mrf.mxu0
        %v9584 = vadd.f32 %v9535, %v9583
        %9585 = vdwg.mxu0
        %9586 = vmatpush.bf16.msra.mxu0 %v7878
        %9587 = vmatpush.bf16.msra.mxu0 %v7874
        %9588 = vmatpush.bf16.msra.mxu0 %v7870
        %9589 = vmatpush.bf16.msra.mxu0 %v7866
        %9590 = vmatpush.bf16.msra.mxu0 %v7862
        %9591 = vmatpush.bf16.msra.mxu0 %v7858
        %9592 = vmatpush.bf16.msra.mxu0 %v7854
        %9593 = vmatpush.bf16.msra.mxu0 %v7850
        %9594 = vmatmul.bf16.gmra.mxu0 %v6656
        %v9595 = vpop.f32.mrf.mxu0
        %v9596 = vadd.f32 %v9547, %v9595
        %v9597 = vpop.f32.mrf.mxu0
        %v9598 = vadd.f32 %v9549, %v9597
        %9599 = vmatmul.bf16.gmra.mxu0 %v6664
        %v9600 = vpop.f32.mrf.mxu0
        %v9601 = vadd.f32 %v9552, %v9600
        %v9602 = vpop.f32.mrf.mxu0
        %v9603 = vadd.f32 %v9554, %v9602
        %9604 = vmatmul.bf16.gmra.mxu0 %v6672
        %v9605 = vpop.f32.mrf.mxu0
        %v9606 = vadd.f32 %v9557, %v9605
        %v9607 = vpop.f32.mrf.mxu0
        %v9608 = vadd.f32 %v9559, %v9607
        %9609 = vmatmul.bf16.gmra.mxu0 %v6680
        %v9610 = vpop.f32.mrf.mxu0
        %v9611 = vadd.f32 %v9562, %v9610
        %v9612 = vpop.f32.mrf.mxu0
        %v9613 = vadd.f32 %v9564, %v9612
        %9614 = vmatmul.bf16.gmra.mxu0 %v6688
        %v9615 = vpop.f32.mrf.mxu0
        %v9616 = vadd.f32 %v9567, %v9615
        %v9617 = vpop.f32.mrf.mxu0
        %v9618 = vadd.f32 %v9569, %v9617
        %9619 = vmatmul.bf16.gmra.mxu0 %v6696
        %v9620 = vpop.f32.mrf.mxu0
        %v9621 = vadd.f32 %v9572, %v9620
        %v9622 = vpop.f32.mrf.mxu0
        %v9623 = vadd.f32 %v9574, %v9622
        %9624 = vmatmul.bf16.gmra.mxu0 %v6704
        %v9625 = vpop.f32.mrf.mxu0
        %v9626 = vadd.f32 %v9577, %v9625
        %v9627 = vpop.f32.mrf.mxu0
        %v9628 = vadd.f32 %v9579, %v9627
        %9629 = vmatmul.bf16.gmra.mxu0 %v6712
        %v9630 = vpop.f32.mrf.mxu0
        %v9631 = vadd.f32 %v9582, %v9630
        %v9632 = vpop.f32.mrf.mxu0
        %v9633 = vadd.f32 %v9584, %v9632
        %9634 = vdwg.mxu0
        %9635 = vmatpush.bf16.msra.mxu0 %v7910
        %9636 = vmatpush.bf16.msra.mxu0 %v7906
        %9637 = vmatpush.bf16.msra.mxu0 %v7902
        %9638 = vmatpush.bf16.msra.mxu0 %v7898
        %9639 = vmatpush.bf16.msra.mxu0 %v7894
        %9640 = vmatpush.bf16.msra.mxu0 %v7890
        %9641 = vmatpush.bf16.msra.mxu0 %v7886
        %9642 = vmatpush.bf16.msra.mxu0 %v7882
        %9643 = vmatmul.bf16.gmra.mxu0 %v6657
        %v9644 = vpop.f32.mrf.mxu0
        %v9645 = vadd.f32 %v9596, %v9644
        %v9646 = vpop.f32.mrf.mxu0
        %v9647 = vadd.f32 %v9598, %v9646
        %9648 = vmatmul.bf16.gmra.mxu0 %v6665
        %v9649 = vpop.f32.mrf.mxu0
        %v9650 = vadd.f32 %v9601, %v9649
        %v9651 = vpop.f32.mrf.mxu0
        %v9652 = vadd.f32 %v9603, %v9651
        %9653 = vmatmul.bf16.gmra.mxu0 %v6673
        %v9654 = vpop.f32.mrf.mxu0
        %v9655 = vadd.f32 %v9606, %v9654
        %v9656 = vpop.f32.mrf.mxu0
        %v9657 = vadd.f32 %v9608, %v9656
        %9658 = vmatmul.bf16.gmra.mxu0 %v6681
        %v9659 = vpop.f32.mrf.mxu0
        %v9660 = vadd.f32 %v9611, %v9659
        %v9661 = vpop.f32.mrf.mxu0
        %v9662 = vadd.f32 %v9613, %v9661
        %9663 = vmatmul.bf16.gmra.mxu0 %v6689
        %v9664 = vpop.f32.mrf.mxu0
        %v9665 = vadd.f32 %v9616, %v9664
        %v9666 = vpop.f32.mrf.mxu0
        %v9667 = vadd.f32 %v9618, %v9666
        %9668 = vmatmul.bf16.gmra.mxu0 %v6697
        %v9669 = vpop.f32.mrf.mxu0
        %v9670 = vadd.f32 %v9621, %v9669
        %v9671 = vpop.f32.mrf.mxu0
        %v9672 = vadd.f32 %v9623, %v9671
        %9673 = vmatmul.bf16.gmra.mxu0 %v6705
        %v9674 = vpop.f32.mrf.mxu0
        %v9675 = vadd.f32 %v9626, %v9674
        %v9676 = vpop.f32.mrf.mxu0
        %v9677 = vadd.f32 %v9628, %v9676
        %9678 = vmatmul.bf16.gmra.mxu0 %v6713
        %v9679 = vpop.f32.mrf.mxu0
        %v9680 = vadd.f32 %v9631, %v9679
        %v9681 = vpop.f32.mrf.mxu0
        %v9682 = vadd.f32 %v9633, %v9681
        %9683 = vdwg.mxu0
        %9684 = vmatpush.bf16.msra.mxu0 %v7942
        %9685 = vmatpush.bf16.msra.mxu0 %v7938
        %9686 = vmatpush.bf16.msra.mxu0 %v7934
        %9687 = vmatpush.bf16.msra.mxu0 %v7930
        %9688 = vmatpush.bf16.msra.mxu0 %v7926
        %9689 = vmatpush.bf16.msra.mxu0 %v7922
        %9690 = vmatpush.bf16.msra.mxu0 %v7918
        %9691 = vmatpush.bf16.msra.mxu0 %v7914
        %9692 = vmatmul.bf16.gmra.mxu0 %v6658
        %v9693 = vpop.f32.mrf.mxu0
        %v9694 = vadd.f32 %v9645, %v9693
        %v9695 = vpop.f32.mrf.mxu0
        %v9696 = vadd.f32 %v9647, %v9695
        %9697 = vmatmul.bf16.gmra.mxu0 %v6666
        %v9698 = vpop.f32.mrf.mxu0
        %v9699 = vadd.f32 %v9650, %v9698
        %v9700 = vpop.f32.mrf.mxu0
        %v9701 = vadd.f32 %v9652, %v9700
        %9702 = vmatmul.bf16.gmra.mxu0 %v6674
        %v9703 = vpop.f32.mrf.mxu0
        %v9704 = vadd.f32 %v9655, %v9703
        %v9705 = vpop.f32.mrf.mxu0
        %v9706 = vadd.f32 %v9657, %v9705
        %9707 = vmatmul.bf16.gmra.mxu0 %v6682
        %v9708 = vpop.f32.mrf.mxu0
        %v9709 = vadd.f32 %v9660, %v9708
        %v9710 = vpop.f32.mrf.mxu0
        %v9711 = vadd.f32 %v9662, %v9710
        %9712 = vmatmul.bf16.gmra.mxu0 %v6690
        %v9713 = vpop.f32.mrf.mxu0
        %v9714 = vadd.f32 %v9665, %v9713
        %v9715 = vpop.f32.mrf.mxu0
        %v9716 = vadd.f32 %v9667, %v9715
        %9717 = vmatmul.bf16.gmra.mxu0 %v6698
        %v9718 = vpop.f32.mrf.mxu0
        %v9719 = vadd.f32 %v9670, %v9718
        %v9720 = vpop.f32.mrf.mxu0
        %v9721 = vadd.f32 %v9672, %v9720
        %9722 = vmatmul.bf16.gmra.mxu0 %v6706
        %v9723 = vpop.f32.mrf.mxu0
        %v9724 = vadd.f32 %v9675, %v9723
        %v9725 = vpop.f32.mrf.mxu0
        %v9726 = vadd.f32 %v9677, %v9725
        %9727 = vmatmul.bf16.gmra.mxu0 %v6714
        %v9728 = vpop.f32.mrf.mxu0
        %v9729 = vadd.f32 %v9680, %v9728
        %v9730 = vpop.f32.mrf.mxu0
        %v9731 = vadd.f32 %v9682, %v9730
        %9732 = vdwg.mxu0
        %9733 = vmatpush.bf16.msra.mxu0 %v7974
        %9734 = vmatpush.bf16.msra.mxu0 %v7970
        %9735 = vmatpush.bf16.msra.mxu0 %v7966
        %9736 = vmatpush.bf16.msra.mxu0 %v7962
        %9737 = vmatpush.bf16.msra.mxu0 %v7958
        %9738 = vmatpush.bf16.msra.mxu0 %v7954
        %9739 = vmatpush.bf16.msra.mxu0 %v7950
        %9740 = vmatpush.bf16.msra.mxu0 %v7946
        %9741 = vmatmul.bf16.gmra.mxu0 %v6659
        %v9742 = vpop.f32.mrf.mxu0
        %v9743 = vadd.f32 %v9694, %v9742
        %v9744 = vpop.f32.mrf.mxu0
        %v9745 = vadd.f32 %v9696, %v9744
        %9746 = vmatmul.bf16.gmra.mxu0 %v6667
        %v9747 = vpop.f32.mrf.mxu0
        %v9748 = vadd.f32 %v9699, %v9747
        %v9749 = vpop.f32.mrf.mxu0
        %v9750 = vadd.f32 %v9701, %v9749
        %9751 = vmatmul.bf16.gmra.mxu0 %v6675
        %v9752 = vpop.f32.mrf.mxu0
        %v9753 = vadd.f32 %v9704, %v9752
        %v9754 = vpop.f32.mrf.mxu0
        %v9755 = vadd.f32 %v9706, %v9754
        %9756 = vmatmul.bf16.gmra.mxu0 %v6683
        %v9757 = vpop.f32.mrf.mxu0
        %v9758 = vadd.f32 %v9709, %v9757
        %v9759 = vpop.f32.mrf.mxu0
        %v9760 = vadd.f32 %v9711, %v9759
        %9761 = vmatmul.bf16.gmra.mxu0 %v6691
        %v9762 = vpop.f32.mrf.mxu0
        %v9763 = vadd.f32 %v9714, %v9762
        %v9764 = vpop.f32.mrf.mxu0
        %v9765 = vadd.f32 %v9716, %v9764
        %9766 = vmatmul.bf16.gmra.mxu0 %v6699
        %v9767 = vpop.f32.mrf.mxu0
        %v9768 = vadd.f32 %v9719, %v9767
        %v9769 = vpop.f32.mrf.mxu0
        %v9770 = vadd.f32 %v9721, %v9769
        %9771 = vmatmul.bf16.gmra.mxu0 %v6707
        %v9772 = vpop.f32.mrf.mxu0
        %v9773 = vadd.f32 %v9724, %v9772
        %v9774 = vpop.f32.mrf.mxu0
        %v9775 = vadd.f32 %v9726, %v9774
        %9776 = vmatmul.bf16.gmra.mxu0 %v6715
        %v9777 = vpop.f32.mrf.mxu0
        %v9778 = vadd.f32 %v9729, %v9777
        %v9779 = vpop.f32.mrf.mxu0
        %v9780 = vadd.f32 %v9731, %v9779
        %9781 = vdwg.mxu0
        %9782 = vmatpush.bf16.msra.mxu0 %v8006
        %9783 = vmatpush.bf16.msra.mxu0 %v8002
        %9784 = vmatpush.bf16.msra.mxu0 %v7998
        %9785 = vmatpush.bf16.msra.mxu0 %v7994
        %9786 = vmatpush.bf16.msra.mxu0 %v7990
        %9787 = vmatpush.bf16.msra.mxu0 %v7986
        %9788 = vmatpush.bf16.msra.mxu0 %v7982
        %9789 = vmatpush.bf16.msra.mxu0 %v7978
        %9790 = vmatmul.bf16.gmra.mxu0 %v6660
        %v9791 = vpop.f32.mrf.mxu0
        %v9792 = vadd.f32 %v9743, %v9791
        %v9793 = vpop.f32.mrf.mxu0
        %v9794 = vadd.f32 %v9745, %v9793
        %9795 = vmatmul.bf16.gmra.mxu0 %v6668
        %v9796 = vpop.f32.mrf.mxu0
        %v9797 = vadd.f32 %v9748, %v9796
        %v9798 = vpop.f32.mrf.mxu0
        %v9799 = vadd.f32 %v9750, %v9798
        %9800 = vmatmul.bf16.gmra.mxu0 %v6676
        %v9801 = vpop.f32.mrf.mxu0
        %v9802 = vadd.f32 %v9753, %v9801
        %v9803 = vpop.f32.mrf.mxu0
        %v9804 = vadd.f32 %v9755, %v9803
        %9805 = vmatmul.bf16.gmra.mxu0 %v6684
        %v9806 = vpop.f32.mrf.mxu0
        %v9807 = vadd.f32 %v9758, %v9806
        %v9808 = vpop.f32.mrf.mxu0
        %v9809 = vadd.f32 %v9760, %v9808
        %9810 = vmatmul.bf16.gmra.mxu0 %v6692
        %v9811 = vpop.f32.mrf.mxu0
        %v9812 = vadd.f32 %v9763, %v9811
        %v9813 = vpop.f32.mrf.mxu0
        %v9814 = vadd.f32 %v9765, %v9813
        %9815 = vmatmul.bf16.gmra.mxu0 %v6700
        %v9816 = vpop.f32.mrf.mxu0
        %v9817 = vadd.f32 %v9768, %v9816
        %v9818 = vpop.f32.mrf.mxu0
        %v9819 = vadd.f32 %v9770, %v9818
        %9820 = vmatmul.bf16.gmra.mxu0 %v6708
        %v9821 = vpop.f32.mrf.mxu0
        %v9822 = vadd.f32 %v9773, %v9821
        %v9823 = vpop.f32.mrf.mxu0
        %v9824 = vadd.f32 %v9775, %v9823
        %9825 = vmatmul.bf16.gmra.mxu0 %v6716
        %v9826 = vpop.f32.mrf.mxu0
        %v9827 = vadd.f32 %v9778, %v9826
        %v9828 = vpop.f32.mrf.mxu0
        %v9829 = vadd.f32 %v9780, %v9828
        %9830 = vdwg.mxu0
        %vm9831 = vcmp.gt.f32.partialorder %v8616, 0.0
        %vm9832 = vcmp.gt.f32.partialorder %v9008, 0.0
        %vm9833 = vcmp.gt.f32.partialorder %v9400, 0.0
        %vm9834 = vcmp.gt.f32.partialorder %v9792, 0.0
        %vm9835 = vcmp.gt.f32.partialorder %v8618, 0.0
        %vm9836 = vcmp.gt.f32.partialorder %v9010, 0.0
        %vm9837 = vcmp.gt.f32.partialorder %v9402, 0.0
        %vm9838 = vcmp.gt.f32.partialorder %v9794, 0.0
        %vm9839 = vcmp.gt.f32.partialorder %v8621, 0.0
        %vm9840 = vcmp.gt.f32.partialorder %v9013, 0.0
        %vm9841 = vcmp.gt.f32.partialorder %v9405, 0.0
        %vm9842 = vcmp.gt.f32.partialorder %v9797, 0.0
        %vm9843 = vcmp.gt.f32.partialorder %v8623, 0.0
        %vm9844 = vcmp.gt.f32.partialorder %v9015, 0.0
        %vm9845 = vcmp.gt.f32.partialorder %v9407, 0.0
        %vm9846 = vcmp.gt.f32.partialorder %v9799, 0.0
        %vm9847 = vcmp.gt.f32.partialorder %v8626, 0.0
        %vm9848 = vcmp.gt.f32.partialorder %v9018, 0.0
        %vm9849 = vcmp.gt.f32.partialorder %v9410, 0.0
        %vm9850 = vcmp.gt.f32.partialorder %v9802, 0.0
        %vm9851 = vcmp.gt.f32.partialorder %v8628, 0.0
        %vm9852 = vcmp.gt.f32.partialorder %v9020, 0.0
        %vm9853 = vcmp.gt.f32.partialorder %v9412, 0.0
        %vm9854 = vcmp.gt.f32.partialorder %v9804, 0.0
        %vm9855 = vcmp.gt.f32.partialorder %v8631, 0.0
        %vm9856 = vcmp.gt.f32.partialorder %v9023, 0.0
        %vm9857 = vcmp.gt.f32.partialorder %v9415, 0.0
        %vm9858 = vcmp.gt.f32.partialorder %v9807, 0.0
        %vm9859 = vcmp.gt.f32.partialorder %v8633, 0.0
        %vm9860 = vcmp.gt.f32.partialorder %v9025, 0.0
        %vm9861 = vcmp.gt.f32.partialorder %v9417, 0.0
        %vm9862 = vcmp.gt.f32.partialorder %v9809, 0.0
        %vm9863 = vcmp.gt.f32.partialorder %v8636, 0.0
        %vm9864 = vcmp.gt.f32.partialorder %v9028, 0.0
        %vm9865 = vcmp.gt.f32.partialorder %v9420, 0.0
        %vm9866 = vcmp.gt.f32.partialorder %v9812, 0.0
        %vm9867 = vcmp.gt.f32.partialorder %v8638, 0.0
        %vm9868 = vcmp.gt.f32.partialorder %v9030, 0.0
        %vm9869 = vcmp.gt.f32.partialorder %v9422, 0.0
        %vm9870 = vcmp.gt.f32.partialorder %v9814, 0.0
        %vm9871 = vcmp.gt.f32.partialorder %v8641, 0.0
        %vm9872 = vcmp.gt.f32.partialorder %v9033, 0.0
        %vm9873 = vcmp.gt.f32.partialorder %v9425, 0.0
        %vm9874 = vcmp.gt.f32.partialorder %v9817, 0.0
        %vm9875 = vcmp.gt.f32.partialorder %v8643, 0.0
        %vm9876 = vcmp.gt.f32.partialorder %v9035, 0.0
        %vm9877 = vcmp.gt.f32.partialorder %v9427, 0.0
        %vm9878 = vcmp.gt.f32.partialorder %v9819, 0.0
        %vm9879 = vcmp.gt.f32.partialorder %v8646, 0.0
        %vm9880 = vcmp.gt.f32.partialorder %v9038, 0.0
        %vm9881 = vcmp.gt.f32.partialorder %v9430, 0.0
        %vm9882 = vcmp.gt.f32.partialorder %v9822, 0.0
        %vm9883 = vcmp.gt.f32.partialorder %v8648, 0.0
        %vm9884 = vcmp.gt.f32.partialorder %v9040, 0.0
        %vm9885 = vcmp.gt.f32.partialorder %v9432, 0.0
        %vm9886 = vcmp.gt.f32.partialorder %v9824, 0.0
        %vm9887 = vcmp.gt.f32.partialorder %v8651, 0.0
        %vm9888 = vcmp.gt.f32.partialorder %v9043, 0.0
        %vm9889 = vcmp.gt.f32.partialorder %v9435, 0.0
        %vm9890 = vcmp.gt.f32.partialorder %v9827, 0.0
        %vm9891 = vcmp.gt.f32.partialorder %v8653, 0.0
        %vm9892 = vcmp.gt.f32.partialorder %v9045, 0.0
        %vm9893 = vcmp.gt.f32.partialorder %v9437, 0.0
        %vm9894 = vcmp.gt.f32.partialorder %v9829, 0.0
        %v9895 = vmul.f32 %v8616, 0.2
        %v9896 = vmul.f32 %v9008, 0.2
        %v9897 = vmul.f32 %v9400, 0.2
        %v9898 = vmul.f32 %v9792, 0.2
        %v9899 = vmul.f32 %v8618, 0.2
        %v9900 = vmul.f32 %v9010, 0.2
        %v9901 = vmul.f32 %v9402, 0.2
        %v9902 = vmul.f32 %v9794, 0.2
        %v9903 = vmul.f32 %v8621, 0.2
        %v9904 = vmul.f32 %v9013, 0.2
        %v9905 = vmul.f32 %v9405, 0.2
        %v9906 = vmul.f32 %v9797, 0.2
        %v9907 = vmul.f32 %v8623, 0.2
        %v9908 = vmul.f32 %v9015, 0.2
        %v9909 = vmul.f32 %v9407, 0.2
        %v9910 = vmul.f32 %v9799, 0.2
        %v9911 = vmul.f32 %v8626, 0.2
        %v9912 = vmul.f32 %v9018, 0.2
        %v9913 = vmul.f32 %v9410, 0.2
        %v9914 = vmul.f32 %v9802, 0.2
        %v9915 = vmul.f32 %v8628, 0.2
        %v9916 = vmul.f32 %v9020, 0.2
        %v9917 = vmul.f32 %v9412, 0.2
        %v9918 = vmul.f32 %v9804, 0.2
        %v9919 = vmul.f32 %v8631, 0.2
        %v9920 = vmul.f32 %v9023, 0.2
        %v9921 = vmul.f32 %v9415, 0.2
        %v9922 = vmul.f32 %v9807, 0.2
        %v9923 = vmul.f32 %v8633, 0.2
        %v9924 = vmul.f32 %v9025, 0.2
        %v9925 = vmul.f32 %v9417, 0.2
        %v9926 = vmul.f32 %v9809, 0.2
        %v9927 = vmul.f32 %v8636, 0.2
        %v9928 = vmul.f32 %v9028, 0.2
        %v9929 = vmul.f32 %v9420, 0.2
        %v9930 = vmul.f32 %v9812, 0.2
        %v9931 = vmul.f32 %v8638, 0.2
        %v9932 = vmul.f32 %v9030, 0.2
        %v9933 = vmul.f32 %v9422, 0.2
        %v9934 = vmul.f32 %v9814, 0.2
        %v9935 = vmul.f32 %v8641, 0.2
        %v9936 = vmul.f32 %v9033, 0.2
        %v9937 = vmul.f32 %v9425, 0.2
        %v9938 = vmul.f32 %v9817, 0.2
        %v9939 = vmul.f32 %v8643, 0.2
        %v9940 = vmul.f32 %v9035, 0.2
        %v9941 = vmul.f32 %v9427, 0.2
        %v9942 = vmul.f32 %v9819, 0.2
        %v9943 = vmul.f32 %v8646, 0.2
        %v9944 = vmul.f32 %v9038, 0.2
        %v9945 = vmul.f32 %v9430, 0.2
        %v9946 = vmul.f32 %v9822, 0.2
        %v9947 = vmul.f32 %v8648, 0.2
        %v9948 = vmul.f32 %v9040, 0.2
        %v9949 = vmul.f32 %v9432, 0.2
        %v9950 = vmul.f32 %v9824, 0.2
        %v9951 = vmul.f32 %v8651, 0.2
        %v9952 = vmul.f32 %v9043, 0.2
        %v9953 = vmul.f32 %v9435, 0.2
        %v9954 = vmul.f32 %v9827, 0.2
        %v9955 = vmul.f32 %v8653, 0.2
        %v9956 = vmul.f32 %v9045, 0.2
        %v9957 = vmul.f32 %v9437, 0.2
        %v9958 = vmul.f32 %v9829, 0.2
        %v9959 = vsel %vm9831, %v8616, %v9895
        %v9960 = vsel %vm9832, %v9008, %v9896
        %v9961 = vsel %vm9833, %v9400, %v9897
        %v9962 = vsel %vm9834, %v9792, %v9898
        %v9963 = vsel %vm9835, %v8618, %v9899
        %v9964 = vsel %vm9836, %v9010, %v9900
        %v9965 = vsel %vm9837, %v9402, %v9901
        %v9966 = vsel %vm9838, %v9794, %v9902
        %v9967 = vsel %vm9839, %v8621, %v9903
        %v9968 = vsel %vm9840, %v9013, %v9904
        %v9969 = vsel %vm9841, %v9405, %v9905
        %v9970 = vsel %vm9842, %v9797, %v9906
        %v9971 = vsel %vm9843, %v8623, %v9907
        %v9972 = vsel %vm9844, %v9015, %v9908
        %v9973 = vsel %vm9845, %v9407, %v9909
        %v9974 = vsel %vm9846, %v9799, %v9910
        %v9975 = vsel %vm9847, %v8626, %v9911
        %v9976 = vsel %vm9848, %v9018, %v9912
        %v9977 = vsel %vm9849, %v9410, %v9913
        %v9978 = vsel %vm9850, %v9802, %v9914
        %v9979 = vsel %vm9851, %v8628, %v9915
        %v9980 = vsel %vm9852, %v9020, %v9916
        %v9981 = vsel %vm9853, %v9412, %v9917
        %v9982 = vsel %vm9854, %v9804, %v9918
        %v9983 = vsel %vm9855, %v8631, %v9919
        %v9984 = vsel %vm9856, %v9023, %v9920
        %v9985 = vsel %vm9857, %v9415, %v9921
        %v9986 = vsel %vm9858, %v9807, %v9922
        %v9987 = vsel %vm9859, %v8633, %v9923
        %v9988 = vsel %vm9860, %v9025, %v9924
        %v9989 = vsel %vm9861, %v9417, %v9925
        %v9990 = vsel %vm9862, %v9809, %v9926
        %v9991 = vsel %vm9863, %v8636, %v9927
        %v9992 = vsel %vm9864, %v9028, %v9928
        %v9993 = vsel %vm9865, %v9420, %v9929
        %v9994 = vsel %vm9866, %v9812, %v9930
        %v9995 = vsel %vm9867, %v8638, %v9931
        %v9996 = vsel %vm9868, %v9030, %v9932
        %v9997 = vsel %vm9869, %v9422, %v9933
        %v9998 = vsel %vm9870, %v9814, %v9934
        %v9999 = vsel %vm9871, %v8641, %v9935
        %v10000 = vsel %vm9872, %v9033, %v9936
        %v10001 = vsel %vm9873, %v9425, %v9937
        %v10002 = vsel %vm9874, %v9817, %v9938
        %v10003 = vsel %vm9875, %v8643, %v9939
        %v10004 = vsel %vm9876, %v9035, %v9940
        %v10005 = vsel %vm9877, %v9427, %v9941
        %v10006 = vsel %vm9878, %v9819, %v9942
        %v10007 = vsel %vm9879, %v8646, %v9943
        %v10008 = vsel %vm9880, %v9038, %v9944
        %v10009 = vsel %vm9881, %v9430, %v9945
        %v10010 = vsel %vm9882, %v9822, %v9946
        %v10011 = vsel %vm9883, %v8648, %v9947
        %v10012 = vsel %vm9884, %v9040, %v9948
        %v10013 = vsel %vm9885, %v9432, %v9949
        %v10014 = vsel %vm9886, %v9824, %v9950
        %v10015 = vsel %vm9887, %v8651, %v9951
        %v10016 = vsel %vm9888, %v9043, %v9952
        %v10017 = vsel %vm9889, %v9435, %v9953
        %v10018 = vsel %vm9890, %v9827, %v9954
        %v10019 = vsel %vm9891, %v8653, %v9955
        %v10020 = vsel %vm9892, %v9045, %v9956
        %v10021 = vsel %vm9893, %v9437, %v9957
        %v10022 = vsel %vm9894, %v9829, %v9958
        %v10023 = vpack.c.bf16 %v9963, %v9959
        %v10024 = vpack.c.bf16 %v9964, %v9960
        %v10025 = vpack.c.bf16 %v9965, %v9961
        %v10026 = vpack.c.bf16 %v9966, %v9962
        %v10027 = vpack.c.bf16 %v9971, %v9967
        %v10028 = vpack.c.bf16 %v9972, %v9968
        %v10029 = vpack.c.bf16 %v9973, %v9969
        %v10030 = vpack.c.bf16 %v9974, %v9970
        %v10031 = vpack.c.bf16 %v9979, %v9975
        %v10032 = vpack.c.bf16 %v9980, %v9976
        %v10033 = vpack.c.bf16 %v9981, %v9977
        %v10034 = vpack.c.bf16 %v9982, %v9978
        %v10035 = vpack.c.bf16 %v9987, %v9983
        %v10036 = vpack.c.bf16 %v9988, %v9984
        %v10037 = vpack.c.bf16 %v9989, %v9985
        %v10038 = vpack.c.bf16 %v9990, %v9986
        %v10039 = vpack.c.bf16 %v9995, %v9991
        %v10040 = vpack.c.bf16 %v9996, %v9992
        %v10041 = vpack.c.bf16 %v9997, %v9993
        %v10042 = vpack.c.bf16 %v9998, %v9994
        %v10043 = vpack.c.bf16 %v10003, %v9999
        %v10044 = vpack.c.bf16 %v10004, %v10000
        %v10045 = vpack.c.bf16 %v10005, %v10001
        %v10046 = vpack.c.bf16 %v10006, %v10002
        %v10047 = vpack.c.bf16 %v10011, %v10007
        %v10048 = vpack.c.bf16 %v10012, %v10008
        %v10049 = vpack.c.bf16 %v10013, %v10009
        %v10050 = vpack.c.bf16 %v10014, %v10010
        %v10051 = vpack.c.bf16 %v10019, %v10015
        %v10052 = vpack.c.bf16 %v10020, %v10016
        %v10053 = vpack.c.bf16 %v10021, %v10017
        %v10054 = vpack.c.bf16 %v10022, %v10018
        %v10055 = vld [vmem:[#allocation11] sm:$0xff]
        %v10056 = vld [vmem:[#allocation11 + $0x8] sm:$0xff]
        %v10057 = vld [vmem:[#allocation11 + $0x10] sm:$0xff]
        %v10058 = vld [vmem:[#allocation11 + $0x18] sm:$0xff]
        %v10059 = vld [vmem:[#allocation11 + $0x20] sm:$0xff]
        %v10060 = vld [vmem:[#allocation11 + $0x28] sm:$0xff]
        %v10061 = vld [vmem:[#allocation11 + $0x30] sm:$0xff]
        %v10062 = vld [vmem:[#allocation11 + $0x38] sm:$0xff]
        %v10063 = vld [vmem:[#allocation11 + $0x40] sm:$0xff]
        %v10064 = vld [vmem:[#allocation11 + $0x48] sm:$0xff]
        %v10065 = vld [vmem:[#allocation11 + $0x50] sm:$0xff]
        %v10066 = vld [vmem:[#allocation11 + $0x58] sm:$0xff]
        %v10067 = vld [vmem:[#allocation11 + $0x60] sm:$0xff]
        %v10068 = vld [vmem:[#allocation11 + $0x68] sm:$0xff]
        %v10069 = vld [vmem:[#allocation11 + $0x70] sm:$0xff]
        %v10070 = vld [vmem:[#allocation11 + $0x78] sm:$0xff]
        %v10071 = vld [vmem:[#allocation11 + $0x80] sm:$0xff]
        %v10072 = vld [vmem:[#allocation11 + $0x88] sm:$0xff]
        %v10073 = vld [vmem:[#allocation11 + $0x90] sm:$0xff]
        %v10074 = vld [vmem:[#allocation11 + $0x98] sm:$0xff]
        %v10075 = vld [vmem:[#allocation11 + $0xa0] sm:$0xff]
        %v10076 = vld [vmem:[#allocation11 + $0xa8] sm:$0xff]
        %v10077 = vld [vmem:[#allocation11 + $0xb0] sm:$0xff]
        %v10078 = vld [vmem:[#allocation11 + $0xb8] sm:$0xff]
        %v10079 = vld [vmem:[#allocation11 + $0xc0] sm:$0xff]
        %v10080 = vld [vmem:[#allocation11 + $0xc8] sm:$0xff]
        %v10081 = vld [vmem:[#allocation11 + $0xd0] sm:$0xff]
        %v10082 = vld [vmem:[#allocation11 + $0xd8] sm:$0xff]
        %v10083 = vld [vmem:[#allocation11 + $0xe0] sm:$0xff]
        %v10084 = vld [vmem:[#allocation11 + $0xe8] sm:$0xff]
        %v10085 = vld [vmem:[#allocation11 + $0xf0] sm:$0xff]
        %v10086 = vld [vmem:[#allocation11 + $0xf8] sm:$0xff]
        %v10087 = vld [vmem:[#allocation11 + $0x100] sm:$0xff]
        %v10088 = vld [vmem:[#allocation11 + $0x108] sm:$0xff]
        %v10089 = vld [vmem:[#allocation11 + $0x110] sm:$0xff]
        %v10090 = vld [vmem:[#allocation11 + $0x118] sm:$0xff]
        %v10091 = vld [vmem:[#allocation11 + $0x120] sm:$0xff]
        %v10092 = vld [vmem:[#allocation11 + $0x128] sm:$0xff]
        %v10093 = vld [vmem:[#allocation11 + $0x130] sm:$0xff]
        %v10094 = vld [vmem:[#allocation11 + $0x138] sm:$0xff]
        %v10095 = vld [vmem:[#allocation11 + $0x140] sm:$0xff]
        %v10096 = vld [vmem:[#allocation11 + $0x148] sm:$0xff]
        %v10097 = vld [vmem:[#allocation11 + $0x150] sm:$0xff]
        %v10098 = vld [vmem:[#allocation11 + $0x158] sm:$0xff]
        %v10099 = vld [vmem:[#allocation11 + $0x160] sm:$0xff]
        %v10100 = vld [vmem:[#allocation11 + $0x168] sm:$0xff]
        %v10101 = vld [vmem:[#allocation11 + $0x170] sm:$0xff]
        %v10102 = vld [vmem:[#allocation11 + $0x178] sm:$0xff]
        %v10103 = vld [vmem:[#allocation11 + $0x180] sm:$0xff]
        %v10104 = vld [vmem:[#allocation11 + $0x188] sm:$0xff]
        %v10105 = vld [vmem:[#allocation11 + $0x190] sm:$0xff]
        %v10106 = vld [vmem:[#allocation11 + $0x198] sm:$0xff]
        %v10107 = vld [vmem:[#allocation11 + $0x1a0] sm:$0xff]
        %v10108 = vld [vmem:[#allocation11 + $0x1a8] sm:$0xff]
        %v10109 = vld [vmem:[#allocation11 + $0x1b0] sm:$0xff]
        %v10110 = vld [vmem:[#allocation11 + $0x1b8] sm:$0xff]
        %v10111 = vld [vmem:[#allocation11 + $0x1c0] sm:$0xff]
        %v10112 = vld [vmem:[#allocation11 + $0x1c8] sm:$0xff]
        %v10113 = vld [vmem:[#allocation11 + $0x1d0] sm:$0xff]
        %v10114 = vld [vmem:[#allocation11 + $0x1d8] sm:$0xff]
        %v10115 = vld [vmem:[#allocation11 + $0x1e0] sm:$0xff]
        %v10116 = vld [vmem:[#allocation11 + $0x1e8] sm:$0xff]
        %v10117 = vld [vmem:[#allocation11 + $0x1f0] sm:$0xff]
        %v10118 = vld [vmem:[#allocation11 + $0x1f8] sm:$0xff]
        %v10119 = vld [vmem:[#allocation13] sm:$0x3]
        %v10121 = vperm.slane %v10119, 0
        %v10122 = vperm.slane %v10119, 1
        %v10189 = vunpack.c.l.b16 %v10055
        %v10190 = vunpack.c.h.b16 %v10055
        %v10191 = vunpack.c.l.b16 %v10056
        %v10192 = vunpack.c.h.b16 %v10056
        %v10193 = vunpack.c.l.b16 %v10057
        %v10194 = vunpack.c.h.b16 %v10057
        %v10195 = vunpack.c.l.b16 %v10058
        %v10196 = vunpack.c.h.b16 %v10058
        %v10197 = vunpack.c.l.b16 %v10059
        %v10198 = vunpack.c.h.b16 %v10059
        %v10199 = vunpack.c.l.b16 %v10060
        %v10200 = vunpack.c.h.b16 %v10060
        %v10201 = vunpack.c.l.b16 %v10061
        %v10202 = vunpack.c.h.b16 %v10061
        %v10203 = vunpack.c.l.b16 %v10062
        %v10204 = vunpack.c.h.b16 %v10062
        %v10205 = vunpack.c.l.b16 %v10063
        %v10206 = vunpack.c.h.b16 %v10063
        %v10207 = vunpack.c.l.b16 %v10064
        %v10208 = vunpack.c.h.b16 %v10064
        %v10209 = vunpack.c.l.b16 %v10065
        %v10210 = vunpack.c.h.b16 %v10065
        %v10211 = vunpack.c.l.b16 %v10066
        %v10212 = vunpack.c.h.b16 %v10066
        %v10213 = vunpack.c.l.b16 %v10067
        %v10214 = vunpack.c.h.b16 %v10067
        %v10215 = vunpack.c.l.b16 %v10068
        %v10216 = vunpack.c.h.b16 %v10068
        %v10217 = vunpack.c.l.b16 %v10069
        %v10218 = vunpack.c.h.b16 %v10069
        %v10219 = vunpack.c.l.b16 %v10070
        %v10220 = vunpack.c.h.b16 %v10070
        %v10221 = vunpack.c.l.b16 %v10071
        %v10222 = vunpack.c.h.b16 %v10071
        %v10223 = vunpack.c.l.b16 %v10072
        %v10224 = vunpack.c.h.b16 %v10072
        %v10225 = vunpack.c.l.b16 %v10073
        %v10226 = vunpack.c.h.b16 %v10073
        %v10227 = vunpack.c.l.b16 %v10074
        %v10228 = vunpack.c.h.b16 %v10074
        %v10229 = vunpack.c.l.b16 %v10075
        %v10230 = vunpack.c.h.b16 %v10075
        %v10231 = vunpack.c.l.b16 %v10076
        %v10232 = vunpack.c.h.b16 %v10076
        %v10233 = vunpack.c.l.b16 %v10077
        %v10234 = vunpack.c.h.b16 %v10077
        %v10235 = vunpack.c.l.b16 %v10078
        %v10236 = vunpack.c.h.b16 %v10078
        %v10237 = vunpack.c.l.b16 %v10079
        %v10238 = vunpack.c.h.b16 %v10079
        %v10239 = vunpack.c.l.b16 %v10080
        %v10240 = vunpack.c.h.b16 %v10080
        %v10241 = vunpack.c.l.b16 %v10081
        %v10242 = vunpack.c.h.b16 %v10081
        %v10243 = vunpack.c.l.b16 %v10082
        %v10244 = vunpack.c.h.b16 %v10082
        %v10245 = vunpack.c.l.b16 %v10083
        %v10246 = vunpack.c.h.b16 %v10083
        %v10247 = vunpack.c.l.b16 %v10084
        %v10248 = vunpack.c.h.b16 %v10084
        %v10249 = vunpack.c.l.b16 %v10085
        %v10250 = vunpack.c.h.b16 %v10085
        %v10251 = vunpack.c.l.b16 %v10086
        %v10252 = vunpack.c.h.b16 %v10086
        %v10253 = vunpack.c.l.b16 %v10087
        %v10254 = vunpack.c.h.b16 %v10087
        %v10255 = vunpack.c.l.b16 %v10088
        %v10256 = vunpack.c.h.b16 %v10088
        %v10257 = vunpack.c.l.b16 %v10089
        %v10258 = vunpack.c.h.b16 %v10089
        %v10259 = vunpack.c.l.b16 %v10090
        %v10260 = vunpack.c.h.b16 %v10090
        %v10261 = vunpack.c.l.b16 %v10091
        %v10262 = vunpack.c.h.b16 %v10091
        %v10263 = vunpack.c.l.b16 %v10092
        %v10264 = vunpack.c.h.b16 %v10092
        %v10265 = vunpack.c.l.b16 %v10093
        %v10266 = vunpack.c.h.b16 %v10093
        %v10267 = vunpack.c.l.b16 %v10094
        %v10268 = vunpack.c.h.b16 %v10094
        %v10269 = vunpack.c.l.b16 %v10095
        %v10270 = vunpack.c.h.b16 %v10095
        %v10271 = vunpack.c.l.b16 %v10096
        %v10272 = vunpack.c.h.b16 %v10096
        %v10273 = vunpack.c.l.b16 %v10097
        %v10274 = vunpack.c.h.b16 %v10097
        %v10275 = vunpack.c.l.b16 %v10098
        %v10276 = vunpack.c.h.b16 %v10098
        %v10277 = vunpack.c.l.b16 %v10099
        %v10278 = vunpack.c.h.b16 %v10099
        %v10279 = vunpack.c.l.b16 %v10100
        %v10280 = vunpack.c.h.b16 %v10100
        %v10281 = vunpack.c.l.b16 %v10101
        %v10282 = vunpack.c.h.b16 %v10101
        %v10283 = vunpack.c.l.b16 %v10102
        %v10284 = vunpack.c.h.b16 %v10102
        %v10285 = vunpack.c.l.b16 %v10103
        %v10286 = vunpack.c.h.b16 %v10103
        %v10287 = vunpack.c.l.b16 %v10104
        %v10288 = vunpack.c.h.b16 %v10104
        %v10289 = vunpack.c.l.b16 %v10105
        %v10290 = vunpack.c.h.b16 %v10105
        %v10291 = vunpack.c.l.b16 %v10106
        %v10292 = vunpack.c.h.b16 %v10106
        %v10293 = vunpack.c.l.b16 %v10107
        %v10294 = vunpack.c.h.b16 %v10107
        %v10295 = vunpack.c.l.b16 %v10108
        %v10296 = vunpack.c.h.b16 %v10108
        %v10297 = vunpack.c.l.b16 %v10109
        %v10298 = vunpack.c.h.b16 %v10109
        %v10299 = vunpack.c.l.b16 %v10110
        %v10300 = vunpack.c.h.b16 %v10110
        %v10301 = vunpack.c.l.b16 %v10111
        %v10302 = vunpack.c.h.b16 %v10111
        %v10303 = vunpack.c.l.b16 %v10112
        %v10304 = vunpack.c.h.b16 %v10112
        %v10305 = vunpack.c.l.b16 %v10113
        %v10306 = vunpack.c.h.b16 %v10113
        %v10307 = vunpack.c.l.b16 %v10114
        %v10308 = vunpack.c.h.b16 %v10114
        %v10309 = vunpack.c.l.b16 %v10115
        %v10310 = vunpack.c.h.b16 %v10115
        %v10311 = vunpack.c.l.b16 %v10116
        %v10312 = vunpack.c.h.b16 %v10116
        %v10313 = vunpack.c.l.b16 %v10117
        %v10314 = vunpack.c.h.b16 %v10117
        %v10315 = vunpack.c.l.b16 %v10118
        %v10316 = vunpack.c.h.b16 %v10118
        %v10317 = vpack.c.b16 %v10191, %v10189
        %v10318 = vpack.c.b16 %v10192, %v10190
        %v10319 = vpack.c.b16 %v10195, %v10193
        %v10320 = vpack.c.b16 %v10196, %v10194
        %v10321 = vpack.c.b16 %v10199, %v10197
        %v10322 = vpack.c.b16 %v10200, %v10198
        %v10323 = vpack.c.b16 %v10203, %v10201
        %v10324 = vpack.c.b16 %v10204, %v10202
        %v10325 = vpack.c.b16 %v10207, %v10205
        %v10326 = vpack.c.b16 %v10208, %v10206
        %v10327 = vpack.c.b16 %v10211, %v10209
        %v10328 = vpack.c.b16 %v10212, %v10210
        %v10329 = vpack.c.b16 %v10215, %v10213
        %v10330 = vpack.c.b16 %v10216, %v10214
        %v10331 = vpack.c.b16 %v10219, %v10217
        %v10332 = vpack.c.b16 %v10220, %v10218
        %v10333 = vpack.c.b16 %v10223, %v10221
        %v10334 = vpack.c.b16 %v10224, %v10222
        %v10335 = vpack.c.b16 %v10227, %v10225
        %v10336 = vpack.c.b16 %v10228, %v10226
        %v10337 = vpack.c.b16 %v10231, %v10229
        %v10338 = vpack.c.b16 %v10232, %v10230
        %v10339 = vpack.c.b16 %v10235, %v10233
        %v10340 = vpack.c.b16 %v10236, %v10234
        %v10341 = vpack.c.b16 %v10239, %v10237
        %v10342 = vpack.c.b16 %v10240, %v10238
        %v10343 = vpack.c.b16 %v10243, %v10241
        %v10344 = vpack.c.b16 %v10244, %v10242
        %v10345 = vpack.c.b16 %v10247, %v10245
        %v10346 = vpack.c.b16 %v10248, %v10246
        %v10347 = vpack.c.b16 %v10251, %v10249
        %v10348 = vpack.c.b16 %v10252, %v10250
        %v10349 = vpack.c.b16 %v10255, %v10253
        %v10350 = vpack.c.b16 %v10256, %v10254
        %v10351 = vpack.c.b16 %v10259, %v10257
        %v10352 = vpack.c.b16 %v10260, %v10258
        %v10353 = vpack.c.b16 %v10263, %v10261
        %v10354 = vpack.c.b16 %v10264, %v10262
        %v10355 = vpack.c.b16 %v10267, %v10265
        %v10356 = vpack.c.b16 %v10268, %v10266
        %v10357 = vpack.c.b16 %v10271, %v10269
        %v10358 = vpack.c.b16 %v10272, %v10270
        %v10359 = vpack.c.b16 %v10275, %v10273
        %v10360 = vpack.c.b16 %v10276, %v10274
        %v10361 = vpack.c.b16 %v10279, %v10277
        %v10362 = vpack.c.b16 %v10280, %v10278
        %v10363 = vpack.c.b16 %v10283, %v10281
        %v10364 = vpack.c.b16 %v10284, %v10282
        %v10365 = vpack.c.b16 %v10287, %v10285
        %v10366 = vpack.c.b16 %v10288, %v10286
        %v10367 = vpack.c.b16 %v10291, %v10289
        %v10368 = vpack.c.b16 %v10292, %v10290
        %v10369 = vpack.c.b16 %v10295, %v10293
        %v10370 = vpack.c.b16 %v10296, %v10294
        %v10371 = vpack.c.b16 %v10299, %v10297
        %v10372 = vpack.c.b16 %v10300, %v10298
        %v10373 = vpack.c.b16 %v10303, %v10301
        %v10374 = vpack.c.b16 %v10304, %v10302
        %v10375 = vpack.c.b16 %v10307, %v10305
        %v10376 = vpack.c.b16 %v10308, %v10306
        %v10377 = vpack.c.b16 %v10311, %v10309
        %v10378 = vpack.c.b16 %v10312, %v10310
        %v10379 = vpack.c.b16 %v10315, %v10313
        %v10380 = vpack.c.b16 %v10316, %v10314
        %10445 = vmatpush.bf16.msra.mxu0 %v10331
        %10446 = vmatpush.bf16.msra.mxu0 %v10329
        %10447 = vmatpush.bf16.msra.mxu0 %v10327
        %10448 = vmatpush.bf16.msra.mxu0 %v10325
        %10449 = vmatpush.bf16.msra.mxu0 %v10323
        %10450 = vmatpush.bf16.msra.mxu0 %v10321
        %10451 = vmatpush.bf16.msra.mxu0 %v10319
        %10452 = vmatpush.bf16.msra.mxu0 %v10317
        %10453 = vmatmul.bf16.gmra.mxu0 %v10023
        %v10454 = vpop.f32.mrf.mxu0
        %v10455 = vadd.f32 %v10121, %v10454
        %v10456 = vpop.f32.mrf.mxu0
        %v10457 = vadd.f32 %v10121, %v10456
        %10458 = vmatmul.bf16.gmra.mxu0 %v10027
        %v10459 = vpop.f32.mrf.mxu0
        %v10460 = vadd.f32 %v10121, %v10459
        %v10461 = vpop.f32.mrf.mxu0
        %v10462 = vadd.f32 %v10121, %v10461
        %10463 = vmatmul.bf16.gmra.mxu0 %v10031
        %v10464 = vpop.f32.mrf.mxu0
        %v10465 = vadd.f32 %v10121, %v10464
        %v10466 = vpop.f32.mrf.mxu0
        %v10467 = vadd.f32 %v10121, %v10466
        %10468 = vmatmul.bf16.gmra.mxu0 %v10035
        %v10469 = vpop.f32.mrf.mxu0
        %v10470 = vadd.f32 %v10121, %v10469
        %v10471 = vpop.f32.mrf.mxu0
        %v10472 = vadd.f32 %v10121, %v10471
        %10473 = vmatmul.bf16.gmra.mxu0 %v10039
        %v10474 = vpop.f32.mrf.mxu0
        %v10475 = vadd.f32 %v10121, %v10474
        %v10476 = vpop.f32.mrf.mxu0
        %v10477 = vadd.f32 %v10121, %v10476
        %10478 = vmatmul.bf16.gmra.mxu0 %v10043
        %v10479 = vpop.f32.mrf.mxu0
        %v10480 = vadd.f32 %v10121, %v10479
        %v10481 = vpop.f32.mrf.mxu0
        %v10482 = vadd.f32 %v10121, %v10481
        %10483 = vmatmul.bf16.gmra.mxu0 %v10047
        %v10484 = vpop.f32.mrf.mxu0
        %v10485 = vadd.f32 %v10121, %v10484
        %v10486 = vpop.f32.mrf.mxu0
        %v10487 = vadd.f32 %v10121, %v10486
        %10488 = vmatmul.bf16.gmra.mxu0 %v10051
        %v10489 = vpop.f32.mrf.mxu0
        %v10490 = vadd.f32 %v10121, %v10489
        %v10491 = vpop.f32.mrf.mxu0
        %v10492 = vadd.f32 %v10121, %v10491
        %10493 = vdwg.mxu0
        %10494 = vmatpush.bf16.msra.mxu0 %v10347
        %10495 = vmatpush.bf16.msra.mxu0 %v10345
        %10496 = vmatpush.bf16.msra.mxu0 %v10343
        %10497 = vmatpush.bf16.msra.mxu0 %v10341
        %10498 = vmatpush.bf16.msra.mxu0 %v10339
        %10499 = vmatpush.bf16.msra.mxu0 %v10337
        %10500 = vmatpush.bf16.msra.mxu0 %v10335
        %10501 = vmatpush.bf16.msra.mxu0 %v10333
        %10502 = vmatmul.bf16.gmra.mxu0 %v10024
        %v10503 = vpop.f32.mrf.mxu0
        %v10504 = vadd.f32 %v10455, %v10503
        %v10505 = vpop.f32.mrf.mxu0
        %v10506 = vadd.f32 %v10457, %v10505
        %10507 = vmatmul.bf16.gmra.mxu0 %v10028
        %v10508 = vpop.f32.mrf.mxu0
        %v10509 = vadd.f32 %v10460, %v10508
        %v10510 = vpop.f32.mrf.mxu0
        %v10511 = vadd.f32 %v10462, %v10510
        %10512 = vmatmul.bf16.gmra.mxu0 %v10032
        %v10513 = vpop.f32.mrf.mxu0
        %v10514 = vadd.f32 %v10465, %v10513
        %v10515 = vpop.f32.mrf.mxu0
        %v10516 = vadd.f32 %v10467, %v10515
        %10517 = vmatmul.bf16.gmra.mxu0 %v10036
        %v10518 = vpop.f32.mrf.mxu0
        %v10519 = vadd.f32 %v10470, %v10518
        %v10520 = vpop.f32.mrf.mxu0
        %v10521 = vadd.f32 %v10472, %v10520
        %10522 = vmatmul.bf16.gmra.mxu0 %v10040
        %v10523 = vpop.f32.mrf.mxu0
        %v10524 = vadd.f32 %v10475, %v10523
        %v10525 = vpop.f32.mrf.mxu0
        %v10526 = vadd.f32 %v10477, %v10525
        %10527 = vmatmul.bf16.gmra.mxu0 %v10044
        %v10528 = vpop.f32.mrf.mxu0
        %v10529 = vadd.f32 %v10480, %v10528
        %v10530 = vpop.f32.mrf.mxu0
        %v10531 = vadd.f32 %v10482, %v10530
        %10532 = vmatmul.bf16.gmra.mxu0 %v10048
        %v10533 = vpop.f32.mrf.mxu0
        %v10534 = vadd.f32 %v10485, %v10533
        %v10535 = vpop.f32.mrf.mxu0
        %v10536 = vadd.f32 %v10487, %v10535
        %10537 = vmatmul.bf16.gmra.mxu0 %v10052
        %v10538 = vpop.f32.mrf.mxu0
        %v10539 = vadd.f32 %v10490, %v10538
        %v10540 = vpop.f32.mrf.mxu0
        %v10541 = vadd.f32 %v10492, %v10540
        %10542 = vdwg.mxu0
        %10543 = vmatpush.bf16.msra.mxu0 %v10363
        %10544 = vmatpush.bf16.msra.mxu0 %v10361
        %10545 = vmatpush.bf16.msra.mxu0 %v10359
        %10546 = vmatpush.bf16.msra.mxu0 %v10357
        %10547 = vmatpush.bf16.msra.mxu0 %v10355
        %10548 = vmatpush.bf16.msra.mxu0 %v10353
        %10549 = vmatpush.bf16.msra.mxu0 %v10351
        %10550 = vmatpush.bf16.msra.mxu0 %v10349
        %10551 = vmatmul.bf16.gmra.mxu0 %v10025
        %v10552 = vpop.f32.mrf.mxu0
        %v10553 = vadd.f32 %v10504, %v10552
        %v10554 = vpop.f32.mrf.mxu0
        %v10555 = vadd.f32 %v10506, %v10554
        %10556 = vmatmul.bf16.gmra.mxu0 %v10029
        %v10557 = vpop.f32.mrf.mxu0
        %v10558 = vadd.f32 %v10509, %v10557
        %v10559 = vpop.f32.mrf.mxu0
        %v10560 = vadd.f32 %v10511, %v10559
        %10561 = vmatmul.bf16.gmra.mxu0 %v10033
        %v10562 = vpop.f32.mrf.mxu0
        %v10563 = vadd.f32 %v10514, %v10562
        %v10564 = vpop.f32.mrf.mxu0
        %v10565 = vadd.f32 %v10516, %v10564
        %10566 = vmatmul.bf16.gmra.mxu0 %v10037
        %v10567 = vpop.f32.mrf.mxu0
        %v10568 = vadd.f32 %v10519, %v10567
        %v10569 = vpop.f32.mrf.mxu0
        %v10570 = vadd.f32 %v10521, %v10569
        %10571 = vmatmul.bf16.gmra.mxu0 %v10041
        %v10572 = vpop.f32.mrf.mxu0
        %v10573 = vadd.f32 %v10524, %v10572
        %v10574 = vpop.f32.mrf.mxu0
        %v10575 = vadd.f32 %v10526, %v10574
        %10576 = vmatmul.bf16.gmra.mxu0 %v10045
        %v10577 = vpop.f32.mrf.mxu0
        %v10578 = vadd.f32 %v10529, %v10577
        %v10579 = vpop.f32.mrf.mxu0
        %v10580 = vadd.f32 %v10531, %v10579
        %10581 = vmatmul.bf16.gmra.mxu0 %v10049
        %v10582 = vpop.f32.mrf.mxu0
        %v10583 = vadd.f32 %v10534, %v10582
        %v10584 = vpop.f32.mrf.mxu0
        %v10585 = vadd.f32 %v10536, %v10584
        %10586 = vmatmul.bf16.gmra.mxu0 %v10053
        %v10587 = vpop.f32.mrf.mxu0
        %v10588 = vadd.f32 %v10539, %v10587
        %v10589 = vpop.f32.mrf.mxu0
        %v10590 = vadd.f32 %v10541, %v10589
        %10591 = vdwg.mxu0
        %10592 = vmatpush.bf16.msra.mxu0 %v10379
        %10593 = vmatpush.bf16.msra.mxu0 %v10377
        %10594 = vmatpush.bf16.msra.mxu0 %v10375
        %10595 = vmatpush.bf16.msra.mxu0 %v10373
        %10596 = vmatpush.bf16.msra.mxu0 %v10371
        %10597 = vmatpush.bf16.msra.mxu0 %v10369
        %10598 = vmatpush.bf16.msra.mxu0 %v10367
        %10599 = vmatpush.bf16.msra.mxu0 %v10365
        %10600 = vmatmul.bf16.gmra.mxu0 %v10026
        %v10601 = vpop.f32.mrf.mxu0
        %v10602 = vadd.f32 %v10553, %v10601
        %v10603 = vpop.f32.mrf.mxu0
        %v10604 = vadd.f32 %v10555, %v10603
        %10605 = vmatmul.bf16.gmra.mxu0 %v10030
        %v10606 = vpop.f32.mrf.mxu0
        %v10607 = vadd.f32 %v10558, %v10606
        %v10608 = vpop.f32.mrf.mxu0
        %v10609 = vadd.f32 %v10560, %v10608
        %10610 = vmatmul.bf16.gmra.mxu0 %v10034
        %v10611 = vpop.f32.mrf.mxu0
        %v10612 = vadd.f32 %v10563, %v10611
        %v10613 = vpop.f32.mrf.mxu0
        %v10614 = vadd.f32 %v10565, %v10613
        %10615 = vmatmul.bf16.gmra.mxu0 %v10038
        %v10616 = vpop.f32.mrf.mxu0
        %v10617 = vadd.f32 %v10568, %v10616
        %v10618 = vpop.f32.mrf.mxu0
        %v10619 = vadd.f32 %v10570, %v10618
        %10620 = vmatmul.bf16.gmra.mxu0 %v10042
        %v10621 = vpop.f32.mrf.mxu0
        %v10622 = vadd.f32 %v10573, %v10621
        %v10623 = vpop.f32.mrf.mxu0
        %v10624 = vadd.f32 %v10575, %v10623
        %10625 = vmatmul.bf16.gmra.mxu0 %v10046
        %v10626 = vpop.f32.mrf.mxu0
        %v10627 = vadd.f32 %v10578, %v10626
        %v10628 = vpop.f32.mrf.mxu0
        %v10629 = vadd.f32 %v10580, %v10628
        %10630 = vmatmul.bf16.gmra.mxu0 %v10050
        %v10631 = vpop.f32.mrf.mxu0
        %v10632 = vadd.f32 %v10583, %v10631
        %v10633 = vpop.f32.mrf.mxu0
        %v10634 = vadd.f32 %v10585, %v10633
        %10635 = vmatmul.bf16.gmra.mxu0 %v10054
        %v10636 = vpop.f32.mrf.mxu0
        %v10637 = vadd.f32 %v10588, %v10636
        %v10638 = vpop.f32.mrf.mxu0
        %v10639 = vadd.f32 %v10590, %v10638
        %10640 = vdwg.mxu0
        %10641 = vmatpush.bf16.msra.mxu0 %v10332
        %10642 = vmatpush.bf16.msra.mxu0 %v10330
        %10643 = vmatpush.bf16.msra.mxu0 %v10328
        %10644 = vmatpush.bf16.msra.mxu0 %v10326
        %10645 = vmatpush.bf16.msra.mxu0 %v10324
        %10646 = vmatpush.bf16.msra.mxu0 %v10322
        %10647 = vmatpush.bf16.msra.mxu0 %v10320
        %10648 = vmatpush.bf16.msra.mxu0 %v10318
        %10649 = vmatmul.bf16.gmra.mxu0 %v10023
        %v10650 = vpop.f32.mrf.mxu0
        %v10651 = vadd.f32 %v10122, %v10650
        %v10652 = vpop.f32.mrf.mxu0
        %v10653 = vadd.f32 %v10122, %v10652
        %10654 = vmatmul.bf16.gmra.mxu0 %v10027
        %v10655 = vpop.f32.mrf.mxu0
        %v10656 = vadd.f32 %v10122, %v10655
        %v10657 = vpop.f32.mrf.mxu0
        %v10658 = vadd.f32 %v10122, %v10657
        %10659 = vmatmul.bf16.gmra.mxu0 %v10031
        %v10660 = vpop.f32.mrf.mxu0
        %v10661 = vadd.f32 %v10122, %v10660
        %v10662 = vpop.f32.mrf.mxu0
        %v10663 = vadd.f32 %v10122, %v10662
        %10664 = vmatmul.bf16.gmra.mxu0 %v10035
        %v10665 = vpop.f32.mrf.mxu0
        %v10666 = vadd.f32 %v10122, %v10665
        %v10667 = vpop.f32.mrf.mxu0
        %v10668 = vadd.f32 %v10122, %v10667
        %10669 = vmatmul.bf16.gmra.mxu0 %v10039
        %v10670 = vpop.f32.mrf.mxu0
        %v10671 = vadd.f32 %v10122, %v10670
        %v10672 = vpop.f32.mrf.mxu0
        %v10673 = vadd.f32 %v10122, %v10672
        %10674 = vmatmul.bf16.gmra.mxu0 %v10043
        %v10675 = vpop.f32.mrf.mxu0
        %v10676 = vadd.f32 %v10122, %v10675
        %v10677 = vpop.f32.mrf.mxu0
        %v10678 = vadd.f32 %v10122, %v10677
        %10679 = vmatmul.bf16.gmra.mxu0 %v10047
        %v10680 = vpop.f32.mrf.mxu0
        %v10681 = vadd.f32 %v10122, %v10680
        %v10682 = vpop.f32.mrf.mxu0
        %v10683 = vadd.f32 %v10122, %v10682
        %10684 = vmatmul.bf16.gmra.mxu0 %v10051
        %v10685 = vpop.f32.mrf.mxu0
        %v10686 = vadd.f32 %v10122, %v10685
        %v10687 = vpop.f32.mrf.mxu0
        %v10688 = vadd.f32 %v10122, %v10687
        %10689 = vdwg.mxu0
        %10690 = vmatpush.bf16.msra.mxu0 %v10348
        %10691 = vmatpush.bf16.msra.mxu0 %v10346
        %10692 = vmatpush.bf16.msra.mxu0 %v10344
        %10693 = vmatpush.bf16.msra.mxu0 %v10342
        %10694 = vmatpush.bf16.msra.mxu0 %v10340
        %10695 = vmatpush.bf16.msra.mxu0 %v10338
        %10696 = vmatpush.bf16.msra.mxu0 %v10336
        %10697 = vmatpush.bf16.msra.mxu0 %v10334
        %10698 = vmatmul.bf16.gmra.mxu0 %v10024
        %v10699 = vpop.f32.mrf.mxu0
        %v10700 = vadd.f32 %v10651, %v10699
        %v10701 = vpop.f32.mrf.mxu0
        %v10702 = vadd.f32 %v10653, %v10701
        %10703 = vmatmul.bf16.gmra.mxu0 %v10028
        %v10704 = vpop.f32.mrf.mxu0
        %v10705 = vadd.f32 %v10656, %v10704
        %v10706 = vpop.f32.mrf.mxu0
        %v10707 = vadd.f32 %v10658, %v10706
        %10708 = vmatmul.bf16.gmra.mxu0 %v10032
        %v10709 = vpop.f32.mrf.mxu0
        %v10710 = vadd.f32 %v10661, %v10709
        %v10711 = vpop.f32.mrf.mxu0
        %v10712 = vadd.f32 %v10663, %v10711
        %10713 = vmatmul.bf16.gmra.mxu0 %v10036
        %v10714 = vpop.f32.mrf.mxu0
        %v10715 = vadd.f32 %v10666, %v10714
        %v10716 = vpop.f32.mrf.mxu0
        %v10717 = vadd.f32 %v10668, %v10716
        %10718 = vmatmul.bf16.gmra.mxu0 %v10040
        %v10719 = vpop.f32.mrf.mxu0
        %v10720 = vadd.f32 %v10671, %v10719
        %v10721 = vpop.f32.mrf.mxu0
        %v10722 = vadd.f32 %v10673, %v10721
        %10723 = vmatmul.bf16.gmra.mxu0 %v10044
        %v10724 = vpop.f32.mrf.mxu0
        %v10725 = vadd.f32 %v10676, %v10724
        %v10726 = vpop.f32.mrf.mxu0
        %v10727 = vadd.f32 %v10678, %v10726
        %10728 = vmatmul.bf16.gmra.mxu0 %v10048
        %v10729 = vpop.f32.mrf.mxu0
        %v10730 = vadd.f32 %v10681, %v10729
        %v10731 = vpop.f32.mrf.mxu0
        %v10732 = vadd.f32 %v10683, %v10731
        %10733 = vmatmul.bf16.gmra.mxu0 %v10052
        %v10734 = vpop.f32.mrf.mxu0
        %v10735 = vadd.f32 %v10686, %v10734
        %v10736 = vpop.f32.mrf.mxu0
        %v10737 = vadd.f32 %v10688, %v10736
        %10738 = vdwg.mxu0
        %10739 = vmatpush.bf16.msra.mxu0 %v10364
        %10740 = vmatpush.bf16.msra.mxu0 %v10362
        %10741 = vmatpush.bf16.msra.mxu0 %v10360
        %10742 = vmatpush.bf16.msra.mxu0 %v10358
        %10743 = vmatpush.bf16.msra.mxu0 %v10356
        %10744 = vmatpush.bf16.msra.mxu0 %v10354
        %10745 = vmatpush.bf16.msra.mxu0 %v10352
        %10746 = vmatpush.bf16.msra.mxu0 %v10350
        %10747 = vmatmul.bf16.gmra.mxu0 %v10025
        %v10748 = vpop.f32.mrf.mxu0
        %v10749 = vadd.f32 %v10700, %v10748
        %v10750 = vpop.f32.mrf.mxu0
        %v10751 = vadd.f32 %v10702, %v10750
        %10752 = vmatmul.bf16.gmra.mxu0 %v10029
        %v10753 = vpop.f32.mrf.mxu0
        %v10754 = vadd.f32 %v10705, %v10753
        %v10755 = vpop.f32.mrf.mxu0
        %v10756 = vadd.f32 %v10707, %v10755
        %10757 = vmatmul.bf16.gmra.mxu0 %v10033
        %v10758 = vpop.f32.mrf.mxu0
        %v10759 = vadd.f32 %v10710, %v10758
        %v10760 = vpop.f32.mrf.mxu0
        %v10761 = vadd.f32 %v10712, %v10760
        %10762 = vmatmul.bf16.gmra.mxu0 %v10037
        %v10763 = vpop.f32.mrf.mxu0
        %v10764 = vadd.f32 %v10715, %v10763
        %v10765 = vpop.f32.mrf.mxu0
        %v10766 = vadd.f32 %v10717, %v10765
        %10767 = vmatmul.bf16.gmra.mxu0 %v10041
        %v10768 = vpop.f32.mrf.mxu0
        %v10769 = vadd.f32 %v10720, %v10768
        %v10770 = vpop.f32.mrf.mxu0
        %v10771 = vadd.f32 %v10722, %v10770
        %10772 = vmatmul.bf16.gmra.mxu0 %v10045
        %v10773 = vpop.f32.mrf.mxu0
        %v10774 = vadd.f32 %v10725, %v10773
        %v10775 = vpop.f32.mrf.mxu0
        %v10776 = vadd.f32 %v10727, %v10775
        %10777 = vmatmul.bf16.gmra.mxu0 %v10049
        %v10778 = vpop.f32.mrf.mxu0
        %v10779 = vadd.f32 %v10730, %v10778
        %v10780 = vpop.f32.mrf.mxu0
        %v10781 = vadd.f32 %v10732, %v10780
        %10782 = vmatmul.bf16.gmra.mxu0 %v10053
        %v10783 = vpop.f32.mrf.mxu0
        %v10784 = vadd.f32 %v10735, %v10783
        %v10785 = vpop.f32.mrf.mxu0
        %v10786 = vadd.f32 %v10737, %v10785
        %10787 = vdwg.mxu0
        %10788 = vmatpush.bf16.msra.mxu0 %v10380
        %10789 = vmatpush.bf16.msra.mxu0 %v10378
        %10790 = vmatpush.bf16.msra.mxu0 %v10376
        %10791 = vmatpush.bf16.msra.mxu0 %v10374
        %10792 = vmatpush.bf16.msra.mxu0 %v10372
        %10793 = vmatpush.bf16.msra.mxu0 %v10370
        %10794 = vmatpush.bf16.msra.mxu0 %v10368
        %10795 = vmatpush.bf16.msra.mxu0 %v10366
        %10796 = vmatmul.bf16.gmra.mxu0 %v10026
        %v10797 = vpop.f32.mrf.mxu0
        %v10798 = vadd.f32 %v10749, %v10797
        %v10799 = vpop.f32.mrf.mxu0
        %v10800 = vadd.f32 %v10751, %v10799
        %10801 = vmatmul.bf16.gmra.mxu0 %v10030
        %v10802 = vpop.f32.mrf.mxu0
        %v10803 = vadd.f32 %v10754, %v10802
        %v10804 = vpop.f32.mrf.mxu0
        %v10805 = vadd.f32 %v10756, %v10804
        %10806 = vmatmul.bf16.gmra.mxu0 %v10034
        %v10807 = vpop.f32.mrf.mxu0
        %v10808 = vadd.f32 %v10759, %v10807
        %v10809 = vpop.f32.mrf.mxu0
        %v10810 = vadd.f32 %v10761, %v10809
        %10811 = vmatmul.bf16.gmra.mxu0 %v10038
        %v10812 = vpop.f32.mrf.mxu0
        %v10813 = vadd.f32 %v10764, %v10812
        %v10814 = vpop.f32.mrf.mxu0
        %v10815 = vadd.f32 %v10766, %v10814
        %10816 = vmatmul.bf16.gmra.mxu0 %v10042
        %v10817 = vpop.f32.mrf.mxu0
        %v10818 = vadd.f32 %v10769, %v10817
        %v10819 = vpop.f32.mrf.mxu0
        %v10820 = vadd.f32 %v10771, %v10819
        %10821 = vmatmul.bf16.gmra.mxu0 %v10046
        %v10822 = vpop.f32.mrf.mxu0
        %v10823 = vadd.f32 %v10774, %v10822
        %v10824 = vpop.f32.mrf.mxu0
        %v10825 = vadd.f32 %v10776, %v10824
        %10826 = vmatmul.bf16.gmra.mxu0 %v10050
        %v10827 = vpop.f32.mrf.mxu0
        %v10828 = vadd.f32 %v10779, %v10827
        %v10829 = vpop.f32.mrf.mxu0
        %v10830 = vadd.f32 %v10781, %v10829
        %10831 = vmatmul.bf16.gmra.mxu0 %v10054
        %v10832 = vpop.f32.mrf.mxu0
        %v10833 = vadd.f32 %v10784, %v10832
        %v10834 = vpop.f32.mrf.mxu0
        %v10835 = vadd.f32 %v10786, %v10834
        %10836 = vdwg.mxu0
        %vm10837 = vcmp.gt.f32.partialorder %v10602, 0.0
        %vm10838 = vcmp.gt.f32.partialorder %v10798, 0.0
        %vm10839 = vcmp.gt.f32.partialorder %v10604, 0.0
        %vm10840 = vcmp.gt.f32.partialorder %v10800, 0.0
        %vm10841 = vcmp.gt.f32.partialorder %v10607, 0.0
        %vm10842 = vcmp.gt.f32.partialorder %v10803, 0.0
        %vm10843 = vcmp.gt.f32.partialorder %v10609, 0.0
        %vm10844 = vcmp.gt.f32.partialorder %v10805, 0.0
        %vm10845 = vcmp.gt.f32.partialorder %v10612, 0.0
        %vm10846 = vcmp.gt.f32.partialorder %v10808, 0.0
        %vm10847 = vcmp.gt.f32.partialorder %v10614, 0.0
        %vm10848 = vcmp.gt.f32.partialorder %v10810, 0.0
        %vm10849 = vcmp.gt.f32.partialorder %v10617, 0.0
        %vm10850 = vcmp.gt.f32.partialorder %v10813, 0.0
        %vm10851 = vcmp.gt.f32.partialorder %v10619, 0.0
        %vm10852 = vcmp.gt.f32.partialorder %v10815, 0.0
        %vm10853 = vcmp.gt.f32.partialorder %v10622, 0.0
        %vm10854 = vcmp.gt.f32.partialorder %v10818, 0.0
        %vm10855 = vcmp.gt.f32.partialorder %v10624, 0.0
        %vm10856 = vcmp.gt.f32.partialorder %v10820, 0.0
        %vm10857 = vcmp.gt.f32.partialorder %v10627, 0.0
        %vm10858 = vcmp.gt.f32.partialorder %v10823, 0.0
        %vm10859 = vcmp.gt.f32.partialorder %v10629, 0.0
        %vm10860 = vcmp.gt.f32.partialorder %v10825, 0.0
        %vm10861 = vcmp.gt.f32.partialorder %v10632, 0.0
        %vm10862 = vcmp.gt.f32.partialorder %v10828, 0.0
        %vm10863 = vcmp.gt.f32.partialorder %v10634, 0.0
        %vm10864 = vcmp.gt.f32.partialorder %v10830, 0.0
        %vm10865 = vcmp.gt.f32.partialorder %v10637, 0.0
        %vm10866 = vcmp.gt.f32.partialorder %v10833, 0.0
        %vm10867 = vcmp.gt.f32.partialorder %v10639, 0.0
        %vm10868 = vcmp.gt.f32.partialorder %v10835, 0.0
        %v10869 = vmul.f32 %v10602, 0.2
        %v10870 = vmul.f32 %v10798, 0.2
        %v10871 = vmul.f32 %v10604, 0.2
        %v10872 = vmul.f32 %v10800, 0.2
        %v10873 = vmul.f32 %v10607, 0.2
        %v10874 = vmul.f32 %v10803, 0.2
        %v10875 = vmul.f32 %v10609, 0.2
        %v10876 = vmul.f32 %v10805, 0.2
        %v10877 = vmul.f32 %v10612, 0.2
        %v10878 = vmul.f32 %v10808, 0.2
        %v10879 = vmul.f32 %v10614, 0.2
        %v10880 = vmul.f32 %v10810, 0.2
        %v10881 = vmul.f32 %v10617, 0.2
        %v10882 = vmul.f32 %v10813, 0.2
        %v10883 = vmul.f32 %v10619, 0.2
        %v10884 = vmul.f32 %v10815, 0.2
        %v10885 = vmul.f32 %v10622, 0.2
        %v10886 = vmul.f32 %v10818, 0.2
        %v10887 = vmul.f32 %v10624, 0.2
        %v10888 = vmul.f32 %v10820, 0.2
        %v10889 = vmul.f32 %v10627, 0.2
        %v10890 = vmul.f32 %v10823, 0.2
        %v10891 = vmul.f32 %v10629, 0.2
        %v10892 = vmul.f32 %v10825, 0.2
        %v10893 = vmul.f32 %v10632, 0.2
        %v10894 = vmul.f32 %v10828, 0.2
        %v10895 = vmul.f32 %v10634, 0.2
        %v10896 = vmul.f32 %v10830, 0.2
        %v10897 = vmul.f32 %v10637, 0.2
        %v10898 = vmul.f32 %v10833, 0.2
        %v10899 = vmul.f32 %v10639, 0.2
        %v10900 = vmul.f32 %v10835, 0.2
        %v10901 = vsel %vm10837, %v10602, %v10869
        %v10902 = vsel %vm10838, %v10798, %v10870
        %v10903 = vsel %vm10839, %v10604, %v10871
        %v10904 = vsel %vm10840, %v10800, %v10872
        %v10905 = vsel %vm10841, %v10607, %v10873
        %v10906 = vsel %vm10842, %v10803, %v10874
        %v10907 = vsel %vm10843, %v10609, %v10875
        %v10908 = vsel %vm10844, %v10805, %v10876
        %v10909 = vsel %vm10845, %v10612, %v10877
        %v10910 = vsel %vm10846, %v10808, %v10878
        %v10911 = vsel %vm10847, %v10614, %v10879
        %v10912 = vsel %vm10848, %v10810, %v10880
        %v10913 = vsel %vm10849, %v10617, %v10881
        %v10914 = vsel %vm10850, %v10813, %v10882
        %v10915 = vsel %vm10851, %v10619, %v10883
        %v10916 = vsel %vm10852, %v10815, %v10884
        %v10917 = vsel %vm10853, %v10622, %v10885
        %v10918 = vsel %vm10854, %v10818, %v10886
        %v10919 = vsel %vm10855, %v10624, %v10887
        %v10920 = vsel %vm10856, %v10820, %v10888
        %v10921 = vsel %vm10857, %v10627, %v10889
        %v10922 = vsel %vm10858, %v10823, %v10890
        %v10923 = vsel %vm10859, %v10629, %v10891
        %v10924 = vsel %vm10860, %v10825, %v10892
        %v10925 = vsel %vm10861, %v10632, %v10893
        %v10926 = vsel %vm10862, %v10828, %v10894
        %v10927 = vsel %vm10863, %v10634, %v10895
        %v10928 = vsel %vm10864, %v10830, %v10896
        %v10929 = vsel %vm10865, %v10637, %v10897
        %v10930 = vsel %vm10866, %v10833, %v10898
        %v10931 = vsel %vm10867, %v10639, %v10899
        %v10932 = vsel %vm10868, %v10835, %v10900
        %v10933 = vld [vmem:[#allocation14] sm:$0x3]
        %v10935 = vperm.slane %v10933, 0
        %v10936 = vperm.slane %v10933, 1
        %v10939 = vmul.f32 %v10901, %v10935
        %v10940 = vmul.f32 %v10902, %v10936
        %v10941 = vmul.f32 %v10903, %v10935
        %v10942 = vmul.f32 %v10904, %v10936
        %v10943 = vmul.f32 %v10905, %v10935
        %v10944 = vmul.f32 %v10906, %v10936
        %v10945 = vmul.f32 %v10907, %v10935
        %v10946 = vmul.f32 %v10908, %v10936
        %v10947 = vmul.f32 %v10909, %v10935
        %v10948 = vmul.f32 %v10910, %v10936
        %v10949 = vmul.f32 %v10911, %v10935
        %v10950 = vmul.f32 %v10912, %v10936
        %v10951 = vmul.f32 %v10913, %v10935
        %v10952 = vmul.f32 %v10914, %v10936
        %v10953 = vmul.f32 %v10915, %v10935
        %v10954 = vmul.f32 %v10916, %v10936
        %v10955 = vmul.f32 %v10917, %v10935
        %v10956 = vmul.f32 %v10918, %v10936
        %v10957 = vmul.f32 %v10919, %v10935
        %v10958 = vmul.f32 %v10920, %v10936
        %v10959 = vmul.f32 %v10921, %v10935
        %v10960 = vmul.f32 %v10922, %v10936
        %v10961 = vmul.f32 %v10923, %v10935
        %v10962 = vmul.f32 %v10924, %v10936
        %v10963 = vmul.f32 %v10925, %v10935
        %v10964 = vmul.f32 %v10926, %v10936
        %v10965 = vmul.f32 %v10927, %v10935
        %v10966 = vmul.f32 %v10928, %v10936
        %v10967 = vmul.f32 %v10929, %v10935
        %v10968 = vmul.f32 %v10930, %v10936
        %v10969 = vmul.f32 %v10931, %v10935
        %v10970 = vmul.f32 %v10932, %v10936
        %v10971 = vadd.f32 %v10939, %v10940
        %10972 = vadd.xlane.f32.xlu0 %v10971
        %v10973 = vpop.xlane.xlu0 %10972
        %v10974 = vadd.f32 %v10941, %v10942
        %10975 = vadd.xlane.f32.xlu0 %v10974
        %v10976 = vpop.xlane.xlu0 %10975
        %v10977 = vadd.f32 %v10943, %v10944
        %10978 = vadd.xlane.f32.xlu0 %v10977
        %v10979 = vpop.xlane.xlu0 %10978
        %v10980 = vadd.f32 %v10945, %v10946
        %10981 = vadd.xlane.f32.xlu0 %v10980
        %v10982 = vpop.xlane.xlu0 %10981
        %v10983 = vadd.f32 %v10947, %v10948
        %10984 = vadd.xlane.f32.xlu0 %v10983
        %v10985 = vpop.xlane.xlu0 %10984
        %v10986 = vadd.f32 %v10949, %v10950
        %10987 = vadd.xlane.f32.xlu0 %v10986
        %v10988 = vpop.xlane.xlu0 %10987
        %v10989 = vadd.f32 %v10951, %v10952
        %10990 = vadd.xlane.f32.xlu0 %v10989
        %v10991 = vpop.xlane.xlu0 %10990
        %v10992 = vadd.f32 %v10953, %v10954
        %10993 = vadd.xlane.f32.xlu0 %v10992
        %v10994 = vpop.xlane.xlu0 %10993
        %v10995 = vadd.f32 %v10955, %v10956
        %10996 = vadd.xlane.f32.xlu0 %v10995
        %v10997 = vpop.xlane.xlu0 %10996
        %v10998 = vadd.f32 %v10957, %v10958
        %10999 = vadd.xlane.f32.xlu0 %v10998
        %v11000 = vpop.xlane.xlu0 %10999
        %v11001 = vadd.f32 %v10959, %v10960
        %11002 = vadd.xlane.f32.xlu0 %v11001
        %v11003 = vpop.xlane.xlu0 %11002
        %v11004 = vadd.f32 %v10961, %v10962
        %11005 = vadd.xlane.f32.xlu0 %v11004
        %v11006 = vpop.xlane.xlu0 %11005
        %v11007 = vadd.f32 %v10963, %v10964
        %11008 = vadd.xlane.f32.xlu0 %v11007
        %v11009 = vpop.xlane.xlu0 %11008
        %v11010 = vadd.f32 %v10965, %v10966
        %11011 = vadd.xlane.f32.xlu0 %v11010
        %v11012 = vpop.xlane.xlu0 %11011
        %v11013 = vadd.f32 %v10967, %v10968
        %11014 = vadd.xlane.f32.xlu0 %v11013
        %v11015 = vpop.xlane.xlu0 %11014
        %v11016 = vadd.f32 %v10969, %v10970
        %11017 = vadd.xlane.f32.xlu0 %v11016
        %v11018 = vpop.xlane.xlu0 %11017
        %s11019 = sld [smem:[#allocation2]]
        %v11020 = vstv %s11019
        %v11021 = vadd.f32 %v10973, %v11020
        %v11022 = vadd.f32 %v10976, %v11020
        %v11023 = vadd.f32 %v10979, %v11020
        %v11024 = vadd.f32 %v10982, %v11020
        %v11025 = vadd.f32 %v10985, %v11020
        %v11026 = vadd.f32 %v10988, %v11020
        %v11027 = vadd.f32 %v10991, %v11020
        %v11028 = vadd.f32 %v10994, %v11020
        %v11029 = vadd.f32 %v10997, %v11020
        %v11030 = vadd.f32 %v11000, %v11020
        %v11031 = vadd.f32 %v11003, %v11020
        %v11032 = vadd.f32 %v11006, %v11020
        %v11033 = vadd.f32 %v11009, %v11020
        %v11034 = vadd.f32 %v11012, %v11020
        %v11035 = vadd.f32 %v11015, %v11020
        %v11036 = vadd.f32 %v11018, %v11020
        %v11037 = vsub.f32 0.0, %v11021
        %v11038 = vsub.f32 0.0, %v11022
        %v11039 = vsub.f32 0.0, %v11023
        %v11040 = vsub.f32 0.0, %v11024
        %v11041 = vsub.f32 0.0, %v11025
        %v11042 = vsub.f32 0.0, %v11026
        %v11043 = vsub.f32 0.0, %v11027
        %v11044 = vsub.f32 0.0, %v11028
        %v11045 = vsub.f32 0.0, %v11029
        %v11046 = vsub.f32 0.0, %v11030
        %v11047 = vsub.f32 0.0, %v11031
        %v11048 = vsub.f32 0.0, %v11032
        %v11049 = vsub.f32 0.0, %v11033
        %v11050 = vsub.f32 0.0, %v11034
        %v11051 = vsub.f32 0.0, %v11035
        %v11052 = vsub.f32 0.0, %v11036
        %v11053 = vmul.f32 %v11037, 1.442695
        %v11054 = vpow.pop %v11053
        %v11055 = vmul.f32 %v11038, 1.442695
        %v11056 = vpow.pop %v11055
        %v11057 = vmul.f32 %v11039, 1.442695
        %v11058 = vpow.pop %v11057
        %v11059 = vmul.f32 %v11040, 1.442695
        %v11060 = vpow.pop %v11059
        %v11061 = vmul.f32 %v11041, 1.442695
        %v11062 = vpow.pop %v11061
        %v11063 = vmul.f32 %v11042, 1.442695
        %v11064 = vpow.pop %v11063
        %v11065 = vmul.f32 %v11043, 1.442695
        %v11066 = vpow.pop %v11065
        %v11067 = vmul.f32 %v11044, 1.442695
        %v11068 = vpow.pop %v11067
        %v11069 = vmul.f32 %v11045, 1.442695
        %v11070 = vpow.pop %v11069
        %v11071 = vmul.f32 %v11046, 1.442695
        %v11072 = vpow.pop %v11071
        %v11073 = vmul.f32 %v11047, 1.442695
        %v11074 = vpow.pop %v11073
        %v11075 = vmul.f32 %v11048, 1.442695
        %v11076 = vpow.pop %v11075
        %v11077 = vmul.f32 %v11049, 1.442695
        %v11078 = vpow.pop %v11077
        %v11079 = vmul.f32 %v11050, 1.442695
        %v11080 = vpow.pop %v11079
        %v11081 = vmul.f32 %v11051, 1.442695
        %v11082 = vpow.pop %v11081
        %v11083 = vmul.f32 %v11052, 1.442695
        %v11084 = vpow.pop %v11083
        %v11085 = vadd.f32 %v11054, 1.0
        %v11086 = vadd.f32 %v11056, 1.0
        %v11087 = vadd.f32 %v11058, 1.0
        %v11088 = vadd.f32 %v11060, 1.0
        %v11089 = vadd.f32 %v11062, 1.0
        %v11090 = vadd.f32 %v11064, 1.0
        %v11091 = vadd.f32 %v11066, 1.0
        %v11092 = vadd.f32 %v11068, 1.0
        %v11093 = vadd.f32 %v11070, 1.0
        %v11094 = vadd.f32 %v11072, 1.0
        %v11095 = vadd.f32 %v11074, 1.0
        %v11096 = vadd.f32 %v11076, 1.0
        %v11097 = vadd.f32 %v11078, 1.0
        %v11098 = vadd.f32 %v11080, 1.0
        %v11099 = vadd.f32 %v11082, 1.0
        %v11100 = vadd.f32 %v11084, 1.0
        %v11101 = vrcp.pop %v11085
        %v11102 = vrcp.pop %v11086
        %v11103 = vrcp.pop %v11087
        %v11104 = vrcp.pop %v11088
        %v11105 = vrcp.pop %v11089
        %v11106 = vrcp.pop %v11090
        %v11107 = vrcp.pop %v11091
        %v11108 = vrcp.pop %v11092
        %v11109 = vrcp.pop %v11093
        %v11110 = vrcp.pop %v11094
        %v11111 = vrcp.pop %v11095
        %v11112 = vrcp.pop %v11096
        %v11113 = vrcp.pop %v11097
        %v11114 = vrcp.pop %v11098
        %v11115 = vrcp.pop %v11099
        %v11116 = vrcp.pop %v11100
        %vm11117 = vcmask 7168
        %11118 = vst.msk [vmem:[%s465] sm:$0xff] %vm11117, %v11101
        %11119 = vst.msk [vmem:[%s465 + $0x8] sm:$0xff] %vm11117, %v11102
        %11120 = vst.msk [vmem:[%s465 + $0x10] sm:$0xff] %vm11117, %v11103
        %11121 = vst.msk [vmem:[%s465 + $0x18] sm:$0xff] %vm11117, %v11104
        %11122 = vst.msk [vmem:[%s465 + $0x20] sm:$0xff] %vm11117, %v11105
        %11123 = vst.msk [vmem:[%s465 + $0x28] sm:$0xff] %vm11117, %v11106
        %11124 = vst.msk [vmem:[%s465 + $0x30] sm:$0xff] %vm11117, %v11107
        %11125 = vst.msk [vmem:[%s465 + $0x38] sm:$0xff] %vm11117, %v11108
        %11126 = vst.msk [vmem:[%s465 + $0x40] sm:$0xff] %vm11117, %v11109
        %11127 = vst.msk [vmem:[%s465 + $0x48] sm:$0xff] %vm11117, %v11110
        %11128 = vst.msk [vmem:[%s465 + $0x50] sm:$0xff] %vm11117, %v11111
        %11129 = vst.msk [vmem:[%s465 + $0x58] sm:$0xff] %vm11117, %v11112
        %11130 = vst.msk [vmem:[%s465 + $0x60] sm:$0xff] %vm11117, %v11113
        %11131 = vst.msk [vmem:[%s465 + $0x68] sm:$0xff] %vm11117, %v11114
        %11132 = vst.msk [vmem:[%s465 + $0x70] sm:$0xff] %vm11117, %v11115
        %11133 = vst.msk [vmem:[%s465 + $0x78] sm:$0xff] %vm11117, %v11116
        %s11134 = smul.u32 16, %s28
        %p11135 = scmp.lt.s32.totalorder %s11134, 31
        %s11136 = scalar_select %p11135, %s11134, 31
        %s11137 = smul.addr %s11136, 8
        %s11138 = scalar_lea.vmem %s9, %s11137
        // Predicated region
        $region89: #{tpu_custom_call.1} parent=55 // pred_check
          %p11139 = pneg %p240
        $region90: #{tpu_custom_call.1} parent=55 // pred_check_branch
          %11141 = sbr.rel (%p11139) target = $region92
        $region91: #{tpu_custom_call.1} parent=55 // pred_region
          %s11142 = smul.u32 16, %s28
        $region92: #{tpu_custom_call.1} parent=55 // pred_fallthru
          _
      $region56: #{tpu_custom_call.1} parent=5 // pred_fallthru
        _
      %p11143 = scmp.le.s32.totalorder 2, %s23
      // Predicated region
      $region93: #{tpu_custom_call.1} parent=5 // pred_check
        %p11144 = pneg %p11143
      $region94: #{tpu_custom_call.1} parent=5 // pred_check_branch
        %11146 = sbr.rel (%p11144) target = $region96
      $region95: #{tpu_custom_call.1} parent=5 // pred_region
        %s11147 = ssub.s32 %s23, 2
        // Predicated region
        $region97: #{tpu_custom_call.1} parent=95 // pred_check
          %p11148 = pneg %p246
        $region98: #{tpu_custom_call.1} parent=95 // pred_check_branch
          %11150 = sbr.rel (%p11148) target = $region100
        $region99: #{tpu_custom_call.1} parent=95 // pred_region
          %s11151 = smul.u32 16, %s29
          %p11152 = scmp.lt.s32.totalorder %s11151, 31
          %s11153 = scalar_select %p11152, %s11151, 31
          %s11154 = smul.addr %s11153, 8
          %s11155 = scalar_lea.vmem %s9, %s11154
        $region100: #{tpu_custom_call.1} parent=95 // pred_fallthru
          _
      $region96: #{tpu_custom_call.1} parent=5 // pred_fallthru
        _
    $region6: #{tpu_custom_call.1} parent=1 // loop_footer
      %s27 = sadd.s32 1, %s23
    $region7: #{tpu_custom_call.1} parent=1 // loop_footer_branch
      %22 = sbr.rel target = $region3
    $region8: #{tpu_custom_call.1} parent=1 // loop_exit
      _
    %11156 = vsyncpa [#allocation4], 1
    %s11157 = scalar_lea.sflag [#allocation4], 1
    %11158 = vsyncpa %s11157, 1
    %11159 = vsyncpa [#allocation6], 1
    %11160 = vsyncpa [#allocation9], 1
    %11161 = vsyncpa [#allocation12], 1
    %11162 = vsyncpa [#allocation15], 1

</llo_original>
